<compile_context>
chip_gen: v7x
topology: tpu7x:2x2x1
jax: 0.10.0
libtpu: 0.0.40
codegen_flags: <defaults>
</compile_context>

<pallas_src>
import functools
import math

import jax
import jax.numpy as jnp
from jax.experimental import pallas as pl
from jax.experimental.pallas import tpu as pltpu


# ----------------------------------------------------------------------------
# small in-kernel helpers
# ----------------------------------------------------------------------------
def _leaky(x, ns):
    return jnp.where(x >= 0, x, ns * x)


def _inorm(x, eps, inv_n):
    # InstanceNorm1d (affine=False): normalize over time per (batch, channel).
    # One-pass statistics: sum and sum-of-squares together (halves XLU reductions).
    s1 = jnp.sum(x, axis=0, keepdims=True)
    s2 = jnp.sum(x * x, axis=0, keepdims=True)
    mean = s1 * inv_n
    var = jnp.maximum(s2 * inv_n - mean * mean, 0.0)
    return (x - mean) * jax.lax.rsqrt(var + eps)


def _const_spec(a):
    nd = a.ndim
    return pl.BlockSpec(a.shape, lambda i, _nd=nd: (0,) * _nd)


# ----------------------------------------------------------------------------
# Kernel 1 ("trunk"): conv bank + concat + leaky + conv2 + leaky + InstanceNorm1
#                     + 3x (conv5/leaky, conv5/leaky, InstanceNorm, residual)
#                     + 2x (dense/leaky, dense/leaky, InstanceNorm, residual)
# ----------------------------------------------------------------------------
def _trunk_kernel(x_ref, w1_ref, b1_ref, w2_ref, b2_ref, w5_ref, b5_ref,
                  wd_ref, bd_ref, o_ref, *, T, C, ns, eps):
    inv_t = 1.0 / T
    x = x_ref[0]                                           # (T, C) f32, C = 128
    xh = x.astype(jnp.bfloat16)

    # ---- conv bank (k = 1..7) + concat + leaky + conv2 (1x1 over concat) ----
    # reflect pad (3, 3) along time, built once in VMEM (bf16):
    xp = jnp.concatenate(
        [xh[3:4], xh[2:3], xh[1:2], xh, xh[T - 2:T - 1], xh[T - 3:T - 2], xh[T - 4:T - 3]],
        axis=0)                                            # (T+6, C)
    # ONE shared im2col slab; branches slice lane-aligned 128-multiples (free views).
    X7 = jnp.concatenate([xp[m:m + T, :] for m in range(7)], axis=1)   # (T, 7C)
    b1 = b1_ref[...]                                       # (7, C) f32

    acc = jnp.zeros((T, C), jnp.float32)
    off = 0
    for k in range(1, 8):                                  # branch with kernel size k
        start = 3 - k // 2                                 # matches pad_layer() offsets
        xc = X7[:, start * C:(start + k) * C]              # (T, k*C) lane-aligned view
        wk = w1_ref[off * C:(off + k) * C, :]              # (k*C, C) bf16
        br = jnp.dot(xc, wk, preferred_element_type=jnp.float32) + b1[k - 1:k, :]
        br = _leaky(br, ns).astype(jnp.bfloat16)           # leaky applied post-cat in torch
        acc = acc + jnp.dot(br, w2_ref[(k - 1) * C:k * C, :],
                            preferred_element_type=jnp.float32)
        off += k
    # the raw-x slice of the concat through conv2
    xb = _leaky(x, ns).astype(jnp.bfloat16)
    acc = acc + jnp.dot(xb, w2_ref[7 * C:8 * C, :], preferred_element_type=jnp.float32)
    acc = _leaky(acc + b2_ref[...], ns)                    # conv2 bias + leaky
    v = _inorm(acc, eps, inv_t)                            # ins_norm1 (+dropout = id)

    # ---- residual conv blocks (K = 5) and dense blocks (K = 1) ----
    b5 = b5_ref[...]                                       # (6, C)
    bd = bd_ref[...]                                       # (4, C)

    def conv5_act(u, w, b):
        uh = u.astype(jnp.bfloat16)
        up = jnp.concatenate(                               # reflect pad (2, 2)
            [uh[2:3], uh[1:2], uh, uh[T - 2:T - 1], uh[T - 3:T - 2]], axis=0)  # (T+4, C)
        xc = jnp.concatenate([up[m:m + T, :] for m in range(5)], axis=1)       # (T, 5C)
        return _leaky(jnp.dot(xc, w, preferred_element_type=jnp.float32) + b, ns)

    def dense_act(u, w, b):
        return _leaky(jnp.dot(u.astype(jnp.bfloat16), w,
                              preferred_element_type=jnp.float32) + b, ns)

    for i in range(3):                                     # conv3/4, conv5/6, conv7/8
        t = conv5_act(v, w5_ref[2 * i], b5[2 * i:2 * i + 1, :])
        t = conv5_act(t, w5_ref[2 * i + 1], b5[2 * i + 1:2 * i + 2, :])
        v = v + _inorm(t, eps, inv_t)                      # norm + residual
    for i in range(2):                                     # dense1/2, dense3/4
        t = dense_act(v, wd_ref[2 * i], bd[2 * i:2 * i + 1, :])
        t = dense_act(t, wd_ref[2 * i + 1], bd[2 * i + 1:2 * i + 2, :])
        v = v + _inorm(t, eps, inv_t)                      # norm + residual

    o_ref[0] = v.astype(o_ref.dtype)                       # bf16 boundary activation


def _trunk_call(x, tp, ns, eps=1e-5):
    B, T, C = x.shape
    assert T >= 5, "reflect padding of the conv bank needs T >= 5"
    kernel = functools.partial(_trunk_kernel, T=T, C=C, ns=ns, eps=eps)
    return pl.pallas_call(
        kernel,
        out_shape=jax.ShapeDtypeStruct((B, T, C), jnp.bfloat16),
        grid=(B,),
        in_specs=[
            pl.BlockSpec((1, T, C), lambda i: (i, 0, 0)),
            _const_spec(tp["w1"]), _const_spec(tp["b1"]),
            _const_spec(tp["w2"]), _const_spec(tp["b2"]),
            _const_spec(tp["w5"]), _const_spec(tp["b5"]),
            _const_spec(tp["wd"]), _const_spec(tp["bd"]),
        ],
        out_specs=pl.BlockSpec((1, T, C), lambda i: (i, 0, 0)),
        compiler_params=pltpu.CompilerParams(dimension_semantics=("parallel",)),
    )(x, tp["w1"], tp["b1"], tp["w2"], tp["b2"],
      tp["w5"], tp["b5"], tp["wd"], tp["bd"])


# ----------------------------------------------------------------------------
# Kernel 2: fused bidirectional LSTM (recurrence over the BATCH axis, as in the
#           original torch code) + final Linear + leaky (batched, lane-dense).
# ----------------------------------------------------------------------------
def _bilstm_kernel(v_ref, wihf_ref, whhf_ref, bf_ref, wihb_ref, whhb_ref, bb_ref,
                   wlin_ref, blin_ref, o_ref,
                   hf, cf, hb, cb, gxf, gxb, hf_all, hb_all,
                   *, L, N, H, C, CO, ns):
    # Hoisted input projection: one big MXU matmul per direction (bias folded in).
    v2d = v_ref[...].reshape(L * N, C)                      # bf16
    gxf[...] = (jnp.dot(v2d, wihf_ref[...], preferred_element_type=jnp.float32)
                + bf_ref[...]).reshape(L, N, 4 * H)
    gxb[...] = (jnp.dot(v2d, wihb_ref[...], preferred_element_type=jnp.float32)
                + bb_ref[...]).reshape(L, N, 4 * H)

    hf[...] = jnp.zeros(hf.shape, jnp.float32)
    cf[...] = jnp.zeros(cf.shape, jnp.float32)
    hb[...] = jnp.zeros(hb.shape, jnp.float32)
    cb[...] = jnp.zeros(cb.shape, jnp.float32)

    def sigmoid(g):                                         # exact (recurrence-critical)
        return 1.0 / (1.0 + jnp.exp(-g))

    def cell(gx, h_scr, c_scr, whh_ref):
        g = gx + jnp.dot(h_scr[...].astype(jnp.bfloat16), whh_ref[...],
                         preferred_element_type=jnp.float32)
        i = sigmoid(g[:, 0:H])
        f = sigmoid(g[:, H:2 * H])
        gg = jnp.tanh(g[:, 2 * H:3 * H])
        o = sigmoid(g[:, 3 * H:4 * H])
        c = f * c_scr[...] + i * gg
        h = o * jnp.tanh(c)
        c_scr[...] = c
        h_scr[...] = h
        return h

    def step(s, carry):
        # forward direction at position s, backward at L-1-s (interleaved)
        hf_all[s] = cell(gxf[s], hf, cf, whhf_ref)
        sb = L - 1 - s
        hb_all[sb] = cell(gxb[sb], hb, cb, whhb_ref)
        return carry

    # L = B is static and small -> fully unrolled for LLO cross-step scheduling.
    jax.lax.fori_loop(0, L, step, 0, unroll=True)

    # Batched epilogue: final Linear over [v | h_fwd | h_bwd] + leaky, one lane-dense
    # (CO = 128) store; the wrapper slices back to 64 channels.
    y = (jnp.dot(v2d, wlin_ref[0:C, :], preferred_element_type=jnp.float32)
         + jnp.dot(hf_all[...].reshape(L * N, H).astype(jnp.bfloat16),
                   wlin_ref[C:C + H, :], preferred_element_type=jnp.float32)
         + jnp.dot(hb_all[...].reshape(L * N, H).astype(jnp.bfloat16),
                   wlin_ref[C + H:C + 2 * H, :], preferred_element_type=jnp.float32)
         + blin_ref[...])
    o_ref[...] = _leaky(y, ns).reshape(L, N, CO).astype(o_ref.dtype)


def _bilstm_linear_call(v, lstm_f, lstm_b, linear, ns):
    L, N, C = v.shape
    wihf, whhf, bf = lstm_f
    wihb, whhb, bb = lstm_b
    wlin, blin = linear
    H = whhf.shape[0]
    CO = wlin.shape[1]
    kernel = functools.partial(_bilstm_kernel, L=L, N=N, H=H, C=C, CO=CO, ns=ns)
    return pl.pallas_call(
        kernel,
        out_shape=jax.ShapeDtypeStruct((L, N, CO), jnp.float32),
        grid=(1,),
        in_specs=[
            pl.BlockSpec((L, N, C), lambda i: (0, 0, 0)),
            _const_spec(wihf), _const_spec(whhf), _const_spec(bf),
            _const_spec(wihb), _const_spec(whhb), _const_spec(bb),
            _const_spec(wlin), _const_spec(blin),
        ],
        out_specs=pl.BlockSpec((L, N, CO), lambda i: (0, 0, 0)),
        scratch_shapes=[
            pltpu.VMEM((N, H), jnp.float32),          # h_f
            pltpu.VMEM((N, H), jnp.float32),          # c_f
            pltpu.VMEM((N, H), jnp.float32),          # h_b
            pltpu.VMEM((N, H), jnp.float32),          # c_b
            pltpu.VMEM((L, N, 4 * H), jnp.float32),   # precomputed input gates, fwd
            pltpu.VMEM((L, N, 4 * H), jnp.float32),   # precomputed input gates, bwd
            pltpu.VMEM((L, N, H), jnp.float32),       # all forward hidden states
            pltpu.VMEM((L, N, H), jnp.float32),       # all backward hidden states
        ],
        compiler_params=pltpu.CompilerParams(dimension_semantics=("arbitrary",)),
    )(v, wihf, whhf, bf, wihb, whhb, bb, wlin, blin)


# ----------------------------------------------------------------------------
# Parameter construction (torch-equivalent layouts) and packing for the kernels
# ----------------------------------------------------------------------------
def init_params(key, c_in=80, c_h1=128, c_h2=64, c_h3=128):
    keys = iter(jax.random.split(key, 64))

    def U(shape, fan_in):
        bound = 1.0 / math.sqrt(fan_in)
        return jax.random.uniform(next(keys), shape, jnp.float32, -bound, bound)

    p = {}
    # conv1s: kernel sizes 1..7, c_in -> c_h1; weights stored as (K, Cin, Cout)
    p["conv1s"] = [(U((k, c_in, c_h1), c_in * k), U((c_h1,), c_in * k))
                   for k in range(1, 8)]
    c_cat = 7 * c_h1 + c_in
    p["conv2"] = (U((1, c_cat, c_h2), c_cat), U((c_h2,), c_cat))
    for name in ["conv3", "conv4", "conv5", "conv6", "conv7", "conv8"]:
        p[name] = (U((5, c_h2, c_h2), 5 * c_h2), U((c_h2,), 5 * c_h2))
    for name in ["dense1", "dense2", "dense3", "dense4"]:
        p[name] = (U((1, c_h2, c_h2), c_h2), U((c_h2,), c_h2))
    H = c_h3
    for d in ["f", "b"]:
        p["lstm_" + d] = (U((c_h2, 4 * H), H),    # W_ih^T
                          U((H, 4 * H), H),        # W_hh^T
                          U((4 * H,), H),          # b_ih
                          U((4 * H,), H))          # b_hh
    p["linear"] = (U((c_h2 + 2 * c_h3, c_h2), c_h2 + 2 * c_h3),
                   U((c_h2,), c_h2 + 2 * c_h3))
    return p


def _pad_axis(a, axis, size):
    if a.shape[axis] == size:
        return a
    pads = [(0, 0)] * a.ndim
    pads[axis] = (0, size - a.shape[axis])
    return jnp.pad(a, pads)


def prepare_params(raw, c_in=80, c_h1=128, c_h2=64, c_h3=128):
    """Pad channels to a lane-dense 128, flatten conv taps for deep-K contraction,
    pre-cast matmul weights to bf16 (biases stay fp32)."""
    C = 128
    pp = {}

    # --- fused bank + conv2 ---
    w1_parts, b1_parts = [], []
    for k in range(1, 8):
        w, b = raw["conv1s"][k - 1]                         # (k, c_in, 128), (128,)
        w = _pad_axis(w, 1, C)                              # zero-pad input chans
        w1_parts.append(w.reshape(k * C, c_h1))
        b1_parts.append(b)
    w2, b2 = raw["conv2"]
    w2 = w2[0]                                              # (7*128 + 80, 64)
    w2_parts = [w2[i * c_h1:(i + 1) * c_h1] for i in range(7)]
    w2_parts.append(_pad_axis(w2[7 * c_h1:], 0, C))         # x-slice, pad 80 -> 128
    w2p = _pad_axis(jnp.concatenate(w2_parts, axis=0), 1, C)  # pad out chans 64 -> 128
    trunk = dict(
        w1=jnp.concatenate(w1_parts, axis=0).astype(jnp.bfloat16),  # (3584, 128)
        b1=jnp.stack(b1_parts, axis=0),                             # (7, 128)
        w2=w2p.astype(jnp.bfloat16),                                # (1024, 128)
        b2=_pad_axis(b2, 0, C).reshape(1, C),
    )

    # --- K=5 residual conv blocks: conv3..conv8 stacked ---
    w5s, b5s = [], []
    for name in ["conv3", "conv4", "conv5", "conv6", "conv7", "conv8"]:
        w, b = raw[name]                                    # (5, 64, 64), (64,)
        w = _pad_axis(_pad_axis(w, 1, C), 2, C)             # (5, 128, 128)
        w5s.append(w.reshape(5 * C, C))
        b5s.append(_pad_axis(b, 0, C))
    trunk["w5"] = jnp.stack(w5s, axis=0).astype(jnp.bfloat16)   # (6, 640, 128)
    trunk["b5"] = jnp.stack(b5s, axis=0)                        # (6, 128)

    # --- K=1 dense blocks: dense1..dense4 stacked ---
    wds, bds = [], []
    for name in ["dense1", "dense2", "dense3", "dense4"]:
        w, b = raw[name]                                    # (1, 64, 64), (64,)
        wds.append(_pad_axis(_pad_axis(w[0], 0, C), 1, C))  # (128, 128)
        bds.append(_pad_axis(b, 0, C))
    trunk["wd"] = jnp.stack(wds, axis=0).astype(jnp.bfloat16)   # (4, 128, 128)
    trunk["bd"] = jnp.stack(bds, axis=0)                        # (4, 128)
    pp["trunk"] = trunk

    # --- bi-LSTM + final linear ---
    H = c_h3

    def pack_lstm(d):
        wih_t, whh_t, bih, bhh = raw["lstm_" + d]
        return (_pad_axis(wih_t, 0, C).astype(jnp.bfloat16),    # (128, 4H)
                whh_t.astype(jnp.bfloat16),                     # (H, 4H)
                (bih + bhh).reshape(1, 4 * H))                  # combined bias
    pp["lstm_f"] = pack_lstm("f")
    pp["lstm_b"] = pack_lstm("b")

    wl, bl = raw["linear"]                                  # (64 + 2H, 64), (64,)
    wlin = jnp.concatenate([_pad_axis(wl[:c_h2], 0, C),     # v part (pad 64 -> 128)
                            wl[c_h2:c_h2 + H],              # h_forward part
                            wl[c_h2 + H:]], axis=0)         # h_backward part
    wlin = _pad_axis(wlin, 1, C)                            # lane-dense output 64 -> 128
    pp["linear"] = (wlin.astype(jnp.bfloat16),              # (384, 128)
                    _pad_axis(bl, 0, C).reshape(1, C))
    return pp


# ----------------------------------------------------------------------------
# Forward pass
# ----------------------------------------------------------------------------
def encoder_forward(x, pp, ns=0.2, c_out=64):
    """x: (B, T, c_in) channels-last.  Returns (B, T, c_h2), matching torch output."""
    # zero-pad input channels to a lane-dense 128 once (zeros stay zero everywhere)
    x = _pad_axis(x, 2, 128)
    v = _trunk_call(x, pp["trunk"], ns)                     # bank + conv2 + all blocks
    out = _bilstm_linear_call(v, pp["lstm_f"], pp["lstm_b"], pp["linear"], ns)
    return out[:, :, :c_out]                                # drop lane padding -> (B, T, 64)


# TODO(synk): nn.Dropout layers are implemented as identity (eval-mode semantics).

if __name__ == "__main__":
    key = jax.random.PRNGKey(0)
    pk, xk = jax.random.split(key)
    raw = init_params(pk)
    params = prepare_params(raw)

    B, T, C_IN = 2, 16, 80                                  # torch input would be (2, 80, 16)
    x = jax.random.normal(xk, (B, T, C_IN), jnp.float32)

    fwd = jax.jit(encoder_forward)
    out = jax.block_until_ready(fwd(x, params))
    assert out.shape == (B, T, 64), out.shape
    assert bool(jnp.all(jnp.isfinite(out)))
    print("KERNEL_OK")
</pallas_src>

<mosaic_0001>
module attributes {stable_mosaic.version = 11 : i64} {
  func.func @_bilstm_kernel(%arg0: i32, %arg1: memref<2x16x128xbf16, #tpu.memory_space<vmem>>, %arg2: memref<128x512xbf16, #tpu.memory_space<vmem>>, %arg3: memref<128x512xbf16, #tpu.memory_space<vmem>>, %arg4: memref<1x512xf32, #tpu.memory_space<vmem>>, %arg5: memref<128x512xbf16, #tpu.memory_space<vmem>>, %arg6: memref<128x512xbf16, #tpu.memory_space<vmem>>, %arg7: memref<1x512xf32, #tpu.memory_space<vmem>>, %arg8: memref<384x128xbf16, #tpu.memory_space<vmem>>, %arg9: memref<1x128xf32, #tpu.memory_space<vmem>>, %arg10: memref<2x16x128xf32, #tpu.memory_space<vmem>>, %arg11: memref<16x128xf32, #tpu.memory_space<vmem>>, %arg12: memref<16x128xf32, #tpu.memory_space<vmem>>, %arg13: memref<16x128xf32, #tpu.memory_space<vmem>>, %arg14: memref<16x128xf32, #tpu.memory_space<vmem>>, %arg15: memref<2x16x512xf32, #tpu.memory_space<vmem>>, %arg16: memref<2x16x512xf32, #tpu.memory_space<vmem>>, %arg17: memref<2x16x128xf32, #tpu.memory_space<vmem>>, %arg18: memref<2x16x128xf32, #tpu.memory_space<vmem>>) attributes {dimension_semantics = [#tpu.dimension_semantics<arbitrary>], iteration_bounds = array<i64: 1>, scalar_prefetch = 0 : i64, scratch_operands = 8 : i64, tpu.core_type = #tpu.core_type<tc>, window_params = [{pipeline_mode = #tpu.pipeline_mode<synchronous>, transform_indices = @transform_0, window_bounds = array<i64: 2, 16, 128>}, {pipeline_mode = #tpu.pipeline_mode<synchronous>, transform_indices = @transform_1, window_bounds = array<i64: 128, 512>}, {pipeline_mode = #tpu.pipeline_mode<synchronous>, transform_indices = @transform_2, window_bounds = array<i64: 128, 512>}, {pipeline_mode = #tpu.pipeline_mode<synchronous>, transform_indices = @transform_3, window_bounds = array<i64: 1, 512>}, {pipeline_mode = #tpu.pipeline_mode<synchronous>, transform_indices = @transform_4, window_bounds = array<i64: 128, 512>}, {pipeline_mode = #tpu.pipeline_mode<synchronous>, transform_indices = @transform_5, window_bounds = array<i64: 128, 512>}, {pipeline_mode = #tpu.pipeline_mode<synchronous>, transform_indices = @transform_6, window_bounds = array<i64: 1, 512>}, {pipeline_mode = #tpu.pipeline_mode<synchronous>, transform_indices = @transform_7, window_bounds = array<i64: 384, 128>}, {pipeline_mode = #tpu.pipeline_mode<synchronous>, transform_indices = @transform_8, window_bounds = array<i64: 1, 128>}, {pipeline_mode = #tpu.pipeline_mode<synchronous>, transform_indices = @transform_9, window_bounds = array<i64: 2, 16, 128>}]} {
    %c0 = arith.constant 0 : index
    %c0_0 = arith.constant 0 : index
    %c0_1 = arith.constant 0 : index
    %0 = vector.load %arg1[%c0, %c0_0, %c0_1] : memref<2x16x128xbf16, #tpu.memory_space<vmem>>, vector<2x16x128xbf16>
    %1 = vector.shape_cast %0 : vector<2x16x128xbf16> to vector<32x128xbf16>
    %c0_2 = arith.constant 0 : index
    %c0_3 = arith.constant 0 : index
    %2 = vector.load %arg2[%c0_2, %c0_3] : memref<128x512xbf16, #tpu.memory_space<vmem>>, vector<128x512xbf16>
    %cst = arith.constant dense<0.000000e+00> : vector<32x512xf32>
    %3 = tpu.matmul %1, %2, %cst {dimension_numbers = #tpu.dot_dimension_numbers<[1], [0], [0], [1], [0, 0, 1, 1], [], []>} : vector<32x128xbf16>, vector<128x512xbf16>, vector<32x512xf32> -> vector<32x512xf32>
    %c0_4 = arith.constant 0 : index
    %c0_5 = arith.constant 0 : index
    %4 = vector.load %arg4[%c0_4, %c0_5] : memref<1x512xf32, #tpu.memory_space<vmem>>, vector<1x512xf32>
    %5 = vector.broadcast %4 : vector<1x512xf32> to vector<32x512xf32>
    %6 = arith.addf %3, %5 : vector<32x512xf32>
    %7 = vector.shape_cast %6 : vector<32x512xf32> to vector<2x16x512xf32>
    %c0_6 = arith.constant 0 : index
    %c0_7 = arith.constant 0 : index
    %c0_8 = arith.constant 0 : index
    %8 = vector.load %arg15[%c0_6, %c0_7, %c0_8] : memref<2x16x512xf32, #tpu.memory_space<vmem>>, vector<2x16x512xf32>
    tpu.vector_store %arg15[%c0_6, %c0_7, %c0_8], %7 {strides = array<i32>} : memref<2x16x512xf32, #tpu.memory_space<vmem>>, vector<2x16x512xf32>,
    %c0_9 = arith.constant 0 : index
    %c0_10 = arith.constant 0 : index
    %9 = vector.load %arg5[%c0_9, %c0_10] : memref<128x512xbf16, #tpu.memory_space<vmem>>, vector<128x512xbf16>
    %cst_11 = arith.constant dense<0.000000e+00> : vector<32x512xf32>
    %10 = tpu.matmul %1, %9, %cst_11 {dimension_numbers = #tpu.dot_dimension_numbers<[1], [0], [0], [1], [0, 0, 1, 1], [], []>} : vector<32x128xbf16>, vector<128x512xbf16>, vector<32x512xf32> -> vector<32x512xf32>
    %c0_12 = arith.constant 0 : index
    %c0_13 = arith.constant 0 : index
    %11 = vector.load %arg7[%c0_12, %c0_13] : memref<1x512xf32, #tpu.memory_space<vmem>>, vector<1x512xf32>
    %12 = vector.broadcast %11 : vector<1x512xf32> to vector<32x512xf32>
    %13 = arith.addf %10, %12 : vector<32x512xf32>
    %14 = vector.shape_cast %13 : vector<32x512xf32> to vector<2x16x512xf32>
    %c0_14 = arith.constant 0 : index
    %c0_15 = arith.constant 0 : index
    %c0_16 = arith.constant 0 : index
    %15 = vector.load %arg16[%c0_14, %c0_15, %c0_16] : memref<2x16x512xf32, #tpu.memory_space<vmem>>, vector<2x16x512xf32>
    tpu.vector_store %arg16[%c0_14, %c0_15, %c0_16], %14 {strides = array<i32>} : memref<2x16x512xf32, #tpu.memory_space<vmem>>, vector<2x16x512xf32>,
    %cst_17 = arith.constant 0.000000e+00 : f32
    %16 = vector.broadcast %cst_17 : f32 to vector<16x128xf32>
    %c0_18 = arith.constant 0 : index
    %c0_19 = arith.constant 0 : index
    %17 = vector.load %arg11[%c0_18, %c0_19] : memref<16x128xf32, #tpu.memory_space<vmem>>, vector<16x128xf32>
    tpu.vector_store %arg11[%c0_18, %c0_19], %16 {strides = array<i32>} : memref<16x128xf32, #tpu.memory_space<vmem>>, vector<16x128xf32>,
    %cst_20 = arith.constant 0.000000e+00 : f32
    %18 = vector.broadcast %cst_20 : f32 to vector<16x128xf32>
    %c0_21 = arith.constant 0 : index
    %c0_22 = arith.constant 0 : index
    %19 = vector.load %arg12[%c0_21, %c0_22] : memref<16x128xf32, #tpu.memory_space<vmem>>, vector<16x128xf32>
    tpu.vector_store %arg12[%c0_21, %c0_22], %18 {strides = array<i32>} : memref<16x128xf32, #tpu.memory_space<vmem>>, vector<16x128xf32>,
    %cst_23 = arith.constant 0.000000e+00 : f32
    %20 = vector.broadcast %cst_23 : f32 to vector<16x128xf32>
    %c0_24 = arith.constant 0 : index
    %c0_25 = arith.constant 0 : index
    %21 = vector.load %arg13[%c0_24, %c0_25] : memref<16x128xf32, #tpu.memory_space<vmem>>, vector<16x128xf32>
    tpu.vector_store %arg13[%c0_24, %c0_25], %20 {strides = array<i32>} : memref<16x128xf32, #tpu.memory_space<vmem>>, vector<16x128xf32>,
    %cst_26 = arith.constant 0.000000e+00 : f32
    %22 = vector.broadcast %cst_26 : f32 to vector<16x128xf32>
    %c0_27 = arith.constant 0 : index
    %c0_28 = arith.constant 0 : index
    %23 = vector.load %arg14[%c0_27, %c0_28] : memref<16x128xf32, #tpu.memory_space<vmem>>, vector<16x128xf32>
    tpu.vector_store %arg14[%c0_27, %c0_28], %22 {strides = array<i32>} : memref<16x128xf32, #tpu.memory_space<vmem>>, vector<16x128xf32>,
    %c0_i32 = arith.constant 0 : i32
    %24 = arith.index_cast %c0_i32 : i32 to index
    %c0_29 = arith.constant 0 : index
    %c0_30 = arith.constant 0 : index
    %25 = vector.load %arg15[%24, %c0_29, %c0_30] : memref<2x16x512xf32, #tpu.memory_space<vmem>>, vector<1x16x512xf32>
    %26 = vector.shape_cast %25 : vector<1x16x512xf32> to vector<16x512xf32>
    %c0_31 = arith.constant 0 : index
    %c0_32 = arith.constant 0 : index
    %27 = vector.load %arg11[%c0_31, %c0_32] : memref<16x128xf32, #tpu.memory_space<vmem>>, vector<16x128xf32>
    %28 = arith.truncf %27 : vector<16x128xf32> to vector<16x128xbf16>
    %c0_33 = arith.constant 0 : index
    %c0_34 = arith.constant 0 : index
    %29 = vector.load %arg3[%c0_33, %c0_34] : memref<128x512xbf16, #tpu.memory_space<vmem>>, vector<128x512xbf16>
    %cst_35 = arith.constant dense<0.000000e+00> : vector<16x512xf32>
    %30 = tpu.matmul %28, %29, %cst_35 {dimension_numbers = #tpu.dot_dimension_numbers<[1], [0], [0], [1], [0, 0, 1, 1], [], []>} : vector<16x128xbf16>, vector<128x512xbf16>, vector<16x512xf32> -> vector<16x512xf32>
    %31 = arith.addf %26, %30 : vector<16x512xf32>
    %32 = vector.extract_strided_slice %31 {offsets = [0, 0], sizes = [16, 128], strides = [1, 1]} : vector<16x512xf32> to vector<16x128xf32>
    %cst_36 = arith.constant 0.000000e+00 : f32
    %33 = vector.broadcast %cst_36 : f32 to vector<16x128xf32>
    %34 = arith.subf %33, %32 : vector<16x128xf32>
    %35 = math.exp %34 : vector<16x128xf32>
    %cst_37 = arith.constant 1.000000e+00 : f32
    %36 = vector.broadcast %cst_37 : f32 to vector<16x128xf32>
    %37 = arith.addf %36, %35 : vector<16x128xf32>
    %cst_38 = arith.constant 1.000000e+00 : f32
    %38 = vector.broadcast %cst_38 : f32 to vector<16x128xf32>
    %39 = arith.divf %38, %37 : vector<16x128xf32>
    %40 = vector.extract_strided_slice %31 {offsets = [0, 128], sizes = [16, 128], strides = [1, 1]} : vector<16x512xf32> to vector<16x128xf32>
    %cst_39 = arith.constant 0.000000e+00 : f32
    %41 = vector.broadcast %cst_39 : f32 to vector<16x128xf32>
    %42 = arith.subf %41, %40 : vector<16x128xf32>
    %43 = math.exp %42 : vector<16x128xf32>
    %cst_40 = arith.constant 1.000000e+00 : f32
    %44 = vector.broadcast %cst_40 : f32 to vector<16x128xf32>
    %45 = arith.addf %44, %43 : vector<16x128xf32>
    %cst_41 = arith.constant 1.000000e+00 : f32
    %46 = vector.broadcast %cst_41 : f32 to vector<16x128xf32>
    %47 = arith.divf %46, %45 : vector<16x128xf32>
    %48 = vector.extract_strided_slice %31 {offsets = [0, 256], sizes = [16, 128], strides = [1, 1]} : vector<16x512xf32> to vector<16x128xf32>
    %49 = math.tanh %48 : vector<16x128xf32>
    %50 = vector.extract_strided_slice %31 {offsets = [0, 384], sizes = [16, 128], strides = [1, 1]} : vector<16x512xf32> to vector<16x128xf32>
    %cst_42 = arith.constant 0.000000e+00 : f32
    %51 = vector.broadcast %cst_42 : f32 to vector<16x128xf32>
    %52 = arith.subf %51, %50 : vector<16x128xf32>
    %53 = math.exp %52 : vector<16x128xf32>
    %cst_43 = arith.constant 1.000000e+00 : f32
    %54 = vector.broadcast %cst_43 : f32 to vector<16x128xf32>
    %55 = arith.addf %54, %53 : vector<16x128xf32>
    %cst_44 = arith.constant 1.000000e+00 : f32
    %56 = vector.broadcast %cst_44 : f32 to vector<16x128xf32>
    %57 = arith.divf %56, %55 : vector<16x128xf32>
    %c0_45 = arith.constant 0 : index
    %c0_46 = arith.constant 0 : index
    %58 = vector.load %arg12[%c0_45, %c0_46] : memref<16x128xf32, #tpu.memory_space<vmem>>, vector<16x128xf32>
    %59 = arith.mulf %47, %58 : vector<16x128xf32>
    %60 = arith.mulf %39, %49 : vector<16x128xf32>
    %61 = arith.addf %59, %60 : vector<16x128xf32>
    %62 = math.tanh %61 : vector<16x128xf32>
    %63 = arith.mulf %57, %62 : vector<16x128xf32>
    %c0_47 = arith.constant 0 : index
    %c0_48 = arith.constant 0 : index
    %64 = vector.load %arg12[%c0_47, %c0_48] : memref<16x128xf32, #tpu.memory_space<vmem>>, vector<16x128xf32>
    tpu.vector_store %arg12[%c0_47, %c0_48], %61 {strides = array<i32>} : memref<16x128xf32, #tpu.memory_space<vmem>>, vector<16x128xf32>,
    %c0_49 = arith.constant 0 : index
    %c0_50 = arith.constant 0 : index
    %65 = vector.load %arg11[%c0_49, %c0_50] : memref<16x128xf32, #tpu.memory_space<vmem>>, vector<16x128xf32>
    tpu.vector_store %arg11[%c0_49, %c0_50], %63 {strides = array<i32>} : memref<16x128xf32, #tpu.memory_space<vmem>>, vector<16x128xf32>,
    %66 = arith.index_cast %c0_i32 : i32 to index
    %c0_51 = arith.constant 0 : index
    %c0_52 = arith.constant 0 : index
    %67 = vector.load %arg17[%66, %c0_51, %c0_52] : memref<2x16x128xf32, #tpu.memory_space<vmem>>, vector<1x16x128xf32>
    %68 = vector.shape_cast %67 : vector<1x16x128xf32> to vector<16x128xf32>
    %69 = vector.shape_cast %63 : vector<16x128xf32> to vector<1x16x128xf32>
    tpu.vector_store %arg17[%66, %c0_51, %c0_52], %69 {strides = array<i32>} : memref<2x16x128xf32, #tpu.memory_space<vmem>>, vector<1x16x128xf32>,
    %c1_i32 = arith.constant 1 : i32
    %70 = arith.subi %c1_i32, %c0_i32 : i32
    %71 = arith.index_cast %70 : i32 to index
    %c0_53 = arith.constant 0 : index
    %c0_54 = arith.constant 0 : index
    %72 = vector.load %arg16[%71, %c0_53, %c0_54] : memref<2x16x512xf32, #tpu.memory_space<vmem>>, vector<1x16x512xf32>
    %73 = vector.shape_cast %72 : vector<1x16x512xf32> to vector<16x512xf32>
    %c0_55 = arith.constant 0 : index
    %c0_56 = arith.constant 0 : index
    %74 = vector.load %arg13[%c0_55, %c0_56] : memref<16x128xf32, #tpu.memory_space<vmem>>, vector<16x128xf32>
    %75 = arith.truncf %74 : vector<16x128xf32> to vector<16x128xbf16>
    %c0_57 = arith.constant 0 : index
    %c0_58 = arith.constant 0 : index
    %76 = vector.load %arg6[%c0_57, %c0_58] : memref<128x512xbf16, #tpu.memory_space<vmem>>, vector<128x512xbf16>
    %cst_59 = arith.constant dense<0.000000e+00> : vector<16x512xf32>
    %77 = tpu.matmul %75, %76, %cst_59 {dimension_numbers = #tpu.dot_dimension_numbers<[1], [0], [0], [1], [0, 0, 1, 1], [], []>} : vector<16x128xbf16>, vector<128x512xbf16>, vector<16x512xf32> -> vector<16x512xf32>
    %78 = arith.addf %73, %77 : vector<16x512xf32>
    %79 = vector.extract_strided_slice %78 {offsets = [0, 0], sizes = [16, 128], strides = [1, 1]} : vector<16x512xf32> to vector<16x128xf32>
    %cst_60 = arith.constant 0.000000e+00 : f32
    %80 = vector.broadcast %cst_60 : f32 to vector<16x128xf32>
    %81 = arith.subf %80, %79 : vector<16x128xf32>
    %82 = math.exp %81 : vector<16x128xf32>
    %cst_61 = arith.constant 1.000000e+00 : f32
    %83 = vector.broadcast %cst_61 : f32 to vector<16x128xf32>
    %84 = arith.addf %83, %82 : vector<16x128xf32>
    %cst_62 = arith.constant 1.000000e+00 : f32
    %85 = vector.broadcast %cst_62 : f32 to vector<16x128xf32>
    %86 = arith.divf %85, %84 : vector<16x128xf32>
    %87 = vector.extract_strided_slice %78 {offsets = [0, 128], sizes = [16, 128], strides = [1, 1]} : vector<16x512xf32> to vector<16x128xf32>
    %cst_63 = arith.constant 0.000000e+00 : f32
    %88 = vector.broadcast %cst_63 : f32 to vector<16x128xf32>
    %89 = arith.subf %88, %87 : vector<16x128xf32>
    %90 = math.exp %89 : vector<16x128xf32>
    %cst_64 = arith.constant 1.000000e+00 : f32
    %91 = vector.broadcast %cst_64 : f32 to vector<16x128xf32>
    %92 = arith.addf %91, %90 : vector<16x128xf32>
    %cst_65 = arith.constant 1.000000e+00 : f32
    %93 = vector.broadcast %cst_65 : f32 to vector<16x128xf32>
    %94 = arith.divf %93, %92 : vector<16x128xf32>
    %95 = vector.extract_strided_slice %78 {offsets = [0, 256], sizes = [16, 128], strides = [1, 1]} : vector<16x512xf32> to vector<16x128xf32>
    %96 = math.tanh %95 : vector<16x128xf32>
    %97 = vector.extract_strided_slice %78 {offsets = [0, 384], sizes = [16, 128], strides = [1, 1]} : vector<16x512xf32> to vector<16x128xf32>
    %cst_66 = arith.constant 0.000000e+00 : f32
    %98 = vector.broadcast %cst_66 : f32 to vector<16x128xf32>
    %99 = arith.subf %98, %97 : vector<16x128xf32>
    %100 = math.exp %99 : vector<16x128xf32>
    %cst_67 = arith.constant 1.000000e+00 : f32
    %101 = vector.broadcast %cst_67 : f32 to vector<16x128xf32>
    %102 = arith.addf %101, %100 : vector<16x128xf32>
    %cst_68 = arith.constant 1.000000e+00 : f32
    %103 = vector.broadcast %cst_68 : f32 to vector<16x128xf32>
    %104 = arith.divf %103, %102 : vector<16x128xf32>
    %c0_69 = arith.constant 0 : index
    %c0_70 = arith.constant 0 : index
    %105 = vector.load %arg14[%c0_69, %c0_70] : memref<16x128xf32, #tpu.memory_space<vmem>>, vector<16x128xf32>
    %106 = arith.mulf %94, %105 : vector<16x128xf32>
    %107 = arith.mulf %86, %96 : vector<16x128xf32>
    %108 = arith.addf %106, %107 : vector<16x128xf32>
    %109 = math.tanh %108 : vector<16x128xf32>
    %110 = arith.mulf %104, %109 : vector<16x128xf32>
    %c0_71 = arith.constant 0 : index
    %c0_72 = arith.constant 0 : index
    %111 = vector.load %arg14[%c0_71, %c0_72] : memref<16x128xf32, #tpu.memory_space<vmem>>, vector<16x128xf32>
    tpu.vector_store %arg14[%c0_71, %c0_72], %108 {strides = array<i32>} : memref<16x128xf32, #tpu.memory_space<vmem>>, vector<16x128xf32>,
    %c0_73 = arith.constant 0 : index
    %c0_74 = arith.constant 0 : index
    %112 = vector.load %arg13[%c0_73, %c0_74] : memref<16x128xf32, #tpu.memory_space<vmem>>, vector<16x128xf32>
    tpu.vector_store %arg13[%c0_73, %c0_74], %110 {strides = array<i32>} : memref<16x128xf32, #tpu.memory_space<vmem>>, vector<16x128xf32>,
    %113 = arith.index_cast %70 : i32 to index
    %c0_75 = arith.constant 0 : index
    %c0_76 = arith.constant 0 : index
    %114 = vector.load %arg18[%113, %c0_75, %c0_76] : memref<2x16x128xf32, #tpu.memory_space<vmem>>, vector<1x16x128xf32>
    %115 = vector.shape_cast %114 : vector<1x16x128xf32> to vector<16x128xf32>
    %116 = vector.shape_cast %110 : vector<16x128xf32> to vector<1x16x128xf32>
    tpu.vector_store %arg18[%113, %c0_75, %c0_76], %116 {strides = array<i32>} : memref<2x16x128xf32, #tpu.memory_space<vmem>>, vector<1x16x128xf32>,
    %c1_i32_77 = arith.constant 1 : i32
    %117 = arith.index_cast %c1_i32_77 : i32 to index
    %c0_78 = arith.constant 0 : index
    %c0_79 = arith.constant 0 : index
    %118 = vector.load %arg15[%117, %c0_78, %c0_79] : memref<2x16x512xf32, #tpu.memory_space<vmem>>, vector<1x16x512xf32>
    %119 = vector.shape_cast %118 : vector<1x16x512xf32> to vector<16x512xf32>
    %c0_80 = arith.constant 0 : index
    %c0_81 = arith.constant 0 : index
    %120 = vector.load %arg11[%c0_80, %c0_81] : memref<16x128xf32, #tpu.memory_space<vmem>>, vector<16x128xf32>
    %121 = arith.truncf %120 : vector<16x128xf32> to vector<16x128xbf16>
    %c0_82 = arith.constant 0 : index
    %c0_83 = arith.constant 0 : index
    %122 = vector.load %arg3[%c0_82, %c0_83] : memref<128x512xbf16, #tpu.memory_space<vmem>>, vector<128x512xbf16>
    %cst_84 = arith.constant dense<0.000000e+00> : vector<16x512xf32>
    %123 = tpu.matmul %121, %122, %cst_84 {dimension_numbers = #tpu.dot_dimension_numbers<[1], [0], [0], [1], [0, 0, 1, 1], [], []>} : vector<16x128xbf16>, vector<128x512xbf16>, vector<16x512xf32> -> vector<16x512xf32>
    %124 = arith.addf %119, %123 : vector<16x512xf32>
    %125 = vector.extract_strided_slice %124 {offsets = [0, 0], sizes = [16, 128], strides = [1, 1]} : vector<16x512xf32> to vector<16x128xf32>
    %cst_85 = arith.constant 0.000000e+00 : f32
    %126 = vector.broadcast %cst_85 : f32 to vector<16x128xf32>
    %127 = arith.subf %126, %125 : vector<16x128xf32>
    %128 = math.exp %127 : vector<16x128xf32>
    %cst_86 = arith.constant 1.000000e+00 : f32
    %129 = vector.broadcast %cst_86 : f32 to vector<16x128xf32>
    %130 = arith.addf %129, %128 : vector<16x128xf32>
    %cst_87 = arith.constant 1.000000e+00 : f32
    %131 = vector.broadcast %cst_87 : f32 to vector<16x128xf32>
    %132 = arith.divf %131, %130 : vector<16x128xf32>
    %133 = vector.extract_strided_slice %124 {offsets = [0, 128], sizes = [16, 128], strides = [1, 1]} : vector<16x512xf32> to vector<16x128xf32>
    %cst_88 = arith.constant 0.000000e+00 : f32
    %134 = vector.broadcast %cst_88 : f32 to vector<16x128xf32>
    %135 = arith.subf %134, %133 : vector<16x128xf32>
    %136 = math.exp %135 : vector<16x128xf32>
    %cst_89 = arith.constant 1.000000e+00 : f32
    %137 = vector.broadcast %cst_89 : f32 to vector<16x128xf32>
    %138 = arith.addf %137, %136 : vector<16x128xf32>
    %cst_90 = arith.constant 1.000000e+00 : f32
    %139 = vector.broadcast %cst_90 : f32 to vector<16x128xf32>
    %140 = arith.divf %139, %138 : vector<16x128xf32>
    %141 = vector.extract_strided_slice %124 {offsets = [0, 256], sizes = [16, 128], strides = [1, 1]} : vector<16x512xf32> to vector<16x128xf32>
    %142 = math.tanh %141 : vector<16x128xf32>
    %143 = vector.extract_strided_slice %124 {offsets = [0, 384], sizes = [16, 128], strides = [1, 1]} : vector<16x512xf32> to vector<16x128xf32>
    %cst_91 = arith.constant 0.000000e+00 : f32
    %144 = vector.broadcast %cst_91 : f32 to vector<16x128xf32>
    %145 = arith.subf %144, %143 : vector<16x128xf32>
    %146 = math.exp %145 : vector<16x128xf32>
    %cst_92 = arith.constant 1.000000e+00 : f32
    %147 = vector.broadcast %cst_92 : f32 to vector<16x128xf32>
    %148 = arith.addf %147, %146 : vector<16x128xf32>
    %cst_93 = arith.constant 1.000000e+00 : f32
    %149 = vector.broadcast %cst_93 : f32 to vector<16x128xf32>
    %150 = arith.divf %149, %148 : vector<16x128xf32>
    %c0_94 = arith.constant 0 : index
    %c0_95 = arith.constant 0 : index
    %151 = vector.load %arg12[%c0_94, %c0_95] : memref<16x128xf32, #tpu.memory_space<vmem>>, vector<16x128xf32>
    %152 = arith.mulf %140, %151 : vector<16x128xf32>
    %153 = arith.mulf %132, %142 : vector<16x128xf32>
    %154 = arith.addf %152, %153 : vector<16x128xf32>
    %155 = math.tanh %154 : vector<16x128xf32>
    %156 = arith.mulf %150, %155 : vector<16x128xf32>
    %c0_96 = arith.constant 0 : index
    %c0_97 = arith.constant 0 : index
    %157 = vector.load %arg12[%c0_96, %c0_97] : memref<16x128xf32, #tpu.memory_space<vmem>>, vector<16x128xf32>
    tpu.vector_store %arg12[%c0_96, %c0_97], %154 {strides = array<i32>} : memref<16x128xf32, #tpu.memory_space<vmem>>, vector<16x128xf32>,
    %c0_98 = arith.constant 0 : index
    %c0_99 = arith.constant 0 : index
    %158 = vector.load %arg11[%c0_98, %c0_99] : memref<16x128xf32, #tpu.memory_space<vmem>>, vector<16x128xf32>
    tpu.vector_store %arg11[%c0_98, %c0_99], %156 {strides = array<i32>} : memref<16x128xf32, #tpu.memory_space<vmem>>, vector<16x128xf32>,
    %159 = arith.index_cast %c1_i32_77 : i32 to index
    %c0_100 = arith.constant 0 : index
    %c0_101 = arith.constant 0 : index
    %160 = vector.load %arg17[%159, %c0_100, %c0_101] : memref<2x16x128xf32, #tpu.memory_space<vmem>>, vector<1x16x128xf32>
    %161 = vector.shape_cast %160 : vector<1x16x128xf32> to vector<16x128xf32>
    %162 = vector.shape_cast %156 : vector<16x128xf32> to vector<1x16x128xf32>
    tpu.vector_store %arg17[%159, %c0_100, %c0_101], %162 {strides = array<i32>} : memref<2x16x128xf32, #tpu.memory_space<vmem>>, vector<1x16x128xf32>,
    %c1_i32_102 = arith.constant 1 : i32
    %163 = arith.subi %c1_i32_102, %c1_i32_77 : i32
    %164 = arith.index_cast %163 : i32 to index
    %c0_103 = arith.constant 0 : index
    %c0_104 = arith.constant 0 : index
    %165 = vector.load %arg16[%164, %c0_103, %c0_104] : memref<2x16x512xf32, #tpu.memory_space<vmem>>, vector<1x16x512xf32>
    %166 = vector.shape_cast %165 : vector<1x16x512xf32> to vector<16x512xf32>
    %c0_105 = arith.constant 0 : index
    %c0_106 = arith.constant 0 : index
    %167 = vector.load %arg13[%c0_105, %c0_106] : memref<16x128xf32, #tpu.memory_space<vmem>>, vector<16x128xf32>
    %168 = arith.truncf %167 : vector<16x128xf32> to vector<16x128xbf16>
    %c0_107 = arith.constant 0 : index
    %c0_108 = arith.constant 0 : index
    %169 = vector.load %arg6[%c0_107, %c0_108] : memref<128x512xbf16, #tpu.memory_space<vmem>>, vector<128x512xbf16>
    %cst_109 = arith.constant dense<0.000000e+00> : vector<16x512xf32>
    %170 = tpu.matmul %168, %169, %cst_109 {dimension_numbers = #tpu.dot_dimension_numbers<[1], [0], [0], [1], [0, 0, 1, 1], [], []>} : vector<16x128xbf16>, vector<128x512xbf16>, vector<16x512xf32> -> vector<16x512xf32>
    %171 = arith.addf %166, %170 : vector<16x512xf32>
    %172 = vector.extract_strided_slice %171 {offsets = [0, 0], sizes = [16, 128], strides = [1, 1]} : vector<16x512xf32> to vector<16x128xf32>
    %cst_110 = arith.constant 0.000000e+00 : f32
    %173 = vector.broadcast %cst_110 : f32 to vector<16x128xf32>
    %174 = arith.subf %173, %172 : vector<16x128xf32>
    %175 = math.exp %174 : vector<16x128xf32>
    %cst_111 = arith.constant 1.000000e+00 : f32
    %176 = vector.broadcast %cst_111 : f32 to vector<16x128xf32>
    %177 = arith.addf %176, %175 : vector<16x128xf32>
    %cst_112 = arith.constant 1.000000e+00 : f32
    %178 = vector.broadcast %cst_112 : f32 to vector<16x128xf32>
    %179 = arith.divf %178, %177 : vector<16x128xf32>
    %180 = vector.extract_strided_slice %171 {offsets = [0, 128], sizes = [16, 128], strides = [1, 1]} : vector<16x512xf32> to vector<16x128xf32>
    %cst_113 = arith.constant 0.000000e+00 : f32
    %181 = vector.broadcast %cst_113 : f32 to vector<16x128xf32>
    %182 = arith.subf %181, %180 : vector<16x128xf32>
    %183 = math.exp %182 : vector<16x128xf32>
    %cst_114 = arith.constant 1.000000e+00 : f32
    %184 = vector.broadcast %cst_114 : f32 to vector<16x128xf32>
    %185 = arith.addf %184, %183 : vector<16x128xf32>
    %cst_115 = arith.constant 1.000000e+00 : f32
    %186 = vector.broadcast %cst_115 : f32 to vector<16x128xf32>
    %187 = arith.divf %186, %185 : vector<16x128xf32>
    %188 = vector.extract_strided_slice %171 {offsets = [0, 256], sizes = [16, 128], strides = [1, 1]} : vector<16x512xf32> to vector<16x128xf32>
    %189 = math.tanh %188 : vector<16x128xf32>
    %190 = vector.extract_strided_slice %171 {offsets = [0, 384], sizes = [16, 128], strides = [1, 1]} : vector<16x512xf32> to vector<16x128xf32>
    %cst_116 = arith.constant 0.000000e+00 : f32
    %191 = vector.broadcast %cst_116 : f32 to vector<16x128xf32>
    %192 = arith.subf %191, %190 : vector<16x128xf32>
    %193 = math.exp %192 : vector<16x128xf32>
    %cst_117 = arith.constant 1.000000e+00 : f32
    %194 = vector.broadcast %cst_117 : f32 to vector<16x128xf32>
    %195 = arith.addf %194, %193 : vector<16x128xf32>
    %cst_118 = arith.constant 1.000000e+00 : f32
    %196 = vector.broadcast %cst_118 : f32 to vector<16x128xf32>
    %197 = arith.divf %196, %195 : vector<16x128xf32>
    %c0_119 = arith.constant 0 : index
    %c0_120 = arith.constant 0 : index
    %198 = vector.load %arg14[%c0_119, %c0_120] : memref<16x128xf32, #tpu.memory_space<vmem>>, vector<16x128xf32>
    %199 = arith.mulf %187, %198 : vector<16x128xf32>
    %200 = arith.mulf %179, %189 : vector<16x128xf32>
    %201 = arith.addf %199, %200 : vector<16x128xf32>
    %202 = math.tanh %201 : vector<16x128xf32>
    %203 = arith.mulf %197, %202 : vector<16x128xf32>
    %c0_121 = arith.constant 0 : index
    %c0_122 = arith.constant 0 : index
    %204 = vector.load %arg14[%c0_121, %c0_122] : memref<16x128xf32, #tpu.memory_space<vmem>>, vector<16x128xf32>
    tpu.vector_store %arg14[%c0_121, %c0_122], %201 {strides = array<i32>} : memref<16x128xf32, #tpu.memory_space<vmem>>, vector<16x128xf32>,
    %c0_123 = arith.constant 0 : index
    %c0_124 = arith.constant 0 : index
    %205 = vector.load %arg13[%c0_123, %c0_124] : memref<16x128xf32, #tpu.memory_space<vmem>>, vector<16x128xf32>
    tpu.vector_store %arg13[%c0_123, %c0_124], %203 {strides = array<i32>} : memref<16x128xf32, #tpu.memory_space<vmem>>, vector<16x128xf32>,
    %206 = arith.index_cast %163 : i32 to index
    %c0_125 = arith.constant 0 : index
    %c0_126 = arith.constant 0 : index
    %207 = vector.load %arg18[%206, %c0_125, %c0_126] : memref<2x16x128xf32, #tpu.memory_space<vmem>>, vector<1x16x128xf32>
    %208 = vector.shape_cast %207 : vector<1x16x128xf32> to vector<16x128xf32>
    %209 = vector.shape_cast %203 : vector<16x128xf32> to vector<1x16x128xf32>
    tpu.vector_store %arg18[%206, %c0_125, %c0_126], %209 {strides = array<i32>} : memref<2x16x128xf32, #tpu.memory_space<vmem>>, vector<1x16x128xf32>,
    %c2_i32 = arith.constant 2 : i32
    %c0_127 = arith.constant 0 : index
    %c0_128 = arith.constant 0 : index
    %210 = vector.load %arg8[%c0_127, %c0_128] : memref<384x128xbf16, #tpu.memory_space<vmem>>, vector<128x128xbf16>
    %cst_129 = arith.constant dense<0.000000e+00> : vector<32x128xf32>
    %211 = tpu.matmul %1, %210, %cst_129 {dimension_numbers = #tpu.dot_dimension_numbers<[1], [0], [0], [1], [0, 0, 1, 1], [], []>} : vector<32x128xbf16>, vector<128x128xbf16>, vector<32x128xf32> -> vector<32x128xf32>
    %c0_130 = arith.constant 0 : index
    %c0_131 = arith.constant 0 : index
    %c0_132 = arith.constant 0 : index
    %212 = vector.load %arg17[%c0_130, %c0_131, %c0_132] : memref<2x16x128xf32, #tpu.memory_space<vmem>>, vector<2x16x128xf32>
    %213 = vector.shape_cast %212 : vector<2x16x128xf32> to vector<32x128xf32>
    %214 = arith.truncf %213 : vector<32x128xf32> to vector<32x128xbf16>
    %c128 = arith.constant 128 : index
    %c0_133 = arith.constant 0 : index
    %215 = vector.load %arg8[%c128, %c0_133] : memref<384x128xbf16, #tpu.memory_space<vmem>>, vector<128x128xbf16>
    %cst_134 = arith.constant dense<0.000000e+00> : vector<32x128xf32>
    %216 = tpu.matmul %214, %215, %cst_134 {dimension_numbers = #tpu.dot_dimension_numbers<[1], [0], [0], [1], [0, 0, 1, 1], [], []>} : vector<32x128xbf16>, vector<128x128xbf16>, vector<32x128xf32> -> vector<32x128xf32>
    %217 = arith.addf %211, %216 : vector<32x128xf32>
    %c0_135 = arith.constant 0 : index
    %c0_136 = arith.constant 0 : index
    %c0_137 = arith.constant 0 : index
    %218 = vector.load %arg18[%c0_135, %c0_136, %c0_137] : memref<2x16x128xf32, #tpu.memory_space<vmem>>, vector<2x16x128xf32>
    %219 = vector.shape_cast %218 : vector<2x16x128xf32> to vector<32x128xf32>
    %220 = arith.truncf %219 : vector<32x128xf32> to vector<32x128xbf16>
    %c256 = arith.constant 256 : index
    %c0_138 = arith.constant 0 : index
    %221 = vector.load %arg8[%c256, %c0_138] : memref<384x128xbf16, #tpu.memory_space<vmem>>, vector<128x128xbf16>
    %cst_139 = arith.constant dense<0.000000e+00> : vector<32x128xf32>
    %222 = tpu.matmul %220, %221, %cst_139 {dimension_numbers = #tpu.dot_dimension_numbers<[1], [0], [0], [1], [0, 0, 1, 1], [], []>} : vector<32x128xbf16>, vector<128x128xbf16>, vector<32x128xf32> -> vector<32x128xf32>
    %223 = arith.addf %217, %222 : vector<32x128xf32>
    %c0_140 = arith.constant 0 : index
    %c0_141 = arith.constant 0 : index
    %224 = vector.load %arg9[%c0_140, %c0_141] : memref<1x128xf32, #tpu.memory_space<vmem>>, vector<1x128xf32>
    %225 = vector.broadcast %224 : vector<1x128xf32> to vector<32x128xf32>
    %226 = arith.addf %223, %225 : vector<32x128xf32>
    %cst_142 = arith.constant 0.000000e+00 : f32
    %227 = vector.broadcast %cst_142 : f32 to vector<32x128xf32>
    %228 = arith.cmpf oge, %226, %227 : vector<32x128xf32>
    %cst_143 = arith.constant 2.000000e-01 : f32
    %229 = vector.broadcast %cst_143 : f32 to vector<32x128xf32>
    %230 = arith.mulf %229, %226 : vector<32x128xf32>
    %231 = arith.select %228, %226, %230 : vector<32x128xi1>, vector<32x128xf32>
    %232 = vector.shape_cast %231 : vector<32x128xf32> to vector<2x16x128xf32>
    %c0_144 = arith.constant 0 : index
    %c0_145 = arith.constant 0 : index
    %c0_146 = arith.constant 0 : index
    %233 = vector.load %arg10[%c0_144, %c0_145, %c0_146] : memref<2x16x128xf32, #tpu.memory_space<vmem>>, vector<2x16x128xf32>
    tpu.vector_store %arg10[%c0_144, %c0_145, %c0_146], %232 {strides = array<i32>} : memref<2x16x128xf32, #tpu.memory_space<vmem>>, vector<2x16x128xf32>,
    return
  }
  func.func @transform_0(%arg0: i32) -> (i32, i32, i32) {
    %c0_i32 = arith.constant 0 : i32
    %c0_i32_0 = arith.constant 0 : i32
    %c0_i32_1 = arith.constant 0 : i32
    %c0_i32_2 = arith.constant 0 : i32
    return %c0_i32, %c0_i32_0, %c0_i32_1 : i32, i32, i32
  }
  func.func @transform_1(%arg0: i32) -> (i32, i32) {
    %c0_i32 = arith.constant 0 : i32
    %c0_i32_0 = arith.constant 0 : i32
    %c0_i32_1 = arith.constant 0 : i32
    return %c0_i32, %c0_i32_0 : i32, i32
  }
  func.func @transform_2(%arg0: i32) -> (i32, i32) {
    %c0_i32 = arith.constant 0 : i32
    %c0_i32_0 = arith.constant 0 : i32
    %c0_i32_1 = arith.constant 0 : i32
    return %c0_i32, %c0_i32_0 : i32, i32
  }
  func.func @transform_3(%arg0: i32) -> (i32, i32) {
    %c0_i32 = arith.constant 0 : i32
    %c0_i32_0 = arith.constant 0 : i32
    %c0_i32_1 = arith.constant 0 : i32
    return %c0_i32, %c0_i32_0 : i32, i32
  }
  func.func @transform_4(%arg0: i32) -> (i32, i32) {
    %c0_i32 = arith.constant 0 : i32
    %c0_i32_0 = arith.constant 0 : i32
    %c0_i32_1 = arith.constant 0 : i32
    return %c0_i32, %c0_i32_0 : i32, i32
  }
  func.func @transform_5(%arg0: i32) -> (i32, i32) {
    %c0_i32 = arith.constant 0 : i32
    %c0_i32_0 = arith.constant 0 : i32
    %c0_i32_1 = arith.constant 0 : i32
    return %c0_i32, %c0_i32_0 : i32, i32
  }
  func.func @transform_6(%arg0: i32) -> (i32, i32) {
    %c0_i32 = arith.constant 0 : i32
    %c0_i32_0 = arith.constant 0 : i32
    %c0_i32_1 = arith.constant 0 : i32
    return %c0_i32, %c0_i32_0 : i32, i32
  }
  func.func @transform_7(%arg0: i32) -> (i32, i32) {
    %c0_i32 = arith.constant 0 : i32
    %c0_i32_0 = arith.constant 0 : i32
    %c0_i32_1 = arith.constant 0 : i32
    return %c0_i32, %c0_i32_0 : i32, i32
  }
  func.func @transform_8(%arg0: i32) -> (i32, i32) {
    %c0_i32 = arith.constant 0 : i32
    %c0_i32_0 = arith.constant 0 : i32
    %c0_i32_1 = arith.constant 0 : i32
    return %c0_i32, %c0_i32_0 : i32, i32
  }
  func.func @transform_9(%arg0: i32) -> (i32, i32, i32) {
    %c0_i32 = arith.constant 0 : i32
    %c0_i32_0 = arith.constant 0 : i32
    %c0_i32_1 = arith.constant 0 : i32
    %c0_i32_2 = arith.constant 0 : i32
    return %c0_i32, %c0_i32_0, %c0_i32_1 : i32, i32, i32
  }
}

module attributes {stable_mosaic.version = 11 : i64} {
  func.func @_trunk_kernel(%arg0: i32, %arg1: memref<1x16x128xf32, #tpu.memory_space<vmem>>, %arg2: memref<3584x128xbf16, #tpu.memory_space<vmem>>, %arg3: memref<7x128xf32, #tpu.memory_space<vmem>>, %arg4: memref<1024x128xbf16, #tpu.memory_space<vmem>>, %arg5: memref<1x128xf32, #tpu.memory_space<vmem>>, %arg6: memref<6x640x128xbf16, #tpu.memory_space<vmem>>, %arg7: memref<6x128xf32, #tpu.memory_space<vmem>>, %arg8: memref<4x128x128xbf16, #tpu.memory_space<vmem>>, %arg9: memref<4x128xf32, #tpu.memory_space<vmem>>, %arg10: memref<1x16x128xbf16, #tpu.memory_space<vmem>>) attributes {dimension_semantics = [#tpu.dimension_semantics<parallel>], iteration_bounds = array<i64: 2>, scalar_prefetch = 0 : i64, scratch_operands = 0 : i64, tpu.core_type = #tpu.core_type<tc>, window_params = [{transform_indices = @transform_0, window_bounds = array<i64: 1, 16, 128>}, {pipeline_mode = #tpu.pipeline_mode<synchronous>, transform_indices = @transform_1, window_bounds = array<i64: 3584, 128>}, {pipeline_mode = #tpu.pipeline_mode<synchronous>, transform_indices = @transform_2, window_bounds = array<i64: 7, 128>}, {pipeline_mode = #tpu.pipeline_mode<synchronous>, transform_indices = @transform_3, window_bounds = array<i64: 1024, 128>}, {pipeline_mode = #tpu.pipeline_mode<synchronous>, transform_indices = @transform_4, window_bounds = array<i64: 1, 128>}, {pipeline_mode = #tpu.pipeline_mode<synchronous>, transform_indices = @transform_5, window_bounds = array<i64: 6, 640, 128>}, {pipeline_mode = #tpu.pipeline_mode<synchronous>, transform_indices = @transform_6, window_bounds = array<i64: 6, 128>}, {pipeline_mode = #tpu.pipeline_mode<synchronous>, transform_indices = @transform_7, window_bounds = array<i64: 4, 128, 128>}, {pipeline_mode = #tpu.pipeline_mode<synchronous>, transform_indices = @transform_8, window_bounds = array<i64: 4, 128>}, {transform_indices = @transform_9, window_bounds = array<i64: 1, 16, 128>}]} {
    %c0 = arith.constant 0 : index
    %c0_0 = arith.constant 0 : index
    %c0_1 = arith.constant 0 : index
    %0 = vector.load %arg1[%c0, %c0_0, %c0_1] : memref<1x16x128xf32, #tpu.memory_space<vmem>>, vector<1x16x128xf32>
    %1 = vector.shape_cast %0 : vector<1x16x128xf32> to vector<16x128xf32>
    %2 = arith.truncf %1 : vector<16x128xf32> to vector<16x128xbf16>
    %3 = vector.extract_strided_slice %2 {offsets = [3, 0], sizes = [1, 128], strides = [1, 1]} : vector<16x128xbf16> to vector<1x128xbf16>
    %4 = vector.extract_strided_slice %2 {offsets = [2, 0], sizes = [1, 128], strides = [1, 1]} : vector<16x128xbf16> to vector<1x128xbf16>
    %5 = vector.extract_strided_slice %2 {offsets = [1, 0], sizes = [1, 128], strides = [1, 1]} : vector<16x128xbf16> to vector<1x128xbf16>
    %6 = vector.extract_strided_slice %2 {offsets = [14, 0], sizes = [1, 128], strides = [1, 1]} : vector<16x128xbf16> to vector<1x128xbf16>
    %7 = vector.extract_strided_slice %2 {offsets = [13, 0], sizes = [1, 128], strides = [1, 1]} : vector<16x128xbf16> to vector<1x128xbf16>
    %8 = vector.extract_strided_slice %2 {offsets = [12, 0], sizes = [1, 128], strides = [1, 1]} : vector<16x128xbf16> to vector<1x128xbf16>
    %9 = tpu.concatenate %3, %4, %5, %2, %6, %7, %8 in 0 : vector<1x128xbf16>, vector<1x128xbf16>, vector<1x128xbf16>, vector<16x128xbf16>, vector<1x128xbf16>, vector<1x128xbf16>, vector<1x128xbf16> -> vector<22x128xbf16>
    %10 = vector.extract_strided_slice %9 {offsets = [0, 0], sizes = [16, 128], strides = [1, 1]} : vector<22x128xbf16> to vector<16x128xbf16>
    %11 = vector.extract_strided_slice %9 {offsets = [1, 0], sizes = [16, 128], strides = [1, 1]} : vector<22x128xbf16> to vector<16x128xbf16>
    %12 = vector.extract_strided_slice %9 {offsets = [2, 0], sizes = [16, 128], strides = [1, 1]} : vector<22x128xbf16> to vector<16x128xbf16>
    %13 = vector.extract_strided_slice %9 {offsets = [3, 0], sizes = [16, 128], strides = [1, 1]} : vector<22x128xbf16> to vector<16x128xbf16>
    %14 = vector.extract_strided_slice %9 {offsets = [4, 0], sizes = [16, 128], strides = [1, 1]} : vector<22x128xbf16> to vector<16x128xbf16>
    %15 = vector.extract_strided_slice %9 {offsets = [5, 0], sizes = [16, 128], strides = [1, 1]} : vector<22x128xbf16> to vector<16x128xbf16>
    %16 = vector.extract_strided_slice %9 {offsets = [6, 0], sizes = [16, 128], strides = [1, 1]} : vector<22x128xbf16> to vector<16x128xbf16>
    %17 = tpu.concatenate %10, %11, %12, %13, %14, %15, %16 in 1 : vector<16x128xbf16>, vector<16x128xbf16>, vector<16x128xbf16>, vector<16x128xbf16>, vector<16x128xbf16>, vector<16x128xbf16>, vector<16x128xbf16> -> vector<16x896xbf16>
    %c0_2 = arith.constant 0 : index
    %c0_3 = arith.constant 0 : index
    %18 = vector.load %arg3[%c0_2, %c0_3] : memref<7x128xf32, #tpu.memory_space<vmem>>, vector<7x128xf32>
    %cst = arith.constant 0.000000e+00 : f32
    %19 = vector.broadcast %cst : f32 to vector<16x128xf32>
    %20 = vector.extract_strided_slice %17 {offsets = [0, 384], sizes = [16, 128], strides = [1, 1]} : vector<16x896xbf16> to vector<16x128xbf16>
    %c0_4 = arith.constant 0 : index
    %c0_5 = arith.constant 0 : index
    %21 = vector.load %arg2[%c0_4, %c0_5] : memref<3584x128xbf16, #tpu.memory_space<vmem>>, vector<128x128xbf16>
    %cst_6 = arith.constant dense<0.000000e+00> : vector<16x128xf32>
    %22 = tpu.matmul %20, %21, %cst_6 {dimension_numbers = #tpu.dot_dimension_numbers<[1], [0], [0], [1], [0, 0, 1, 1], [], []>} : vector<16x128xbf16>, vector<128x128xbf16>, vector<16x128xf32> -> vector<16x128xf32>
    %23 = vector.extract_strided_slice %18 {offsets = [0, 0], sizes = [1, 128], strides = [1, 1]} : vector<7x128xf32> to vector<1x128xf32>
    %24 = vector.broadcast %23 : vector<1x128xf32> to vector<16x128xf32>
    %25 = arith.addf %22, %24 : vector<16x128xf32>
    %cst_7 = arith.constant 0.000000e+00 : f32
    %26 = vector.broadcast %cst_7 : f32 to vector<16x128xf32>
    %27 = arith.cmpf oge, %25, %26 : vector<16x128xf32>
    %cst_8 = arith.constant 2.000000e-01 : f32
    %28 = vector.broadcast %cst_8 : f32 to vector<16x128xf32>
    %29 = arith.mulf %28, %25 : vector<16x128xf32>
    %30 = arith.select %27, %25, %29 : vector<16x128xi1>, vector<16x128xf32>
    %31 = arith.truncf %30 : vector<16x128xf32> to vector<16x128xbf16>
    %c0_9 = arith.constant 0 : index
    %c0_10 = arith.constant 0 : index
    %32 = vector.load %arg4[%c0_9, %c0_10] : memref<1024x128xbf16, #tpu.memory_space<vmem>>, vector<128x128xbf16>
    %cst_11 = arith.constant dense<0.000000e+00> : vector<16x128xf32>
    %33 = tpu.matmul %31, %32, %cst_11 {dimension_numbers = #tpu.dot_dimension_numbers<[1], [0], [0], [1], [0, 0, 1, 1], [], []>} : vector<16x128xbf16>, vector<128x128xbf16>, vector<16x128xf32> -> vector<16x128xf32>
    %34 = arith.addf %19, %33 : vector<16x128xf32>
    %35 = vector.extract_strided_slice %17 {offsets = [0, 256], sizes = [16, 256], strides = [1, 1]} : vector<16x896xbf16> to vector<16x256xbf16>
    %c128 = arith.constant 128 : index
    %c0_12 = arith.constant 0 : index
    %36 = vector.load %arg2[%c128, %c0_12] : memref<3584x128xbf16, #tpu.memory_space<vmem>>, vector<256x128xbf16>
    %cst_13 = arith.constant dense<0.000000e+00> : vector<16x128xf32>
    %37 = tpu.matmul %35, %36, %cst_13 {dimension_numbers = #tpu.dot_dimension_numbers<[1], [0], [0], [1], [0, 0, 1, 1], [], []>} : vector<16x256xbf16>, vector<256x128xbf16>, vector<16x128xf32> -> vector<16x128xf32>
    %38 = vector.extract_strided_slice %18 {offsets = [1, 0], sizes = [1, 128], strides = [1, 1]} : vector<7x128xf32> to vector<1x128xf32>
    %39 = vector.broadcast %38 : vector<1x128xf32> to vector<16x128xf32>
    %40 = arith.addf %37, %39 : vector<16x128xf32>
    %cst_14 = arith.constant 0.000000e+00 : f32
    %41 = vector.broadcast %cst_14 : f32 to vector<16x128xf32>
    %42 = arith.cmpf oge, %40, %41 : vector<16x128xf32>
    %cst_15 = arith.constant 2.000000e-01 : f32
    %43 = vector.broadcast %cst_15 : f32 to vector<16x128xf32>
    %44 = arith.mulf %43, %40 : vector<16x128xf32>
    %45 = arith.select %42, %40, %44 : vector<16x128xi1>, vector<16x128xf32>
    %46 = arith.truncf %45 : vector<16x128xf32> to vector<16x128xbf16>
    %c128_16 = arith.constant 128 : index
    %c0_17 = arith.constant 0 : index
    %47 = vector.load %arg4[%c128_16, %c0_17] : memref<1024x128xbf16, #tpu.memory_space<vmem>>, vector<128x128xbf16>
    %cst_18 = arith.constant dense<0.000000e+00> : vector<16x128xf32>
    %48 = tpu.matmul %46, %47, %cst_18 {dimension_numbers = #tpu.dot_dimension_numbers<[1], [0], [0], [1], [0, 0, 1, 1], [], []>} : vector<16x128xbf16>, vector<128x128xbf16>, vector<16x128xf32> -> vector<16x128xf32>
    %49 = arith.addf %34, %48 : vector<16x128xf32>
    %50 = vector.extract_strided_slice %17 {offsets = [0, 256], sizes = [16, 384], strides = [1, 1]} : vector<16x896xbf16> to vector<16x384xbf16>
    %c384 = arith.constant 384 : index
    %c0_19 = arith.constant 0 : index
    %51 = vector.load %arg2[%c384, %c0_19] : memref<3584x128xbf16, #tpu.memory_space<vmem>>, vector<384x128xbf16>
    %cst_20 = arith.constant dense<0.000000e+00> : vector<16x128xf32>
    %52 = tpu.matmul %50, %51, %cst_20 {dimension_numbers = #tpu.dot_dimension_numbers<[1], [0], [0], [1], [0, 0, 1, 1], [], []>} : vector<16x384xbf16>, vector<384x128xbf16>, vector<16x128xf32> -> vector<16x128xf32>
    %53 = vector.extract_strided_slice %18 {offsets = [2, 0], sizes = [1, 128], strides = [1, 1]} : vector<7x128xf32> to vector<1x128xf32>
    %54 = vector.broadcast %53 : vector<1x128xf32> to vector<16x128xf32>
    %55 = arith.addf %52, %54 : vector<16x128xf32>
    %cst_21 = arith.constant 0.000000e+00 : f32
    %56 = vector.broadcast %cst_21 : f32 to vector<16x128xf32>
    %57 = arith.cmpf oge, %55, %56 : vector<16x128xf32>
    %cst_22 = arith.constant 2.000000e-01 : f32
    %58 = vector.broadcast %cst_22 : f32 to vector<16x128xf32>
    %59 = arith.mulf %58, %55 : vector<16x128xf32>
    %60 = arith.select %57, %55, %59 : vector<16x128xi1>, vector<16x128xf32>
    %61 = arith.truncf %60 : vector<16x128xf32> to vector<16x128xbf16>
    %c256 = arith.constant 256 : index
    %c0_23 = arith.constant 0 : index
    %62 = vector.load %arg4[%c256, %c0_23] : memref<1024x128xbf16, #tpu.memory_space<vmem>>, vector<128x128xbf16>
    %cst_24 = arith.constant dense<0.000000e+00> : vector<16x128xf32>
    %63 = tpu.matmul %61, %62, %cst_24 {dimension_numbers = #tpu.dot_dimension_numbers<[1], [0], [0], [1], [0, 0, 1, 1], [], []>} : vector<16x128xbf16>, vector<128x128xbf16>, vector<16x128xf32> -> vector<16x128xf32>
    %64 = arith.addf %49, %63 : vector<16x128xf32>
    %65 = vector.extract_strided_slice %17 {offsets = [0, 128], sizes = [16, 512], strides = [1, 1]} : vector<16x896xbf16> to vector<16x512xbf16>
    %c768 = arith.constant 768 : index
    %c0_25 = arith.constant 0 : index
    %66 = vector.load %arg2[%c768, %c0_25] : memref<3584x128xbf16, #tpu.memory_space<vmem>>, vector<512x128xbf16>
    %cst_26 = arith.constant dense<0.000000e+00> : vector<16x128xf32>
    %67 = tpu.matmul %65, %66, %cst_26 {dimension_numbers = #tpu.dot_dimension_numbers<[1], [0], [0], [1], [0, 0, 1, 1], [], []>} : vector<16x512xbf16>, vector<512x128xbf16>, vector<16x128xf32> -> vector<16x128xf32>
    %68 = vector.extract_strided_slice %18 {offsets = [3, 0], sizes = [1, 128], strides = [1, 1]} : vector<7x128xf32> to vector<1x128xf32>
    %69 = vector.broadcast %68 : vector<1x128xf32> to vector<16x128xf32>
    %70 = arith.addf %67, %69 : vector<16x128xf32>
    %cst_27 = arith.constant 0.000000e+00 : f32
    %71 = vector.broadcast %cst_27 : f32 to vector<16x128xf32>
    %72 = arith.cmpf oge, %70, %71 : vector<16x128xf32>
    %cst_28 = arith.constant 2.000000e-01 : f32
    %73 = vector.broadcast %cst_28 : f32 to vector<16x128xf32>
    %74 = arith.mulf %73, %70 : vector<16x128xf32>
    %75 = arith.select %72, %70, %74 : vector<16x128xi1>, vector<16x128xf32>
    %76 = arith.truncf %75 : vector<16x128xf32> to vector<16x128xbf16>
    %c384_29 = arith.constant 384 : index
    %c0_30 = arith.constant 0 : index
    %77 = vector.load %arg4[%c384_29, %c0_30] : memref<1024x128xbf16, #tpu.memory_space<vmem>>, vector<128x128xbf16>
    %cst_31 = arith.constant dense<0.000000e+00> : vector<16x128xf32>
    %78 = tpu.matmul %76, %77, %cst_31 {dimension_numbers = #tpu.dot_dimension_numbers<[1], [0], [0], [1], [0, 0, 1, 1], [], []>} : vector<16x128xbf16>, vector<128x128xbf16>, vector<16x128xf32> -> vector<16x128xf32>
    %79 = arith.addf %64, %78 : vector<16x128xf32>
    %80 = vector.extract_strided_slice %17 {offsets = [0, 128], sizes = [16, 640], strides = [1, 1]} : vector<16x896xbf16> to vector<16x640xbf16>
    %c1280 = arith.constant 1280 : index
    %c0_32 = arith.constant 0 : index
    %81 = vector.load %arg2[%c1280, %c0_32] : memref<3584x128xbf16, #tpu.memory_space<vmem>>, vector<640x128xbf16>
    %cst_33 = arith.constant dense<0.000000e+00> : vector<16x128xf32>
    %82 = tpu.matmul %80, %81, %cst_33 {dimension_numbers = #tpu.dot_dimension_numbers<[1], [0], [0], [1], [0, 0, 1, 1], [], []>} : vector<16x640xbf16>, vector<640x128xbf16>, vector<16x128xf32> -> vector<16x128xf32>
    %83 = vector.extract_strided_slice %18 {offsets = [4, 0], sizes = [1, 128], strides = [1, 1]} : vector<7x128xf32> to vector<1x128xf32>
    %84 = vector.broadcast %83 : vector<1x128xf32> to vector<16x128xf32>
    %85 = arith.addf %82, %84 : vector<16x128xf32>
    %cst_34 = arith.constant 0.000000e+00 : f32
    %86 = vector.broadcast %cst_34 : f32 to vector<16x128xf32>
    %87 = arith.cmpf oge, %85, %86 : vector<16x128xf32>
    %cst_35 = arith.constant 2.000000e-01 : f32
    %88 = vector.broadcast %cst_35 : f32 to vector<16x128xf32>
    %89 = arith.mulf %88, %85 : vector<16x128xf32>
    %90 = arith.select %87, %85, %89 : vector<16x128xi1>, vector<16x128xf32>
    %91 = arith.truncf %90 : vector<16x128xf32> to vector<16x128xbf16>
    %c512 = arith.constant 512 : index
    %c0_36 = arith.constant 0 : index
    %92 = vector.load %arg4[%c512, %c0_36] : memref<1024x128xbf16, #tpu.memory_space<vmem>>, vector<128x128xbf16>
    %cst_37 = arith.constant dense<0.000000e+00> : vector<16x128xf32>
    %93 = tpu.matmul %91, %92, %cst_37 {dimension_numbers = #tpu.dot_dimension_numbers<[1], [0], [0], [1], [0, 0, 1, 1], [], []>} : vector<16x128xbf16>, vector<128x128xbf16>, vector<16x128xf32> -> vector<16x128xf32>
    %94 = arith.addf %79, %93 : vector<16x128xf32>
    %95 = vector.extract_strided_slice %17 {offsets = [0, 0], sizes = [16, 768], strides = [1, 1]} : vector<16x896xbf16> to vector<16x768xbf16>
    %c1920 = arith.constant 1920 : index
    %c0_38 = arith.constant 0 : index
    %96 = vector.load %arg2[%c1920, %c0_38] : memref<3584x128xbf16, #tpu.memory_space<vmem>>, vector<768x128xbf16>
    %cst_39 = arith.constant dense<0.000000e+00> : vector<16x128xf32>
    %97 = tpu.matmul %95, %96, %cst_39 {dimension_numbers = #tpu.dot_dimension_numbers<[1], [0], [0], [1], [0, 0, 1, 1], [], []>} : vector<16x768xbf16>, vector<768x128xbf16>, vector<16x128xf32> -> vector<16x128xf32>
    %98 = vector.extract_strided_slice %18 {offsets = [5, 0], sizes = [1, 128], strides = [1, 1]} : vector<7x128xf32> to vector<1x128xf32>
    %99 = vector.broadcast %98 : vector<1x128xf32> to vector<16x128xf32>
    %100 = arith.addf %97, %99 : vector<16x128xf32>
    %cst_40 = arith.constant 0.000000e+00 : f32
    %101 = vector.broadcast %cst_40 : f32 to vector<16x128xf32>
    %102 = arith.cmpf oge, %100, %101 : vector<16x128xf32>
    %cst_41 = arith.constant 2.000000e-01 : f32
    %103 = vector.broadcast %cst_41 : f32 to vector<16x128xf32>
    %104 = arith.mulf %103, %100 : vector<16x128xf32>
    %105 = arith.select %102, %100, %104 : vector<16x128xi1>, vector<16x128xf32>
    %106 = arith.truncf %105 : vector<16x128xf32> to vector<16x128xbf16>
    %c640 = arith.constant 640 : index
    %c0_42 = arith.constant 0 : index
    %107 = vector.load %arg4[%c640, %c0_42] : memref<1024x128xbf16, #tpu.memory_space<vmem>>, vector<128x128xbf16>
    %cst_43 = arith.constant dense<0.000000e+00> : vector<16x128xf32>
    %108 = tpu.matmul %106, %107, %cst_43 {dimension_numbers = #tpu.dot_dimension_numbers<[1], [0], [0], [1], [0, 0, 1, 1], [], []>} : vector<16x128xbf16>, vector<128x128xbf16>, vector<16x128xf32> -> vector<16x128xf32>
    %109 = arith.addf %94, %108 : vector<16x128xf32>
    %c2688 = arith.constant 2688 : index
    %c0_44 = arith.constant 0 : index
    %110 = vector.load %arg2[%c2688, %c0_44] : memref<3584x128xbf16, #tpu.memory_space<vmem>>, vector<896x128xbf16>
    %cst_45 = arith.constant dense<0.000000e+00> : vector<16x128xf32>
    %111 = tpu.matmul %17, %110, %cst_45 {dimension_numbers = #tpu.dot_dimension_numbers<[1], [0], [0], [1], [0, 0, 1, 1], [], []>} : vector<16x896xbf16>, vector<896x128xbf16>, vector<16x128xf32> -> vector<16x128xf32>
    %112 = vector.extract_strided_slice %18 {offsets = [6, 0], sizes = [1, 128], strides = [1, 1]} : vector<7x128xf32> to vector<1x128xf32>
    %113 = vector.broadcast %112 : vector<1x128xf32> to vector<16x128xf32>
    %114 = arith.addf %111, %113 : vector<16x128xf32>
    %cst_46 = arith.constant 0.000000e+00 : f32
    %115 = vector.broadcast %cst_46 : f32 to vector<16x128xf32>
    %116 = arith.cmpf oge, %114, %115 : vector<16x128xf32>
    %cst_47 = arith.constant 2.000000e-01 : f32
    %117 = vector.broadcast %cst_47 : f32 to vector<16x128xf32>
    %118 = arith.mulf %117, %114 : vector<16x128xf32>
    %119 = arith.select %116, %114, %118 : vector<16x128xi1>, vector<16x128xf32>
    %120 = arith.truncf %119 : vector<16x128xf32> to vector<16x128xbf16>
    %c768_48 = arith.constant 768 : index
    %c0_49 = arith.constant 0 : index
    %121 = vector.load %arg4[%c768_48, %c0_49] : memref<1024x128xbf16, #tpu.memory_space<vmem>>, vector<128x128xbf16>
    %cst_50 = arith.constant dense<0.000000e+00> : vector<16x128xf32>
    %122 = tpu.matmul %120, %121, %cst_50 {dimension_numbers = #tpu.dot_dimension_numbers<[1], [0], [0], [1], [0, 0, 1, 1], [], []>} : vector<16x128xbf16>, vector<128x128xbf16>, vector<16x128xf32> -> vector<16x128xf32>
    %123 = arith.addf %109, %122 : vector<16x128xf32>
    %cst_51 = arith.constant 0.000000e+00 : f32
    %124 = vector.broadcast %cst_51 : f32 to vector<16x128xf32>
    %125 = arith.cmpf oge, %1, %124 : vector<16x128xf32>
    %cst_52 = arith.constant 2.000000e-01 : f32
    %126 = vector.broadcast %cst_52 : f32 to vector<16x128xf32>
    %127 = arith.mulf %126, %1 : vector<16x128xf32>
    %128 = arith.select %125, %1, %127 : vector<16x128xi1>, vector<16x128xf32>
    %129 = arith.truncf %128 : vector<16x128xf32> to vector<16x128xbf16>
    %c896 = arith.constant 896 : index
    %c0_53 = arith.constant 0 : index
    %130 = vector.load %arg4[%c896, %c0_53] : memref<1024x128xbf16, #tpu.memory_space<vmem>>, vector<128x128xbf16>
    %cst_54 = arith.constant dense<0.000000e+00> : vector<16x128xf32>
    %131 = tpu.matmul %129, %130, %cst_54 {dimension_numbers = #tpu.dot_dimension_numbers<[1], [0], [0], [1], [0, 0, 1, 1], [], []>} : vector<16x128xbf16>, vector<128x128xbf16>, vector<16x128xf32> -> vector<16x128xf32>
    %132 = arith.addf %123, %131 : vector<16x128xf32>
    %c0_55 = arith.constant 0 : index
    %c0_56 = arith.constant 0 : index
    %133 = vector.load %arg5[%c0_55, %c0_56] : memref<1x128xf32, #tpu.memory_space<vmem>>, vector<1x128xf32>
    %134 = vector.broadcast %133 : vector<1x128xf32> to vector<16x128xf32>
    %135 = arith.addf %132, %134 : vector<16x128xf32>
    %cst_57 = arith.constant 0.000000e+00 : f32
    %136 = vector.broadcast %cst_57 : f32 to vector<16x128xf32>
    %137 = arith.cmpf oge, %135, %136 : vector<16x128xf32>
    %cst_58 = arith.constant 2.000000e-01 : f32
    %138 = vector.broadcast %cst_58 : f32 to vector<16x128xf32>
    %139 = arith.mulf %138, %135 : vector<16x128xf32>
    %140 = arith.select %137, %135, %139 : vector<16x128xi1>, vector<16x128xf32>
    %cst_59 = arith.constant dense<0.000000e+00> : vector<128xf32>
    %141 = vector.multi_reduction <add>, %140, %cst_59 [0] : vector<16x128xf32> to vector<128xf32>
    %142 = vector.shape_cast %141 : vector<128xf32> to vector<1x128xf32>
    %143 = arith.mulf %140, %140 : vector<16x128xf32>
    %cst_60 = arith.constant dense<0.000000e+00> : vector<128xf32>
    %144 = vector.multi_reduction <add>, %143, %cst_60 [0] : vector<16x128xf32> to vector<128xf32>
    %145 = vector.shape_cast %144 : vector<128xf32> to vector<1x128xf32>
    %cst_61 = arith.constant 6.250000e-02 : f32
    %146 = vector.broadcast %cst_61 : f32 to vector<1x128xf32>
    %147 = arith.mulf %142, %146 : vector<1x128xf32>
    %cst_62 = arith.constant 6.250000e-02 : f32
    %148 = vector.broadcast %cst_62 : f32 to vector<1x128xf32>
    %149 = arith.mulf %145, %148 : vector<1x128xf32>
    %150 = arith.mulf %147, %147 : vector<1x128xf32>
    %151 = arith.subf %149, %150 : vector<1x128xf32>
    %cst_63 = arith.constant 0.000000e+00 : f32
    %152 = vector.broadcast %cst_63 : f32 to vector<1x128xf32>
    %153 = arith.maximumf %151, %152 : vector<1x128xf32>
    %154 = vector.broadcast %147 : vector<1x128xf32> to vector<16x128xf32>
    %155 = arith.subf %140, %154 : vector<16x128xf32>
    %cst_64 = arith.constant 9.99999974E-6 : f32
    %156 = vector.broadcast %cst_64 : f32 to vector<1x128xf32>
    %157 = arith.addf %153, %156 : vector<1x128xf32>
    %158 = math.rsqrt %157 : vector<1x128xf32>
    %159 = vector.broadcast %158 : vector<1x128xf32> to vector<16x128xf32>
    %160 = arith.mulf %155, %159 : vector<16x128xf32>
    %c0_65 = arith.constant 0 : index
    %c0_66 = arith.constant 0 : index
    %161 = vector.load %arg7[%c0_65, %c0_66] : memref<6x128xf32, #tpu.memory_space<vmem>>, vector<6x128xf32>
    %c0_67 = arith.constant 0 : index
    %c0_68 = arith.constant 0 : index
    %162 = vector.load %arg9[%c0_67, %c0_68] : memref<4x128xf32, #tpu.memory_space<vmem>>, vector<4x128xf32>
    %c0_69 = arith.constant 0 : index
    %c0_70 = arith.constant 0 : index
    %c0_71 = arith.constant 0 : index
    %163 = vector.load %arg6[%c0_69, %c0_70, %c0_71] : memref<6x640x128xbf16, #tpu.memory_space<vmem>>, vector<1x640x128xbf16>
    %164 = vector.shape_cast %163 : vector<1x640x128xbf16> to vector<640x128xbf16>
    %165 = vector.extract_strided_slice %161 {offsets = [0, 0], sizes = [1, 128], strides = [1, 1]} : vector<6x128xf32> to vector<1x128xf32>
    %166 = arith.truncf %160 : vector<16x128xf32> to vector<16x128xbf16>
    %167 = vector.extract_strided_slice %166 {offsets = [2, 0], sizes = [1, 128], strides = [1, 1]} : vector<16x128xbf16> to vector<1x128xbf16>
    %168 = vector.extract_strided_slice %166 {offsets = [1, 0], sizes = [1, 128], strides = [1, 1]} : vector<16x128xbf16> to vector<1x128xbf16>
    %169 = vector.extract_strided_slice %166 {offsets = [14, 0], sizes = [1, 128], strides = [1, 1]} : vector<16x128xbf16> to vector<1x128xbf16>
    %170 = vector.extract_strided_slice %166 {offsets = [13, 0], sizes = [1, 128], strides = [1, 1]} : vector<16x128xbf16> to vector<1x128xbf16>
    %171 = tpu.concatenate %167, %168, %166, %169, %170 in 0 : vector<1x128xbf16>, vector<1x128xbf16>, vector<16x128xbf16>, vector<1x128xbf16>, vector<1x128xbf16> -> vector<20x128xbf16>
    %172 = vector.extract_strided_slice %171 {offsets = [0, 0], sizes = [16, 128], strides = [1, 1]} : vector<20x128xbf16> to vector<16x128xbf16>
    %173 = vector.extract_strided_slice %171 {offsets = [1, 0], sizes = [16, 128], strides = [1, 1]} : vector<20x128xbf16> to vector<16x128xbf16>
    %174 = vector.extract_strided_slice %171 {offsets = [2, 0], sizes = [16, 128], strides = [1, 1]} : vector<20x128xbf16> to vector<16x128xbf16>
    %175 = vector.extract_strided_slice %171 {offsets = [3, 0], sizes = [16, 128], strides = [1, 1]} : vector<20x128xbf16> to vector<16x128xbf16>
    %176 = vector.extract_strided_slice %171 {offsets = [4, 0], sizes = [16, 128], strides = [1, 1]} : vector<20x128xbf16> to vector<16x128xbf16>
    %177 = tpu.concatenate %172, %173, %174, %175, %176 in 1 : vector<16x128xbf16>, vector<16x128xbf16>, vector<16x128xbf16>, vector<16x128xbf16>, vector<16x128xbf16> -> vector<16x640xbf16>
    %cst_72 = arith.constant dense<0.000000e+00> : vector<16x128xf32>
    %178 = tpu.matmul %177, %164, %cst_72 {dimension_numbers = #tpu.dot_dimension_numbers<[1], [0], [0], [1], [0, 0, 1, 1], [], []>} : vector<16x640xbf16>, vector<640x128xbf16>, vector<16x128xf32> -> vector<16x128xf32>
    %179 = vector.broadcast %165 : vector<1x128xf32> to vector<16x128xf32>
    %180 = arith.addf %178, %179 : vector<16x128xf32>
    %cst_73 = arith.constant 0.000000e+00 : f32
    %181 = vector.broadcast %cst_73 : f32 to vector<16x128xf32>
    %182 = arith.cmpf oge, %180, %181 : vector<16x128xf32>
    %cst_74 = arith.constant 2.000000e-01 : f32
    %183 = vector.broadcast %cst_74 : f32 to vector<16x128xf32>
    %184 = arith.mulf %183, %180 : vector<16x128xf32>
    %185 = arith.select %182, %180, %184 : vector<16x128xi1>, vector<16x128xf32>
    %c1 = arith.constant 1 : index
    %c0_75 = arith.constant 0 : index
    %c0_76 = arith.constant 0 : index
    %186 = vector.load %arg6[%c1, %c0_75, %c0_76] : memref<6x640x128xbf16, #tpu.memory_space<vmem>>, vector<1x640x128xbf16>
    %187 = vector.shape_cast %186 : vector<1x640x128xbf16> to vector<640x128xbf16>
    %188 = vector.extract_strided_slice %161 {offsets = [1, 0], sizes = [1, 128], strides = [1, 1]} : vector<6x128xf32> to vector<1x128xf32>
    %189 = arith.truncf %185 : vector<16x128xf32> to vector<16x128xbf16>
    %190 = vector.extract_strided_slice %189 {offsets = [2, 0], sizes = [1, 128], strides = [1, 1]} : vector<16x128xbf16> to vector<1x128xbf16>
    %191 = vector.extract_strided_slice %189 {offsets = [1, 0], sizes = [1, 128], strides = [1, 1]} : vector<16x128xbf16> to vector<1x128xbf16>
    %192 = vector.extract_strided_slice %189 {offsets = [14, 0], sizes = [1, 128], strides = [1, 1]} : vector<16x128xbf16> to vector<1x128xbf16>
    %193 = vector.extract_strided_slice %189 {offsets = [13, 0], sizes = [1, 128], strides = [1, 1]} : vector<16x128xbf16> to vector<1x128xbf16>
    %194 = tpu.concatenate %190, %191, %189, %192, %193 in 0 : vector<1x128xbf16>, vector<1x128xbf16>, vector<16x128xbf16>, vector<1x128xbf16>, vector<1x128xbf16> -> vector<20x128xbf16>
    %195 = vector.extract_strided_slice %194 {offsets = [0, 0], sizes = [16, 128], strides = [1, 1]} : vector<20x128xbf16> to vector<16x128xbf16>
    %196 = vector.extract_strided_slice %194 {offsets = [1, 0], sizes = [16, 128], strides = [1, 1]} : vector<20x128xbf16> to vector<16x128xbf16>
    %197 = vector.extract_strided_slice %194 {offsets = [2, 0], sizes = [16, 128], strides = [1, 1]} : vector<20x128xbf16> to vector<16x128xbf16>
    %198 = vector.extract_strided_slice %194 {offsets = [3, 0], sizes = [16, 128], strides = [1, 1]} : vector<20x128xbf16> to vector<16x128xbf16>
    %199 = vector.extract_strided_slice %194 {offsets = [4, 0], sizes = [16, 128], strides = [1, 1]} : vector<20x128xbf16> to vector<16x128xbf16>
    %200 = tpu.concatenate %195, %196, %197, %198, %199 in 1 : vector<16x128xbf16>, vector<16x128xbf16>, vector<16x128xbf16>, vector<16x128xbf16>, vector<16x128xbf16> -> vector<16x640xbf16>
    %cst_77 = arith.constant dense<0.000000e+00> : vector<16x128xf32>
    %201 = tpu.matmul %200, %187, %cst_77 {dimension_numbers = #tpu.dot_dimension_numbers<[1], [0], [0], [1], [0, 0, 1, 1], [], []>} : vector<16x640xbf16>, vector<640x128xbf16>, vector<16x128xf32> -> vector<16x128xf32>
    %202 = vector.broadcast %188 : vector<1x128xf32> to vector<16x128xf32>
    %203 = arith.addf %201, %202 : vector<16x128xf32>
    %cst_78 = arith.constant 0.000000e+00 : f32
    %204 = vector.broadcast %cst_78 : f32 to vector<16x128xf32>
    %205 = arith.cmpf oge, %203, %204 : vector<16x128xf32>
    %cst_79 = arith.constant 2.000000e-01 : f32
    %206 = vector.broadcast %cst_79 : f32 to vector<16x128xf32>
    %207 = arith.mulf %206, %203 : vector<16x128xf32>
    %208 = arith.select %205, %203, %207 : vector<16x128xi1>, vector<16x128xf32>
    %cst_80 = arith.constant dense<0.000000e+00> : vector<128xf32>
    %209 = vector.multi_reduction <add>, %208, %cst_80 [0] : vector<16x128xf32> to vector<128xf32>
    %210 = vector.shape_cast %209 : vector<128xf32> to vector<1x128xf32>
    %211 = arith.mulf %208, %208 : vector<16x128xf32>
    %cst_81 = arith.constant dense<0.000000e+00> : vector<128xf32>
    %212 = vector.multi_reduction <add>, %211, %cst_81 [0] : vector<16x128xf32> to vector<128xf32>
    %213 = vector.shape_cast %212 : vector<128xf32> to vector<1x128xf32>
    %cst_82 = arith.constant 6.250000e-02 : f32
    %214 = vector.broadcast %cst_82 : f32 to vector<1x128xf32>
    %215 = arith.mulf %210, %214 : vector<1x128xf32>
    %cst_83 = arith.constant 6.250000e-02 : f32
    %216 = vector.broadcast %cst_83 : f32 to vector<1x128xf32>
    %217 = arith.mulf %213, %216 : vector<1x128xf32>
    %218 = arith.mulf %215, %215 : vector<1x128xf32>
    %219 = arith.subf %217, %218 : vector<1x128xf32>
    %cst_84 = arith.constant 0.000000e+00 : f32
    %220 = vector.broadcast %cst_84 : f32 to vector<1x128xf32>
    %221 = arith.maximumf %219, %220 : vector<1x128xf32>
    %222 = vector.broadcast %215 : vector<1x128xf32> to vector<16x128xf32>
    %223 = arith.subf %208, %222 : vector<16x128xf32>
    %cst_85 = arith.constant 9.99999974E-6 : f32
    %224 = vector.broadcast %cst_85 : f32 to vector<1x128xf32>
    %225 = arith.addf %221, %224 : vector<1x128xf32>
    %226 = math.rsqrt %225 : vector<1x128xf32>
    %227 = vector.broadcast %226 : vector<1x128xf32> to vector<16x128xf32>
    %228 = arith.mulf %223, %227 : vector<16x128xf32>
    %229 = arith.addf %160, %228 : vector<16x128xf32>
    %c2 = arith.constant 2 : index
    %c0_86 = arith.constant 0 : index
    %c0_87 = arith.constant 0 : index
    %230 = vector.load %arg6[%c2, %c0_86, %c0_87] : memref<6x640x128xbf16, #tpu.memory_space<vmem>>, vector<1x640x128xbf16>
    %231 = vector.shape_cast %230 : vector<1x640x128xbf16> to vector<640x128xbf16>
    %232 = vector.extract_strided_slice %161 {offsets = [2, 0], sizes = [1, 128], strides = [1, 1]} : vector<6x128xf32> to vector<1x128xf32>
    %233 = arith.truncf %229 : vector<16x128xf32> to vector<16x128xbf16>
    %234 = vector.extract_strided_slice %233 {offsets = [2, 0], sizes = [1, 128], strides = [1, 1]} : vector<16x128xbf16> to vector<1x128xbf16>
    %235 = vector.extract_strided_slice %233 {offsets = [1, 0], sizes = [1, 128], strides = [1, 1]} : vector<16x128xbf16> to vector<1x128xbf16>
    %236 = vector.extract_strided_slice %233 {offsets = [14, 0], sizes = [1, 128], strides = [1, 1]} : vector<16x128xbf16> to vector<1x128xbf16>
    %237 = vector.extract_strided_slice %233 {offsets = [13, 0], sizes = [1, 128], strides = [1, 1]} : vector<16x128xbf16> to vector<1x128xbf16>
    %238 = tpu.concatenate %234, %235, %233, %236, %237 in 0 : vector<1x128xbf16>, vector<1x128xbf16>, vector<16x128xbf16>, vector<1x128xbf16>, vector<1x128xbf16> -> vector<20x128xbf16>
    %239 = vector.extract_strided_slice %238 {offsets = [0, 0], sizes = [16, 128], strides = [1, 1]} : vector<20x128xbf16> to vector<16x128xbf16>
    %240 = vector.extract_strided_slice %238 {offsets = [1, 0], sizes = [16, 128], strides = [1, 1]} : vector<20x128xbf16> to vector<16x128xbf16>
    %241 = vector.extract_strided_slice %238 {offsets = [2, 0], sizes = [16, 128], strides = [1, 1]} : vector<20x128xbf16> to vector<16x128xbf16>
    %242 = vector.extract_strided_slice %238 {offsets = [3, 0], sizes = [16, 128], strides = [1, 1]} : vector<20x128xbf16> to vector<16x128xbf16>
    %243 = vector.extract_strided_slice %238 {offsets = [4, 0], sizes = [16, 128], strides = [1, 1]} : vector<20x128xbf16> to vector<16x128xbf16>
    %244 = tpu.concatenate %239, %240, %241, %242, %243 in 1 : vector<16x128xbf16>, vector<16x128xbf16>, vector<16x128xbf16>, vector<16x128xbf16>, vector<16x128xbf16> -> vector<16x640xbf16>
    %cst_88 = arith.constant dense<0.000000e+00> : vector<16x128xf32>
    %245 = tpu.matmul %244, %231, %cst_88 {dimension_numbers = #tpu.dot_dimension_numbers<[1], [0], [0], [1], [0, 0, 1, 1], [], []>} : vector<16x640xbf16>, vector<640x128xbf16>, vector<16x128xf32> -> vector<16x128xf32>
    %246 = vector.broadcast %232 : vector<1x128xf32> to vector<16x128xf32>
    %247 = arith.addf %245, %246 : vector<16x128xf32>
    %cst_89 = arith.constant 0.000000e+00 : f32
    %248 = vector.broadcast %cst_89 : f32 to vector<16x128xf32>
    %249 = arith.cmpf oge, %247, %248 : vector<16x128xf32>
    %cst_90 = arith.constant 2.000000e-01 : f32
    %250 = vector.broadcast %cst_90 : f32 to vector<16x128xf32>
    %251 = arith.mulf %250, %247 : vector<16x128xf32>
    %252 = arith.select %249, %247, %251 : vector<16x128xi1>, vector<16x128xf32>
    %c3 = arith.constant 3 : index
    %c0_91 = arith.constant 0 : index
    %c0_92 = arith.constant 0 : index
    %253 = vector.load %arg6[%c3, %c0_91, %c0_92] : memref<6x640x128xbf16, #tpu.memory_space<vmem>>, vector<1x640x128xbf16>
    %254 = vector.shape_cast %253 : vector<1x640x128xbf16> to vector<640x128xbf16>
    %255 = vector.extract_strided_slice %161 {offsets = [3, 0], sizes = [1, 128], strides = [1, 1]} : vector<6x128xf32> to vector<1x128xf32>
    %256 = arith.truncf %252 : vector<16x128xf32> to vector<16x128xbf16>
    %257 = vector.extract_strided_slice %256 {offsets = [2, 0], sizes = [1, 128], strides = [1, 1]} : vector<16x128xbf16> to vector<1x128xbf16>
    %258 = vector.extract_strided_slice %256 {offsets = [1, 0], sizes = [1, 128], strides = [1, 1]} : vector<16x128xbf16> to vector<1x128xbf16>
    %259 = vector.extract_strided_slice %256 {offsets = [14, 0], sizes = [1, 128], strides = [1, 1]} : vector<16x128xbf16> to vector<1x128xbf16>
    %260 = vector.extract_strided_slice %256 {offsets = [13, 0], sizes = [1, 128], strides = [1, 1]} : vector<16x128xbf16> to vector<1x128xbf16>
    %261 = tpu.concatenate %257, %258, %256, %259, %260 in 0 : vector<1x128xbf16>, vector<1x128xbf16>, vector<16x128xbf16>, vector<1x128xbf16>, vector<1x128xbf16> -> vector<20x128xbf16>
    %262 = vector.extract_strided_slice %261 {offsets = [0, 0], sizes = [16, 128], strides = [1, 1]} : vector<20x128xbf16> to vector<16x128xbf16>
    %263 = vector.extract_strided_slice %261 {offsets = [1, 0], sizes = [16, 128], strides = [1, 1]} : vector<20x128xbf16> to vector<16x128xbf16>
    %264 = vector.extract_strided_slice %261 {offsets = [2, 0], sizes = [16, 128], strides = [1, 1]} : vector<20x128xbf16> to vector<16x128xbf16>
    %265 = vector.extract_strided_slice %261 {offsets = [3, 0], sizes = [16, 128], strides = [1, 1]} : vector<20x128xbf16> to vector<16x128xbf16>
    %266 = vector.extract_strided_slice %261 {offsets = [4, 0], sizes = [16, 128], strides = [1, 1]} : vector<20x128xbf16> to vector<16x128xbf16>
    %267 = tpu.concatenate %262, %263, %264, %265, %266 in 1 : vector<16x128xbf16>, vector<16x128xbf16>, vector<16x128xbf16>, vector<16x128xbf16>, vector<16x128xbf16> -> vector<16x640xbf16>
    %cst_93 = arith.constant dense<0.000000e+00> : vector<16x128xf32>
    %268 = tpu.matmul %267, %254, %cst_93 {dimension_numbers = #tpu.dot_dimension_numbers<[1], [0], [0], [1], [0, 0, 1, 1], [], []>} : vector<16x640xbf16>, vector<640x128xbf16>, vector<16x128xf32> -> vector<16x128xf32>
    %269 = vector.broadcast %255 : vector<1x128xf32> to vector<16x128xf32>
    %270 = arith.addf %268, %269 : vector<16x128xf32>
    %cst_94 = arith.constant 0.000000e+00 : f32
    %271 = vector.broadcast %cst_94 : f32 to vector<16x128xf32>
    %272 = arith.cmpf oge, %270, %271 : vector<16x128xf32>
    %cst_95 = arith.constant 2.000000e-01 : f32
    %273 = vector.broadcast %cst_95 : f32 to vector<16x128xf32>
    %274 = arith.mulf %273, %270 : vector<16x128xf32>
    %275 = arith.select %272, %270, %274 : vector<16x128xi1>, vector<16x128xf32>
    %cst_96 = arith.constant dense<0.000000e+00> : vector<128xf32>
    %276 = vector.multi_reduction <add>, %275, %cst_96 [0] : vector<16x128xf32> to vector<128xf32>
    %277 = vector.shape_cast %276 : vector<128xf32> to vector<1x128xf32>
    %278 = arith.mulf %275, %275 : vector<16x128xf32>
    %cst_97 = arith.constant dense<0.000000e+00> : vector<128xf32>
    %279 = vector.multi_reduction <add>, %278, %cst_97 [0] : vector<16x128xf32> to vector<128xf32>
    %280 = vector.shape_cast %279 : vector<128xf32> to vector<1x128xf32>
    %cst_98 = arith.constant 6.250000e-02 : f32
    %281 = vector.broadcast %cst_98 : f32 to vector<1x128xf32>
    %282 = arith.mulf %277, %281 : vector<1x128xf32>
    %cst_99 = arith.constant 6.250000e-02 : f32
    %283 = vector.broadcast %cst_99 : f32 to vector<1x128xf32>
    %284 = arith.mulf %280, %283 : vector<1x128xf32>
    %285 = arith.mulf %282, %282 : vector<1x128xf32>
    %286 = arith.subf %284, %285 : vector<1x128xf32>
    %cst_100 = arith.constant 0.000000e+00 : f32
    %287 = vector.broadcast %cst_100 : f32 to vector<1x128xf32>
    %288 = arith.maximumf %286, %287 : vector<1x128xf32>
    %289 = vector.broadcast %282 : vector<1x128xf32> to vector<16x128xf32>
    %290 = arith.subf %275, %289 : vector<16x128xf32>
    %cst_101 = arith.constant 9.99999974E-6 : f32
    %291 = vector.broadcast %cst_101 : f32 to vector<1x128xf32>
    %292 = arith.addf %288, %291 : vector<1x128xf32>
    %293 = math.rsqrt %292 : vector<1x128xf32>
    %294 = vector.broadcast %293 : vector<1x128xf32> to vector<16x128xf32>
    %295 = arith.mulf %290, %294 : vector<16x128xf32>
    %296 = arith.addf %229, %295 : vector<16x128xf32>
    %c4 = arith.constant 4 : index
    %c0_102 = arith.constant 0 : index
    %c0_103 = arith.constant 0 : index
    %297 = vector.load %arg6[%c4, %c0_102, %c0_103] : memref<6x640x128xbf16, #tpu.memory_space<vmem>>, vector<1x640x128xbf16>
    %298 = vector.shape_cast %297 : vector<1x640x128xbf16> to vector<640x128xbf16>
    %299 = vector.extract_strided_slice %161 {offsets = [4, 0], sizes = [1, 128], strides = [1, 1]} : vector<6x128xf32> to vector<1x128xf32>
    %300 = arith.truncf %296 : vector<16x128xf32> to vector<16x128xbf16>
    %301 = vector.extract_strided_slice %300 {offsets = [2, 0], sizes = [1, 128], strides = [1, 1]} : vector<16x128xbf16> to vector<1x128xbf16>
    %302 = vector.extract_strided_slice %300 {offsets = [1, 0], sizes = [1, 128], strides = [1, 1]} : vector<16x128xbf16> to vector<1x128xbf16>
    %303 = vector.extract_strided_slice %300 {offsets = [14, 0], sizes = [1, 128], strides = [1, 1]} : vector<16x128xbf16> to vector<1x128xbf16>
    %304 = vector.extract_strided_slice %300 {offsets = [13, 0], sizes = [1, 128], strides = [1, 1]} : vector<16x128xbf16> to vector<1x128xbf16>
    %305 = tpu.concatenate %301, %302, %300, %303, %304 in 0 : vector<1x128xbf16>, vector<1x128xbf16>, vector<16x128xbf16>, vector<1x128xbf16>, vector<1x128xbf16> -> vector<20x128xbf16>
    %306 = vector.extract_strided_slice %305 {offsets = [0, 0], sizes = [16, 128], strides = [1, 1]} : vector<20x128xbf16> to vector<16x128xbf16>
    %307 = vector.extract_strided_slice %305 {offsets = [1, 0], sizes = [16, 128], strides = [1, 1]} : vector<20x128xbf16> to vector<16x128xbf16>
    %308 = vector.extract_strided_slice %305 {offsets = [2, 0], sizes = [16, 128], strides = [1, 1]} : vector<20x128xbf16> to vector<16x128xbf16>
    %309 = vector.extract_strided_slice %305 {offsets = [3, 0], sizes = [16, 128], strides = [1, 1]} : vector<20x128xbf16> to vector<16x128xbf16>
    %310 = vector.extract_strided_slice %305 {offsets = [4, 0], sizes = [16, 128], strides = [1, 1]} : vector<20x128xbf16> to vector<16x128xbf16>
    %311 = tpu.concatenate %306, %307, %308, %309, %310 in 1 : vector<16x128xbf16>, vector<16x128xbf16>, vector<16x128xbf16>, vector<16x128xbf16>, vector<16x128xbf16> -> vector<16x640xbf16>
    %cst_104 = arith.constant dense<0.000000e+00> : vector<16x128xf32>
    %312 = tpu.matmul %311, %298, %cst_104 {dimension_numbers = #tpu.dot_dimension_numbers<[1], [0], [0], [1], [0, 0, 1, 1], [], []>} : vector<16x640xbf16>, vector<640x128xbf16>, vector<16x128xf32> -> vector<16x128xf32>
    %313 = vector.broadcast %299 : vector<1x128xf32> to vector<16x128xf32>
    %314 = arith.addf %312, %313 : vector<16x128xf32>
    %cst_105 = arith.constant 0.000000e+00 : f32
    %315 = vector.broadcast %cst_105 : f32 to vector<16x128xf32>
    %316 = arith.cmpf oge, %314, %315 : vector<16x128xf32>
    %cst_106 = arith.constant 2.000000e-01 : f32
    %317 = vector.broadcast %cst_106 : f32 to vector<16x128xf32>
    %318 = arith.mulf %317, %314 : vector<16x128xf32>
    %319 = arith.select %316, %314, %318 : vector<16x128xi1>, vector<16x128xf32>
    %c5 = arith.constant 5 : index
    %c0_107 = arith.constant 0 : index
    %c0_108 = arith.constant 0 : index
    %320 = vector.load %arg6[%c5, %c0_107, %c0_108] : memref<6x640x128xbf16, #tpu.memory_space<vmem>>, vector<1x640x128xbf16>
    %321 = vector.shape_cast %320 : vector<1x640x128xbf16> to vector<640x128xbf16>
    %322 = vector.extract_strided_slice %161 {offsets = [5, 0], sizes = [1, 128], strides = [1, 1]} : vector<6x128xf32> to vector<1x128xf32>
    %323 = arith.truncf %319 : vector<16x128xf32> to vector<16x128xbf16>
    %324 = vector.extract_strided_slice %323 {offsets = [2, 0], sizes = [1, 128], strides = [1, 1]} : vector<16x128xbf16> to vector<1x128xbf16>
    %325 = vector.extract_strided_slice %323 {offsets = [1, 0], sizes = [1, 128], strides = [1, 1]} : vector<16x128xbf16> to vector<1x128xbf16>
    %326 = vector.extract_strided_slice %323 {offsets = [14, 0], sizes = [1, 128], strides = [1, 1]} : vector<16x128xbf16> to vector<1x128xbf16>
    %327 = vector.extract_strided_slice %323 {offsets = [13, 0], sizes = [1, 128], strides = [1, 1]} : vector<16x128xbf16> to vector<1x128xbf16>
    %328 = tpu.concatenate %324, %325, %323, %326, %327 in 0 : vector<1x128xbf16>, vector<1x128xbf16>, vector<16x128xbf16>, vector<1x128xbf16>, vector<1x128xbf16> -> vector<20x128xbf16>
    %329 = vector.extract_strided_slice %328 {offsets = [0, 0], sizes = [16, 128], strides = [1, 1]} : vector<20x128xbf16> to vector<16x128xbf16>
    %330 = vector.extract_strided_slice %328 {offsets = [1, 0], sizes = [16, 128], strides = [1, 1]} : vector<20x128xbf16> to vector<16x128xbf16>
    %331 = vector.extract_strided_slice %328 {offsets = [2, 0], sizes = [16, 128], strides = [1, 1]} : vector<20x128xbf16> to vector<16x128xbf16>
    %332 = vector.extract_strided_slice %328 {offsets = [3, 0], sizes = [16, 128], strides = [1, 1]} : vector<20x128xbf16> to vector<16x128xbf16>
    %333 = vector.extract_strided_slice %328 {offsets = [4, 0], sizes = [16, 128], strides = [1, 1]} : vector<20x128xbf16> to vector<16x128xbf16>
    %334 = tpu.concatenate %329, %330, %331, %332, %333 in 1 : vector<16x128xbf16>, vector<16x128xbf16>, vector<16x128xbf16>, vector<16x128xbf16>, vector<16x128xbf16> -> vector<16x640xbf16>
    %cst_109 = arith.constant dense<0.000000e+00> : vector<16x128xf32>
    %335 = tpu.matmul %334, %321, %cst_109 {dimension_numbers = #tpu.dot_dimension_numbers<[1], [0], [0], [1], [0, 0, 1, 1], [], []>} : vector<16x640xbf16>, vector<640x128xbf16>, vector<16x128xf32> -> vector<16x128xf32>
    %336 = vector.broadcast %322 : vector<1x128xf32> to vector<16x128xf32>
    %337 = arith.addf %335, %336 : vector<16x128xf32>
    %cst_110 = arith.constant 0.000000e+00 : f32
    %338 = vector.broadcast %cst_110 : f32 to vector<16x128xf32>
    %339 = arith.cmpf oge, %337, %338 : vector<16x128xf32>
    %cst_111 = arith.constant 2.000000e-01 : f32
    %340 = vector.broadcast %cst_111 : f32 to vector<16x128xf32>
    %341 = arith.mulf %340, %337 : vector<16x128xf32>
    %342 = arith.select %339, %337, %341 : vector<16x128xi1>, vector<16x128xf32>
    %cst_112 = arith.constant dense<0.000000e+00> : vector<128xf32>
    %343 = vector.multi_reduction <add>, %342, %cst_112 [0] : vector<16x128xf32> to vector<128xf32>
    %344 = vector.shape_cast %343 : vector<128xf32> to vector<1x128xf32>
    %345 = arith.mulf %342, %342 : vector<16x128xf32>
    %cst_113 = arith.constant dense<0.000000e+00> : vector<128xf32>
    %346 = vector.multi_reduction <add>, %345, %cst_113 [0] : vector<16x128xf32> to vector<128xf32>
    %347 = vector.shape_cast %346 : vector<128xf32> to vector<1x128xf32>
    %cst_114 = arith.constant 6.250000e-02 : f32
    %348 = vector.broadcast %cst_114 : f32 to vector<1x128xf32>
    %349 = arith.mulf %344, %348 : vector<1x128xf32>
    %cst_115 = arith.constant 6.250000e-02 : f32
    %350 = vector.broadcast %cst_115 : f32 to vector<1x128xf32>
    %351 = arith.mulf %347, %350 : vector<1x128xf32>
    %352 = arith.mulf %349, %349 : vector<1x128xf32>
    %353 = arith.subf %351, %352 : vector<1x128xf32>
    %cst_116 = arith.constant 0.000000e+00 : f32
    %354 = vector.broadcast %cst_116 : f32 to vector<1x128xf32>
    %355 = arith.maximumf %353, %354 : vector<1x128xf32>
    %356 = vector.broadcast %349 : vector<1x128xf32> to vector<16x128xf32>
    %357 = arith.subf %342, %356 : vector<16x128xf32>
    %cst_117 = arith.constant 9.99999974E-6 : f32
    %358 = vector.broadcast %cst_117 : f32 to vector<1x128xf32>
    %359 = arith.addf %355, %358 : vector<1x128xf32>
    %360 = math.rsqrt %359 : vector<1x128xf32>
    %361 = vector.broadcast %360 : vector<1x128xf32> to vector<16x128xf32>
    %362 = arith.mulf %357, %361 : vector<16x128xf32>
    %363 = arith.addf %296, %362 : vector<16x128xf32>
    %c0_118 = arith.constant 0 : index
    %c0_119 = arith.constant 0 : index
    %c0_120 = arith.constant 0 : index
    %364 = vector.load %arg8[%c0_118, %c0_119, %c0_120] : memref<4x128x128xbf16, #tpu.memory_space<vmem>>, vector<1x128x128xbf16>
    %365 = vector.shape_cast %364 : vector<1x128x128xbf16> to vector<128x128xbf16>
    %366 = vector.extract_strided_slice %162 {offsets = [0, 0], sizes = [1, 128], strides = [1, 1]} : vector<4x128xf32> to vector<1x128xf32>
    %367 = arith.truncf %363 : vector<16x128xf32> to vector<16x128xbf16>
    %cst_121 = arith.constant dense<0.000000e+00> : vector<16x128xf32>
    %368 = tpu.matmul %367, %365, %cst_121 {dimension_numbers = #tpu.dot_dimension_numbers<[1], [0], [0], [1], [0, 0, 1, 1], [], []>} : vector<16x128xbf16>, vector<128x128xbf16>, vector<16x128xf32> -> vector<16x128xf32>
    %369 = vector.broadcast %366 : vector<1x128xf32> to vector<16x128xf32>
    %370 = arith.addf %368, %369 : vector<16x128xf32>
    %cst_122 = arith.constant 0.000000e+00 : f32
    %371 = vector.broadcast %cst_122 : f32 to vector<16x128xf32>
    %372 = arith.cmpf oge, %370, %371 : vector<16x128xf32>
    %cst_123 = arith.constant 2.000000e-01 : f32
    %373 = vector.broadcast %cst_123 : f32 to vector<16x128xf32>
    %374 = arith.mulf %373, %370 : vector<16x128xf32>
    %375 = arith.select %372, %370, %374 : vector<16x128xi1>, vector<16x128xf32>
    %c1_124 = arith.constant 1 : index
    %c0_125 = arith.constant 0 : index
    %c0_126 = arith.constant 0 : index
    %376 = vector.load %arg8[%c1_124, %c0_125, %c0_126] : memref<4x128x128xbf16, #tpu.memory_space<vmem>>, vector<1x128x128xbf16>
    %377 = vector.shape_cast %376 : vector<1x128x128xbf16> to vector<128x128xbf16>
    %378 = vector.extract_strided_slice %162 {offsets = [1, 0], sizes = [1, 128], strides = [1, 1]} : vector<4x128xf32> to vector<1x128xf32>
    %379 = arith.truncf %375 : vector<16x128xf32> to vector<16x128xbf16>
    %cst_127 = arith.constant dense<0.000000e+00> : vector<16x128xf32>
    %380 = tpu.matmul %379, %377, %cst_127 {dimension_numbers = #tpu.dot_dimension_numbers<[1], [0], [0], [1], [0, 0, 1, 1], [], []>} : vector<16x128xbf16>, vector<128x128xbf16>, vector<16x128xf32> -> vector<16x128xf32>
    %381 = vector.broadcast %378 : vector<1x128xf32> to vector<16x128xf32>
    %382 = arith.addf %380, %381 : vector<16x128xf32>
    %cst_128 = arith.constant 0.000000e+00 : f32
    %383 = vector.broadcast %cst_128 : f32 to vector<16x128xf32>
    %384 = arith.cmpf oge, %382, %383 : vector<16x128xf32>
    %cst_129 = arith.constant 2.000000e-01 : f32
    %385 = vector.broadcast %cst_129 : f32 to vector<16x128xf32>
    %386 = arith.mulf %385, %382 : vector<16x128xf32>
    %387 = arith.select %384, %382, %386 : vector<16x128xi1>, vector<16x128xf32>
    %cst_130 = arith.constant dense<0.000000e+00> : vector<128xf32>
    %388 = vector.multi_reduction <add>, %387, %cst_130 [0] : vector<16x128xf32> to vector<128xf32>
    %389 = vector.shape_cast %388 : vector<128xf32> to vector<1x128xf32>
    %390 = arith.mulf %387, %387 : vector<16x128xf32>
    %cst_131 = arith.constant dense<0.000000e+00> : vector<128xf32>
    %391 = vector.multi_reduction <add>, %390, %cst_131 [0] : vector<16x128xf32> to vector<128xf32>
    %392 = vector.shape_cast %391 : vector<128xf32> to vector<1x128xf32>
    %cst_132 = arith.constant 6.250000e-02 : f32
    %393 = vector.broadcast %cst_132 : f32 to vector<1x128xf32>
    %394 = arith.mulf %389, %393 : vector<1x128xf32>
    %cst_133 = arith.constant 6.250000e-02 : f32
    %395 = vector.broadcast %cst_133 : f32 to vector<1x128xf32>
    %396 = arith.mulf %392, %395 : vector<1x128xf32>
    %397 = arith.mulf %394, %394 : vector<1x128xf32>
    %398 = arith.subf %396, %397 : vector<1x128xf32>
    %cst_134 = arith.constant 0.000000e+00 : f32
    %399 = vector.broadcast %cst_134 : f32 to vector<1x128xf32>
    %400 = arith.maximumf %398, %399 : vector<1x128xf32>
    %401 = vector.broadcast %394 : vector<1x128xf32> to vector<16x128xf32>
    %402 = arith.subf %387, %401 : vector<16x128xf32>
    %cst_135 = arith.constant 9.99999974E-6 : f32
    %403 = vector.broadcast %cst_135 : f32 to vector<1x128xf32>
    %404 = arith.addf %400, %403 : vector<1x128xf32>
    %405 = math.rsqrt %404 : vector<1x128xf32>
    %406 = vector.broadcast %405 : vector<1x128xf32> to vector<16x128xf32>
    %407 = arith.mulf %402, %406 : vector<16x128xf32>
    %408 = arith.addf %363, %407 : vector<16x128xf32>
    %c2_136 = arith.constant 2 : index
    %c0_137 = arith.constant 0 : index
    %c0_138 = arith.constant 0 : index
    %409 = vector.load %arg8[%c2_136, %c0_137, %c0_138] : memref<4x128x128xbf16, #tpu.memory_space<vmem>>, vector<1x128x128xbf16>
    %410 = vector.shape_cast %409 : vector<1x128x128xbf16> to vector<128x128xbf16>
    %411 = vector.extract_strided_slice %162 {offsets = [2, 0], sizes = [1, 128], strides = [1, 1]} : vector<4x128xf32> to vector<1x128xf32>
    %412 = arith.truncf %408 : vector<16x128xf32> to vector<16x128xbf16>
    %cst_139 = arith.constant dense<0.000000e+00> : vector<16x128xf32>
    %413 = tpu.matmul %412, %410, %cst_139 {dimension_numbers = #tpu.dot_dimension_numbers<[1], [0], [0], [1], [0, 0, 1, 1], [], []>} : vector<16x128xbf16>, vector<128x128xbf16>, vector<16x128xf32> -> vector<16x128xf32>
    %414 = vector.broadcast %411 : vector<1x128xf32> to vector<16x128xf32>
    %415 = arith.addf %413, %414 : vector<16x128xf32>
    %cst_140 = arith.constant 0.000000e+00 : f32
    %416 = vector.broadcast %cst_140 : f32 to vector<16x128xf32>
    %417 = arith.cmpf oge, %415, %416 : vector<16x128xf32>
    %cst_141 = arith.constant 2.000000e-01 : f32
    %418 = vector.broadcast %cst_141 : f32 to vector<16x128xf32>
    %419 = arith.mulf %418, %415 : vector<16x128xf32>
    %420 = arith.select %417, %415, %419 : vector<16x128xi1>, vector<16x128xf32>
    %c3_142 = arith.constant 3 : index
    %c0_143 = arith.constant 0 : index
    %c0_144 = arith.constant 0 : index
    %421 = vector.load %arg8[%c3_142, %c0_143, %c0_144] : memref<4x128x128xbf16, #tpu.memory_space<vmem>>, vector<1x128x128xbf16>
    %422 = vector.shape_cast %421 : vector<1x128x128xbf16> to vector<128x128xbf16>
    %423 = vector.extract_strided_slice %162 {offsets = [3, 0], sizes = [1, 128], strides = [1, 1]} : vector<4x128xf32> to vector<1x128xf32>
    %424 = arith.truncf %420 : vector<16x128xf32> to vector<16x128xbf16>
    %cst_145 = arith.constant dense<0.000000e+00> : vector<16x128xf32>
    %425 = tpu.matmul %424, %422, %cst_145 {dimension_numbers = #tpu.dot_dimension_numbers<[1], [0], [0], [1], [0, 0, 1, 1], [], []>} : vector<16x128xbf16>, vector<128x128xbf16>, vector<16x128xf32> -> vector<16x128xf32>
    %426 = vector.broadcast %423 : vector<1x128xf32> to vector<16x128xf32>
    %427 = arith.addf %425, %426 : vector<16x128xf32>
    %cst_146 = arith.constant 0.000000e+00 : f32
    %428 = vector.broadcast %cst_146 : f32 to vector<16x128xf32>
    %429 = arith.cmpf oge, %427, %428 : vector<16x128xf32>
    %cst_147 = arith.constant 2.000000e-01 : f32
    %430 = vector.broadcast %cst_147 : f32 to vector<16x128xf32>
    %431 = arith.mulf %430, %427 : vector<16x128xf32>
    %432 = arith.select %429, %427, %431 : vector<16x128xi1>, vector<16x128xf32>
    %cst_148 = arith.constant dense<0.000000e+00> : vector<128xf32>
    %433 = vector.multi_reduction <add>, %432, %cst_148 [0] : vector<16x128xf32> to vector<128xf32>
    %434 = vector.shape_cast %433 : vector<128xf32> to vector<1x128xf32>
    %435 = arith.mulf %432, %432 : vector<16x128xf32>
    %cst_149 = arith.constant dense<0.000000e+00> : vector<128xf32>
    %436 = vector.multi_reduction <add>, %435, %cst_149 [0] : vector<16x128xf32> to vector<128xf32>
    %437 = vector.shape_cast %436 : vector<128xf32> to vector<1x128xf32>
    %cst_150 = arith.constant 6.250000e-02 : f32
    %438 = vector.broadcast %cst_150 : f32 to vector<1x128xf32>
    %439 = arith.mulf %434, %438 : vector<1x128xf32>
    %cst_151 = arith.constant 6.250000e-02 : f32
    %440 = vector.broadcast %cst_151 : f32 to vector<1x128xf32>
    %441 = arith.mulf %437, %440 : vector<1x128xf32>
    %442 = arith.mulf %439, %439 : vector<1x128xf32>
    %443 = arith.subf %441, %442 : vector<1x128xf32>
    %cst_152 = arith.constant 0.000000e+00 : f32
    %444 = vector.broadcast %cst_152 : f32 to vector<1x128xf32>
    %445 = arith.maximumf %443, %444 : vector<1x128xf32>
    %446 = vector.broadcast %439 : vector<1x128xf32> to vector<16x128xf32>
    %447 = arith.subf %432, %446 : vector<16x128xf32>
    %cst_153 = arith.constant 9.99999974E-6 : f32
    %448 = vector.broadcast %cst_153 : f32 to vector<1x128xf32>
    %449 = arith.addf %445, %448 : vector<1x128xf32>
    %450 = math.rsqrt %449 : vector<1x128xf32>
    %451 = vector.broadcast %450 : vector<1x128xf32> to vector<16x128xf32>
    %452 = arith.mulf %447, %451 : vector<16x128xf32>
    %453 = arith.addf %408, %452 : vector<16x128xf32>
    %454 = arith.truncf %453 : vector<16x128xf32> to vector<16x128xbf16>
    %c0_154 = arith.constant 0 : index
    %c0_155 = arith.constant 0 : index
    %c0_156 = arith.constant 0 : index
    %455 = vector.load %arg10[%c0_154, %c0_155, %c0_156] : memref<1x16x128xbf16, #tpu.memory_space<vmem>>, vector<1x16x128xbf16>
    %456 = vector.shape_cast %455 : vector<1x16x128xbf16> to vector<16x128xbf16>
    %457 = vector.shape_cast %454 : vector<16x128xbf16> to vector<1x16x128xbf16>
    tpu.vector_store %arg10[%c0_154, %c0_155, %c0_156], %457 {strides = array<i32>} : memref<1x16x128xbf16, #tpu.memory_space<vmem>>, vector<1x16x128xbf16>,
    return
  }
  func.func @transform_0(%arg0: i32) -> (i32, i32, i32) {
    %c0_i32 = arith.constant 0 : i32
    %c0_i32_0 = arith.constant 0 : i32
    %c0_i32_1 = arith.constant 0 : i32
    return %arg0, %c0_i32, %c0_i32_0 : i32, i32, i32
  }
  func.func @transform_1(%arg0: i32) -> (i32, i32) {
    %c0_i32 = arith.constant 0 : i32
    %c0_i32_0 = arith.constant 0 : i32
    %c0_i32_1 = arith.constant 0 : i32
    return %c0_i32, %c0_i32_0 : i32, i32
  }
  func.func @transform_2(%arg0: i32) -> (i32, i32) {
    %c0_i32 = arith.constant 0 : i32
    %c0_i32_0 = arith.constant 0 : i32
    %c0_i32_1 = arith.constant 0 : i32
    return %c0_i32, %c0_i32_0 : i32, i32
  }
  func.func @transform_3(%arg0: i32) -> (i32, i32) {
    %c0_i32 = arith.constant 0 : i32
    %c0_i32_0 = arith.constant 0 : i32
    %c0_i32_1 = arith.constant 0 : i32
    return %c0_i32, %c0_i32_0 : i32, i32
  }
  func.func @transform_4(%arg0: i32) -> (i32, i32) {
    %c0_i32 = arith.constant 0 : i32
    %c0_i32_0 = arith.constant 0 : i32
    %c0_i32_1 = arith.constant 0 : i32
    return %c0_i32, %c0_i32_0 : i32, i32
  }
  func.func @transform_5(%arg0: i32) -> (i32, i32, i32) {
    %c0_i32 = arith.constant 0 : i32
    %c0_i32_0 = arith.constant 0 : i32
    %c0_i32_1 = arith.constant 0 : i32
    %c0_i32_2 = arith.constant 0 : i32
    return %c0_i32, %c0_i32_0, %c0_i32_1 : i32, i32, i32
  }
  func.func @transform_6(%arg0: i32) -> (i32, i32) {
    %c0_i32 = arith.constant 0 : i32
    %c0_i32_0 = arith.constant 0 : i32
    %c0_i32_1 = arith.constant 0 : i32
    return %c0_i32, %c0_i32_0 : i32, i32
  }
  func.func @transform_7(%arg0: i32) -> (i32, i32, i32) {
    %c0_i32 = arith.constant 0 : i32
    %c0_i32_0 = arith.constant 0 : i32
    %c0_i32_1 = arith.constant 0 : i32
    %c0_i32_2 = arith.constant 0 : i32
    return %c0_i32, %c0_i32_0, %c0_i32_1 : i32, i32, i32
  }
  func.func @transform_8(%arg0: i32) -> (i32, i32) {
    %c0_i32 = arith.constant 0 : i32
    %c0_i32_0 = arith.constant 0 : i32
    %c0_i32_1 = arith.constant 0 : i32
    return %c0_i32, %c0_i32_0 : i32, i32
  }
  func.func @transform_9(%arg0: i32) -> (i32, i32, i32) {
    %c0_i32 = arith.constant 0 : i32
    %c0_i32_0 = arith.constant 0 : i32
    %c0_i32_1 = arith.constant 0 : i32
    return %arg0, %c0_i32, %c0_i32_0 : i32, i32, i32
  }
}

</mosaic_0001>

<llo_original>
// kernel: encoder_forward.3
$region0: #{encoder_forward.3}
  #allocation0 [shape = 'u32[]', space=smem, size = 0x4, offset = 0x4, fixed_abs, tag = 'smem constant byte address 0x4 - core index']
  #allocation1 [shape = 'u32[144,128]{1,0:T(1,128)}', space=vmem, size = 0x12000, scoped, tag = 'internal scratch']
  #allocation2 [shape = 'f32[16,128]{1,0:T(8,128)}', space=vmem, size = 0x2000, scoped, tag = 'scratch operand']
  #allocation3 [shape = 'f32[16,128]{1,0:T(8,128)}', space=vmem, size = 0x2000, scoped, tag = 'scratch operand']
  #allocation4 [shape = 'f32[16,128]{1,0:T(8,128)}', space=vmem, size = 0x2000, scoped, tag = 'scratch operand']
  #allocation5 [shape = 'f32[16,128]{1,0:T(8,128)}', space=vmem, size = 0x2000, scoped, tag = 'scratch operand']
  #allocation6 [shape = 'f32[2,16,512]{2,1,0:T(8,128)}', space=vmem, size = 0x10000, scoped, tag = 'scratch operand']
  #allocation7 [shape = 'f32[2,16,512]{2,1,0:T(8,128)}', space=vmem, size = 0x10000, scoped, tag = 'scratch operand']
  #allocation8 [shape = 'f32[2,16,128]{2,1,0:T(8,128)}', space=vmem, size = 0x4000, scoped, tag = 'scratch operand']
  #allocation9 [shape = 'f32[2,16,128]{2,1,0:T(8,128)}', space=vmem, size = 0x4000, scoped, tag = 'scratch operand']
  %s0 = inlined_call_operand.vmem [shape: bf16[2,16,128], index: 0, kind: input, shape index: {}]
  %s1 = inlined_call_operand.vmem [shape: bf16[128,512], index: 1, kind: input, shape index: {}]
  %s2 = inlined_call_operand.vmem [shape: bf16[128,512], index: 2, kind: input, shape index: {}]
  %s3 = inlined_call_operand.vmem [shape: f32[1,512], index: 3, kind: input, shape index: {}]
  %s4 = inlined_call_operand.vmem [shape: bf16[128,512], index: 4, kind: input, shape index: {}]
  %s5 = inlined_call_operand.vmem [shape: bf16[128,512], index: 5, kind: input, shape index: {}]
  %s6 = inlined_call_operand.vmem [shape: f32[1,512], index: 6, kind: input, shape index: {}]
  %s7 = inlined_call_operand.vmem [shape: bf16[384,128], index: 7, kind: input, shape index: {}]
  %s8 = inlined_call_operand.vmem [shape: f32[1,128], index: 8, kind: input, shape index: {}]
  %s9 = inlined_call_operand.hbm [shape: f32[2,16,128], index: 9, kind: output, shape index: {}]
  %s10 = sld [smem:[#allocation0]]
  $region46: #{encoder_forward.3} parent=0
    _
  %s12 = ssub.s32 1, %s10
  %s13 = scalar_select 0, %s12, %s10
  $region1: #{encoder_forward.3} parent=0
    #allocation10 [shape = 'u8[16384]{0}', space=vmem, size = 0x4000, scoped, tag = 'output window, operand 0, single buffered']
    #allocation11 [shape = 's32[1]{0}', space=sflag, size = 0x4, scoped, tag = 'scoped memory for encoder_forward.3']
    %14 = vsyncpa [#allocation11], 0
    // Predicated region
    $region2: #{encoder_forward.3} parent=1 // pred_check
      _
    $region3: #{encoder_forward.3} parent=1 // pred_check_branch
      %16 = sbr.rel (0) target = $region5
    $region4: #{encoder_forward.3} parent=1 // pred_region
      _
    $region5: #{encoder_forward.3} parent=1 // pred_fallthru
      _
    // Predicated region
    $region6: #{encoder_forward.3} parent=1 // pred_check
      _
    $region7: #{encoder_forward.3} parent=1 // pred_check_branch
      %18 = sbr.rel (0) target = $region9
    $region8: #{encoder_forward.3} parent=1 // pred_region
      _
    $region9: #{encoder_forward.3} parent=1 // pred_fallthru
      _
    // Predicated region
    $region10: #{encoder_forward.3} parent=1 // pred_check
      _
    $region11: #{encoder_forward.3} parent=1 // pred_check_branch
      %20 = sbr.rel (0) target = $region13
    $region12: #{encoder_forward.3} parent=1 // pred_region
      _
    $region13: #{encoder_forward.3} parent=1 // pred_fallthru
      _
    // Predicated region
    $region14: #{encoder_forward.3} parent=1 // pred_check
      _
    $region15: #{encoder_forward.3} parent=1 // pred_check_branch
      %22 = sbr.rel (0) target = $region17
    $region16: #{encoder_forward.3} parent=1 // pred_region
      _
    $region17: #{encoder_forward.3} parent=1 // pred_fallthru
      _
    // Predicated region
    $region18: #{encoder_forward.3} parent=1 // pred_check
      _
    $region19: #{encoder_forward.3} parent=1 // pred_check_branch
      %24 = sbr.rel (0) target = $region21
    $region20: #{encoder_forward.3} parent=1 // pred_region
      _
    $region21: #{encoder_forward.3} parent=1 // pred_fallthru
      _
    // Predicated region
    $region22: #{encoder_forward.3} parent=1 // pred_check
      _
    $region23: #{encoder_forward.3} parent=1 // pred_check_branch
      %26 = sbr.rel (0) target = $region25
    $region24: #{encoder_forward.3} parent=1 // pred_region
      _
    $region25: #{encoder_forward.3} parent=1 // pred_fallthru
      _
    // Predicated region
    $region26: #{encoder_forward.3} parent=1 // pred_check
      _
    $region27: #{encoder_forward.3} parent=1 // pred_check_branch
      %28 = sbr.rel (0) target = $region29
    $region28: #{encoder_forward.3} parent=1 // pred_region
      _
    $region29: #{encoder_forward.3} parent=1 // pred_fallthru
      _
    // Predicated region
    $region30: #{encoder_forward.3} parent=1 // pred_check
      _
    $region31: #{encoder_forward.3} parent=1 // pred_check_branch
      %30 = sbr.rel (0) target = $region33
    $region32: #{encoder_forward.3} parent=1 // pred_region
      _
    $region33: #{encoder_forward.3} parent=1 // pred_fallthru
      _
    // Predicated region
    $region34: #{encoder_forward.3} parent=1 // pred_check
      _
    $region35: #{encoder_forward.3} parent=1 // pred_check_branch
      %32 = sbr.rel (0) target = $region37
    $region36: #{encoder_forward.3} parent=1 // pred_region
      _
    $region37: #{encoder_forward.3} parent=1 // pred_fallthru
      _
    %v34 = vld [vmem:[%s0] sm:$0xf]
    %v35 = vld [vmem:[%s0 + $0x4] sm:$0xf]
    %v36 = vld [vmem:[%s0 + $0x8] sm:$0xf]
    %v37 = vld [vmem:[%s0 + $0xc] sm:$0xf]
    %v38 = vld [vmem:[%s1] sm:$0xff]
    %v39 = vld [vmem:[%s1 + $0x8] sm:$0xff]
    %v40 = vld [vmem:[%s1 + $0x10] sm:$0xff]
    %v41 = vld [vmem:[%s1 + $0x18] sm:$0xff]
    %v42 = vld [vmem:[%s1 + $0x20] sm:$0xff]
    %v43 = vld [vmem:[%s1 + $0x28] sm:$0xff]
    %v44 = vld [vmem:[%s1 + $0x30] sm:$0xff]
    %v45 = vld [vmem:[%s1 + $0x38] sm:$0xff]
    %v46 = vld [vmem:[%s1 + $0x40] sm:$0xff]
    %v47 = vld [vmem:[%s1 + $0x48] sm:$0xff]
    %v48 = vld [vmem:[%s1 + $0x50] sm:$0xff]
    %v49 = vld [vmem:[%s1 + $0x58] sm:$0xff]
    %v50 = vld [vmem:[%s1 + $0x60] sm:$0xff]
    %v51 = vld [vmem:[%s1 + $0x68] sm:$0xff]
    %v52 = vld [vmem:[%s1 + $0x70] sm:$0xff]
    %v53 = vld [vmem:[%s1 + $0x78] sm:$0xff]
    %v54 = vld [vmem:[%s1 + $0x80] sm:$0xff]
    %v55 = vld [vmem:[%s1 + $0x88] sm:$0xff]
    %v56 = vld [vmem:[%s1 + $0x90] sm:$0xff]
    %v57 = vld [vmem:[%s1 + $0x98] sm:$0xff]
    %v58 = vld [vmem:[%s1 + $0xa0] sm:$0xff]
    %v59 = vld [vmem:[%s1 + $0xa8] sm:$0xff]
    %v60 = vld [vmem:[%s1 + $0xb0] sm:$0xff]
    %v61 = vld [vmem:[%s1 + $0xb8] sm:$0xff]
    %v62 = vld [vmem:[%s1 + $0xc0] sm:$0xff]
    %v63 = vld [vmem:[%s1 + $0xc8] sm:$0xff]
    %v64 = vld [vmem:[%s1 + $0xd0] sm:$0xff]
    %v65 = vld [vmem:[%s1 + $0xd8] sm:$0xff]
    %v66 = vld [vmem:[%s1 + $0xe0] sm:$0xff]
    %v67 = vld [vmem:[%s1 + $0xe8] sm:$0xff]
    %v68 = vld [vmem:[%s1 + $0xf0] sm:$0xff]
    %v69 = vld [vmem:[%s1 + $0xf8] sm:$0xff]
    %v70 = vld [vmem:[%s3] sm:$0xf]
    %v72 = vlaneseq
    %v73 = vshrl.u32 %v72, 7
    %v74 = vsub.s32 0, %v73
    %v75 = vrot.slane %v70, %v74
    %v76 = vlaneseq
    %v77 = vshrl.u32 %v76, 7
    %v78 = vsub.s32 1, %v77
    %v79 = vrot.slane %v70, %v78
    %v80 = vlaneseq
    %v81 = vshrl.u32 %v80, 7
    %v82 = vsub.s32 2, %v81
    %v83 = vrot.slane %v70, %v82
    %v84 = vlaneseq
    %v85 = vshrl.u32 %v84, 7
    %v86 = vsub.s32 3, %v85
    %v87 = vrot.slane %v70, %v86
    %v96 = vunpack.c.l.b16 %v34
    %v97 = vunpack.c.l.b16 %v35
    %v98 = vunpack.c.l.b16 %v36
    %v99 = vunpack.c.l.b16 %v37
    %v100 = vpack.c.b16 %v97, %v96
    %v101 = vpack.c.b16 %v99, %v98
    %v136 = vunpack.c.l.b16 %v38
    %v137 = vunpack.c.h.b16 %v38
    %v138 = vunpack.c.l.b16 %v39
    %v139 = vunpack.c.h.b16 %v39
    %v140 = vunpack.c.l.b16 %v40
    %v141 = vunpack.c.h.b16 %v40
    %v142 = vunpack.c.l.b16 %v41
    %v143 = vunpack.c.h.b16 %v41
    %v144 = vunpack.c.l.b16 %v42
    %v145 = vunpack.c.h.b16 %v42
    %v146 = vunpack.c.l.b16 %v43
    %v147 = vunpack.c.h.b16 %v43
    %v148 = vunpack.c.l.b16 %v44
    %v149 = vunpack.c.h.b16 %v44
    %v150 = vunpack.c.l.b16 %v45
    %v151 = vunpack.c.h.b16 %v45
    %v152 = vunpack.c.l.b16 %v46
    %v153 = vunpack.c.h.b16 %v46
    %v154 = vunpack.c.l.b16 %v47
    %v155 = vunpack.c.h.b16 %v47
    %v156 = vunpack.c.l.b16 %v48
    %v157 = vunpack.c.h.b16 %v48
    %v158 = vunpack.c.l.b16 %v49
    %v159 = vunpack.c.h.b16 %v49
    %v160 = vunpack.c.l.b16 %v50
    %v161 = vunpack.c.h.b16 %v50
    %v162 = vunpack.c.l.b16 %v51
    %v163 = vunpack.c.h.b16 %v51
    %v164 = vunpack.c.l.b16 %v52
    %v165 = vunpack.c.h.b16 %v52
    %v166 = vunpack.c.l.b16 %v53
    %v167 = vunpack.c.h.b16 %v53
    %v168 = vunpack.c.l.b16 %v54
    %v169 = vunpack.c.h.b16 %v54
    %v170 = vunpack.c.l.b16 %v55
    %v171 = vunpack.c.h.b16 %v55
    %v172 = vunpack.c.l.b16 %v56
    %v173 = vunpack.c.h.b16 %v56
    %v174 = vunpack.c.l.b16 %v57
    %v175 = vunpack.c.h.b16 %v57
    %v176 = vunpack.c.l.b16 %v58
    %v177 = vunpack.c.h.b16 %v58
    %v178 = vunpack.c.l.b16 %v59
    %v179 = vunpack.c.h.b16 %v59
    %v180 = vunpack.c.l.b16 %v60
    %v181 = vunpack.c.h.b16 %v60
    %v182 = vunpack.c.l.b16 %v61
    %v183 = vunpack.c.h.b16 %v61
    %v184 = vunpack.c.l.b16 %v62
    %v185 = vunpack.c.h.b16 %v62
    %v186 = vunpack.c.l.b16 %v63
    %v187 = vunpack.c.h.b16 %v63
    %v188 = vunpack.c.l.b16 %v64
    %v189 = vunpack.c.h.b16 %v64
    %v190 = vunpack.c.l.b16 %v65
    %v191 = vunpack.c.h.b16 %v65
    %v192 = vunpack.c.l.b16 %v66
    %v193 = vunpack.c.h.b16 %v66
    %v194 = vunpack.c.l.b16 %v67
    %v195 = vunpack.c.h.b16 %v67
    %v196 = vunpack.c.l.b16 %v68
    %v197 = vunpack.c.h.b16 %v68
    %v198 = vunpack.c.l.b16 %v69
    %v199 = vunpack.c.h.b16 %v69
    %v200 = vpack.c.b16 %v140, %v136
    %v201 = vpack.c.b16 %v141, %v137
    %v202 = vpack.c.b16 %v142, %v138
    %v203 = vpack.c.b16 %v143, %v139
    %v204 = vpack.c.b16 %v148, %v144
    %v205 = vpack.c.b16 %v149, %v145
    %v206 = vpack.c.b16 %v150, %v146
    %v207 = vpack.c.b16 %v151, %v147
    %v208 = vpack.c.b16 %v156, %v152
    %v209 = vpack.c.b16 %v157, %v153
    %v210 = vpack.c.b16 %v158, %v154
    %v211 = vpack.c.b16 %v159, %v155
    %v212 = vpack.c.b16 %v164, %v160
    %v213 = vpack.c.b16 %v165, %v161
    %v214 = vpack.c.b16 %v166, %v162
    %v215 = vpack.c.b16 %v167, %v163
    %v216 = vpack.c.b16 %v172, %v168
    %v217 = vpack.c.b16 %v173, %v169
    %v218 = vpack.c.b16 %v174, %v170
    %v219 = vpack.c.b16 %v175, %v171
    %v220 = vpack.c.b16 %v180, %v176
    %v221 = vpack.c.b16 %v181, %v177
    %v222 = vpack.c.b16 %v182, %v178
    %v223 = vpack.c.b16 %v183, %v179
    %v224 = vpack.c.b16 %v188, %v184
    %v225 = vpack.c.b16 %v189, %v185
    %v226 = vpack.c.b16 %v190, %v186
    %v227 = vpack.c.b16 %v191, %v187
    %v228 = vpack.c.b16 %v196, %v192
    %v229 = vpack.c.b16 %v197, %v193
    %v230 = vpack.c.b16 %v198, %v194
    %v231 = vpack.c.b16 %v199, %v195
    %264 = vmatprep.subr.bf16.mxu0 %v201
    %265 = vmatpush1.bf16.msra.mxu0 %v200
    %266 = vmatprep.subr.bf16.mxu0 %v205
    %267 = vmatpush1.bf16.msra.mxu0 %v204
    %268 = vmatprep.subr.bf16.mxu0 %v209
    %269 = vmatpush1.bf16.msra.mxu0 %v208
    %270 = vmatprep.subr.bf16.mxu0 %v213
    %271 = vmatpush1.bf16.msra.mxu0 %v212
    %272 = vmatprep.subr.bf16.mxu0 %v217
    %273 = vmatpush1.bf16.msra.mxu0 %v216
    %274 = vmatprep.subr.bf16.mxu0 %v221
    %275 = vmatpush1.bf16.msra.mxu0 %v220
    %276 = vmatprep.subr.bf16.mxu0 %v225
    %277 = vmatpush1.bf16.msra.mxu0 %v224
    %278 = vmatprep.subr.bf16.mxu0 %v229
    %279 = vmatpush1.bf16.msra.mxu0 %v228
    %280 = vmatprep.subr.bf16.mxu0 0
    %281 = vmatpush1.bf16.msra.mxu0 0
    %282 = vmatprep.subr.bf16.mxu0 0
    %283 = vmatpush1.bf16.msra.mxu0 0
    %284 = vmatprep.subr.bf16.mxu0 0
    %285 = vmatpush1.bf16.msra.mxu0 0
    %286 = vmatprep.subr.bf16.mxu0 0
    %287 = vmatpush1.bf16.msra.mxu0 0
    %288 = vmatprep.subr.bf16.mxu0 0
    %289 = vmatpush1.bf16.msra.mxu0 0
    %290 = vmatprep.subr.bf16.mxu0 0
    %291 = vmatpush1.bf16.msra.mxu0 0
    %292 = vmatprep.subr.bf16.mxu0 0
    %293 = vmatpush1.bf16.msra.mxu0 0
    %294 = vmatprep.subr.bf16.mxu0 0
    %295 = vmatpush1.bf16.msra.mxu0 0
    %296 = vmatprep.mubr.bf16.mxu0 0
    %297 = vmatmul.mubr.bf16.gmra.mrb[0].mxu0 %v100
    %v298 = vpop.f32.mrb[0].mxu0
    %v299 = vadd.f32 %v75, %v298
    %v300 = vpop.f32.mrb[0].mxu0
    %v301 = vadd.f32 %v79, %v300
    %v302 = vpop.f32.mrb[0].mxu0
    %v303 = vadd.f32 %v75, %v302
    %v304 = vpop.f32.mrb[0].mxu0
    %v305 = vadd.f32 %v79, %v304
    %306 = vmatprep.mubr.bf16.mxu0 0
    %307 = vmatmul.mubr.bf16.gmra.mrb[0].mxu0 %v101
    %v308 = vpop.f32.mrb[0].mxu0
    %v309 = vadd.f32 %v75, %v308
    %v310 = vpop.f32.mrb[0].mxu0
    %v311 = vadd.f32 %v79, %v310
    %v312 = vpop.f32.mrb[0].mxu0
    %v313 = vadd.f32 %v75, %v312
    %v314 = vpop.f32.mrb[0].mxu0
    %v315 = vadd.f32 %v79, %v314
    %316 = vdwg.mxu0
    %317 = vmatprep.subr.bf16.mxu0 %v203
    %318 = vmatpush1.bf16.msra.mxu0 %v202
    %319 = vmatprep.subr.bf16.mxu0 %v207
    %320 = vmatpush1.bf16.msra.mxu0 %v206
    %321 = vmatprep.subr.bf16.mxu0 %v211
    %322 = vmatpush1.bf16.msra.mxu0 %v210
    %323 = vmatprep.subr.bf16.mxu0 %v215
    %324 = vmatpush1.bf16.msra.mxu0 %v214
    %325 = vmatprep.subr.bf16.mxu0 %v219
    %326 = vmatpush1.bf16.msra.mxu0 %v218
    %327 = vmatprep.subr.bf16.mxu0 %v223
    %328 = vmatpush1.bf16.msra.mxu0 %v222
    %329 = vmatprep.subr.bf16.mxu0 %v227
    %330 = vmatpush1.bf16.msra.mxu0 %v226
    %331 = vmatprep.subr.bf16.mxu0 %v231
    %332 = vmatpush1.bf16.msra.mxu0 %v230
    %333 = vmatprep.subr.bf16.mxu0 0
    %334 = vmatpush1.bf16.msra.mxu0 0
    %335 = vmatprep.subr.bf16.mxu0 0
    %336 = vmatpush1.bf16.msra.mxu0 0
    %337 = vmatprep.subr.bf16.mxu0 0
    %338 = vmatpush1.bf16.msra.mxu0 0
    %339 = vmatprep.subr.bf16.mxu0 0
    %340 = vmatpush1.bf16.msra.mxu0 0
    %341 = vmatprep.subr.bf16.mxu0 0
    %342 = vmatpush1.bf16.msra.mxu0 0
    %343 = vmatprep.subr.bf16.mxu0 0
    %344 = vmatpush1.bf16.msra.mxu0 0
    %345 = vmatprep.subr.bf16.mxu0 0
    %346 = vmatpush1.bf16.msra.mxu0 0
    %347 = vmatprep.subr.bf16.mxu0 0
    %348 = vmatpush1.bf16.msra.mxu0 0
    %349 = vmatprep.mubr.bf16.mxu0 0
    %350 = vmatmul.mubr.bf16.gmra.mrb[0].mxu0 %v100
    %v351 = vpop.f32.mrb[0].mxu0
    %v352 = vadd.f32 %v83, %v351
    %v353 = vpop.f32.mrb[0].mxu0
    %v354 = vadd.f32 %v87, %v353
    %v355 = vpop.f32.mrb[0].mxu0
    %v356 = vadd.f32 %v83, %v355
    %v357 = vpop.f32.mrb[0].mxu0
    %v358 = vadd.f32 %v87, %v357
    %359 = vmatprep.mubr.bf16.mxu0 0
    %360 = vmatmul.mubr.bf16.gmra.mrb[0].mxu0 %v101
    %v361 = vpop.f32.mrb[0].mxu0
    %v362 = vadd.f32 %v83, %v361
    %v363 = vpop.f32.mrb[0].mxu0
    %v364 = vadd.f32 %v87, %v363
    %v365 = vpop.f32.mrb[0].mxu0
    %v366 = vadd.f32 %v83, %v365
    %v367 = vpop.f32.mrb[0].mxu0
    %v368 = vadd.f32 %v87, %v367
    %369 = vdwg.mxu0
    %370 = vst [vmem:[#allocation6] sm:$0xff] %v299
    %371 = vst [vmem:[#allocation6 + $0x8] sm:$0xff] %v301
    %372 = vst [vmem:[#allocation6 + $0x10] sm:$0xff] %v352
    %373 = vst [vmem:[#allocation6 + $0x18] sm:$0xff] %v354
    %374 = vst [vmem:[#allocation6 + $0x20] sm:$0xff] %v303
    %375 = vst [vmem:[#allocation6 + $0x28] sm:$0xff] %v305
    %376 = vst [vmem:[#allocation6 + $0x30] sm:$0xff] %v356
    %377 = vst [vmem:[#allocation6 + $0x38] sm:$0xff] %v358
    %378 = vst [vmem:[#allocation6 + $0x40] sm:$0xff] %v309
    %379 = vst [vmem:[#allocation6 + $0x48] sm:$0xff] %v311
    %380 = vst [vmem:[#allocation6 + $0x50] sm:$0xff] %v362
    %381 = vst [vmem:[#allocation6 + $0x58] sm:$0xff] %v364
    %382 = vst [vmem:[#allocation6 + $0x60] sm:$0xff] %v313
    %383 = vst [vmem:[#allocation6 + $0x68] sm:$0xff] %v315
    %384 = vst [vmem:[#allocation6 + $0x70] sm:$0xff] %v366
    %385 = vst [vmem:[#allocation6 + $0x78] sm:$0xff] %v368
    %v386 = vld [vmem:[%s4] sm:$0xff]
    %v387 = vld [vmem:[%s4 + $0x8] sm:$0xff]
    %v388 = vld [vmem:[%s4 + $0x10] sm:$0xff]
    %v389 = vld [vmem:[%s4 + $0x18] sm:$0xff]
    %v390 = vld [vmem:[%s4 + $0x20] sm:$0xff]
    %v391 = vld [vmem:[%s4 + $0x28] sm:$0xff]
    %v392 = vld [vmem:[%s4 + $0x30] sm:$0xff]
    %v393 = vld [vmem:[%s4 + $0x38] sm:$0xff]
    %v394 = vld [vmem:[%s4 + $0x40] sm:$0xff]
    %v395 = vld [vmem:[%s4 + $0x48] sm:$0xff]
    %v396 = vld [vmem:[%s4 + $0x50] sm:$0xff]
    %v397 = vld [vmem:[%s4 + $0x58] sm:$0xff]
    %v398 = vld [vmem:[%s4 + $0x60] sm:$0xff]
    %v399 = vld [vmem:[%s4 + $0x68] sm:$0xff]
    %v400 = vld [vmem:[%s4 + $0x70] sm:$0xff]
    %v401 = vld [vmem:[%s4 + $0x78] sm:$0xff]
    %v402 = vld [vmem:[%s4 + $0x80] sm:$0xff]
    %v403 = vld [vmem:[%s4 + $0x88] sm:$0xff]
    %v404 = vld [vmem:[%s4 + $0x90] sm:$0xff]
    %v405 = vld [vmem:[%s4 + $0x98] sm:$0xff]
    %v406 = vld [vmem:[%s4 + $0xa0] sm:$0xff]
    %v407 = vld [vmem:[%s4 + $0xa8] sm:$0xff]
    %v408 = vld [vmem:[%s4 + $0xb0] sm:$0xff]
    %v409 = vld [vmem:[%s4 + $0xb8] sm:$0xff]
    %v410 = vld [vmem:[%s4 + $0xc0] sm:$0xff]
    %v411 = vld [vmem:[%s4 + $0xc8] sm:$0xff]
    %v412 = vld [vmem:[%s4 + $0xd0] sm:$0xff]
    %v413 = vld [vmem:[%s4 + $0xd8] sm:$0xff]
    %v414 = vld [vmem:[%s4 + $0xe0] sm:$0xff]
    %v415 = vld [vmem:[%s4 + $0xe8] sm:$0xff]
    %v416 = vld [vmem:[%s4 + $0xf0] sm:$0xff]
    %v417 = vld [vmem:[%s4 + $0xf8] sm:$0xff]
    %v418 = vld [vmem:[%s6] sm:$0xf]
    %v420 = vlaneseq
    %v421 = vshrl.u32 %v420, 7
    %v422 = vsub.s32 0, %v421
    %v423 = vrot.slane %v418, %v422
    %v424 = vlaneseq
    %v425 = vshrl.u32 %v424, 7
    %v426 = vsub.s32 1, %v425
    %v427 = vrot.slane %v418, %v426
    %v428 = vlaneseq
    %v429 = vshrl.u32 %v428, 7
    %v430 = vsub.s32 2, %v429
    %v431 = vrot.slane %v418, %v430
    %v432 = vlaneseq
    %v433 = vshrl.u32 %v432, 7
    %v434 = vsub.s32 3, %v433
    %v435 = vrot.slane %v418, %v434
    %v472 = vunpack.c.l.b16 %v386
    %v473 = vunpack.c.h.b16 %v386
    %v474 = vunpack.c.l.b16 %v387
    %v475 = vunpack.c.h.b16 %v387
    %v476 = vunpack.c.l.b16 %v388
    %v477 = vunpack.c.h.b16 %v388
    %v478 = vunpack.c.l.b16 %v389
    %v479 = vunpack.c.h.b16 %v389
    %v480 = vunpack.c.l.b16 %v390
    %v481 = vunpack.c.h.b16 %v390
    %v482 = vunpack.c.l.b16 %v391
    %v483 = vunpack.c.h.b16 %v391
    %v484 = vunpack.c.l.b16 %v392
    %v485 = vunpack.c.h.b16 %v392
    %v486 = vunpack.c.l.b16 %v393
    %v487 = vunpack.c.h.b16 %v393
    %v488 = vunpack.c.l.b16 %v394
    %v489 = vunpack.c.h.b16 %v394
    %v490 = vunpack.c.l.b16 %v395
    %v491 = vunpack.c.h.b16 %v395
    %v492 = vunpack.c.l.b16 %v396
    %v493 = vunpack.c.h.b16 %v396
    %v494 = vunpack.c.l.b16 %v397
    %v495 = vunpack.c.h.b16 %v397
    %v496 = vunpack.c.l.b16 %v398
    %v497 = vunpack.c.h.b16 %v398
    %v498 = vunpack.c.l.b16 %v399
    %v499 = vunpack.c.h.b16 %v399
    %v500 = vunpack.c.l.b16 %v400
    %v501 = vunpack.c.h.b16 %v400
    %v502 = vunpack.c.l.b16 %v401
    %v503 = vunpack.c.h.b16 %v401
    %v504 = vunpack.c.l.b16 %v402
    %v505 = vunpack.c.h.b16 %v402
    %v506 = vunpack.c.l.b16 %v403
    %v507 = vunpack.c.h.b16 %v403
    %v508 = vunpack.c.l.b16 %v404
    %v509 = vunpack.c.h.b16 %v404
    %v510 = vunpack.c.l.b16 %v405
    %v511 = vunpack.c.h.b16 %v405
    %v512 = vunpack.c.l.b16 %v406
    %v513 = vunpack.c.h.b16 %v406
    %v514 = vunpack.c.l.b16 %v407
    %v515 = vunpack.c.h.b16 %v407
    %v516 = vunpack.c.l.b16 %v408
    %v517 = vunpack.c.h.b16 %v408
    %v518 = vunpack.c.l.b16 %v409
    %v519 = vunpack.c.h.b16 %v409
    %v520 = vunpack.c.l.b16 %v410
    %v521 = vunpack.c.h.b16 %v410
    %v522 = vunpack.c.l.b16 %v411
    %v523 = vunpack.c.h.b16 %v411
    %v524 = vunpack.c.l.b16 %v412
    %v525 = vunpack.c.h.b16 %v412
    %v526 = vunpack.c.l.b16 %v413
    %v527 = vunpack.c.h.b16 %v413
    %v528 = vunpack.c.l.b16 %v414
    %v529 = vunpack.c.h.b16 %v414
    %v530 = vunpack.c.l.b16 %v415
    %v531 = vunpack.c.h.b16 %v415
    %v532 = vunpack.c.l.b16 %v416
    %v533 = vunpack.c.h.b16 %v416
    %v534 = vunpack.c.l.b16 %v417
    %v535 = vunpack.c.h.b16 %v417
    %v536 = vpack.c.b16 %v476, %v472
    %v537 = vpack.c.b16 %v477, %v473
    %v538 = vpack.c.b16 %v478, %v474
    %v539 = vpack.c.b16 %v479, %v475
    %v540 = vpack.c.b16 %v484, %v480
    %v541 = vpack.c.b16 %v485, %v481
    %v542 = vpack.c.b16 %v486, %v482
    %v543 = vpack.c.b16 %v487, %v483
    %v544 = vpack.c.b16 %v492, %v488
    %v545 = vpack.c.b16 %v493, %v489
    %v546 = vpack.c.b16 %v494, %v490
    %v547 = vpack.c.b16 %v495, %v491
    %v548 = vpack.c.b16 %v500, %v496
    %v549 = vpack.c.b16 %v501, %v497
    %v550 = vpack.c.b16 %v502, %v498
    %v551 = vpack.c.b16 %v503, %v499
    %v552 = vpack.c.b16 %v508, %v504
    %v553 = vpack.c.b16 %v509, %v505
    %v554 = vpack.c.b16 %v510, %v506
    %v555 = vpack.c.b16 %v511, %v507
    %v556 = vpack.c.b16 %v516, %v512
    %v557 = vpack.c.b16 %v517, %v513
    %v558 = vpack.c.b16 %v518, %v514
    %v559 = vpack.c.b16 %v519, %v515
    %v560 = vpack.c.b16 %v524, %v520
    %v561 = vpack.c.b16 %v525, %v521
    %v562 = vpack.c.b16 %v526, %v522
    %v563 = vpack.c.b16 %v527, %v523
    %v564 = vpack.c.b16 %v532, %v528
    %v565 = vpack.c.b16 %v533, %v529
    %v566 = vpack.c.b16 %v534, %v530
    %v567 = vpack.c.b16 %v535, %v531
    %600 = vmatprep.subr.bf16.mxu0 %v537
    %601 = vmatpush1.bf16.msra.mxu0 %v536
    %602 = vmatprep.subr.bf16.mxu0 %v541
    %603 = vmatpush1.bf16.msra.mxu0 %v540
    %604 = vmatprep.subr.bf16.mxu0 %v545
    %605 = vmatpush1.bf16.msra.mxu0 %v544
    %606 = vmatprep.subr.bf16.mxu0 %v549
    %607 = vmatpush1.bf16.msra.mxu0 %v548
    %608 = vmatprep.subr.bf16.mxu0 %v553
    %609 = vmatpush1.bf16.msra.mxu0 %v552
    %610 = vmatprep.subr.bf16.mxu0 %v557
    %611 = vmatpush1.bf16.msra.mxu0 %v556
    %612 = vmatprep.subr.bf16.mxu0 %v561
    %613 = vmatpush1.bf16.msra.mxu0 %v560
    %614 = vmatprep.subr.bf16.mxu0 %v565
    %615 = vmatpush1.bf16.msra.mxu0 %v564
    %616 = vmatprep.subr.bf16.mxu0 0
    %617 = vmatpush1.bf16.msra.mxu0 0
    %618 = vmatprep.subr.bf16.mxu0 0
    %619 = vmatpush1.bf16.msra.mxu0 0
    %620 = vmatprep.subr.bf16.mxu0 0
    %621 = vmatpush1.bf16.msra.mxu0 0
    %622 = vmatprep.subr.bf16.mxu0 0
    %623 = vmatpush1.bf16.msra.mxu0 0
    %624 = vmatprep.subr.bf16.mxu0 0
    %625 = vmatpush1.bf16.msra.mxu0 0
    %626 = vmatprep.subr.bf16.mxu0 0
    %627 = vmatpush1.bf16.msra.mxu0 0
    %628 = vmatprep.subr.bf16.mxu0 0
    %629 = vmatpush1.bf16.msra.mxu0 0
    %630 = vmatprep.subr.bf16.mxu0 0
    %631 = vmatpush1.bf16.msra.mxu0 0
    %632 = vmatprep.mubr.bf16.mxu0 0
    %633 = vmatmul.mubr.bf16.gmra.mrb[0].mxu0 %v100
    %v634 = vpop.f32.mrb[0].mxu0
    %v635 = vadd.f32 %v423, %v634
    %v636 = vpop.f32.mrb[0].mxu0
    %v637 = vadd.f32 %v427, %v636
    %v638 = vpop.f32.mrb[0].mxu0
    %v639 = vadd.f32 %v423, %v638
    %v640 = vpop.f32.mrb[0].mxu0
    %v641 = vadd.f32 %v427, %v640
    %642 = vmatprep.mubr.bf16.mxu0 0
    %643 = vmatmul.mubr.bf16.gmra.mrb[0].mxu0 %v101
    %v644 = vpop.f32.mrb[0].mxu0
    %v645 = vadd.f32 %v423, %v644
    %v646 = vpop.f32.mrb[0].mxu0
    %v647 = vadd.f32 %v427, %v646
    %v648 = vpop.f32.mrb[0].mxu0
    %v649 = vadd.f32 %v423, %v648
    %v650 = vpop.f32.mrb[0].mxu0
    %v651 = vadd.f32 %v427, %v650
    %652 = vdwg.mxu0
    %653 = vmatprep.subr.bf16.mxu0 %v539
    %654 = vmatpush1.bf16.msra.mxu0 %v538
    %655 = vmatprep.subr.bf16.mxu0 %v543
    %656 = vmatpush1.bf16.msra.mxu0 %v542
    %657 = vmatprep.subr.bf16.mxu0 %v547
    %658 = vmatpush1.bf16.msra.mxu0 %v546
    %659 = vmatprep.subr.bf16.mxu0 %v551
    %660 = vmatpush1.bf16.msra.mxu0 %v550
    %661 = vmatprep.subr.bf16.mxu0 %v555
    %662 = vmatpush1.bf16.msra.mxu0 %v554
    %663 = vmatprep.subr.bf16.mxu0 %v559
    %664 = vmatpush1.bf16.msra.mxu0 %v558
    %665 = vmatprep.subr.bf16.mxu0 %v563
    %666 = vmatpush1.bf16.msra.mxu0 %v562
    %667 = vmatprep.subr.bf16.mxu0 %v567
    %668 = vmatpush1.bf16.msra.mxu0 %v566
    %669 = vmatprep.subr.bf16.mxu0 0
    %670 = vmatpush1.bf16.msra.mxu0 0
    %671 = vmatprep.subr.bf16.mxu0 0
    %672 = vmatpush1.bf16.msra.mxu0 0
    %673 = vmatprep.subr.bf16.mxu0 0
    %674 = vmatpush1.bf16.msra.mxu0 0
    %675 = vmatprep.subr.bf16.mxu0 0
    %676 = vmatpush1.bf16.msra.mxu0 0
    %677 = vmatprep.subr.bf16.mxu0 0
    %678 = vmatpush1.bf16.msra.mxu0 0
    %679 = vmatprep.subr.bf16.mxu0 0
    %680 = vmatpush1.bf16.msra.mxu0 0
    %681 = vmatprep.subr.bf16.mxu0 0
    %682 = vmatpush1.bf16.msra.mxu0 0
    %683 = vmatprep.subr.bf16.mxu0 0
    %684 = vmatpush1.bf16.msra.mxu0 0
    %685 = vmatprep.mubr.bf16.mxu0 0
    %686 = vmatmul.mubr.bf16.gmra.mrb[0].mxu0 %v100
    %v687 = vpop.f32.mrb[0].mxu0
    %v688 = vadd.f32 %v431, %v687
    %v689 = vpop.f32.mrb[0].mxu0
    %v690 = vadd.f32 %v435, %v689
    %v691 = vpop.f32.mrb[0].mxu0
    %v692 = vadd.f32 %v431, %v691
    %v693 = vpop.f32.mrb[0].mxu0
    %v694 = vadd.f32 %v435, %v693
    %695 = vmatprep.mubr.bf16.mxu0 0
    %696 = vmatmul.mubr.bf16.gmra.mrb[0].mxu0 %v101
    %v697 = vpop.f32.mrb[0].mxu0
    %v698 = vadd.f32 %v431, %v697
    %v699 = vpop.f32.mrb[0].mxu0
    %v700 = vadd.f32 %v435, %v699
    %v701 = vpop.f32.mrb[0].mxu0
    %v702 = vadd.f32 %v431, %v701
    %v703 = vpop.f32.mrb[0].mxu0
    %v704 = vadd.f32 %v435, %v703
    %705 = vdwg.mxu0
    %706 = vst [vmem:[#allocation7] sm:$0xff] %v635
    %707 = vst [vmem:[#allocation7 + $0x8] sm:$0xff] %v637
    %708 = vst [vmem:[#allocation7 + $0x10] sm:$0xff] %v688
    %709 = vst [vmem:[#allocation7 + $0x18] sm:$0xff] %v690
    %710 = vst [vmem:[#allocation7 + $0x20] sm:$0xff] %v639
    %711 = vst [vmem:[#allocation7 + $0x28] sm:$0xff] %v641
    %712 = vst [vmem:[#allocation7 + $0x30] sm:$0xff] %v692
    %713 = vst [vmem:[#allocation7 + $0x38] sm:$0xff] %v694
    %714 = vst [vmem:[#allocation7 + $0x40] sm:$0xff] %v645
    %715 = vst [vmem:[#allocation7 + $0x48] sm:$0xff] %v647
    %716 = vst [vmem:[#allocation7 + $0x50] sm:$0xff] %v698
    %717 = vst [vmem:[#allocation7 + $0x58] sm:$0xff] %v700
    %718 = vst [vmem:[#allocation7 + $0x60] sm:$0xff] %v649
    %719 = vst [vmem:[#allocation7 + $0x68] sm:$0xff] %v651
    %720 = vst [vmem:[#allocation7 + $0x70] sm:$0xff] %v702
    %721 = vst [vmem:[#allocation7 + $0x78] sm:$0xff] %v704
    %722 = vst [vmem:[#allocation2] sm:$0xff] 0.0
    %723 = vst [vmem:[#allocation2 + $0x8] sm:$0xff] 0.0
    %724 = vst [vmem:[#allocation3] sm:$0xff] 0.0
    %725 = vst [vmem:[#allocation3 + $0x8] sm:$0xff] 0.0
    %726 = vst [vmem:[#allocation4] sm:$0xff] 0.0
    %727 = vst [vmem:[#allocation4 + $0x8] sm:$0xff] 0.0
    %728 = vst [vmem:[#allocation5] sm:$0xff] 0.0
    %729 = vst [vmem:[#allocation5 + $0x8] sm:$0xff] 0.0
    %v730 = vld [vmem:[#allocation6] sm:$0xff]
    %v731 = vld [vmem:[#allocation6 + $0x8] sm:$0xff]
    %v732 = vld [vmem:[#allocation6 + $0x10] sm:$0xff]
    %v733 = vld [vmem:[#allocation6 + $0x18] sm:$0xff]
    %v734 = vld [vmem:[#allocation6 + $0x20] sm:$0xff]
    %v735 = vld [vmem:[#allocation6 + $0x28] sm:$0xff]
    %v736 = vld [vmem:[#allocation6 + $0x30] sm:$0xff]
    %v737 = vld [vmem:[#allocation6 + $0x38] sm:$0xff]
    %v738 = vld [vmem:[#allocation2] sm:$0xff]
    %v739 = vld [vmem:[#allocation2 + $0x8] sm:$0xff]
    %v740 = vpack.c.bf16 %v739, %v738
    %v741 = vld [vmem:[%s2] sm:$0xff]
    %v742 = vld [vmem:[%s2 + $0x8] sm:$0xff]
    %v743 = vld [vmem:[%s2 + $0x10] sm:$0xff]
    %v744 = vld [vmem:[%s2 + $0x18] sm:$0xff]
    %v745 = vld [vmem:[%s2 + $0x20] sm:$0xff]
    %v746 = vld [vmem:[%s2 + $0x28] sm:$0xff]
    %v747 = vld [vmem:[%s2 + $0x30] sm:$0xff]
    %v748 = vld [vmem:[%s2 + $0x38] sm:$0xff]
    %v749 = vld [vmem:[%s2 + $0x40] sm:$0xff]
    %v750 = vld [vmem:[%s2 + $0x48] sm:$0xff]
    %v751 = vld [vmem:[%s2 + $0x50] sm:$0xff]
    %v752 = vld [vmem:[%s2 + $0x58] sm:$0xff]
    %v753 = vld [vmem:[%s2 + $0x60] sm:$0xff]
    %v754 = vld [vmem:[%s2 + $0x68] sm:$0xff]
    %v755 = vld [vmem:[%s2 + $0x70] sm:$0xff]
    %v756 = vld [vmem:[%s2 + $0x78] sm:$0xff]
    %v757 = vld [vmem:[%s2 + $0x80] sm:$0xff]
    %v758 = vld [vmem:[%s2 + $0x88] sm:$0xff]
    %v759 = vld [vmem:[%s2 + $0x90] sm:$0xff]
    %v760 = vld [vmem:[%s2 + $0x98] sm:$0xff]
    %v761 = vld [vmem:[%s2 + $0xa0] sm:$0xff]
    %v762 = vld [vmem:[%s2 + $0xa8] sm:$0xff]
    %v763 = vld [vmem:[%s2 + $0xb0] sm:$0xff]
    %v764 = vld [vmem:[%s2 + $0xb8] sm:$0xff]
    %v765 = vld [vmem:[%s2 + $0xc0] sm:$0xff]
    %v766 = vld [vmem:[%s2 + $0xc8] sm:$0xff]
    %v767 = vld [vmem:[%s2 + $0xd0] sm:$0xff]
    %v768 = vld [vmem:[%s2 + $0xd8] sm:$0xff]
    %v769 = vld [vmem:[%s2 + $0xe0] sm:$0xff]
    %v770 = vld [vmem:[%s2 + $0xe8] sm:$0xff]
    %v771 = vld [vmem:[%s2 + $0xf0] sm:$0xff]
    %v772 = vld [vmem:[%s2 + $0xf8] sm:$0xff]
    %v805 = vunpack.c.l.b16 %v741
    %v806 = vunpack.c.h.b16 %v741
    %v807 = vunpack.c.l.b16 %v742
    %v808 = vunpack.c.h.b16 %v742
    %v809 = vunpack.c.l.b16 %v743
    %v810 = vunpack.c.h.b16 %v743
    %v811 = vunpack.c.l.b16 %v744
    %v812 = vunpack.c.h.b16 %v744
    %v813 = vunpack.c.l.b16 %v745
    %v814 = vunpack.c.h.b16 %v745
    %v815 = vunpack.c.l.b16 %v746
    %v816 = vunpack.c.h.b16 %v746
    %v817 = vunpack.c.l.b16 %v747
    %v818 = vunpack.c.h.b16 %v747
    %v819 = vunpack.c.l.b16 %v748
    %v820 = vunpack.c.h.b16 %v748
    %v821 = vunpack.c.l.b16 %v749
    %v822 = vunpack.c.h.b16 %v749
    %v823 = vunpack.c.l.b16 %v750
    %v824 = vunpack.c.h.b16 %v750
    %v825 = vunpack.c.l.b16 %v751
    %v826 = vunpack.c.h.b16 %v751
    %v827 = vunpack.c.l.b16 %v752
    %v828 = vunpack.c.h.b16 %v752
    %v829 = vunpack.c.l.b16 %v753
    %v830 = vunpack.c.h.b16 %v753
    %v831 = vunpack.c.l.b16 %v754
    %v832 = vunpack.c.h.b16 %v754
    %v833 = vunpack.c.l.b16 %v755
    %v834 = vunpack.c.h.b16 %v755
    %v835 = vunpack.c.l.b16 %v756
    %v836 = vunpack.c.h.b16 %v756
    %v837 = vunpack.c.l.b16 %v757
    %v838 = vunpack.c.h.b16 %v757
    %v839 = vunpack.c.l.b16 %v758
    %v840 = vunpack.c.h.b16 %v758
    %v841 = vunpack.c.l.b16 %v759
    %v842 = vunpack.c.h.b16 %v759
    %v843 = vunpack.c.l.b16 %v760
    %v844 = vunpack.c.h.b16 %v760
    %v845 = vunpack.c.l.b16 %v761
    %v846 = vunpack.c.h.b16 %v761
    %v847 = vunpack.c.l.b16 %v762
    %v848 = vunpack.c.h.b16 %v762
    %v849 = vunpack.c.l.b16 %v763
    %v850 = vunpack.c.h.b16 %v763
    %v851 = vunpack.c.l.b16 %v764
    %v852 = vunpack.c.h.b16 %v764
    %v853 = vunpack.c.l.b16 %v765
    %v854 = vunpack.c.h.b16 %v765
    %v855 = vunpack.c.l.b16 %v766
    %v856 = vunpack.c.h.b16 %v766
    %v857 = vunpack.c.l.b16 %v767
    %v858 = vunpack.c.h.b16 %v767
    %v859 = vunpack.c.l.b16 %v768
    %v860 = vunpack.c.h.b16 %v768
    %v861 = vunpack.c.l.b16 %v769
    %v862 = vunpack.c.h.b16 %v769
    %v863 = vunpack.c.l.b16 %v770
    %v864 = vunpack.c.h.b16 %v770
    %v865 = vunpack.c.l.b16 %v771
    %v866 = vunpack.c.h.b16 %v771
    %v867 = vunpack.c.l.b16 %v772
    %v868 = vunpack.c.h.b16 %v772
    %v869 = vpack.c.b16 %v809, %v805
    %v870 = vpack.c.b16 %v810, %v806
    %v871 = vpack.c.b16 %v811, %v807
    %v872 = vpack.c.b16 %v812, %v808
    %v873 = vpack.c.b16 %v817, %v813
    %v874 = vpack.c.b16 %v818, %v814
    %v875 = vpack.c.b16 %v819, %v815
    %v876 = vpack.c.b16 %v820, %v816
    %v877 = vpack.c.b16 %v825, %v821
    %v878 = vpack.c.b16 %v826, %v822
    %v879 = vpack.c.b16 %v827, %v823
    %v880 = vpack.c.b16 %v828, %v824
    %v881 = vpack.c.b16 %v833, %v829
    %v882 = vpack.c.b16 %v834, %v830
    %v883 = vpack.c.b16 %v835, %v831
    %v884 = vpack.c.b16 %v836, %v832
    %v885 = vpack.c.b16 %v841, %v837
    %v886 = vpack.c.b16 %v842, %v838
    %v887 = vpack.c.b16 %v843, %v839
    %v888 = vpack.c.b16 %v844, %v840
    %v889 = vpack.c.b16 %v849, %v845
    %v890 = vpack.c.b16 %v850, %v846
    %v891 = vpack.c.b16 %v851, %v847
    %v892 = vpack.c.b16 %v852, %v848
    %v893 = vpack.c.b16 %v857, %v853
    %v894 = vpack.c.b16 %v858, %v854
    %v895 = vpack.c.b16 %v859, %v855
    %v896 = vpack.c.b16 %v860, %v856
    %v897 = vpack.c.b16 %v865, %v861
    %v898 = vpack.c.b16 %v866, %v862
    %v899 = vpack.c.b16 %v867, %v863
    %v900 = vpack.c.b16 %v868, %v864
    %933 = vmatprep.subr.bf16.mxu0 %v870
    %934 = vmatpush1.bf16.msra.mxu0 %v869
    %935 = vmatprep.subr.bf16.mxu0 %v874
    %936 = vmatpush1.bf16.msra.mxu0 %v873
    %937 = vmatprep.subr.bf16.mxu0 %v878
    %938 = vmatpush1.bf16.msra.mxu0 %v877
    %939 = vmatprep.subr.bf16.mxu0 %v882
    %940 = vmatpush1.bf16.msra.mxu0 %v881
    %941 = vmatprep.subr.bf16.mxu0 %v886
    %942 = vmatpush1.bf16.msra.mxu0 %v885
    %943 = vmatprep.subr.bf16.mxu0 %v890
    %944 = vmatpush1.bf16.msra.mxu0 %v889
    %945 = vmatprep.subr.bf16.mxu0 %v894
    %946 = vmatpush1.bf16.msra.mxu0 %v893
    %947 = vmatprep.subr.bf16.mxu0 %v898
    %948 = vmatpush1.bf16.msra.mxu0 %v897
    %949 = vmatprep.subr.bf16.mxu0 0
    %950 = vmatpush1.bf16.msra.mxu0 0
    %951 = vmatprep.subr.bf16.mxu0 0
    %952 = vmatpush1.bf16.msra.mxu0 0
    %953 = vmatprep.subr.bf16.mxu0 0
    %954 = vmatpush1.bf16.msra.mxu0 0
    %955 = vmatprep.subr.bf16.mxu0 0
    %956 = vmatpush1.bf16.msra.mxu0 0
    %957 = vmatprep.subr.bf16.mxu0 0
    %958 = vmatpush1.bf16.msra.mxu0 0
    %959 = vmatprep.subr.bf16.mxu0 0
    %960 = vmatpush1.bf16.msra.mxu0 0
    %961 = vmatprep.subr.bf16.mxu0 0
    %962 = vmatpush1.bf16.msra.mxu0 0
    %963 = vmatprep.subr.bf16.mxu0 0
    %964 = vmatpush1.bf16.msra.mxu0 0
    %965 = vmatprep.mubr.bf16.mxu0 0
    %966 = vmatmul.mubr.bf16.gmra.mrb[0].mxu0 %v740
    %v967 = vpop.f32.mrb[0].mxu0
    %v968 = vadd.f32 0.0, %v967
    %v969 = vpop.f32.mrb[0].mxu0
    %v970 = vadd.f32 0.0, %v969
    %v971 = vpop.f32.mrb[0].mxu0
    %v972 = vadd.f32 0.0, %v971
    %v973 = vpop.f32.mrb[0].mxu0
    %v974 = vadd.f32 0.0, %v973
    %975 = vdwg.mxu0
    %976 = vmatprep.subr.bf16.mxu0 %v872
    %977 = vmatpush1.bf16.msra.mxu0 %v871
    %978 = vmatprep.subr.bf16.mxu0 %v876
    %979 = vmatpush1.bf16.msra.mxu0 %v875
    %980 = vmatprep.subr.bf16.mxu0 %v880
    %981 = vmatpush1.bf16.msra.mxu0 %v879
    %982 = vmatprep.subr.bf16.mxu0 %v884
    %983 = vmatpush1.bf16.msra.mxu0 %v883
    %984 = vmatprep.subr.bf16.mxu0 %v888
    %985 = vmatpush1.bf16.msra.mxu0 %v887
    %986 = vmatprep.subr.bf16.mxu0 %v892
    %987 = vmatpush1.bf16.msra.mxu0 %v891
    %988 = vmatprep.subr.bf16.mxu0 %v896
    %989 = vmatpush1.bf16.msra.mxu0 %v895
    %990 = vmatprep.subr.bf16.mxu0 %v900
    %991 = vmatpush1.bf16.msra.mxu0 %v899
    %992 = vmatprep.subr.bf16.mxu0 0
    %993 = vmatpush1.bf16.msra.mxu0 0
    %994 = vmatprep.subr.bf16.mxu0 0
    %995 = vmatpush1.bf16.msra.mxu0 0
    %996 = vmatprep.subr.bf16.mxu0 0
    %997 = vmatpush1.bf16.msra.mxu0 0
    %998 = vmatprep.subr.bf16.mxu0 0
    %999 = vmatpush1.bf16.msra.mxu0 0
    %1000 = vmatprep.subr.bf16.mxu0 0
    %1001 = vmatpush1.bf16.msra.mxu0 0
    %1002 = vmatprep.subr.bf16.mxu0 0
    %1003 = vmatpush1.bf16.msra.mxu0 0
    %1004 = vmatprep.subr.bf16.mxu0 0
    %1005 = vmatpush1.bf16.msra.mxu0 0
    %1006 = vmatprep.subr.bf16.mxu0 0
    %1007 = vmatpush1.bf16.msra.mxu0 0
    %1008 = vmatprep.mubr.bf16.mxu0 0
    %1009 = vmatmul.mubr.bf16.gmra.mrb[0].mxu0 %v740
    %v1010 = vpop.f32.mrb[0].mxu0
    %v1011 = vadd.f32 0.0, %v1010
    %v1012 = vpop.f32.mrb[0].mxu0
    %v1013 = vadd.f32 0.0, %v1012
    %v1014 = vpop.f32.mrb[0].mxu0
    %v1015 = vadd.f32 0.0, %v1014
    %v1016 = vpop.f32.mrb[0].mxu0
    %v1017 = vadd.f32 0.0, %v1016
    %1018 = vdwg.mxu0
    %v1019 = vadd.f32 %v730, %v968
    %v1020 = vadd.f32 %v731, %v970
    %v1021 = vadd.f32 %v732, %v1011
    %v1022 = vadd.f32 %v733, %v1013
    %v1023 = vadd.f32 %v734, %v972
    %v1024 = vadd.f32 %v735, %v974
    %v1025 = vadd.f32 %v736, %v1015
    %v1026 = vadd.f32 %v737, %v1017
    %v1027 = vsub.f32 0.0, %v1019
    %v1028 = vsub.f32 0.0, %v1023
    %v1029 = vmul.f32 %v1027, 1.442695
    %v1030 = vpow.pop %v1029
    %v1031 = vmul.f32 %v1028, 1.442695
    %v1032 = vpow.pop %v1031
    %v1033 = vadd.f32 %v1030, 1.0
    %v1034 = vadd.f32 %v1032, 1.0
    %v1035 = vrcp.pop %v1033
    %v1036 = vmul.f32 1.0, %v1035
    %v1037 = vrcp.pop %v1034
    %v1038 = vmul.f32 1.0, %v1037
    %v1039 = vsub.f32 0.0, %v1020
    %v1040 = vsub.f32 0.0, %v1024
    %v1041 = vmul.f32 %v1039, 1.442695
    %v1042 = vpow.pop %v1041
    %v1043 = vmul.f32 %v1040, 1.442695
    %v1044 = vpow.pop %v1043
    %v1045 = vadd.f32 %v1042, 1.0
    %v1046 = vadd.f32 %v1044, 1.0
    %v1047 = vrcp.pop %v1045
    %v1048 = vmul.f32 1.0, %v1047
    %v1049 = vrcp.pop %v1046
    %v1050 = vmul.f32 1.0, %v1049
    %v1051 = vtanh.pop %v1021
    %v1052 = vtanh.pop %v1025
    %v1053 = vsub.f32 0.0, %v1022
    %v1054 = vsub.f32 0.0, %v1026
    %v1055 = vmul.f32 %v1053, 1.442695
    %v1056 = vpow.pop %v1055
    %v1057 = vmul.f32 %v1054, 1.442695
    %v1058 = vpow.pop %v1057
    %v1059 = vadd.f32 %v1056, 1.0
    %v1060 = vadd.f32 %v1058, 1.0
    %v1061 = vrcp.pop %v1059
    %v1062 = vmul.f32 1.0, %v1061
    %v1063 = vrcp.pop %v1060
    %v1064 = vmul.f32 1.0, %v1063
    %v1065 = vld [vmem:[#allocation3] sm:$0xff]
    %v1066 = vld [vmem:[#allocation3 + $0x8] sm:$0xff]
    %v1067 = vmul.f32 %v1048, %v1065
    %v1068 = vmul.f32 %v1050, %v1066
    %v1069 = vmul.f32 %v1036, %v1051
    %v1070 = vmul.f32 %v1038, %v1052
    %v1071 = vadd.f32 %v1067, %v1069
    %v1072 = vadd.f32 %v1068, %v1070
    %v1073 = vtanh.pop %v1071
    %v1074 = vtanh.pop %v1072
    %v1075 = vmul.f32 %v1062, %v1073
    %v1076 = vmul.f32 %v1064, %v1074
    %1077 = vst [vmem:[#allocation3] sm:$0xff] %v1071
    %1078 = vst [vmem:[#allocation3 + $0x8] sm:$0xff] %v1072
    %1079 = vst [vmem:[#allocation2] sm:$0xff] %v1075
    %1080 = vst [vmem:[#allocation2 + $0x8] sm:$0xff] %v1076
    %1081 = vst [vmem:[#allocation8] sm:$0xff] %v1075
    %1082 = vst [vmem:[#allocation8 + $0x8] sm:$0xff] %v1076
    %s1083 = scalar_lea.vmem [#allocation7], 64
    %v1084 = vld [vmem:[%s1083] sm:$0xff]
    %v1085 = vld [vmem:[%s1083 + $0x8] sm:$0xff]
    %v1086 = vld [vmem:[%s1083 + $0x10] sm:$0xff]
    %v1087 = vld [vmem:[%s1083 + $0x18] sm:$0xff]
    %v1088 = vld [vmem:[%s1083 + $0x20] sm:$0xff]
    %v1089 = vld [vmem:[%s1083 + $0x28] sm:$0xff]
    %v1090 = vld [vmem:[%s1083 + $0x30] sm:$0xff]
    %v1091 = vld [vmem:[%s1083 + $0x38] sm:$0xff]
    %v1092 = vld [vmem:[#allocation4] sm:$0xff]
    %v1093 = vld [vmem:[#allocation4 + $0x8] sm:$0xff]
    %v1094 = vpack.c.bf16 %v1093, %v1092
    %v1095 = vld [vmem:[%s5] sm:$0xff]
    %v1096 = vld [vmem:[%s5 + $0x8] sm:$0xff]
    %v1097 = vld [vmem:[%s5 + $0x10] sm:$0xff]
    %v1098 = vld [vmem:[%s5 + $0x18] sm:$0xff]
    %v1099 = vld [vmem:[%s5 + $0x20] sm:$0xff]
    %v1100 = vld [vmem:[%s5 + $0x28] sm:$0xff]
    %v1101 = vld [vmem:[%s5 + $0x30] sm:$0xff]
    %v1102 = vld [vmem:[%s5 + $0x38] sm:$0xff]
    %v1103 = vld [vmem:[%s5 + $0x40] sm:$0xff]
    %v1104 = vld [vmem:[%s5 + $0x48] sm:$0xff]
    %v1105 = vld [vmem:[%s5 + $0x50] sm:$0xff]
    %v1106 = vld [vmem:[%s5 + $0x58] sm:$0xff]
    %v1107 = vld [vmem:[%s5 + $0x60] sm:$0xff]
    %v1108 = vld [vmem:[%s5 + $0x68] sm:$0xff]
    %v1109 = vld [vmem:[%s5 + $0x70] sm:$0xff]
    %v1110 = vld [vmem:[%s5 + $0x78] sm:$0xff]
    %v1111 = vld [vmem:[%s5 + $0x80] sm:$0xff]
    %v1112 = vld [vmem:[%s5 + $0x88] sm:$0xff]
    %v1113 = vld [vmem:[%s5 + $0x90] sm:$0xff]
    %v1114 = vld [vmem:[%s5 + $0x98] sm:$0xff]
    %v1115 = vld [vmem:[%s5 + $0xa0] sm:$0xff]
    %v1116 = vld [vmem:[%s5 + $0xa8] sm:$0xff]
    %v1117 = vld [vmem:[%s5 + $0xb0] sm:$0xff]
    %v1118 = vld [vmem:[%s5 + $0xb8] sm:$0xff]
    %v1119 = vld [vmem:[%s5 + $0xc0] sm:$0xff]
    %v1120 = vld [vmem:[%s5 + $0xc8] sm:$0xff]
    %v1121 = vld [vmem:[%s5 + $0xd0] sm:$0xff]
    %v1122 = vld [vmem:[%s5 + $0xd8] sm:$0xff]
    %v1123 = vld [vmem:[%s5 + $0xe0] sm:$0xff]
    %v1124 = vld [vmem:[%s5 + $0xe8] sm:$0xff]
    %v1125 = vld [vmem:[%s5 + $0xf0] sm:$0xff]
    %v1126 = vld [vmem:[%s5 + $0xf8] sm:$0xff]
    %v1159 = vunpack.c.l.b16 %v1095
    %v1160 = vunpack.c.h.b16 %v1095
    %v1161 = vunpack.c.l.b16 %v1096
    %v1162 = vunpack.c.h.b16 %v1096
    %v1163 = vunpack.c.l.b16 %v1097
    %v1164 = vunpack.c.h.b16 %v1097
    %v1165 = vunpack.c.l.b16 %v1098
    %v1166 = vunpack.c.h.b16 %v1098
    %v1167 = vunpack.c.l.b16 %v1099
    %v1168 = vunpack.c.h.b16 %v1099
    %v1169 = vunpack.c.l.b16 %v1100
    %v1170 = vunpack.c.h.b16 %v1100
    %v1171 = vunpack.c.l.b16 %v1101
    %v1172 = vunpack.c.h.b16 %v1101
    %v1173 = vunpack.c.l.b16 %v1102
    %v1174 = vunpack.c.h.b16 %v1102
    %v1175 = vunpack.c.l.b16 %v1103
    %v1176 = vunpack.c.h.b16 %v1103
    %v1177 = vunpack.c.l.b16 %v1104
    %v1178 = vunpack.c.h.b16 %v1104
    %v1179 = vunpack.c.l.b16 %v1105
    %v1180 = vunpack.c.h.b16 %v1105
    %v1181 = vunpack.c.l.b16 %v1106
    %v1182 = vunpack.c.h.b16 %v1106
    %v1183 = vunpack.c.l.b16 %v1107
    %v1184 = vunpack.c.h.b16 %v1107
    %v1185 = vunpack.c.l.b16 %v1108
    %v1186 = vunpack.c.h.b16 %v1108
    %v1187 = vunpack.c.l.b16 %v1109
    %v1188 = vunpack.c.h.b16 %v1109
    %v1189 = vunpack.c.l.b16 %v1110
    %v1190 = vunpack.c.h.b16 %v1110
    %v1191 = vunpack.c.l.b16 %v1111
    %v1192 = vunpack.c.h.b16 %v1111
    %v1193 = vunpack.c.l.b16 %v1112
    %v1194 = vunpack.c.h.b16 %v1112
    %v1195 = vunpack.c.l.b16 %v1113
    %v1196 = vunpack.c.h.b16 %v1113
    %v1197 = vunpack.c.l.b16 %v1114
    %v1198 = vunpack.c.h.b16 %v1114
    %v1199 = vunpack.c.l.b16 %v1115
    %v1200 = vunpack.c.h.b16 %v1115
    %v1201 = vunpack.c.l.b16 %v1116
    %v1202 = vunpack.c.h.b16 %v1116
    %v1203 = vunpack.c.l.b16 %v1117
    %v1204 = vunpack.c.h.b16 %v1117
    %v1205 = vunpack.c.l.b16 %v1118
    %v1206 = vunpack.c.h.b16 %v1118
    %v1207 = vunpack.c.l.b16 %v1119
    %v1208 = vunpack.c.h.b16 %v1119
    %v1209 = vunpack.c.l.b16 %v1120
    %v1210 = vunpack.c.h.b16 %v1120
    %v1211 = vunpack.c.l.b16 %v1121
    %v1212 = vunpack.c.h.b16 %v1121
    %v1213 = vunpack.c.l.b16 %v1122
    %v1214 = vunpack.c.h.b16 %v1122
    %v1215 = vunpack.c.l.b16 %v1123
    %v1216 = vunpack.c.h.b16 %v1123
    %v1217 = vunpack.c.l.b16 %v1124
    %v1218 = vunpack.c.h.b16 %v1124
    %v1219 = vunpack.c.l.b16 %v1125
    %v1220 = vunpack.c.h.b16 %v1125
    %v1221 = vunpack.c.l.b16 %v1126
    %v1222 = vunpack.c.h.b16 %v1126
    %v1223 = vpack.c.b16 %v1163, %v1159
    %v1224 = vpack.c.b16 %v1164, %v1160
    %v1225 = vpack.c.b16 %v1165, %v1161
    %v1226 = vpack.c.b16 %v1166, %v1162
    %v1227 = vpack.c.b16 %v1171, %v1167
    %v1228 = vpack.c.b16 %v1172, %v1168
    %v1229 = vpack.c.b16 %v1173, %v1169
    %v1230 = vpack.c.b16 %v1174, %v1170
    %v1231 = vpack.c.b16 %v1179, %v1175
    %v1232 = vpack.c.b16 %v1180, %v1176
    %v1233 = vpack.c.b16 %v1181, %v1177
    %v1234 = vpack.c.b16 %v1182, %v1178
    %v1235 = vpack.c.b16 %v1187, %v1183
    %v1236 = vpack.c.b16 %v1188, %v1184
    %v1237 = vpack.c.b16 %v1189, %v1185
    %v1238 = vpack.c.b16 %v1190, %v1186
    %v1239 = vpack.c.b16 %v1195, %v1191
    %v1240 = vpack.c.b16 %v1196, %v1192
    %v1241 = vpack.c.b16 %v1197, %v1193
    %v1242 = vpack.c.b16 %v1198, %v1194
    %v1243 = vpack.c.b16 %v1203, %v1199
    %v1244 = vpack.c.b16 %v1204, %v1200
    %v1245 = vpack.c.b16 %v1205, %v1201
    %v1246 = vpack.c.b16 %v1206, %v1202
    %v1247 = vpack.c.b16 %v1211, %v1207
    %v1248 = vpack.c.b16 %v1212, %v1208
    %v1249 = vpack.c.b16 %v1213, %v1209
    %v1250 = vpack.c.b16 %v1214, %v1210
    %v1251 = vpack.c.b16 %v1219, %v1215
    %v1252 = vpack.c.b16 %v1220, %v1216
    %v1253 = vpack.c.b16 %v1221, %v1217
    %v1254 = vpack.c.b16 %v1222, %v1218
    %1287 = vmatprep.subr.bf16.mxu0 %v1224
    %1288 = vmatpush1.bf16.msra.mxu0 %v1223
    %1289 = vmatprep.subr.bf16.mxu0 %v1228
    %1290 = vmatpush1.bf16.msra.mxu0 %v1227
    %1291 = vmatprep.subr.bf16.mxu0 %v1232
    %1292 = vmatpush1.bf16.msra.mxu0 %v1231
    %1293 = vmatprep.subr.bf16.mxu0 %v1236
    %1294 = vmatpush1.bf16.msra.mxu0 %v1235
    %1295 = vmatprep.subr.bf16.mxu0 %v1240
    %1296 = vmatpush1.bf16.msra.mxu0 %v1239
    %1297 = vmatprep.subr.bf16.mxu0 %v1244
    %1298 = vmatpush1.bf16.msra.mxu0 %v1243
    %1299 = vmatprep.subr.bf16.mxu0 %v1248
    %1300 = vmatpush1.bf16.msra.mxu0 %v1247
    %1301 = vmatprep.subr.bf16.mxu0 %v1252
    %1302 = vmatpush1.bf16.msra.mxu0 %v1251
    %1303 = vmatprep.subr.bf16.mxu0 0
    %1304 = vmatpush1.bf16.msra.mxu0 0
    %1305 = vmatprep.subr.bf16.mxu0 0
    %1306 = vmatpush1.bf16.msra.mxu0 0
    %1307 = vmatprep.subr.bf16.mxu0 0
    %1308 = vmatpush1.bf16.msra.mxu0 0
    %1309 = vmatprep.subr.bf16.mxu0 0
    %1310 = vmatpush1.bf16.msra.mxu0 0
    %1311 = vmatprep.subr.bf16.mxu0 0
    %1312 = vmatpush1.bf16.msra.mxu0 0
    %1313 = vmatprep.subr.bf16.mxu0 0
    %1314 = vmatpush1.bf16.msra.mxu0 0
    %1315 = vmatprep.subr.bf16.mxu0 0
    %1316 = vmatpush1.bf16.msra.mxu0 0
    %1317 = vmatprep.subr.bf16.mxu0 0
    %1318 = vmatpush1.bf16.msra.mxu0 0
    %1319 = vmatprep.mubr.bf16.mxu0 0
    %1320 = vmatmul.mubr.bf16.gmra.mrb[0].mxu0 %v1094
    %v1321 = vpop.f32.mrb[0].mxu0
    %v1322 = vadd.f32 0.0, %v1321
    %v1323 = vpop.f32.mrb[0].mxu0
    %v1324 = vadd.f32 0.0, %v1323
    %v1325 = vpop.f32.mrb[0].mxu0
    %v1326 = vadd.f32 0.0, %v1325
    %v1327 = vpop.f32.mrb[0].mxu0
    %v1328 = vadd.f32 0.0, %v1327
    %1329 = vdwg.mxu0
    %1330 = vmatprep.subr.bf16.mxu0 %v1226
    %1331 = vmatpush1.bf16.msra.mxu0 %v1225
    %1332 = vmatprep.subr.bf16.mxu0 %v1230
    %1333 = vmatpush1.bf16.msra.mxu0 %v1229
    %1334 = vmatprep.subr.bf16.mxu0 %v1234
    %1335 = vmatpush1.bf16.msra.mxu0 %v1233
    %1336 = vmatprep.subr.bf16.mxu0 %v1238
    %1337 = vmatpush1.bf16.msra.mxu0 %v1237
    %1338 = vmatprep.subr.bf16.mxu0 %v1242
    %1339 = vmatpush1.bf16.msra.mxu0 %v1241
    %1340 = vmatprep.subr.bf16.mxu0 %v1246
    %1341 = vmatpush1.bf16.msra.mxu0 %v1245
    %1342 = vmatprep.subr.bf16.mxu0 %v1250
    %1343 = vmatpush1.bf16.msra.mxu0 %v1249
    %1344 = vmatprep.subr.bf16.mxu0 %v1254
    %1345 = vmatpush1.bf16.msra.mxu0 %v1253
    %1346 = vmatprep.subr.bf16.mxu0 0
    %1347 = vmatpush1.bf16.msra.mxu0 0
    %1348 = vmatprep.subr.bf16.mxu0 0
    %1349 = vmatpush1.bf16.msra.mxu0 0
    %1350 = vmatprep.subr.bf16.mxu0 0
    %1351 = vmatpush1.bf16.msra.mxu0 0
    %1352 = vmatprep.subr.bf16.mxu0 0
    %1353 = vmatpush1.bf16.msra.mxu0 0
    %1354 = vmatprep.subr.bf16.mxu0 0
    %1355 = vmatpush1.bf16.msra.mxu0 0
    %1356 = vmatprep.subr.bf16.mxu0 0
    %1357 = vmatpush1.bf16.msra.mxu0 0
    %1358 = vmatprep.subr.bf16.mxu0 0
    %1359 = vmatpush1.bf16.msra.mxu0 0
    %1360 = vmatprep.subr.bf16.mxu0 0
    %1361 = vmatpush1.bf16.msra.mxu0 0
    %1362 = vmatprep.mubr.bf16.mxu0 0
    %1363 = vmatmul.mubr.bf16.gmra.mrb[0].mxu0 %v1094
    %v1364 = vpop.f32.mrb[0].mxu0
    %v1365 = vadd.f32 0.0, %v1364
    %v1366 = vpop.f32.mrb[0].mxu0
    %v1367 = vadd.f32 0.0, %v1366
    %v1368 = vpop.f32.mrb[0].mxu0
    %v1369 = vadd.f32 0.0, %v1368
    %v1370 = vpop.f32.mrb[0].mxu0
    %v1371 = vadd.f32 0.0, %v1370
    %1372 = vdwg.mxu0
    %v1373 = vadd.f32 %v1084, %v1322
    %v1374 = vadd.f32 %v1085, %v1324
    %v1375 = vadd.f32 %v1086, %v1365
    %v1376 = vadd.f32 %v1087, %v1367
    %v1377 = vadd.f32 %v1088, %v1326
    %v1378 = vadd.f32 %v1089, %v1328
    %v1379 = vadd.f32 %v1090, %v1369
    %v1380 = vadd.f32 %v1091, %v1371
    %v1381 = vsub.f32 0.0, %v1373
    %v1382 = vsub.f32 0.0, %v1377
    %v1383 = vmul.f32 %v1381, 1.442695
    %v1384 = vpow.pop %v1383
    %v1385 = vmul.f32 %v1382, 1.442695
    %v1386 = vpow.pop %v1385
    %v1387 = vadd.f32 %v1384, 1.0
    %v1388 = vadd.f32 %v1386, 1.0
    %v1389 = vrcp.pop %v1387
    %v1390 = vmul.f32 1.0, %v1389
    %v1391 = vrcp.pop %v1388
    %v1392 = vmul.f32 1.0, %v1391
    %v1393 = vsub.f32 0.0, %v1374
    %v1394 = vsub.f32 0.0, %v1378
    %v1395 = vmul.f32 %v1393, 1.442695
    %v1396 = vpow.pop %v1395
    %v1397 = vmul.f32 %v1394, 1.442695
    %v1398 = vpow.pop %v1397
    %v1399 = vadd.f32 %v1396, 1.0
    %v1400 = vadd.f32 %v1398, 1.0
    %v1401 = vrcp.pop %v1399
    %v1402 = vmul.f32 1.0, %v1401
    %v1403 = vrcp.pop %v1400
    %v1404 = vmul.f32 1.0, %v1403
    %v1405 = vtanh.pop %v1375
    %v1406 = vtanh.pop %v1379
    %v1407 = vsub.f32 0.0, %v1376
    %v1408 = vsub.f32 0.0, %v1380
    %v1409 = vmul.f32 %v1407, 1.442695
    %v1410 = vpow.pop %v1409
    %v1411 = vmul.f32 %v1408, 1.442695
    %v1412 = vpow.pop %v1411
    %v1413 = vadd.f32 %v1410, 1.0
    %v1414 = vadd.f32 %v1412, 1.0
    %v1415 = vrcp.pop %v1413
    %v1416 = vmul.f32 1.0, %v1415
    %v1417 = vrcp.pop %v1414
    %v1418 = vmul.f32 1.0, %v1417
    %v1419 = vld [vmem:[#allocation5] sm:$0xff]
    %v1420 = vld [vmem:[#allocation5 + $0x8] sm:$0xff]
    %v1421 = vmul.f32 %v1402, %v1419
    %v1422 = vmul.f32 %v1404, %v1420
    %v1423 = vmul.f32 %v1390, %v1405
    %v1424 = vmul.f32 %v1392, %v1406
    %v1425 = vadd.f32 %v1421, %v1423
    %v1426 = vadd.f32 %v1422, %v1424
    %v1427 = vtanh.pop %v1425
    %v1428 = vtanh.pop %v1426
    %v1429 = vmul.f32 %v1416, %v1427
    %v1430 = vmul.f32 %v1418, %v1428
    %1431 = vst [vmem:[#allocation5] sm:$0xff] %v1425
    %1432 = vst [vmem:[#allocation5 + $0x8] sm:$0xff] %v1426
    %1433 = vst [vmem:[#allocation4] sm:$0xff] %v1429
    %1434 = vst [vmem:[#allocation4 + $0x8] sm:$0xff] %v1430
    %s1435 = scalar_lea.vmem [#allocation9], 16
    %1436 = vst [vmem:[%s1435] sm:$0xff] %v1429
    %1437 = vst [vmem:[%s1435 + $0x8] sm:$0xff] %v1430
    %s1438 = scalar_lea.vmem [#allocation6], 64
    %v1439 = vld [vmem:[%s1438] sm:$0xff]
    %v1440 = vld [vmem:[%s1438 + $0x8] sm:$0xff]
    %v1441 = vld [vmem:[%s1438 + $0x10] sm:$0xff]
    %v1442 = vld [vmem:[%s1438 + $0x18] sm:$0xff]
    %v1443 = vld [vmem:[%s1438 + $0x20] sm:$0xff]
    %v1444 = vld [vmem:[%s1438 + $0x28] sm:$0xff]
    %v1445 = vld [vmem:[%s1438 + $0x30] sm:$0xff]
    %v1446 = vld [vmem:[%s1438 + $0x38] sm:$0xff]
    %v1447 = vld [vmem:[#allocation2] sm:$0xff]
    %v1448 = vld [vmem:[#allocation2 + $0x8] sm:$0xff]
    %v1449 = vpack.c.bf16 %v1448, %v1447
    %v1450 = vld [vmem:[%s2] sm:$0xff]
    %v1451 = vld [vmem:[%s2 + $0x8] sm:$0xff]
    %v1452 = vld [vmem:[%s2 + $0x10] sm:$0xff]
    %v1453 = vld [vmem:[%s2 + $0x18] sm:$0xff]
    %v1454 = vld [vmem:[%s2 + $0x20] sm:$0xff]
    %v1455 = vld [vmem:[%s2 + $0x28] sm:$0xff]
    %v1456 = vld [vmem:[%s2 + $0x30] sm:$0xff]
    %v1457 = vld [vmem:[%s2 + $0x38] sm:$0xff]
    %v1458 = vld [vmem:[%s2 + $0x40] sm:$0xff]
    %v1459 = vld [vmem:[%s2 + $0x48] sm:$0xff]
    %v1460 = vld [vmem:[%s2 + $0x50] sm:$0xff]
    %v1461 = vld [vmem:[%s2 + $0x58] sm:$0xff]
    %v1462 = vld [vmem:[%s2 + $0x60] sm:$0xff]
    %v1463 = vld [vmem:[%s2 + $0x68] sm:$0xff]
    %v1464 = vld [vmem:[%s2 + $0x70] sm:$0xff]
    %v1465 = vld [vmem:[%s2 + $0x78] sm:$0xff]
    %v1466 = vld [vmem:[%s2 + $0x80] sm:$0xff]
    %v1467 = vld [vmem:[%s2 + $0x88] sm:$0xff]
    %v1468 = vld [vmem:[%s2 + $0x90] sm:$0xff]
    %v1469 = vld [vmem:[%s2 + $0x98] sm:$0xff]
    %v1470 = vld [vmem:[%s2 + $0xa0] sm:$0xff]
    %v1471 = vld [vmem:[%s2 + $0xa8] sm:$0xff]
    %v1472 = vld [vmem:[%s2 + $0xb0] sm:$0xff]
    %v1473 = vld [vmem:[%s2 + $0xb8] sm:$0xff]
    %v1474 = vld [vmem:[%s2 + $0xc0] sm:$0xff]
    %v1475 = vld [vmem:[%s2 + $0xc8] sm:$0xff]
    %v1476 = vld [vmem:[%s2 + $0xd0] sm:$0xff]
    %v1477 = vld [vmem:[%s2 + $0xd8] sm:$0xff]
    %v1478 = vld [vmem:[%s2 + $0xe0] sm:$0xff]
    %v1479 = vld [vmem:[%s2 + $0xe8] sm:$0xff]
    %v1480 = vld [vmem:[%s2 + $0xf0] sm:$0xff]
    %v1481 = vld [vmem:[%s2 + $0xf8] sm:$0xff]
    %v1514 = vunpack.c.l.b16 %v1450
    %v1515 = vunpack.c.h.b16 %v1450
    %v1516 = vunpack.c.l.b16 %v1451
    %v1517 = vunpack.c.h.b16 %v1451
    %v1518 = vunpack.c.l.b16 %v1452
    %v1519 = vunpack.c.h.b16 %v1452
    %v1520 = vunpack.c.l.b16 %v1453
    %v1521 = vunpack.c.h.b16 %v1453
    %v1522 = vunpack.c.l.b16 %v1454
    %v1523 = vunpack.c.h.b16 %v1454
    %v1524 = vunpack.c.l.b16 %v1455
    %v1525 = vunpack.c.h.b16 %v1455
    %v1526 = vunpack.c.l.b16 %v1456
    %v1527 = vunpack.c.h.b16 %v1456
    %v1528 = vunpack.c.l.b16 %v1457
    %v1529 = vunpack.c.h.b16 %v1457
    %v1530 = vunpack.c.l.b16 %v1458
    %v1531 = vunpack.c.h.b16 %v1458
    %v1532 = vunpack.c.l.b16 %v1459
    %v1533 = vunpack.c.h.b16 %v1459
    %v1534 = vunpack.c.l.b16 %v1460
    %v1535 = vunpack.c.h.b16 %v1460
    %v1536 = vunpack.c.l.b16 %v1461
    %v1537 = vunpack.c.h.b16 %v1461
    %v1538 = vunpack.c.l.b16 %v1462
    %v1539 = vunpack.c.h.b16 %v1462
    %v1540 = vunpack.c.l.b16 %v1463
    %v1541 = vunpack.c.h.b16 %v1463
    %v1542 = vunpack.c.l.b16 %v1464
    %v1543 = vunpack.c.h.b16 %v1464
    %v1544 = vunpack.c.l.b16 %v1465
    %v1545 = vunpack.c.h.b16 %v1465
    %v1546 = vunpack.c.l.b16 %v1466
    %v1547 = vunpack.c.h.b16 %v1466
    %v1548 = vunpack.c.l.b16 %v1467
    %v1549 = vunpack.c.h.b16 %v1467
    %v1550 = vunpack.c.l.b16 %v1468
    %v1551 = vunpack.c.h.b16 %v1468
    %v1552 = vunpack.c.l.b16 %v1469
    %v1553 = vunpack.c.h.b16 %v1469
    %v1554 = vunpack.c.l.b16 %v1470
    %v1555 = vunpack.c.h.b16 %v1470
    %v1556 = vunpack.c.l.b16 %v1471
    %v1557 = vunpack.c.h.b16 %v1471
    %v1558 = vunpack.c.l.b16 %v1472
    %v1559 = vunpack.c.h.b16 %v1472
    %v1560 = vunpack.c.l.b16 %v1473
    %v1561 = vunpack.c.h.b16 %v1473
    %v1562 = vunpack.c.l.b16 %v1474
    %v1563 = vunpack.c.h.b16 %v1474
    %v1564 = vunpack.c.l.b16 %v1475
    %v1565 = vunpack.c.h.b16 %v1475
    %v1566 = vunpack.c.l.b16 %v1476
    %v1567 = vunpack.c.h.b16 %v1476
    %v1568 = vunpack.c.l.b16 %v1477
    %v1569 = vunpack.c.h.b16 %v1477
    %v1570 = vunpack.c.l.b16 %v1478
    %v1571 = vunpack.c.h.b16 %v1478
    %v1572 = vunpack.c.l.b16 %v1479
    %v1573 = vunpack.c.h.b16 %v1479
    %v1574 = vunpack.c.l.b16 %v1480
    %v1575 = vunpack.c.h.b16 %v1480
    %v1576 = vunpack.c.l.b16 %v1481
    %v1577 = vunpack.c.h.b16 %v1481
    %v1578 = vpack.c.b16 %v1518, %v1514
    %v1579 = vpack.c.b16 %v1519, %v1515
    %v1580 = vpack.c.b16 %v1520, %v1516
    %v1581 = vpack.c.b16 %v1521, %v1517
    %v1582 = vpack.c.b16 %v1526, %v1522
    %v1583 = vpack.c.b16 %v1527, %v1523
    %v1584 = vpack.c.b16 %v1528, %v1524
    %v1585 = vpack.c.b16 %v1529, %v1525
    %v1586 = vpack.c.b16 %v1534, %v1530
    %v1587 = vpack.c.b16 %v1535, %v1531
    %v1588 = vpack.c.b16 %v1536, %v1532
    %v1589 = vpack.c.b16 %v1537, %v1533
    %v1590 = vpack.c.b16 %v1542, %v1538
    %v1591 = vpack.c.b16 %v1543, %v1539
    %v1592 = vpack.c.b16 %v1544, %v1540
    %v1593 = vpack.c.b16 %v1545, %v1541
    %v1594 = vpack.c.b16 %v1550, %v1546
    %v1595 = vpack.c.b16 %v1551, %v1547
    %v1596 = vpack.c.b16 %v1552, %v1548
    %v1597 = vpack.c.b16 %v1553, %v1549
    %v1598 = vpack.c.b16 %v1558, %v1554
    %v1599 = vpack.c.b16 %v1559, %v1555
    %v1600 = vpack.c.b16 %v1560, %v1556
    %v1601 = vpack.c.b16 %v1561, %v1557
    %v1602 = vpack.c.b16 %v1566, %v1562
    %v1603 = vpack.c.b16 %v1567, %v1563
    %v1604 = vpack.c.b16 %v1568, %v1564
    %v1605 = vpack.c.b16 %v1569, %v1565
    %v1606 = vpack.c.b16 %v1574, %v1570
    %v1607 = vpack.c.b16 %v1575, %v1571
    %v1608 = vpack.c.b16 %v1576, %v1572
    %v1609 = vpack.c.b16 %v1577, %v1573
    %1642 = vmatprep.subr.bf16.mxu0 %v1579
    %1643 = vmatpush1.bf16.msra.mxu0 %v1578
    %1644 = vmatprep.subr.bf16.mxu0 %v1583
    %1645 = vmatpush1.bf16.msra.mxu0 %v1582
    %1646 = vmatprep.subr.bf16.mxu0 %v1587
    %1647 = vmatpush1.bf16.msra.mxu0 %v1586
    %1648 = vmatprep.subr.bf16.mxu0 %v1591
    %1649 = vmatpush1.bf16.msra.mxu0 %v1590
    %1650 = vmatprep.subr.bf16.mxu0 %v1595
    %1651 = vmatpush1.bf16.msra.mxu0 %v1594
    %1652 = vmatprep.subr.bf16.mxu0 %v1599
    %1653 = vmatpush1.bf16.msra.mxu0 %v1598
    %1654 = vmatprep.subr.bf16.mxu0 %v1603
    %1655 = vmatpush1.bf16.msra.mxu0 %v1602
    %1656 = vmatprep.subr.bf16.mxu0 %v1607
    %1657 = vmatpush1.bf16.msra.mxu0 %v1606
    %1658 = vmatprep.subr.bf16.mxu0 0
    %1659 = vmatpush1.bf16.msra.mxu0 0
    %1660 = vmatprep.subr.bf16.mxu0 0
    %1661 = vmatpush1.bf16.msra.mxu0 0
    %1662 = vmatprep.subr.bf16.mxu0 0
    %1663 = vmatpush1.bf16.msra.mxu0 0
    %1664 = vmatprep.subr.bf16.mxu0 0
    %1665 = vmatpush1.bf16.msra.mxu0 0
    %1666 = vmatprep.subr.bf16.mxu0 0
    %1667 = vmatpush1.bf16.msra.mxu0 0
    %1668 = vmatprep.subr.bf16.mxu0 0
    %1669 = vmatpush1.bf16.msra.mxu0 0
    %1670 = vmatprep.subr.bf16.mxu0 0
    %1671 = vmatpush1.bf16.msra.mxu0 0
    %1672 = vmatprep.subr.bf16.mxu0 0
    %1673 = vmatpush1.bf16.msra.mxu0 0
    %1674 = vmatprep.mubr.bf16.mxu0 0
    %1675 = vmatmul.mubr.bf16.gmra.mrb[0].mxu0 %v1449
    %v1676 = vpop.f32.mrb[0].mxu0
    %v1677 = vadd.f32 0.0, %v1676
    %v1678 = vpop.f32.mrb[0].mxu0
    %v1679 = vadd.f32 0.0, %v1678
    %v1680 = vpop.f32.mrb[0].mxu0
    %v1681 = vadd.f32 0.0, %v1680
    %v1682 = vpop.f32.mrb[0].mxu0
    %v1683 = vadd.f32 0.0, %v1682
    %1684 = vdwg.mxu0
    %1685 = vmatprep.subr.bf16.mxu0 %v1581
    %1686 = vmatpush1.bf16.msra.mxu0 %v1580
    %1687 = vmatprep.subr.bf16.mxu0 %v1585
    %1688 = vmatpush1.bf16.msra.mxu0 %v1584
    %1689 = vmatprep.subr.bf16.mxu0 %v1589
    %1690 = vmatpush1.bf16.msra.mxu0 %v1588
    %1691 = vmatprep.subr.bf16.mxu0 %v1593
    %1692 = vmatpush1.bf16.msra.mxu0 %v1592
    %1693 = vmatprep.subr.bf16.mxu0 %v1597
    %1694 = vmatpush1.bf16.msra.mxu0 %v1596
    %1695 = vmatprep.subr.bf16.mxu0 %v1601
    %1696 = vmatpush1.bf16.msra.mxu0 %v1600
    %1697 = vmatprep.subr.bf16.mxu0 %v1605
    %1698 = vmatpush1.bf16.msra.mxu0 %v1604
    %1699 = vmatprep.subr.bf16.mxu0 %v1609
    %1700 = vmatpush1.bf16.msra.mxu0 %v1608
    %1701 = vmatprep.subr.bf16.mxu0 0
    %1702 = vmatpush1.bf16.msra.mxu0 0
    %1703 = vmatprep.subr.bf16.mxu0 0
    %1704 = vmatpush1.bf16.msra.mxu0 0
    %1705 = vmatprep.subr.bf16.mxu0 0
    %1706 = vmatpush1.bf16.msra.mxu0 0
    %1707 = vmatprep.subr.bf16.mxu0 0
    %1708 = vmatpush1.bf16.msra.mxu0 0
    %1709 = vmatprep.subr.bf16.mxu0 0
    %1710 = vmatpush1.bf16.msra.mxu0 0
    %1711 = vmatprep.subr.bf16.mxu0 0
    %1712 = vmatpush1.bf16.msra.mxu0 0
    %1713 = vmatprep.subr.bf16.mxu0 0
    %1714 = vmatpush1.bf16.msra.mxu0 0
    %1715 = vmatprep.subr.bf16.mxu0 0
    %1716 = vmatpush1.bf16.msra.mxu0 0
    %1717 = vmatprep.mubr.bf16.mxu0 0
    %1718 = vmatmul.mubr.bf16.gmra.mrb[0].mxu0 %v1449
    %v1719 = vpop.f32.mrb[0].mxu0
    %v1720 = vadd.f32 0.0, %v1719
    %v1721 = vpop.f32.mrb[0].mxu0
    %v1722 = vadd.f32 0.0, %v1721
    %v1723 = vpop.f32.mrb[0].mxu0
    %v1724 = vadd.f32 0.0, %v1723
    %v1725 = vpop.f32.mrb[0].mxu0
    %v1726 = vadd.f32 0.0, %v1725
    %1727 = vdwg.mxu0
    %v1728 = vadd.f32 %v1439, %v1677
    %v1729 = vadd.f32 %v1440, %v1679
    %v1730 = vadd.f32 %v1441, %v1720
    %v1731 = vadd.f32 %v1442, %v1722
    %v1732 = vadd.f32 %v1443, %v1681
    %v1733 = vadd.f32 %v1444, %v1683
    %v1734 = vadd.f32 %v1445, %v1724
    %v1735 = vadd.f32 %v1446, %v1726
    %v1736 = vsub.f32 0.0, %v1728
    %v1737 = vsub.f32 0.0, %v1732
    %v1738 = vmul.f32 %v1736, 1.442695
    %v1739 = vpow.pop %v1738
    %v1740 = vmul.f32 %v1737, 1.442695
    %v1741 = vpow.pop %v1740
    %v1742 = vadd.f32 %v1739, 1.0
    %v1743 = vadd.f32 %v1741, 1.0
    %v1744 = vrcp.pop %v1742
    %v1745 = vmul.f32 1.0, %v1744
    %v1746 = vrcp.pop %v1743
    %v1747 = vmul.f32 1.0, %v1746
    %v1748 = vsub.f32 0.0, %v1729
    %v1749 = vsub.f32 0.0, %v1733
    %v1750 = vmul.f32 %v1748, 1.442695
    %v1751 = vpow.pop %v1750
    %v1752 = vmul.f32 %v1749, 1.442695
    %v1753 = vpow.pop %v1752
    %v1754 = vadd.f32 %v1751, 1.0
    %v1755 = vadd.f32 %v1753, 1.0
    %v1756 = vrcp.pop %v1754
    %v1757 = vmul.f32 1.0, %v1756
    %v1758 = vrcp.pop %v1755
    %v1759 = vmul.f32 1.0, %v1758
    %v1760 = vtanh.pop %v1730
    %v1761 = vtanh.pop %v1734
    %v1762 = vsub.f32 0.0, %v1731
    %v1763 = vsub.f32 0.0, %v1735
    %v1764 = vmul.f32 %v1762, 1.442695
    %v1765 = vpow.pop %v1764
    %v1766 = vmul.f32 %v1763, 1.442695
    %v1767 = vpow.pop %v1766
    %v1768 = vadd.f32 %v1765, 1.0
    %v1769 = vadd.f32 %v1767, 1.0
    %v1770 = vrcp.pop %v1768
    %v1771 = vmul.f32 1.0, %v1770
    %v1772 = vrcp.pop %v1769
    %v1773 = vmul.f32 1.0, %v1772
    %v1774 = vld [vmem:[#allocation3] sm:$0xff]
    %v1775 = vld [vmem:[#allocation3 + $0x8] sm:$0xff]
    %v1776 = vmul.f32 %v1757, %v1774
    %v1777 = vmul.f32 %v1759, %v1775
    %v1778 = vmul.f32 %v1745, %v1760
    %v1779 = vmul.f32 %v1747, %v1761
    %v1780 = vadd.f32 %v1776, %v1778
    %v1781 = vadd.f32 %v1777, %v1779
    %v1782 = vtanh.pop %v1780
    %v1783 = vtanh.pop %v1781
    %v1784 = vmul.f32 %v1771, %v1782
    %v1785 = vmul.f32 %v1773, %v1783
    %1786 = vst [vmem:[#allocation3] sm:$0xff] %v1780
    %1787 = vst [vmem:[#allocation3 + $0x8] sm:$0xff] %v1781
    %1788 = vst [vmem:[#allocation2] sm:$0xff] %v1784
    %1789 = vst [vmem:[#allocation2 + $0x8] sm:$0xff] %v1785
    %s1790 = scalar_lea.vmem [#allocation8], 16
    %1791 = vst [vmem:[%s1790] sm:$0xff] %v1784
    %1792 = vst [vmem:[%s1790 + $0x8] sm:$0xff] %v1785
    %v1793 = vld [vmem:[#allocation7] sm:$0xff]
    %v1794 = vld [vmem:[#allocation7 + $0x8] sm:$0xff]
    %v1795 = vld [vmem:[#allocation7 + $0x10] sm:$0xff]
    %v1796 = vld [vmem:[#allocation7 + $0x18] sm:$0xff]
    %v1797 = vld [vmem:[#allocation7 + $0x20] sm:$0xff]
    %v1798 = vld [vmem:[#allocation7 + $0x28] sm:$0xff]
    %v1799 = vld [vmem:[#allocation7 + $0x30] sm:$0xff]
    %v1800 = vld [vmem:[#allocation7 + $0x38] sm:$0xff]
    %v1801 = vld [vmem:[#allocation4] sm:$0xff]
    %v1802 = vld [vmem:[#allocation4 + $0x8] sm:$0xff]
    %v1803 = vpack.c.bf16 %v1802, %v1801
    %v1804 = vld [vmem:[%s5] sm:$0xff]
    %v1805 = vld [vmem:[%s5 + $0x8] sm:$0xff]
    %v1806 = vld [vmem:[%s5 + $0x10] sm:$0xff]
    %v1807 = vld [vmem:[%s5 + $0x18] sm:$0xff]
    %v1808 = vld [vmem:[%s5 + $0x20] sm:$0xff]
    %v1809 = vld [vmem:[%s5 + $0x28] sm:$0xff]
    %v1810 = vld [vmem:[%s5 + $0x30] sm:$0xff]
    %v1811 = vld [vmem:[%s5 + $0x38] sm:$0xff]
    %v1812 = vld [vmem:[%s5 + $0x40] sm:$0xff]
    %v1813 = vld [vmem:[%s5 + $0x48] sm:$0xff]
    %v1814 = vld [vmem:[%s5 + $0x50] sm:$0xff]
    %v1815 = vld [vmem:[%s5 + $0x58] sm:$0xff]
    %v1816 = vld [vmem:[%s5 + $0x60] sm:$0xff]
    %v1817 = vld [vmem:[%s5 + $0x68] sm:$0xff]
    %v1818 = vld [vmem:[%s5 + $0x70] sm:$0xff]
    %v1819 = vld [vmem:[%s5 + $0x78] sm:$0xff]
    %v1820 = vld [vmem:[%s5 + $0x80] sm:$0xff]
    %v1821 = vld [vmem:[%s5 + $0x88] sm:$0xff]
    %v1822 = vld [vmem:[%s5 + $0x90] sm:$0xff]
    %v1823 = vld [vmem:[%s5 + $0x98] sm:$0xff]
    %v1824 = vld [vmem:[%s5 + $0xa0] sm:$0xff]
    %v1825 = vld [vmem:[%s5 + $0xa8] sm:$0xff]
    %v1826 = vld [vmem:[%s5 + $0xb0] sm:$0xff]
    %v1827 = vld [vmem:[%s5 + $0xb8] sm:$0xff]
    %v1828 = vld [vmem:[%s5 + $0xc0] sm:$0xff]
    %v1829 = vld [vmem:[%s5 + $0xc8] sm:$0xff]
    %v1830 = vld [vmem:[%s5 + $0xd0] sm:$0xff]
    %v1831 = vld [vmem:[%s5 + $0xd8] sm:$0xff]
    %v1832 = vld [vmem:[%s5 + $0xe0] sm:$0xff]
    %v1833 = vld [vmem:[%s5 + $0xe8] sm:$0xff]
    %v1834 = vld [vmem:[%s5 + $0xf0] sm:$0xff]
    %v1835 = vld [vmem:[%s5 + $0xf8] sm:$0xff]
    %v1868 = vunpack.c.l.b16 %v1804
    %v1869 = vunpack.c.h.b16 %v1804
    %v1870 = vunpack.c.l.b16 %v1805
    %v1871 = vunpack.c.h.b16 %v1805
    %v1872 = vunpack.c.l.b16 %v1806
    %v1873 = vunpack.c.h.b16 %v1806
    %v1874 = vunpack.c.l.b16 %v1807
    %v1875 = vunpack.c.h.b16 %v1807
    %v1876 = vunpack.c.l.b16 %v1808
    %v1877 = vunpack.c.h.b16 %v1808
    %v1878 = vunpack.c.l.b16 %v1809
    %v1879 = vunpack.c.h.b16 %v1809
    %v1880 = vunpack.c.l.b16 %v1810
    %v1881 = vunpack.c.h.b16 %v1810
    %v1882 = vunpack.c.l.b16 %v1811
    %v1883 = vunpack.c.h.b16 %v1811
    %v1884 = vunpack.c.l.b16 %v1812
    %v1885 = vunpack.c.h.b16 %v1812
    %v1886 = vunpack.c.l.b16 %v1813
    %v1887 = vunpack.c.h.b16 %v1813
    %v1888 = vunpack.c.l.b16 %v1814
    %v1889 = vunpack.c.h.b16 %v1814
    %v1890 = vunpack.c.l.b16 %v1815
    %v1891 = vunpack.c.h.b16 %v1815
    %v1892 = vunpack.c.l.b16 %v1816
    %v1893 = vunpack.c.h.b16 %v1816
    %v1894 = vunpack.c.l.b16 %v1817
    %v1895 = vunpack.c.h.b16 %v1817
    %v1896 = vunpack.c.l.b16 %v1818
    %v1897 = vunpack.c.h.b16 %v1818
    %v1898 = vunpack.c.l.b16 %v1819
    %v1899 = vunpack.c.h.b16 %v1819
    %v1900 = vunpack.c.l.b16 %v1820
    %v1901 = vunpack.c.h.b16 %v1820
    %v1902 = vunpack.c.l.b16 %v1821
    %v1903 = vunpack.c.h.b16 %v1821
    %v1904 = vunpack.c.l.b16 %v1822
    %v1905 = vunpack.c.h.b16 %v1822
    %v1906 = vunpack.c.l.b16 %v1823
    %v1907 = vunpack.c.h.b16 %v1823
    %v1908 = vunpack.c.l.b16 %v1824
    %v1909 = vunpack.c.h.b16 %v1824
    %v1910 = vunpack.c.l.b16 %v1825
    %v1911 = vunpack.c.h.b16 %v1825
    %v1912 = vunpack.c.l.b16 %v1826
    %v1913 = vunpack.c.h.b16 %v1826
    %v1914 = vunpack.c.l.b16 %v1827
    %v1915 = vunpack.c.h.b16 %v1827
    %v1916 = vunpack.c.l.b16 %v1828
    %v1917 = vunpack.c.h.b16 %v1828
    %v1918 = vunpack.c.l.b16 %v1829
    %v1919 = vunpack.c.h.b16 %v1829
    %v1920 = vunpack.c.l.b16 %v1830
    %v1921 = vunpack.c.h.b16 %v1830
    %v1922 = vunpack.c.l.b16 %v1831
    %v1923 = vunpack.c.h.b16 %v1831
    %v1924 = vunpack.c.l.b16 %v1832
    %v1925 = vunpack.c.h.b16 %v1832
    %v1926 = vunpack.c.l.b16 %v1833
    %v1927 = vunpack.c.h.b16 %v1833
    %v1928 = vunpack.c.l.b16 %v1834
    %v1929 = vunpack.c.h.b16 %v1834
    %v1930 = vunpack.c.l.b16 %v1835
    %v1931 = vunpack.c.h.b16 %v1835
    %v1932 = vpack.c.b16 %v1872, %v1868
    %v1933 = vpack.c.b16 %v1873, %v1869
    %v1934 = vpack.c.b16 %v1874, %v1870
    %v1935 = vpack.c.b16 %v1875, %v1871
    %v1936 = vpack.c.b16 %v1880, %v1876
    %v1937 = vpack.c.b16 %v1881, %v1877
    %v1938 = vpack.c.b16 %v1882, %v1878
    %v1939 = vpack.c.b16 %v1883, %v1879
    %v1940 = vpack.c.b16 %v1888, %v1884
    %v1941 = vpack.c.b16 %v1889, %v1885
    %v1942 = vpack.c.b16 %v1890, %v1886
    %v1943 = vpack.c.b16 %v1891, %v1887
    %v1944 = vpack.c.b16 %v1896, %v1892
    %v1945 = vpack.c.b16 %v1897, %v1893
    %v1946 = vpack.c.b16 %v1898, %v1894
    %v1947 = vpack.c.b16 %v1899, %v1895
    %v1948 = vpack.c.b16 %v1904, %v1900
    %v1949 = vpack.c.b16 %v1905, %v1901
    %v1950 = vpack.c.b16 %v1906, %v1902
    %v1951 = vpack.c.b16 %v1907, %v1903
    %v1952 = vpack.c.b16 %v1912, %v1908
    %v1953 = vpack.c.b16 %v1913, %v1909
    %v1954 = vpack.c.b16 %v1914, %v1910
    %v1955 = vpack.c.b16 %v1915, %v1911
    %v1956 = vpack.c.b16 %v1920, %v1916
    %v1957 = vpack.c.b16 %v1921, %v1917
    %v1958 = vpack.c.b16 %v1922, %v1918
    %v1959 = vpack.c.b16 %v1923, %v1919
    %v1960 = vpack.c.b16 %v1928, %v1924
    %v1961 = vpack.c.b16 %v1929, %v1925
    %v1962 = vpack.c.b16 %v1930, %v1926
    %v1963 = vpack.c.b16 %v1931, %v1927
    %1996 = vmatprep.subr.bf16.mxu0 %v1933
    %1997 = vmatpush1.bf16.msra.mxu0 %v1932
    %1998 = vmatprep.subr.bf16.mxu0 %v1937
    %1999 = vmatpush1.bf16.msra.mxu0 %v1936
    %2000 = vmatprep.subr.bf16.mxu0 %v1941
    %2001 = vmatpush1.bf16.msra.mxu0 %v1940
    %2002 = vmatprep.subr.bf16.mxu0 %v1945
    %2003 = vmatpush1.bf16.msra.mxu0 %v1944
    %2004 = vmatprep.subr.bf16.mxu0 %v1949
    %2005 = vmatpush1.bf16.msra.mxu0 %v1948
    %2006 = vmatprep.subr.bf16.mxu0 %v1953
    %2007 = vmatpush1.bf16.msra.mxu0 %v1952
    %2008 = vmatprep.subr.bf16.mxu0 %v1957
    %2009 = vmatpush1.bf16.msra.mxu0 %v1956
    %2010 = vmatprep.subr.bf16.mxu0 %v1961
    %2011 = vmatpush1.bf16.msra.mxu0 %v1960
    %2012 = vmatprep.subr.bf16.mxu0 0
    %2013 = vmatpush1.bf16.msra.mxu0 0
    %2014 = vmatprep.subr.bf16.mxu0 0
    %2015 = vmatpush1.bf16.msra.mxu0 0
    %2016 = vmatprep.subr.bf16.mxu0 0
    %2017 = vmatpush1.bf16.msra.mxu0 0
    %2018 = vmatprep.subr.bf16.mxu0 0
    %2019 = vmatpush1.bf16.msra.mxu0 0
    %2020 = vmatprep.subr.bf16.mxu0 0
    %2021 = vmatpush1.bf16.msra.mxu0 0
    %2022 = vmatprep.subr.bf16.mxu0 0
    %2023 = vmatpush1.bf16.msra.mxu0 0
    %2024 = vmatprep.subr.bf16.mxu0 0
    %2025 = vmatpush1.bf16.msra.mxu0 0
    %2026 = vmatprep.subr.bf16.mxu0 0
    %2027 = vmatpush1.bf16.msra.mxu0 0
    %2028 = vmatprep.mubr.bf16.mxu0 0
    %2029 = vmatmul.mubr.bf16.gmra.mrb[0].mxu0 %v1803
    %v2030 = vpop.f32.mrb[0].mxu0
    %v2031 = vadd.f32 0.0, %v2030
    %v2032 = vpop.f32.mrb[0].mxu0
    %v2033 = vadd.f32 0.0, %v2032
    %v2034 = vpop.f32.mrb[0].mxu0
    %v2035 = vadd.f32 0.0, %v2034
    %v2036 = vpop.f32.mrb[0].mxu0
    %v2037 = vadd.f32 0.0, %v2036
    %2038 = vdwg.mxu0
    %2039 = vmatprep.subr.bf16.mxu0 %v1935
    %2040 = vmatpush1.bf16.msra.mxu0 %v1934
    %2041 = vmatprep.subr.bf16.mxu0 %v1939
    %2042 = vmatpush1.bf16.msra.mxu0 %v1938
    %2043 = vmatprep.subr.bf16.mxu0 %v1943
    %2044 = vmatpush1.bf16.msra.mxu0 %v1942
    %2045 = vmatprep.subr.bf16.mxu0 %v1947
    %2046 = vmatpush1.bf16.msra.mxu0 %v1946
    %2047 = vmatprep.subr.bf16.mxu0 %v1951
    %2048 = vmatpush1.bf16.msra.mxu0 %v1950
    %2049 = vmatprep.subr.bf16.mxu0 %v1955
    %2050 = vmatpush1.bf16.msra.mxu0 %v1954
    %2051 = vmatprep.subr.bf16.mxu0 %v1959
    %2052 = vmatpush1.bf16.msra.mxu0 %v1958
    %2053 = vmatprep.subr.bf16.mxu0 %v1963
    %2054 = vmatpush1.bf16.msra.mxu0 %v1962
    %2055 = vmatprep.subr.bf16.mxu0 0
    %2056 = vmatpush1.bf16.msra.mxu0 0
    %2057 = vmatprep.subr.bf16.mxu0 0
    %2058 = vmatpush1.bf16.msra.mxu0 0
    %2059 = vmatprep.subr.bf16.mxu0 0
    %2060 = vmatpush1.bf16.msra.mxu0 0
    %2061 = vmatprep.subr.bf16.mxu0 0
    %2062 = vmatpush1.bf16.msra.mxu0 0
    %2063 = vmatprep.subr.bf16.mxu0 0
    %2064 = vmatpush1.bf16.msra.mxu0 0
    %2065 = vmatprep.subr.bf16.mxu0 0
    %2066 = vmatpush1.bf16.msra.mxu0 0
    %2067 = vmatprep.subr.bf16.mxu0 0
    %2068 = vmatpush1.bf16.msra.mxu0 0
    %2069 = vmatprep.subr.bf16.mxu0 0
    %2070 = vmatpush1.bf16.msra.mxu0 0
    %2071 = vmatprep.mubr.bf16.mxu0 0
    %2072 = vmatmul.mubr.bf16.gmra.mrb[0].mxu0 %v1803
    %v2073 = vpop.f32.mrb[0].mxu0
    %v2074 = vadd.f32 0.0, %v2073
    %v2075 = vpop.f32.mrb[0].mxu0
    %v2076 = vadd.f32 0.0, %v2075
    %v2077 = vpop.f32.mrb[0].mxu0
    %v2078 = vadd.f32 0.0, %v2077
    %v2079 = vpop.f32.mrb[0].mxu0
    %v2080 = vadd.f32 0.0, %v2079
    %2081 = vdwg.mxu0
    %v2082 = vadd.f32 %v1793, %v2031
    %v2083 = vadd.f32 %v1794, %v2033
    %v2084 = vadd.f32 %v1795, %v2074
    %v2085 = vadd.f32 %v1796, %v2076
    %v2086 = vadd.f32 %v1797, %v2035
    %v2087 = vadd.f32 %v1798, %v2037
    %v2088 = vadd.f32 %v1799, %v2078
    %v2089 = vadd.f32 %v1800, %v2080
    %v2090 = vsub.f32 0.0, %v2082
    %v2091 = vsub.f32 0.0, %v2086
    %v2092 = vmul.f32 %v2090, 1.442695
    %v2093 = vpow.pop %v2092
    %v2094 = vmul.f32 %v2091, 1.442695
    %v2095 = vpow.pop %v2094
    %v2096 = vadd.f32 %v2093, 1.0
    %v2097 = vadd.f32 %v2095, 1.0
    %v2098 = vrcp.pop %v2096
    %v2099 = vmul.f32 1.0, %v2098
    %v2100 = vrcp.pop %v2097
    %v2101 = vmul.f32 1.0, %v2100
    %v2102 = vsub.f32 0.0, %v2083
    %v2103 = vsub.f32 0.0, %v2087
    %v2104 = vmul.f32 %v2102, 1.442695
    %v2105 = vpow.pop %v2104
    %v2106 = vmul.f32 %v2103, 1.442695
    %v2107 = vpow.pop %v2106
    %v2108 = vadd.f32 %v2105, 1.0
    %v2109 = vadd.f32 %v2107, 1.0
    %v2110 = vrcp.pop %v2108
    %v2111 = vmul.f32 1.0, %v2110
    %v2112 = vrcp.pop %v2109
    %v2113 = vmul.f32 1.0, %v2112
    %v2114 = vtanh.pop %v2084
    %v2115 = vtanh.pop %v2088
    %v2116 = vsub.f32 0.0, %v2085
    %v2117 = vsub.f32 0.0, %v2089
    %v2118 = vmul.f32 %v2116, 1.442695
    %v2119 = vpow.pop %v2118
    %v2120 = vmul.f32 %v2117, 1.442695
    %v2121 = vpow.pop %v2120
    %v2122 = vadd.f32 %v2119, 1.0
    %v2123 = vadd.f32 %v2121, 1.0
    %v2124 = vrcp.pop %v2122
    %v2125 = vmul.f32 1.0, %v2124
    %v2126 = vrcp.pop %v2123
    %v2127 = vmul.f32 1.0, %v2126
    %v2128 = vld [vmem:[#allocation5] sm:$0xff]
    %v2129 = vld [vmem:[#allocation5 + $0x8] sm:$0xff]
    %v2130 = vmul.f32 %v2111, %v2128
    %v2131 = vmul.f32 %v2113, %v2129
    %v2132 = vmul.f32 %v2099, %v2114
    %v2133 = vmul.f32 %v2101, %v2115
    %v2134 = vadd.f32 %v2130, %v2132
    %v2135 = vadd.f32 %v2131, %v2133
    %v2136 = vtanh.pop %v2134
    %v2137 = vtanh.pop %v2135
    %v2138 = vmul.f32 %v2125, %v2136
    %v2139 = vmul.f32 %v2127, %v2137
    %2140 = vst [vmem:[#allocation5] sm:$0xff] %v2134
    %2141 = vst [vmem:[#allocation5 + $0x8] sm:$0xff] %v2135
    %2142 = vst [vmem:[#allocation4] sm:$0xff] %v2138
    %2143 = vst [vmem:[#allocation4 + $0x8] sm:$0xff] %v2139
    %2144 = vst [vmem:[#allocation9] sm:$0xff] %v2138
    %2145 = vst [vmem:[#allocation9 + $0x8] sm:$0xff] %v2139
    %v2146 = vld [vmem:[%s7] sm:$0xf]
    %v2147 = vld [vmem:[%s7 + $0x4] sm:$0xf]
    %v2148 = vld [vmem:[%s7 + $0x8] sm:$0xf]
    %v2149 = vld [vmem:[%s7 + $0xc] sm:$0xf]
    %v2150 = vld [vmem:[%s7 + $0x10] sm:$0xf]
    %v2151 = vld [vmem:[%s7 + $0x14] sm:$0xf]
    %v2152 = vld [vmem:[%s7 + $0x18] sm:$0xf]
    %v2153 = vld [vmem:[%s7 + $0x1c] sm:$0xf]
    %v2154 = vld [vmem:[%s7 + $0x20] sm:$0xf]
    %v2155 = vld [vmem:[%s7 + $0x24] sm:$0xf]
    %v2156 = vld [vmem:[%s7 + $0x28] sm:$0xf]
    %v2157 = vld [vmem:[%s7 + $0x2c] sm:$0xf]
    %v2158 = vld [vmem:[%s7 + $0x30] sm:$0xf]
    %v2159 = vld [vmem:[%s7 + $0x34] sm:$0xf]
    %v2160 = vld [vmem:[%s7 + $0x38] sm:$0xf]
    %v2161 = vld [vmem:[%s7 + $0x3c] sm:$0xf]
    %v2162 = vld [vmem:[#allocation8] sm:$0xff]
    %v2163 = vld [vmem:[#allocation8 + $0x8] sm:$0xff]
    %v2164 = vld [vmem:[#allocation8 + $0x10] sm:$0xff]
    %v2165 = vld [vmem:[#allocation8 + $0x18] sm:$0xff]
    %v2166 = vpack.c.bf16 %v2163, %v2162
    %v2167 = vpack.c.bf16 %v2165, %v2164
    %v2168 = vld [vmem:[%s7 + $0x40] sm:$0xf]
    %v2169 = vld [vmem:[%s7 + $0x44] sm:$0xf]
    %v2170 = vld [vmem:[%s7 + $0x48] sm:$0xf]
    %v2171 = vld [vmem:[%s7 + $0x4c] sm:$0xf]
    %v2172 = vld [vmem:[%s7 + $0x50] sm:$0xf]
    %v2173 = vld [vmem:[%s7 + $0x54] sm:$0xf]
    %v2174 = vld [vmem:[%s7 + $0x58] sm:$0xf]
    %v2175 = vld [vmem:[%s7 + $0x5c] sm:$0xf]
    %v2176 = vld [vmem:[%s7 + $0x60] sm:$0xf]
    %v2177 = vld [vmem:[%s7 + $0x64] sm:$0xf]
    %v2178 = vld [vmem:[%s7 + $0x68] sm:$0xf]
    %v2179 = vld [vmem:[%s7 + $0x6c] sm:$0xf]
    %v2180 = vld [vmem:[%s7 + $0x70] sm:$0xf]
    %v2181 = vld [vmem:[%s7 + $0x74] sm:$0xf]
    %v2182 = vld [vmem:[%s7 + $0x78] sm:$0xf]
    %v2183 = vld [vmem:[%s7 + $0x7c] sm:$0xf]
    %v2200 = vunpack.c.l.b16 %v2168
    %v2201 = vunpack.c.l.b16 %v2169
    %v2202 = vunpack.c.l.b16 %v2170
    %v2203 = vunpack.c.l.b16 %v2171
    %v2204 = vunpack.c.l.b16 %v2172
    %v2205 = vunpack.c.l.b16 %v2173
    %v2206 = vunpack.c.l.b16 %v2174
    %v2207 = vunpack.c.l.b16 %v2175
    %v2208 = vunpack.c.l.b16 %v2176
    %v2209 = vunpack.c.l.b16 %v2177
    %v2210 = vunpack.c.l.b16 %v2178
    %v2211 = vunpack.c.l.b16 %v2179
    %v2212 = vunpack.c.l.b16 %v2180
    %v2213 = vunpack.c.l.b16 %v2181
    %v2214 = vunpack.c.l.b16 %v2182
    %v2215 = vunpack.c.l.b16 %v2183
    %v2216 = vpack.c.b16 %v2201, %v2200
    %v2217 = vpack.c.b16 %v2203, %v2202
    %v2218 = vpack.c.b16 %v2205, %v2204
    %v2219 = vpack.c.b16 %v2207, %v2206
    %v2220 = vpack.c.b16 %v2209, %v2208
    %v2221 = vpack.c.b16 %v2211, %v2210
    %v2222 = vpack.c.b16 %v2213, %v2212
    %v2223 = vpack.c.b16 %v2215, %v2214
    %2232 = vmatprep.subr.bf16.mxu0 0
    %2233 = vmatpush1.bf16.msra.mxu0 %v2216
    %2234 = vmatprep.subr.bf16.mxu0 0
    %2235 = vmatpush1.bf16.msra.mxu0 %v2217
    %2236 = vmatprep.subr.bf16.mxu0 0
    %2237 = vmatpush1.bf16.msra.mxu0 %v2218
    %2238 = vmatprep.subr.bf16.mxu0 0
    %2239 = vmatpush1.bf16.msra.mxu0 %v2219
    %2240 = vmatprep.subr.bf16.mxu0 0
    %2241 = vmatpush1.bf16.msra.mxu0 %v2220
    %2242 = vmatprep.subr.bf16.mxu0 0
    %2243 = vmatpush1.bf16.msra.mxu0 %v2221
    %2244 = vmatprep.subr.bf16.mxu0 0
    %2245 = vmatpush1.bf16.msra.mxu0 %v2222
    %2246 = vmatprep.subr.bf16.mxu0 0
    %2247 = vmatpush1.bf16.msra.mxu0 %v2223
    %2248 = vmatprep.subr.bf16.mxu0 0
    %2249 = vmatpush1.bf16.msra.mxu0 0
    %2250 = vmatprep.subr.bf16.mxu0 0
    %2251 = vmatpush1.bf16.msra.mxu0 0
    %2252 = vmatprep.subr.bf16.mxu0 0
    %2253 = vmatpush1.bf16.msra.mxu0 0
    %2254 = vmatprep.subr.bf16.mxu0 0
    %2255 = vmatpush1.bf16.msra.mxu0 0
    %2256 = vmatprep.subr.bf16.mxu0 0
    %2257 = vmatpush1.bf16.msra.mxu0 0
    %2258 = vmatprep.subr.bf16.mxu0 0
    %2259 = vmatpush1.bf16.msra.mxu0 0
    %2260 = vmatprep.subr.bf16.mxu0 0
    %2261 = vmatpush1.bf16.msra.mxu0 0
    %2262 = vmatprep.subr.bf16.mxu0 0
    %2263 = vmatpush1.bf16.msra.mxu0 0
    %2264 = vmatprep.mubr.bf16.mxu0 0
    %2265 = vmatmul.mubr.bf16.gmra.mrb[0].mxu0 %v2166
    %v2266 = vpop.f32.mrb[0].mxu0
    %v2267 = vadd.f32 0.0, %v2266
    %v2268 = vpop.f32.mrb[0].mxu0
    %v2269 = vpop.f32.mrb[0].mxu0
    %v2270 = vadd.f32 0.0, %v2269
    %v2271 = vpop.f32.mrb[0].mxu0
    %2272 = vmatprep.mubr.bf16.mxu0 0
    %2273 = vmatmul.mubr.bf16.gmra.mrb[0].mxu0 %v2167
    %v2274 = vpop.f32.mrb[0].mxu0
    %v2275 = vadd.f32 0.0, %v2274
    %v2276 = vpop.f32.mrb[0].mxu0
    %v2277 = vpop.f32.mrb[0].mxu0
    %v2278 = vadd.f32 0.0, %v2277
    %v2279 = vpop.f32.mrb[0].mxu0
    %2280 = vdwg.mxu0
    %v2297 = vunpack.c.l.b16 %v2146
    %v2298 = vunpack.c.l.b16 %v2147
    %v2299 = vunpack.c.l.b16 %v2148
    %v2300 = vunpack.c.l.b16 %v2149
    %v2301 = vunpack.c.l.b16 %v2150
    %v2302 = vunpack.c.l.b16 %v2151
    %v2303 = vunpack.c.l.b16 %v2152
    %v2304 = vunpack.c.l.b16 %v2153
    %v2305 = vunpack.c.l.b16 %v2154
    %v2306 = vunpack.c.l.b16 %v2155
    %v2307 = vunpack.c.l.b16 %v2156
    %v2308 = vunpack.c.l.b16 %v2157
    %v2309 = vunpack.c.l.b16 %v2158
    %v2310 = vunpack.c.l.b16 %v2159
    %v2311 = vunpack.c.l.b16 %v2160
    %v2312 = vunpack.c.l.b16 %v2161
    %v2313 = vpack.c.b16 %v2298, %v2297
    %v2314 = vpack.c.b16 %v2300, %v2299
    %v2315 = vpack.c.b16 %v2302, %v2301
    %v2316 = vpack.c.b16 %v2304, %v2303
    %v2317 = vpack.c.b16 %v2306, %v2305
    %v2318 = vpack.c.b16 %v2308, %v2307
    %v2319 = vpack.c.b16 %v2310, %v2309
    %v2320 = vpack.c.b16 %v2312, %v2311
    %2329 = vmatprep.subr.bf16.mxu0 0
    %2330 = vmatpush1.bf16.msra.mxu0 %v2313
    %2331 = vmatprep.subr.bf16.mxu0 0
    %2332 = vmatpush1.bf16.msra.mxu0 %v2314
    %2333 = vmatprep.subr.bf16.mxu0 0
    %2334 = vmatpush1.bf16.msra.mxu0 %v2315
    %2335 = vmatprep.subr.bf16.mxu0 0
    %2336 = vmatpush1.bf16.msra.mxu0 %v2316
    %2337 = vmatprep.subr.bf16.mxu0 0
    %2338 = vmatpush1.bf16.msra.mxu0 %v2317
    %2339 = vmatprep.subr.bf16.mxu0 0
    %2340 = vmatpush1.bf16.msra.mxu0 %v2318
    %2341 = vmatprep.subr.bf16.mxu0 0
    %2342 = vmatpush1.bf16.msra.mxu0 %v2319
    %2343 = vmatprep.subr.bf16.mxu0 0
    %2344 = vmatpush1.bf16.msra.mxu0 %v2320
    %2345 = vmatprep.subr.bf16.mxu0 0
    %2346 = vmatpush1.bf16.msra.mxu0 0
    %2347 = vmatprep.subr.bf16.mxu0 0
    %2348 = vmatpush1.bf16.msra.mxu0 0
    %2349 = vmatprep.subr.bf16.mxu0 0
    %2350 = vmatpush1.bf16.msra.mxu0 0
    %2351 = vmatprep.subr.bf16.mxu0 0
    %2352 = vmatpush1.bf16.msra.mxu0 0
    %2353 = vmatprep.subr.bf16.mxu0 0
    %2354 = vmatpush1.bf16.msra.mxu0 0
    %2355 = vmatprep.subr.bf16.mxu0 0
    %2356 = vmatpush1.bf16.msra.mxu0 0
    %2357 = vmatprep.subr.bf16.mxu0 0
    %2358 = vmatpush1.bf16.msra.mxu0 0
    %2359 = vmatprep.subr.bf16.mxu0 0
    %2360 = vmatpush1.bf16.msra.mxu0 0
    %2361 = vmatprep.mubr.bf16.mxu0 0
    %2362 = vmatmul.mubr.bf16.gmra.mrb[0].mxu0 %v100
    %v2363 = vpop.f32.mrb[0].mxu0
    %v2364 = vadd.f32 %v2267, %v2363
    %v2365 = vpop.f32.mrb[0].mxu0
    %v2366 = vpop.f32.mrb[0].mxu0
    %v2367 = vadd.f32 %v2270, %v2366
    %v2368 = vpop.f32.mrb[0].mxu0
    %2369 = vmatprep.mubr.bf16.mxu0 0
    %2370 = vmatmul.mubr.bf16.gmra.mrb[0].mxu0 %v101
    %v2371 = vpop.f32.mrb[0].mxu0
    %v2372 = vadd.f32 %v2275, %v2371
    %v2373 = vpop.f32.mrb[0].mxu0
    %v2374 = vpop.f32.mrb[0].mxu0
    %v2375 = vadd.f32 %v2278, %v2374
    %v2376 = vpop.f32.mrb[0].mxu0
    %2377 = vdwg.mxu0
    %v2378 = vld [vmem:[#allocation9] sm:$0xff]
    %v2379 = vld [vmem:[#allocation9 + $0x8] sm:$0xff]
    %v2380 = vld [vmem:[#allocation9 + $0x10] sm:$0xff]
    %v2381 = vld [vmem:[#allocation9 + $0x18] sm:$0xff]
    %v2382 = vpack.c.bf16 %v2379, %v2378
    %v2383 = vpack.c.bf16 %v2381, %v2380
    %v2384 = vld [vmem:[%s7 + $0x80] sm:$0xf]
    %v2385 = vld [vmem:[%s7 + $0x84] sm:$0xf]
    %v2386 = vld [vmem:[%s7 + $0x88] sm:$0xf]
    %v2387 = vld [vmem:[%s7 + $0x8c] sm:$0xf]
    %v2388 = vld [vmem:[%s7 + $0x90] sm:$0xf]
    %v2389 = vld [vmem:[%s7 + $0x94] sm:$0xf]
    %v2390 = vld [vmem:[%s7 + $0x98] sm:$0xf]
    %v2391 = vld [vmem:[%s7 + $0x9c] sm:$0xf]
    %v2392 = vld [vmem:[%s7 + $0xa0] sm:$0xf]
    %v2393 = vld [vmem:[%s7 + $0xa4] sm:$0xf]
    %v2394 = vld [vmem:[%s7 + $0xa8] sm:$0xf]
    %v2395 = vld [vmem:[%s7 + $0xac] sm:$0xf]
    %v2396 = vld [vmem:[%s7 + $0xb0] sm:$0xf]
    %v2397 = vld [vmem:[%s7 + $0xb4] sm:$0xf]
    %v2398 = vld [vmem:[%s7 + $0xb8] sm:$0xf]
    %v2399 = vld [vmem:[%s7 + $0xbc] sm:$0xf]
    %v2416 = vunpack.c.l.b16 %v2384
    %v2417 = vunpack.c.l.b16 %v2385
    %v2418 = vunpack.c.l.b16 %v2386
    %v2419 = vunpack.c.l.b16 %v2387
    %v2420 = vunpack.c.l.b16 %v2388
    %v2421 = vunpack.c.l.b16 %v2389
    %v2422 = vunpack.c.l.b16 %v2390
    %v2423 = vunpack.c.l.b16 %v2391
    %v2424 = vunpack.c.l.b16 %v2392
    %v2425 = vunpack.c.l.b16 %v2393
    %v2426 = vunpack.c.l.b16 %v2394
    %v2427 = vunpack.c.l.b16 %v2395
    %v2428 = vunpack.c.l.b16 %v2396
    %v2429 = vunpack.c.l.b16 %v2397
    %v2430 = vunpack.c.l.b16 %v2398
    %v2431 = vunpack.c.l.b16 %v2399
    %v2432 = vpack.c.b16 %v2417, %v2416
    %v2433 = vpack.c.b16 %v2419, %v2418
    %v2434 = vpack.c.b16 %v2421, %v2420
    %v2435 = vpack.c.b16 %v2423, %v2422
    %v2436 = vpack.c.b16 %v2425, %v2424
    %v2437 = vpack.c.b16 %v2427, %v2426
    %v2438 = vpack.c.b16 %v2429, %v2428
    %v2439 = vpack.c.b16 %v2431, %v2430
    %2448 = vmatprep.subr.bf16.mxu0 0
    %2449 = vmatpush1.bf16.msra.mxu0 %v2432
    %2450 = vmatprep.subr.bf16.mxu0 0
    %2451 = vmatpush1.bf16.msra.mxu0 %v2433
    %2452 = vmatprep.subr.bf16.mxu0 0
    %2453 = vmatpush1.bf16.msra.mxu0 %v2434
    %2454 = vmatprep.subr.bf16.mxu0 0
    %2455 = vmatpush1.bf16.msra.mxu0 %v2435
    %2456 = vmatprep.subr.bf16.mxu0 0
    %2457 = vmatpush1.bf16.msra.mxu0 %v2436
    %2458 = vmatprep.subr.bf16.mxu0 0
    %2459 = vmatpush1.bf16.msra.mxu0 %v2437
    %2460 = vmatprep.subr.bf16.mxu0 0
    %2461 = vmatpush1.bf16.msra.mxu0 %v2438
    %2462 = vmatprep.subr.bf16.mxu0 0
    %2463 = vmatpush1.bf16.msra.mxu0 %v2439
    %2464 = vmatprep.subr.bf16.mxu0 0
    %2465 = vmatpush1.bf16.msra.mxu0 0
    %2466 = vmatprep.subr.bf16.mxu0 0
    %2467 = vmatpush1.bf16.msra.mxu0 0
    %2468 = vmatprep.subr.bf16.mxu0 0
    %2469 = vmatpush1.bf16.msra.mxu0 0
    %2470 = vmatprep.subr.bf16.mxu0 0
    %2471 = vmatpush1.bf16.msra.mxu0 0
    %2472 = vmatprep.subr.bf16.mxu0 0
    %2473 = vmatpush1.bf16.msra.mxu0 0
    %2474 = vmatprep.subr.bf16.mxu0 0
    %2475 = vmatpush1.bf16.msra.mxu0 0
    %2476 = vmatprep.subr.bf16.mxu0 0
    %2477 = vmatpush1.bf16.msra.mxu0 0
    %2478 = vmatprep.subr.bf16.mxu0 0
    %2479 = vmatpush1.bf16.msra.mxu0 0
    %2480 = vmatprep.mubr.bf16.mxu0 0
    %2481 = vmatmul.mubr.bf16.gmra.mrb[0].mxu0 %v2382
    %v2482 = vpop.f32.mrb[0].mxu0
    %v2483 = vadd.f32 0.0, %v2482
    %v2484 = vpop.f32.mrb[0].mxu0
    %v2485 = vpop.f32.mrb[0].mxu0
    %v2486 = vadd.f32 0.0, %v2485
    %v2487 = vpop.f32.mrb[0].mxu0
    %2488 = vmatprep.mubr.bf16.mxu0 0
    %2489 = vmatmul.mubr.bf16.gmra.mrb[0].mxu0 %v2383
    %v2490 = vpop.f32.mrb[0].mxu0
    %v2491 = vadd.f32 0.0, %v2490
    %v2492 = vpop.f32.mrb[0].mxu0
    %v2493 = vpop.f32.mrb[0].mxu0
    %v2494 = vadd.f32 0.0, %v2493
    %v2495 = vpop.f32.mrb[0].mxu0
    %2496 = vdwg.mxu0
    %v2497 = vadd.f32 %v2364, %v2483
    %v2498 = vadd.f32 %v2367, %v2486
    %v2499 = vadd.f32 %v2372, %v2491
    %v2500 = vadd.f32 %v2375, %v2494
    %v2501 = vld [vmem:[%s8] sm:$0x1]
    %v2503 = vlaneseq
    %v2504 = vshrl.u32 %v2503, 7
    %v2505 = vsub.s32 0, %v2504
    %v2506 = vrot.slane %v2501, %v2505
    %v2508 = vadd.f32 %v2497, %v2506
    %v2509 = vadd.f32 %v2498, %v2506
    %v2510 = vadd.f32 %v2499, %v2506
    %v2511 = vadd.f32 %v2500, %v2506
    %vm2512 = vcmp.ge.f32.partialorder %v2508, 0.0
    %vm2513 = vcmp.ge.f32.partialorder %v2509, 0.0
    %vm2514 = vcmp.ge.f32.partialorder %v2510, 0.0
    %vm2515 = vcmp.ge.f32.partialorder %v2511, 0.0
    %v2516 = vmul.f32 %v2508, 0.2
    %v2517 = vmul.f32 %v2509, 0.2
    %v2518 = vmul.f32 %v2510, 0.2
    %v2519 = vmul.f32 %v2511, 0.2
    %v2520 = vsel %vm2512, %v2508, %v2516
    %v2521 = vsel %vm2513, %v2509, %v2517
    %v2522 = vsel %vm2514, %v2510, %v2518
    %v2523 = vsel %vm2515, %v2511, %v2519
    %2524 = vst [vmem:[#allocation10] sm:$0xff] %v2520
    %2525 = vst [vmem:[#allocation10 + $0x8] sm:$0xff] %v2521
    %2526 = vst [vmem:[#allocation10 + $0x10] sm:$0xff] %v2522
    %2527 = vst [vmem:[#allocation10 + $0x18] sm:$0xff] %v2523
    // Predicated region
    $region38: #{encoder_forward.3} parent=1 // pred_check
      _
    $region39: #{encoder_forward.3} parent=1 // pred_check_branch
      %2529 = sbr.rel (0) target = $region41
    $region40: #{encoder_forward.3} parent=1 // pred_region
      %s2531 = ssub.s32 512, 512
      %2532 = vsyncadd [#allocation11], %s2531
      %s2533 = sshll.u32 [#allocation10], 4
      %s2534 = int_to_ptr.vmem [resolvable:$true] %s2533
      %2539 = dma.vmem_to_hbm [thread:$0]  %s2534, 512, %s9, [#allocation11], 128, 128, 8
    $region41: #{encoder_forward.3} parent=1 // pred_fallthru
      _
    // Predicated region
    $region42: #{encoder_forward.3} parent=1 // pred_check
      _
    $region43: #{encoder_forward.3} parent=1 // pred_check_branch
      %2541 = sbr.rel (0) target = $region45
    $region44: #{encoder_forward.3} parent=1 // pred_region
      %2542 = dma.done [#allocation11], 512
    $region45: #{encoder_forward.3} parent=1 // pred_fallthru
      _
    %2543 = vsyncpa [#allocation11], 1

// kernel: encoder_forward.2
$region0: #{encoder_forward.2}
  #allocation0 [shape = 'u32[]', space=smem, size = 0x4, offset = 0x4, fixed_abs, tag = 'smem constant byte address 0x4 - core index']
  #allocation1 [shape = 'u32[144,128]{1,0:T(1,128)}', space=vmem, size = 0x12000, scoped, tag = 'internal scratch']
  %s0 = inlined_call_operand.vmem [shape: f32[2,16,128], index: 0, kind: input, shape index: {}]
  %s1 = inlined_call_operand.hbm [shape: bf16[3584,128], index: 1, kind: input, shape index: {}]
  %s2 = inlined_call_operand.vmem [shape: f32[7,128], index: 2, kind: input, shape index: {}]
  %s3 = inlined_call_operand.hbm [shape: bf16[1024,128], index: 3, kind: input, shape index: {}]
  %s4 = inlined_call_operand.vmem [shape: f32[1,128], index: 4, kind: input, shape index: {}]
  %s5 = inlined_call_operand.hbm [shape: bf16[6,640,128], index: 5, kind: input, shape index: {}]
  %s6 = inlined_call_operand.vmem [shape: f32[6,128], index: 6, kind: input, shape index: {}]
  %s7 = inlined_call_operand.hbm [shape: bf16[4,128,128], index: 7, kind: input, shape index: {}]
  %s8 = inlined_call_operand.vmem [shape: f32[4,128], index: 8, kind: input, shape index: {}]
  %s9 = inlined_call_operand.vmem [shape: bf16[2,16,128], index: 9, kind: output, shape index: {}]
  %s10 = sld [smem:[#allocation0]]
  $region85: #{encoder_forward.2} parent=0
    _
  %s12 = ssub.s32 1, %s10
  %s13 = scalar_select 0, %s12, %s10
  $region1: #{encoder_forward.2} parent=0
    #allocation2 [shape = 'u8[917504]{0}', space=vmem, size = 0xe0000, scoped, tag = 'input window, operand 1, single buffered']
    #allocation3 [shape = 's32[2]{0}', space=sflag, size = 0x8, scoped, tag = 'scoped memory for encoder_forward.2']
    #allocation4 [shape = 'u8[262144]{0}', space=vmem, size = 0x40000, scoped, tag = 'input window, operand 3, single buffered']
    #allocation5 [shape = 's32[1]{0}', space=sflag, size = 0x4, scoped, tag = 'scoped memory for encoder_forward.2']
    #allocation6 [shape = 'u8[983040]{0}', space=vmem, size = 0xf0000, scoped, tag = 'input window, operand 5, single buffered']
    #allocation7 [shape = 'u8[131072]{0}', space=vmem, size = 0x20000, scoped, tag = 'input window, operand 7, single buffered']
    #allocation8 [shape = 's32[1]{0}', space=sflag, size = 0x4, scoped, tag = 'scoped memory for encoder_forward.2']
    %14 = vsyncpa [#allocation3], 0
    %15 = vsyncpa [#allocation5], 0
    %16 = vsyncpa [#allocation8], 0
    loop: start=0, step=1, limit=4
    $region2: #{encoder_forward.2} parent=1 // loop_pre_header
      _
    $region3: #{encoder_forward.2} parent=1 // loop_header
      %s18 = sphi 0, %s22
      %p19 = scmp.ge.s32.totalorder %s18, 4
      %s28 = sphi 0, %s30
      %s31 = sphi 0, %s28
      %s32 = sphi 0, %s31
      %s48 = sphi 0, %s32
      %s52 = sphi 0, %s52
      %s54 = sphi 0, %s52
      %s55 = sphi 0, %s54
      %s69 = sphi 0, %s55
      %s73 = sphi 0, %s73
      %s75 = sphi 0, %s73
      %s76 = sphi 0, %s75
      %s90 = sphi 0, %s76
      %s94 = sphi 0, %s94
      %s96 = sphi 0, %s94
      %s97 = sphi 0, %s96
      %s111 = sphi 0, %s97
      %s115 = sphi 0, %s115
      %s117 = sphi 0, %s115
      %s118 = sphi 0, %s117
      %s132 = sphi 0, %s118
      %s136 = sphi 0, %s136
      %s138 = sphi 0, %s136
      %s139 = sphi 0, %s138
      %s153 = sphi 0, %s139
      %s157 = sphi 0, %s157
      %s159 = sphi 0, %s157
      %s160 = sphi 0, %s159
      %s174 = sphi 0, %s160
      %s178 = sphi 0, %s178
      %s180 = sphi 0, %s178
      %s181 = sphi 0, %s180
      %s195 = sphi 0, %s181
      %s199 = sphi 0, %s199
      %s201 = sphi 0, %s199
      %s202 = sphi 0, %s201
      %s216 = sphi 0, %s202
      %s222 = sphi 0, %s224
      %s225 = sphi 0, %s222
      %s226 = sphi 0, %s225
      %s242 = sphi 0, %s226
    $region4: #{encoder_forward.2} parent=1 // loop_header_branch
      %21 = sbr.rel (%p19) target = $region8
    $region5: #{encoder_forward.2} parent=1 // loop_body
      %s23 = ssub.s32 %s18, 1
      %s24 = ssub.s32 %s18, 2
      %s25 = sadd.s32 %s18, 1
      %s26 = ssub.s32 %s18, %s25
      %p27 = scmp.eq.s32.totalorder %s26, 0
      %s29 = sadd.s32 %s28, 1
      %s30 = scalar_select %p27, %s28, %s29
      %p33 = pneg %p27
      %p34 = scmp.eq.s32.totalorder %s18, 1
      %p35 = por %p33, %p34
      %p36 = scmp.ne.s32.totalorder %s28, %s31
      %p37 = scmp.eq.s32.totalorder %s18, 0
      %p38 = por %p36, %p37
      %p39 = scmp.ne.s32.totalorder %s28, %s31
      %p40 = scmp.eq.s32.totalorder %s23, 1
      %p41 = por %p39, %p40
      %p42 = scmp.ne.s32.totalorder %s31, %s32
      %p43 = scmp.eq.s32.totalorder %s23, 0
      %p44 = por %p42, %p43
      %p45 = scmp.ne.s32.totalorder %s31, %s32
      %p46 = scmp.eq.s32.totalorder %s24, 1
      %p47 = por %p45, %p46
      %p49 = scmp.ne.s32.totalorder %s32, %s48
      %p50 = scmp.eq.s32.totalorder %s24, 0
      %p51 = por %p49, %p50
      %s53 = sadd.s32 %s52, 1
      %p56 = scmp.eq.s32.totalorder %s18, 1
      %p57 = scmp.ne.s32.totalorder %s52, %s54
      %p58 = scmp.eq.s32.totalorder %s18, 0
      %p59 = por %p57, %p58
      %p60 = scmp.ne.s32.totalorder %s52, %s54
      %p61 = scmp.eq.s32.totalorder %s23, 1
      %p62 = por %p60, %p61
      %p63 = scmp.ne.s32.totalorder %s54, %s55
      %p64 = scmp.eq.s32.totalorder %s23, 0
      %p65 = por %p63, %p64
      %p66 = scmp.ne.s32.totalorder %s54, %s55
      %p67 = scmp.eq.s32.totalorder %s24, 1
      %p68 = por %p66, %p67
      %p70 = scmp.ne.s32.totalorder %s55, %s69
      %p71 = scmp.eq.s32.totalorder %s24, 0
      %p72 = por %p70, %p71
      %s74 = sadd.s32 %s73, 1
      %p77 = scmp.eq.s32.totalorder %s18, 1
      %p78 = scmp.ne.s32.totalorder %s73, %s75
      %p79 = scmp.eq.s32.totalorder %s18, 0
      %p80 = por %p78, %p79
      %p81 = scmp.ne.s32.totalorder %s73, %s75
      %p82 = scmp.eq.s32.totalorder %s23, 1
      %p83 = por %p81, %p82
      %p84 = scmp.ne.s32.totalorder %s75, %s76
      %p85 = scmp.eq.s32.totalorder %s23, 0
      %p86 = por %p84, %p85
      %p87 = scmp.ne.s32.totalorder %s75, %s76
      %p88 = scmp.eq.s32.totalorder %s24, 1
      %p89 = por %p87, %p88
      %p91 = scmp.ne.s32.totalorder %s76, %s90
      %p92 = scmp.eq.s32.totalorder %s24, 0
      %p93 = por %p91, %p92
      %s95 = sadd.s32 %s94, 1
      %p98 = scmp.eq.s32.totalorder %s18, 1
      %p99 = scmp.ne.s32.totalorder %s94, %s96
      %p100 = scmp.eq.s32.totalorder %s18, 0
      %p101 = por %p99, %p100
      %p102 = scmp.ne.s32.totalorder %s94, %s96
      %p103 = scmp.eq.s32.totalorder %s23, 1
      %p104 = por %p102, %p103
      %p105 = scmp.ne.s32.totalorder %s96, %s97
      %p106 = scmp.eq.s32.totalorder %s23, 0
      %p107 = por %p105, %p106
      %p108 = scmp.ne.s32.totalorder %s96, %s97
      %p109 = scmp.eq.s32.totalorder %s24, 1
      %p110 = por %p108, %p109
      %p112 = scmp.ne.s32.totalorder %s97, %s111
      %p113 = scmp.eq.s32.totalorder %s24, 0
      %p114 = por %p112, %p113
      %s116 = sadd.s32 %s115, 1
      %p119 = scmp.eq.s32.totalorder %s18, 1
      %p120 = scmp.ne.s32.totalorder %s115, %s117
      %p121 = scmp.eq.s32.totalorder %s18, 0
      %p122 = por %p120, %p121
      %p123 = scmp.ne.s32.totalorder %s115, %s117
      %p124 = scmp.eq.s32.totalorder %s23, 1
      %p125 = por %p123, %p124
      %p126 = scmp.ne.s32.totalorder %s117, %s118
      %p127 = scmp.eq.s32.totalorder %s23, 0
      %p128 = por %p126, %p127
      %p129 = scmp.ne.s32.totalorder %s117, %s118
      %p130 = scmp.eq.s32.totalorder %s24, 1
      %p131 = por %p129, %p130
      %p133 = scmp.ne.s32.totalorder %s118, %s132
      %p134 = scmp.eq.s32.totalorder %s24, 0
      %p135 = por %p133, %p134
      %s137 = sadd.s32 %s136, 1
      %p140 = scmp.eq.s32.totalorder %s18, 1
      %p141 = scmp.ne.s32.totalorder %s136, %s138
      %p142 = scmp.eq.s32.totalorder %s18, 0
      %p143 = por %p141, %p142
      %p144 = scmp.ne.s32.totalorder %s136, %s138
      %p145 = scmp.eq.s32.totalorder %s23, 1
      %p146 = por %p144, %p145
      %p147 = scmp.ne.s32.totalorder %s138, %s139
      %p148 = scmp.eq.s32.totalorder %s23, 0
      %p149 = por %p147, %p148
      %p150 = scmp.ne.s32.totalorder %s138, %s139
      %p151 = scmp.eq.s32.totalorder %s24, 1
      %p152 = por %p150, %p151
      %p154 = scmp.ne.s32.totalorder %s139, %s153
      %p155 = scmp.eq.s32.totalorder %s24, 0
      %p156 = por %p154, %p155
      %s158 = sadd.s32 %s157, 1
      %p161 = scmp.eq.s32.totalorder %s18, 1
      %p162 = scmp.ne.s32.totalorder %s157, %s159
      %p163 = scmp.eq.s32.totalorder %s18, 0
      %p164 = por %p162, %p163
      %p165 = scmp.ne.s32.totalorder %s157, %s159
      %p166 = scmp.eq.s32.totalorder %s23, 1
      %p167 = por %p165, %p166
      %p168 = scmp.ne.s32.totalorder %s159, %s160
      %p169 = scmp.eq.s32.totalorder %s23, 0
      %p170 = por %p168, %p169
      %p171 = scmp.ne.s32.totalorder %s159, %s160
      %p172 = scmp.eq.s32.totalorder %s24, 1
      %p173 = por %p171, %p172
      %p175 = scmp.ne.s32.totalorder %s160, %s174
      %p176 = scmp.eq.s32.totalorder %s24, 0
      %p177 = por %p175, %p176
      %s179 = sadd.s32 %s178, 1
      %p182 = scmp.eq.s32.totalorder %s18, 1
      %p183 = scmp.ne.s32.totalorder %s178, %s180
      %p184 = scmp.eq.s32.totalorder %s18, 0
      %p185 = por %p183, %p184
      %p186 = scmp.ne.s32.totalorder %s178, %s180
      %p187 = scmp.eq.s32.totalorder %s23, 1
      %p188 = por %p186, %p187
      %p189 = scmp.ne.s32.totalorder %s180, %s181
      %p190 = scmp.eq.s32.totalorder %s23, 0
      %p191 = por %p189, %p190
      %p192 = scmp.ne.s32.totalorder %s180, %s181
      %p193 = scmp.eq.s32.totalorder %s24, 1
      %p194 = por %p192, %p193
      %p196 = scmp.ne.s32.totalorder %s181, %s195
      %p197 = scmp.eq.s32.totalorder %s24, 0
      %p198 = por %p196, %p197
      %s200 = sadd.s32 %s199, 1
      %p203 = scmp.eq.s32.totalorder %s18, 1
      %p204 = scmp.ne.s32.totalorder %s199, %s201
      %p205 = scmp.eq.s32.totalorder %s18, 0
      %p206 = por %p204, %p205
      %p207 = scmp.ne.s32.totalorder %s199, %s201
      %p208 = scmp.eq.s32.totalorder %s23, 1
      %p209 = por %p207, %p208
      %p210 = scmp.ne.s32.totalorder %s201, %s202
      %p211 = scmp.eq.s32.totalorder %s23, 0
      %p212 = por %p210, %p211
      %p213 = scmp.ne.s32.totalorder %s201, %s202
      %p214 = scmp.eq.s32.totalorder %s24, 1
      %p215 = por %p213, %p214
      %p217 = scmp.ne.s32.totalorder %s202, %s216
      %p218 = scmp.eq.s32.totalorder %s24, 0
      %p219 = por %p217, %p218
      %s220 = ssub.s32 %s18, %s25
      %p221 = scmp.eq.s32.totalorder %s220, 0
      %s223 = sadd.s32 %s222, 1
      %s224 = scalar_select %p221, %s222, %s223
      %p227 = pneg %p221
      %p228 = scmp.eq.s32.totalorder %s18, 1
      %p229 = por %p227, %p228
      %p230 = scmp.ne.s32.totalorder %s222, %s225
      %p231 = scmp.eq.s32.totalorder %s18, 0
      %p232 = por %p230, %p231
      %p233 = scmp.ne.s32.totalorder %s222, %s225
      %p234 = scmp.eq.s32.totalorder %s23, 1
      %p235 = por %p233, %p234
      %p236 = scmp.ne.s32.totalorder %s225, %s226
      %p237 = scmp.eq.s32.totalorder %s23, 0
      %p238 = por %p236, %p237
      %p239 = scmp.ne.s32.totalorder %s225, %s226
      %p240 = scmp.eq.s32.totalorder %s24, 1
      %p241 = por %p239, %p240
      %p243 = scmp.ne.s32.totalorder %s226, %s242
      %p244 = scmp.eq.s32.totalorder %s24, 0
      %p245 = por %p243, %p244
      %p246 = scmp.le.s32.totalorder 1, %s18
      %p247 = scmp.lt.s32.totalorder %s18, 3
      %p248 = pnand %p246, %p247
      %p249 = pneg %p248
      // Predicated region
      $region9: #{encoder_forward.2} parent=5 // pred_check
        _
      $region10: #{encoder_forward.2} parent=5 // pred_check_branch
        %251 = sbr.rel (%p248) target = $region12
      $region11: #{encoder_forward.2} parent=5 // pred_region
        %s252 = ssub.s32 %s18, 1
        // Predicated region
        $region13: #{encoder_forward.2} parent=11 // pred_check
          %p253 = pneg %p65
        $region14: #{encoder_forward.2} parent=11 // pred_check_branch
          %255 = sbr.rel (%p253) target = $region16
        $region15: #{encoder_forward.2} parent=11 // pred_region
          %s257 = ssub.s32 28672, 28672
          %258 = vsyncadd [#allocation3], %s257
          %s259 = sshll.u32 [#allocation2], 4
          %s260 = int_to_ptr.vmem [resolvable:$true] %s259
          %265 = dma.hbm_to_vmem [thread:$0]  %s1, 28672, %s260, [#allocation3], 64, 64, 4
        $region16: #{encoder_forward.2} parent=11 // pred_fallthru
          _
        // Predicated region
        $region17: #{encoder_forward.2} parent=11 // pred_check
          %p266 = pneg %p86
        $region18: #{encoder_forward.2} parent=11 // pred_check_branch
          %268 = sbr.rel (%p266) target = $region20
        $region19: #{encoder_forward.2} parent=11 // pred_region
          _
        $region20: #{encoder_forward.2} parent=11 // pred_fallthru
          _
        // Predicated region
        $region21: #{encoder_forward.2} parent=11 // pred_check
          %p269 = pneg %p107
        $region22: #{encoder_forward.2} parent=11 // pred_check_branch
          %271 = sbr.rel (%p269) target = $region24
        $region23: #{encoder_forward.2} parent=11 // pred_region
          %s273 = ssub.s32 8192, 8192
          %274 = vsyncadd [#allocation5], %s273
          %s275 = sshll.u32 [#allocation4], 4
          %s276 = int_to_ptr.vmem [resolvable:$true] %s275
          %281 = dma.hbm_to_vmem [thread:$0]  %s3, 8192, %s276, [#allocation5], 64, 64, 4
        $region24: #{encoder_forward.2} parent=11 // pred_fallthru
          _
        // Predicated region
        $region25: #{encoder_forward.2} parent=11 // pred_check
          %p282 = pneg %p128
        $region26: #{encoder_forward.2} parent=11 // pred_check_branch
          %284 = sbr.rel (%p282) target = $region28
        $region27: #{encoder_forward.2} parent=11 // pred_region
          _
        $region28: #{encoder_forward.2} parent=11 // pred_fallthru
          _
        // Predicated region
        $region29: #{encoder_forward.2} parent=11 // pred_check
          %p285 = pneg %p149
        $region30: #{encoder_forward.2} parent=11 // pred_check_branch
          %287 = sbr.rel (%p285) target = $region32
        $region31: #{encoder_forward.2} parent=11 // pred_region
          %s289 = ssub.s32 30720, 30720
          %290 = vsyncadd [#allocation5], %s289
          %s291 = sshll.u32 [#allocation6], 4
          %s292 = int_to_ptr.vmem [resolvable:$true] %s291
          %297 = dma.hbm_to_vmem [thread:$0]  %s5, 30720, %s292, [#allocation5], 64, 64, 4
        $region32: #{encoder_forward.2} parent=11 // pred_fallthru
          _
        // Predicated region
        $region33: #{encoder_forward.2} parent=11 // pred_check
          %p298 = pneg %p170
        $region34: #{encoder_forward.2} parent=11 // pred_check_branch
          %300 = sbr.rel (%p298) target = $region36
        $region35: #{encoder_forward.2} parent=11 // pred_region
          _
        $region36: #{encoder_forward.2} parent=11 // pred_fallthru
          _
        // Predicated region
        $region37: #{encoder_forward.2} parent=11 // pred_check
          %p301 = pneg %p191
        $region38: #{encoder_forward.2} parent=11 // pred_check_branch
          %303 = sbr.rel (%p301) target = $region40
        $region39: #{encoder_forward.2} parent=11 // pred_region
          %s305 = ssub.s32 4096, 4096
          %306 = vsyncadd [#allocation8], %s305
          %s307 = sshll.u32 [#allocation7], 4
          %s308 = int_to_ptr.vmem [resolvable:$true] %s307
          %313 = dma.hbm_to_vmem [thread:$0]  %s7, 4096, %s308, [#allocation8], 64, 64, 4
        $region40: #{encoder_forward.2} parent=11 // pred_fallthru
          _
        // Predicated region
        $region41: #{encoder_forward.2} parent=11 // pred_check
          %p314 = pneg %p212
        $region42: #{encoder_forward.2} parent=11 // pred_check_branch
          %316 = sbr.rel (%p314) target = $region44
        $region43: #{encoder_forward.2} parent=11 // pred_region
          _
        $region44: #{encoder_forward.2} parent=11 // pred_fallthru
          _
      $region12: #{encoder_forward.2} parent=5 // pred_fallthru
        _
      %p317 = scmp.lt.s32.totalorder %s18, 2
      // Predicated region
      $region45: #{encoder_forward.2} parent=5 // pred_check
        %p318 = pneg %p317
      $region46: #{encoder_forward.2} parent=5 // pred_check_branch
        %320 = sbr.rel (%p318) target = $region48
      $region47: #{encoder_forward.2} parent=5 // pred_region
        // Predicated region
        $region49: #{encoder_forward.2} parent=47 // pred_check
          %p321 = pneg %p38
        $region50: #{encoder_forward.2} parent=47 // pred_check_branch
          %323 = sbr.rel (%p321) target = $region52
        $region51: #{encoder_forward.2} parent=47 // pred_region
          %p324 = scmp.lt.s32.totalorder %s18, 1
          %s325 = scalar_select %p324, %s18, 1
          %s326 = smul.addr %s325, 2
          %s327 = smul.addr %s326, 8
          %s328 = scalar_lea.vmem %s0, %s327
        $region52: #{encoder_forward.2} parent=47 // pred_fallthru
          _
      $region48: #{encoder_forward.2} parent=5 // pred_fallthru
        _
      %p329 = scmp.le.s32.totalorder 1, %s18
      %p330 = scmp.lt.s32.totalorder %s18, 3
      %p331 = pnand %p329, %p330
      %p332 = pneg %p331
      // Predicated region
      $region53: #{encoder_forward.2} parent=5 // pred_check
        _
      $region54: #{encoder_forward.2} parent=5 // pred_check_branch
        %334 = sbr.rel (%p331) target = $region56
      $region55: #{encoder_forward.2} parent=5 // pred_region
        %s335 = ssub.s32 %s18, 1
        // Predicated region
        $region57: #{encoder_forward.2} parent=55 // pred_check
          %p336 = pneg %p65
        $region58: #{encoder_forward.2} parent=55 // pred_check_branch
          %338 = sbr.rel (%p336) target = $region60
        $region59: #{encoder_forward.2} parent=55 // pred_region
          %339 = dma.done [#allocation3], 28672
        $region60: #{encoder_forward.2} parent=55 // pred_fallthru
          _
        // Predicated region
        $region61: #{encoder_forward.2} parent=55 // pred_check
          %p340 = pneg %p107
        $region62: #{encoder_forward.2} parent=55 // pred_check_branch
          %342 = sbr.rel (%p340) target = $region64
        $region63: #{encoder_forward.2} parent=55 // pred_region
          %343 = dma.done [#allocation5], 8192
        $region64: #{encoder_forward.2} parent=55 // pred_fallthru
          _
        // Predicated region
        $region65: #{encoder_forward.2} parent=55 // pred_check
          %p344 = pneg %p149
        $region66: #{encoder_forward.2} parent=55 // pred_check_branch
          %346 = sbr.rel (%p344) target = $region68
        $region67: #{encoder_forward.2} parent=55 // pred_region
          %347 = dma.done [#allocation5], 30720
        $region68: #{encoder_forward.2} parent=55 // pred_fallthru
          _
        // Predicated region
        $region69: #{encoder_forward.2} parent=55 // pred_check
          %p348 = pneg %p191
        $region70: #{encoder_forward.2} parent=55 // pred_check_branch
          %350 = sbr.rel (%p348) target = $region72
        $region71: #{encoder_forward.2} parent=55 // pred_region
          %351 = dma.done [#allocation8], 4096
        $region72: #{encoder_forward.2} parent=55 // pred_fallthru
          _
        %p352 = scmp.lt.s32.totalorder %s23, 1
        %s353 = scalar_select %p352, %s23, 1
        %s354 = smul.addr %s353, 2
        %s355 = smul.addr %s354, 8
        %s356 = scalar_lea.vmem %s0, %s355
        %p357 = pneg %p44
        %p358 = pneg %p41
        %p359 = pneg %p65
        %p360 = pneg %p62
        %p361 = pneg %p86
        %p362 = pneg %p83
        %p363 = pneg %p107
        %p364 = pneg %p104
        %p365 = pneg %p128
        %p366 = pneg %p125
        %p367 = pneg %p149
        %p368 = pneg %p146
        %p369 = pneg %p170
        %p370 = pneg %p167
        %p371 = pneg %p191
        %p372 = pneg %p188
        %p373 = pneg %p212
        %p374 = pneg %p209
        %p375 = pneg %p238
        %p376 = pneg %p235
        %p377 = scmp.lt.s32.totalorder %s23, 1
        %s378 = scalar_select %p377, %s23, 1
        %s379 = smul.addr %s378, 2
        %s380 = smul.addr %s379, 4
        %s381 = scalar_lea.vmem %s9, %s380
        %p382 = scmp.lt.s32.totalorder %s23, 1
        %s383 = scalar_select %p382, %s23, 1
        %s384 = smul.addr %s383, 2
        %s385 = smul.addr %s384, 8
        %s386 = scalar_lea.vmem %s0, %s385
        %p387 = scmp.lt.s32.totalorder %s23, 1
        %s388 = scalar_select %p387, %s23, 1
        %s389 = smul.addr %s388, 2
        %s390 = smul.addr %s389, 4
        %s391 = scalar_lea.vmem %s9, %s390
        %v393 = vld [vmem:[%s386] sm:$0xff]
        %v394 = vld [vmem:[%s386 + $0x8] sm:$0xff]
        %v395 = vpack.c.bf16 %v394, %v393
        %v397 = vshrl.u32 %v395, 16
        %v399 = vrot.slane %v397, 1
        %v401 = vshll.u32 %v395, 16
        %v403 = vrot.slane %v401, 1
        %v405 = vrot.slane %v397, 7
        %v406 = vrot.slane %v397, 6
        %v407 = vrot.slane %v401, 7
        %v408 = vor.u32 %v406, %v407
        %v410 = vrot.slane %v401, 6
        %v412 = vrot.slane %v397, 4
        %v413 = vrot.slane %v401, 4
        %vm415 = vcmask 1040384
        %vm416 = vsmask.f32 256
        %vm417 = vmand %vm415, %vm416
        %v418 = vsel %vm417, %v399, %v403
        %vm419 = vcmask 1040384
        %v422 = vsel %vm419, %v418, %v405
        %vm424 = vcmask 1041408
        %vm425 = vsmask.f32 1280
        %vm426 = vmand %vm424, %vm425
        %v427 = vsel %vm426, %v422, %v408
        %v428 = vsel %vm426, %v408, %v410
        %vm429 = vcmask 1041408
        %v432 = vsel %vm429, %v428, %v412
        %vm434 = vcmask 1042432
        %vm435 = vsmask.f32 2304
        %vm436 = vmand %vm434, %vm435
        %v437 = vsel %vm436, %v432, %v413
        %vm438 = vsmask.f32 7424
        %v440 = vshrl.u32 %v427, 16
        %v442 = vshll.u32 %v427, 16
        %v444 = vrot.slane %v442, 1
        %v445 = vor.u32 %v440, %v444
        %v447 = vshll.u32 %v437, 16
        %v449 = vrot.slane %v447, 1
        %v450 = vsel %vm438, %v445, %v449
        %vm454 = vcmask 1046528
        %v455 = vrot.slane %v427, 1
        %v456 = vrot.slane %v437, 1
        %v457 = vsel %vm454, %v455, %v456
        %vm459 = vsmask.f32 6400
        %v460 = vrot.slane %v440, 1
        %v461 = vrot.slane %v442, 2
        %v462 = vor.u32 %v460, %v461
        %v463 = vshrl.u32 %v437, 16
        %v465 = vrot.slane %v463, 1
        %v466 = vrot.slane %v447, 2
        %v467 = vor.u32 %v465, %v466
        %v468 = vsel %vm459, %v462, %v467
        %vm470 = vcmask 1045504
        %v471 = vrot.slane %v427, 2
        %v472 = vrot.slane %v437, 2
        %v473 = vsel %vm470, %v471, %v472
        %vm475 = vsmask.f32 5376
        %v476 = vrot.slane %v440, 2
        %v477 = vrot.slane %v442, 3
        %v478 = vor.u32 %v476, %v477
        %v479 = vrot.slane %v463, 2
        %v480 = vrot.slane %v447, 3
        %v481 = vor.u32 %v479, %v480
        %v482 = vsel %vm475, %v478, %v481
        %vm484 = vcmask 1044480
        %v485 = vrot.slane %v427, 3
        %v486 = vrot.slane %v437, 3
        %v487 = vsel %vm484, %v485, %v486
        %v489 = vld [vmem:[%s2] sm:$0x7f]
        %v490 = vld [vmem:[#allocation2] sm:$0xf]
        %v491 = vld [vmem:[#allocation2 + $0x4] sm:$0xf]
        %v492 = vld [vmem:[#allocation2 + $0x8] sm:$0xf]
        %v493 = vld [vmem:[#allocation2 + $0xc] sm:$0xf]
        %v494 = vld [vmem:[#allocation2 + $0x10] sm:$0xf]
        %v495 = vld [vmem:[#allocation2 + $0x14] sm:$0xf]
        %v496 = vld [vmem:[#allocation2 + $0x18] sm:$0xf]
        %v497 = vld [vmem:[#allocation2 + $0x1c] sm:$0xf]
        %v498 = vld [vmem:[#allocation2 + $0x20] sm:$0xf]
        %v499 = vld [vmem:[#allocation2 + $0x24] sm:$0xf]
        %v500 = vld [vmem:[#allocation2 + $0x28] sm:$0xf]
        %v501 = vld [vmem:[#allocation2 + $0x2c] sm:$0xf]
        %v502 = vld [vmem:[#allocation2 + $0x30] sm:$0xf]
        %v503 = vld [vmem:[#allocation2 + $0x34] sm:$0xf]
        %v504 = vld [vmem:[#allocation2 + $0x38] sm:$0xf]
        %v505 = vld [vmem:[#allocation2 + $0x3c] sm:$0xf]
        %v506 = vlaneseq
        %v507 = vshrl.u32 %v506, 7
        %v508 = vsub.s32 0, %v507
        %v509 = vrot.slane %v489, %v508
        %v526 = vunpack.c.l.b16 %v490
        %v527 = vunpack.c.l.b16 %v491
        %v528 = vunpack.c.l.b16 %v492
        %v529 = vunpack.c.l.b16 %v493
        %v530 = vunpack.c.l.b16 %v494
        %v531 = vunpack.c.l.b16 %v495
        %v532 = vunpack.c.l.b16 %v496
        %v533 = vunpack.c.l.b16 %v497
        %v534 = vunpack.c.l.b16 %v498
        %v535 = vunpack.c.l.b16 %v499
        %v536 = vunpack.c.l.b16 %v500
        %v537 = vunpack.c.l.b16 %v501
        %v538 = vunpack.c.l.b16 %v502
        %v539 = vunpack.c.l.b16 %v503
        %v540 = vunpack.c.l.b16 %v504
        %v541 = vunpack.c.l.b16 %v505
        %v542 = vpack.c.b16 %v527, %v526
        %v543 = vpack.c.b16 %v529, %v528
        %v544 = vpack.c.b16 %v531, %v530
        %v545 = vpack.c.b16 %v533, %v532
        %v546 = vpack.c.b16 %v535, %v534
        %v547 = vpack.c.b16 %v537, %v536
        %v548 = vpack.c.b16 %v539, %v538
        %v549 = vpack.c.b16 %v541, %v540
        %558 = vmatprep.subr.bf16.mxu0 0
        %559 = vmatpush1.bf16.msra.mxu0 %v542
        %560 = vmatprep.subr.bf16.mxu0 0
        %561 = vmatpush1.bf16.msra.mxu0 %v543
        %562 = vmatprep.subr.bf16.mxu0 0
        %563 = vmatpush1.bf16.msra.mxu0 %v544
        %564 = vmatprep.subr.bf16.mxu0 0
        %565 = vmatpush1.bf16.msra.mxu0 %v545
        %566 = vmatprep.subr.bf16.mxu0 0
        %567 = vmatpush1.bf16.msra.mxu0 %v546
        %568 = vmatprep.subr.bf16.mxu0 0
        %569 = vmatpush1.bf16.msra.mxu0 %v547
        %570 = vmatprep.subr.bf16.mxu0 0
        %571 = vmatpush1.bf16.msra.mxu0 %v548
        %572 = vmatprep.subr.bf16.mxu0 0
        %573 = vmatpush1.bf16.msra.mxu0 %v549
        %574 = vmatprep.subr.bf16.mxu0 0
        %575 = vmatpush1.bf16.msra.mxu0 0
        %576 = vmatprep.subr.bf16.mxu0 0
        %577 = vmatpush1.bf16.msra.mxu0 0
        %578 = vmatprep.subr.bf16.mxu0 0
        %579 = vmatpush1.bf16.msra.mxu0 0
        %580 = vmatprep.subr.bf16.mxu0 0
        %581 = vmatpush1.bf16.msra.mxu0 0
        %582 = vmatprep.subr.bf16.mxu0 0
        %583 = vmatpush1.bf16.msra.mxu0 0
        %584 = vmatprep.subr.bf16.mxu0 0
        %585 = vmatpush1.bf16.msra.mxu0 0
        %586 = vmatprep.subr.bf16.mxu0 0
        %587 = vmatpush1.bf16.msra.mxu0 0
        %588 = vmatprep.subr.bf16.mxu0 0
        %589 = vmatpush1.bf16.msra.mxu0 0
        %590 = vmatprep.mubr.bf16.mxu0 0
        %591 = vmatmul.mubr.bf16.gmra.mrb[0].mxu0 %v468
        %v592 = vpop.f32.mrb[0].mxu0
        %v593 = vadd.f32 %v509, %v592
        %v594 = vpop.f32.mrb[0].mxu0
        %v595 = vpop.f32.mrb[0].mxu0
        %v596 = vadd.f32 %v509, %v595
        %v597 = vpop.f32.mrb[0].mxu0
        %598 = vdwg.mxu0
        %vm599 = vcmp.ge.f32.partialorder %v593, 0.0
        %vm600 = vcmp.ge.f32.partialorder %v596, 0.0
        %v601 = vmul.f32 %v593, 0.2
        %v602 = vmul.f32 %v596, 0.2
        %v603 = vsel %vm599, %v593, %v601
        %v604 = vsel %vm600, %v596, %v602
        %v605 = vpack.c.bf16 %v604, %v603
        %v606 = vld [vmem:[#allocation4] sm:$0xf]
        %v607 = vld [vmem:[#allocation4 + $0x4] sm:$0xf]
        %v608 = vld [vmem:[#allocation4 + $0x8] sm:$0xf]
        %v609 = vld [vmem:[#allocation4 + $0xc] sm:$0xf]
        %v610 = vld [vmem:[#allocation4 + $0x10] sm:$0xf]
        %v611 = vld [vmem:[#allocation4 + $0x14] sm:$0xf]
        %v612 = vld [vmem:[#allocation4 + $0x18] sm:$0xf]
        %v613 = vld [vmem:[#allocation4 + $0x1c] sm:$0xf]
        %v614 = vld [vmem:[#allocation4 + $0x20] sm:$0xf]
        %v615 = vld [vmem:[#allocation4 + $0x24] sm:$0xf]
        %v616 = vld [vmem:[#allocation4 + $0x28] sm:$0xf]
        %v617 = vld [vmem:[#allocation4 + $0x2c] sm:$0xf]
        %v618 = vld [vmem:[#allocation4 + $0x30] sm:$0xf]
        %v619 = vld [vmem:[#allocation4 + $0x34] sm:$0xf]
        %v620 = vld [vmem:[#allocation4 + $0x38] sm:$0xf]
        %v621 = vld [vmem:[#allocation4 + $0x3c] sm:$0xf]
        %v622 = vld [vmem:[#allocation2 + $0x40] sm:$0xf]
        %v623 = vld [vmem:[#allocation2 + $0x44] sm:$0xf]
        %v624 = vld [vmem:[#allocation2 + $0x48] sm:$0xf]
        %v625 = vld [vmem:[#allocation2 + $0x4c] sm:$0xf]
        %v626 = vld [vmem:[#allocation2 + $0x50] sm:$0xf]
        %v627 = vld [vmem:[#allocation2 + $0x54] sm:$0xf]
        %v628 = vld [vmem:[#allocation2 + $0x58] sm:$0xf]
        %v629 = vld [vmem:[#allocation2 + $0x5c] sm:$0xf]
        %v630 = vld [vmem:[#allocation2 + $0x60] sm:$0xf]
        %v631 = vld [vmem:[#allocation2 + $0x64] sm:$0xf]
        %v632 = vld [vmem:[#allocation2 + $0x68] sm:$0xf]
        %v633 = vld [vmem:[#allocation2 + $0x6c] sm:$0xf]
        %v634 = vld [vmem:[#allocation2 + $0x70] sm:$0xf]
        %v635 = vld [vmem:[#allocation2 + $0x74] sm:$0xf]
        %v636 = vld [vmem:[#allocation2 + $0x78] sm:$0xf]
        %v637 = vld [vmem:[#allocation2 + $0x7c] sm:$0xf]
        %v638 = vld [vmem:[#allocation2 + $0x80] sm:$0xf]
        %v639 = vld [vmem:[#allocation2 + $0x84] sm:$0xf]
        %v640 = vld [vmem:[#allocation2 + $0x88] sm:$0xf]
        %v641 = vld [vmem:[#allocation2 + $0x8c] sm:$0xf]
        %v642 = vld [vmem:[#allocation2 + $0x90] sm:$0xf]
        %v643 = vld [vmem:[#allocation2 + $0x94] sm:$0xf]
        %v644 = vld [vmem:[#allocation2 + $0x98] sm:$0xf]
        %v645 = vld [vmem:[#allocation2 + $0x9c] sm:$0xf]
        %v646 = vld [vmem:[#allocation2 + $0xa0] sm:$0xf]
        %v647 = vld [vmem:[#allocation2 + $0xa4] sm:$0xf]
        %v648 = vld [vmem:[#allocation2 + $0xa8] sm:$0xf]
        %v649 = vld [vmem:[#allocation2 + $0xac] sm:$0xf]
        %v650 = vld [vmem:[#allocation2 + $0xb0] sm:$0xf]
        %v651 = vld [vmem:[#allocation2 + $0xb4] sm:$0xf]
        %v652 = vld [vmem:[#allocation2 + $0xb8] sm:$0xf]
        %v653 = vld [vmem:[#allocation2 + $0xbc] sm:$0xf]
        %v654 = vlaneseq
        %v655 = vshrl.u32 %v654, 7
        %v656 = vsub.s32 1, %v655
        %v657 = vrot.slane %v489, %v656
        %v690 = vunpack.c.l.b16 %v622
        %v691 = vunpack.c.l.b16 %v623
        %v692 = vunpack.c.l.b16 %v624
        %v693 = vunpack.c.l.b16 %v625
        %v694 = vunpack.c.l.b16 %v626
        %v695 = vunpack.c.l.b16 %v627
        %v696 = vunpack.c.l.b16 %v628
        %v697 = vunpack.c.l.b16 %v629
        %v698 = vunpack.c.l.b16 %v630
        %v699 = vunpack.c.l.b16 %v631
        %v700 = vunpack.c.l.b16 %v632
        %v701 = vunpack.c.l.b16 %v633
        %v702 = vunpack.c.l.b16 %v634
        %v703 = vunpack.c.l.b16 %v635
        %v704 = vunpack.c.l.b16 %v636
        %v705 = vunpack.c.l.b16 %v637
        %v706 = vunpack.c.l.b16 %v638
        %v707 = vunpack.c.l.b16 %v639
        %v708 = vunpack.c.l.b16 %v640
        %v709 = vunpack.c.l.b16 %v641
        %v710 = vunpack.c.l.b16 %v642
        %v711 = vunpack.c.l.b16 %v643
        %v712 = vunpack.c.l.b16 %v644
        %v713 = vunpack.c.l.b16 %v645
        %v714 = vunpack.c.l.b16 %v646
        %v715 = vunpack.c.l.b16 %v647
        %v716 = vunpack.c.l.b16 %v648
        %v717 = vunpack.c.l.b16 %v649
        %v718 = vunpack.c.l.b16 %v650
        %v719 = vunpack.c.l.b16 %v651
        %v720 = vunpack.c.l.b16 %v652
        %v721 = vunpack.c.l.b16 %v653
        %v722 = vpack.c.b16 %v691, %v690
        %v723 = vpack.c.b16 %v693, %v692
        %v724 = vpack.c.b16 %v695, %v694
        %v725 = vpack.c.b16 %v697, %v696
        %v726 = vpack.c.b16 %v699, %v698
        %v727 = vpack.c.b16 %v701, %v700
        %v728 = vpack.c.b16 %v703, %v702
        %v729 = vpack.c.b16 %v705, %v704
        %v730 = vpack.c.b16 %v707, %v706
        %v731 = vpack.c.b16 %v709, %v708
        %v732 = vpack.c.b16 %v711, %v710
        %v733 = vpack.c.b16 %v713, %v712
        %v734 = vpack.c.b16 %v715, %v714
        %v735 = vpack.c.b16 %v717, %v716
        %v736 = vpack.c.b16 %v719, %v718
        %v737 = vpack.c.b16 %v721, %v720
        %754 = vmatprep.subr.bf16.mxu0 0
        %755 = vmatpush1.bf16.msra.mxu0 %v722
        %756 = vmatprep.subr.bf16.mxu0 0
        %757 = vmatpush1.bf16.msra.mxu0 %v723
        %758 = vmatprep.subr.bf16.mxu0 0
        %759 = vmatpush1.bf16.msra.mxu0 %v724
        %760 = vmatprep.subr.bf16.mxu0 0
        %761 = vmatpush1.bf16.msra.mxu0 %v725
        %762 = vmatprep.subr.bf16.mxu0 0
        %763 = vmatpush1.bf16.msra.mxu0 %v726
        %764 = vmatprep.subr.bf16.mxu0 0
        %765 = vmatpush1.bf16.msra.mxu0 %v727
        %766 = vmatprep.subr.bf16.mxu0 0
        %767 = vmatpush1.bf16.msra.mxu0 %v728
        %768 = vmatprep.subr.bf16.mxu0 0
        %769 = vmatpush1.bf16.msra.mxu0 %v729
        %770 = vmatprep.subr.bf16.mxu0 0
        %771 = vmatpush1.bf16.msra.mxu0 %v730
        %772 = vmatprep.subr.bf16.mxu0 0
        %773 = vmatpush1.bf16.msra.mxu0 %v731
        %774 = vmatprep.subr.bf16.mxu0 0
        %775 = vmatpush1.bf16.msra.mxu0 %v732
        %776 = vmatprep.subr.bf16.mxu0 0
        %777 = vmatpush1.bf16.msra.mxu0 %v733
        %778 = vmatprep.subr.bf16.mxu0 0
        %779 = vmatpush1.bf16.msra.mxu0 %v734
        %780 = vmatprep.subr.bf16.mxu0 0
        %781 = vmatpush1.bf16.msra.mxu0 %v735
        %782 = vmatprep.subr.bf16.mxu0 0
        %783 = vmatpush1.bf16.msra.mxu0 %v736
        %784 = vmatprep.subr.bf16.mxu0 0
        %785 = vmatpush1.bf16.msra.mxu0 %v737
        %786 = vmatprep.mubr.bf16.mxu0 %v468
        %787 = vmatmul.mubr.bf16.gmra.mrb[0].mxu0 %v457
        %v788 = vpop.f32.mrb[0].mxu0
        %v789 = vadd.f32 %v657, %v788
        %v790 = vpop.f32.mrb[0].mxu0
        %v791 = vpop.f32.mrb[0].mxu0
        %v792 = vadd.f32 %v657, %v791
        %v793 = vpop.f32.mrb[0].mxu0
        %794 = vdwg.mxu0
        %vm795 = vcmp.ge.f32.partialorder %v789, 0.0
        %vm796 = vcmp.ge.f32.partialorder %v792, 0.0
        %v797 = vmul.f32 %v789, 0.2
        %v798 = vmul.f32 %v792, 0.2
        %v799 = vsel %vm795, %v789, %v797
        %v800 = vsel %vm796, %v792, %v798
        %v801 = vpack.c.bf16 %v800, %v799
        %v802 = vld [vmem:[#allocation4 + $0x40] sm:$0xf]
        %v803 = vld [vmem:[#allocation4 + $0x44] sm:$0xf]
        %v804 = vld [vmem:[#allocation4 + $0x48] sm:$0xf]
        %v805 = vld [vmem:[#allocation4 + $0x4c] sm:$0xf]
        %v806 = vld [vmem:[#allocation4 + $0x50] sm:$0xf]
        %v807 = vld [vmem:[#allocation4 + $0x54] sm:$0xf]
        %v808 = vld [vmem:[#allocation4 + $0x58] sm:$0xf]
        %v809 = vld [vmem:[#allocation4 + $0x5c] sm:$0xf]
        %v810 = vld [vmem:[#allocation4 + $0x60] sm:$0xf]
        %v811 = vld [vmem:[#allocation4 + $0x64] sm:$0xf]
        %v812 = vld [vmem:[#allocation4 + $0x68] sm:$0xf]
        %v813 = vld [vmem:[#allocation4 + $0x6c] sm:$0xf]
        %v814 = vld [vmem:[#allocation4 + $0x70] sm:$0xf]
        %v815 = vld [vmem:[#allocation4 + $0x74] sm:$0xf]
        %v816 = vld [vmem:[#allocation4 + $0x78] sm:$0xf]
        %v817 = vld [vmem:[#allocation4 + $0x7c] sm:$0xf]
        %v834 = vunpack.c.l.b16 %v802
        %v835 = vunpack.c.l.b16 %v803
        %v836 = vunpack.c.l.b16 %v804
        %v837 = vunpack.c.l.b16 %v805
        %v838 = vunpack.c.l.b16 %v806
        %v839 = vunpack.c.l.b16 %v807
        %v840 = vunpack.c.l.b16 %v808
        %v841 = vunpack.c.l.b16 %v809
        %v842 = vunpack.c.l.b16 %v810
        %v843 = vunpack.c.l.b16 %v811
        %v844 = vunpack.c.l.b16 %v812
        %v845 = vunpack.c.l.b16 %v813
        %v846 = vunpack.c.l.b16 %v814
        %v847 = vunpack.c.l.b16 %v815
        %v848 = vunpack.c.l.b16 %v816
        %v849 = vunpack.c.l.b16 %v817
        %v850 = vpack.c.b16 %v835, %v834
        %v851 = vpack.c.b16 %v837, %v836
        %v852 = vpack.c.b16 %v839, %v838
        %v853 = vpack.c.b16 %v841, %v840
        %v854 = vpack.c.b16 %v843, %v842
        %v855 = vpack.c.b16 %v845, %v844
        %v856 = vpack.c.b16 %v847, %v846
        %v857 = vpack.c.b16 %v849, %v848
        %866 = vmatprep.subr.bf16.mxu0 0
        %867 = vmatpush1.bf16.msra.mxu0 %v850
        %868 = vmatprep.subr.bf16.mxu0 0
        %869 = vmatpush1.bf16.msra.mxu0 %v851
        %870 = vmatprep.subr.bf16.mxu0 0
        %871 = vmatpush1.bf16.msra.mxu0 %v852
        %872 = vmatprep.subr.bf16.mxu0 0
        %873 = vmatpush1.bf16.msra.mxu0 %v853
        %874 = vmatprep.subr.bf16.mxu0 0
        %875 = vmatpush1.bf16.msra.mxu0 %v854
        %876 = vmatprep.subr.bf16.mxu0 0
        %877 = vmatpush1.bf16.msra.mxu0 %v855
        %878 = vmatprep.subr.bf16.mxu0 0
        %879 = vmatpush1.bf16.msra.mxu0 %v856
        %880 = vmatprep.subr.bf16.mxu0 0
        %881 = vmatpush1.bf16.msra.mxu0 %v857
        %882 = vmatprep.subr.bf16.mxu0 0
        %883 = vmatpush1.bf16.msra.mxu0 0
        %884 = vmatprep.subr.bf16.mxu0 0
        %885 = vmatpush1.bf16.msra.mxu0 0
        %886 = vmatprep.subr.bf16.mxu0 0
        %887 = vmatpush1.bf16.msra.mxu0 0
        %888 = vmatprep.subr.bf16.mxu0 0
        %889 = vmatpush1.bf16.msra.mxu0 0
        %890 = vmatprep.subr.bf16.mxu0 0
        %891 = vmatpush1.bf16.msra.mxu0 0
        %892 = vmatprep.subr.bf16.mxu0 0
        %893 = vmatpush1.bf16.msra.mxu0 0
        %894 = vmatprep.subr.bf16.mxu0 0
        %895 = vmatpush1.bf16.msra.mxu0 0
        %896 = vmatprep.subr.bf16.mxu0 0
        %897 = vmatpush1.bf16.msra.mxu0 0
        %898 = vmatprep.mubr.bf16.mxu0 0
        %899 = vmatmul.mubr.bf16.gmra.mrb[0].mxu0 %v801
        %v900 = vpop.f32.mrb[0].mxu0
        %v901 = vadd.f32 0.0, %v900
        %v902 = vpop.f32.mrb[0].mxu0
        %v903 = vpop.f32.mrb[0].mxu0
        %v904 = vadd.f32 0.0, %v903
        %v905 = vpop.f32.mrb[0].mxu0
        %906 = vdwg.mxu0
        %v923 = vunpack.c.l.b16 %v606
        %v924 = vunpack.c.l.b16 %v607
        %v925 = vunpack.c.l.b16 %v608
        %v926 = vunpack.c.l.b16 %v609
        %v927 = vunpack.c.l.b16 %v610
        %v928 = vunpack.c.l.b16 %v611
        %v929 = vunpack.c.l.b16 %v612
        %v930 = vunpack.c.l.b16 %v613
        %v931 = vunpack.c.l.b16 %v614
        %v932 = vunpack.c.l.b16 %v615
        %v933 = vunpack.c.l.b16 %v616
        %v934 = vunpack.c.l.b16 %v617
        %v935 = vunpack.c.l.b16 %v618
        %v936 = vunpack.c.l.b16 %v619
        %v937 = vunpack.c.l.b16 %v620
        %v938 = vunpack.c.l.b16 %v621
        %v939 = vpack.c.b16 %v924, %v923
        %v940 = vpack.c.b16 %v926, %v925
        %v941 = vpack.c.b16 %v928, %v927
        %v942 = vpack.c.b16 %v930, %v929
        %v943 = vpack.c.b16 %v932, %v931
        %v944 = vpack.c.b16 %v934, %v933
        %v945 = vpack.c.b16 %v936, %v935
        %v946 = vpack.c.b16 %v938, %v937
        %955 = vmatprep.subr.bf16.mxu0 0
        %956 = vmatpush1.bf16.msra.mxu0 %v939
        %957 = vmatprep.subr.bf16.mxu0 0
        %958 = vmatpush1.bf16.msra.mxu0 %v940
        %959 = vmatprep.subr.bf16.mxu0 0
        %960 = vmatpush1.bf16.msra.mxu0 %v941
        %961 = vmatprep.subr.bf16.mxu0 0
        %962 = vmatpush1.bf16.msra.mxu0 %v942
        %963 = vmatprep.subr.bf16.mxu0 0
        %964 = vmatpush1.bf16.msra.mxu0 %v943
        %965 = vmatprep.subr.bf16.mxu0 0
        %966 = vmatpush1.bf16.msra.mxu0 %v944
        %967 = vmatprep.subr.bf16.mxu0 0
        %968 = vmatpush1.bf16.msra.mxu0 %v945
        %969 = vmatprep.subr.bf16.mxu0 0
        %970 = vmatpush1.bf16.msra.mxu0 %v946
        %971 = vmatprep.subr.bf16.mxu0 0
        %972 = vmatpush1.bf16.msra.mxu0 0
        %973 = vmatprep.subr.bf16.mxu0 0
        %974 = vmatpush1.bf16.msra.mxu0 0
        %975 = vmatprep.subr.bf16.mxu0 0
        %976 = vmatpush1.bf16.msra.mxu0 0
        %977 = vmatprep.subr.bf16.mxu0 0
        %978 = vmatpush1.bf16.msra.mxu0 0
        %979 = vmatprep.subr.bf16.mxu0 0
        %980 = vmatpush1.bf16.msra.mxu0 0
        %981 = vmatprep.subr.bf16.mxu0 0
        %982 = vmatpush1.bf16.msra.mxu0 0
        %983 = vmatprep.subr.bf16.mxu0 0
        %984 = vmatpush1.bf16.msra.mxu0 0
        %985 = vmatprep.subr.bf16.mxu0 0
        %986 = vmatpush1.bf16.msra.mxu0 0
        %987 = vmatprep.mubr.bf16.mxu0 0
        %988 = vmatmul.mubr.bf16.gmra.mrb[0].mxu0 %v605
        %v989 = vpop.f32.mrb[0].mxu0
        %v990 = vadd.f32 %v901, %v989
        %v991 = vpop.f32.mrb[0].mxu0
        %v992 = vpop.f32.mrb[0].mxu0
        %v993 = vadd.f32 %v904, %v992
        %v994 = vpop.f32.mrb[0].mxu0
        %995 = vdwg.mxu0
        %v996 = vld [vmem:[#allocation2 + $0xc0] sm:$0xf]
        %v997 = vld [vmem:[#allocation2 + $0xc4] sm:$0xf]
        %v998 = vld [vmem:[#allocation2 + $0xc8] sm:$0xf]
        %v999 = vld [vmem:[#allocation2 + $0xcc] sm:$0xf]
        %v1000 = vld [vmem:[#allocation2 + $0xd0] sm:$0xf]
        %v1001 = vld [vmem:[#allocation2 + $0xd4] sm:$0xf]
        %v1002 = vld [vmem:[#allocation2 + $0xd8] sm:$0xf]
        %v1003 = vld [vmem:[#allocation2 + $0xdc] sm:$0xf]
        %v1004 = vld [vmem:[#allocation2 + $0xe0] sm:$0xf]
        %v1005 = vld [vmem:[#allocation2 + $0xe4] sm:$0xf]
        %v1006 = vld [vmem:[#allocation2 + $0xe8] sm:$0xf]
        %v1007 = vld [vmem:[#allocation2 + $0xec] sm:$0xf]
        %v1008 = vld [vmem:[#allocation2 + $0xf0] sm:$0xf]
        %v1009 = vld [vmem:[#allocation2 + $0xf4] sm:$0xf]
        %v1010 = vld [vmem:[#allocation2 + $0xf8] sm:$0xf]
        %v1011 = vld [vmem:[#allocation2 + $0xfc] sm:$0xf]
        %v1012 = vld [vmem:[#allocation2 + $0x100] sm:$0xf]
        %v1013 = vld [vmem:[#allocation2 + $0x104] sm:$0xf]
        %v1014 = vld [vmem:[#allocation2 + $0x108] sm:$0xf]
        %v1015 = vld [vmem:[#allocation2 + $0x10c] sm:$0xf]
        %v1016 = vld [vmem:[#allocation2 + $0x110] sm:$0xf]
        %v1017 = vld [vmem:[#allocation2 + $0x114] sm:$0xf]
        %v1018 = vld [vmem:[#allocation2 + $0x118] sm:$0xf]
        %v1019 = vld [vmem:[#allocation2 + $0x11c] sm:$0xf]
        %v1020 = vld [vmem:[#allocation2 + $0x120] sm:$0xf]
        %v1021 = vld [vmem:[#allocation2 + $0x124] sm:$0xf]
        %v1022 = vld [vmem:[#allocation2 + $0x128] sm:$0xf]
        %v1023 = vld [vmem:[#allocation2 + $0x12c] sm:$0xf]
        %v1024 = vld [vmem:[#allocation2 + $0x130] sm:$0xf]
        %v1025 = vld [vmem:[#allocation2 + $0x134] sm:$0xf]
        %v1026 = vld [vmem:[#allocation2 + $0x138] sm:$0xf]
        %v1027 = vld [vmem:[#allocation2 + $0x13c] sm:$0xf]
        %v1028 = vld [vmem:[#allocation2 + $0x140] sm:$0xf]
        %v1029 = vld [vmem:[#allocation2 + $0x144] sm:$0xf]
        %v1030 = vld [vmem:[#allocation2 + $0x148] sm:$0xf]
        %v1031 = vld [vmem:[#allocation2 + $0x14c] sm:$0xf]
        %v1032 = vld [vmem:[#allocation2 + $0x150] sm:$0xf]
        %v1033 = vld [vmem:[#allocation2 + $0x154] sm:$0xf]
        %v1034 = vld [vmem:[#allocation2 + $0x158] sm:$0xf]
        %v1035 = vld [vmem:[#allocation2 + $0x15c] sm:$0xf]
        %v1036 = vld [vmem:[#allocation2 + $0x160] sm:$0xf]
        %v1037 = vld [vmem:[#allocation2 + $0x164] sm:$0xf]
        %v1038 = vld [vmem:[#allocation2 + $0x168] sm:$0xf]
        %v1039 = vld [vmem:[#allocation2 + $0x16c] sm:$0xf]
        %v1040 = vld [vmem:[#allocation2 + $0x170] sm:$0xf]
        %v1041 = vld [vmem:[#allocation2 + $0x174] sm:$0xf]
        %v1042 = vld [vmem:[#allocation2 + $0x178] sm:$0xf]
        %v1043 = vld [vmem:[#allocation2 + $0x17c] sm:$0xf]
        %v1044 = vlaneseq
        %v1045 = vshrl.u32 %v1044, 7
        %v1046 = vsub.s32 2, %v1045
        %v1047 = vrot.slane %v489, %v1046
        %v1096 = vunpack.c.l.b16 %v996
        %v1097 = vunpack.c.l.b16 %v997
        %v1098 = vunpack.c.l.b16 %v998
        %v1099 = vunpack.c.l.b16 %v999
        %v1100 = vunpack.c.l.b16 %v1000
        %v1101 = vunpack.c.l.b16 %v1001
        %v1102 = vunpack.c.l.b16 %v1002
        %v1103 = vunpack.c.l.b16 %v1003
        %v1104 = vunpack.c.l.b16 %v1004
        %v1105 = vunpack.c.l.b16 %v1005
        %v1106 = vunpack.c.l.b16 %v1006
        %v1107 = vunpack.c.l.b16 %v1007
        %v1108 = vunpack.c.l.b16 %v1008
        %v1109 = vunpack.c.l.b16 %v1009
        %v1110 = vunpack.c.l.b16 %v1010
        %v1111 = vunpack.c.l.b16 %v1011
        %v1112 = vunpack.c.l.b16 %v1012
        %v1113 = vunpack.c.l.b16 %v1013
        %v1114 = vunpack.c.l.b16 %v1014
        %v1115 = vunpack.c.l.b16 %v1015
        %v1116 = vunpack.c.l.b16 %v1016
        %v1117 = vunpack.c.l.b16 %v1017
        %v1118 = vunpack.c.l.b16 %v1018
        %v1119 = vunpack.c.l.b16 %v1019
        %v1120 = vunpack.c.l.b16 %v1020
        %v1121 = vunpack.c.l.b16 %v1021
        %v1122 = vunpack.c.l.b16 %v1022
        %v1123 = vunpack.c.l.b16 %v1023
        %v1124 = vunpack.c.l.b16 %v1024
        %v1125 = vunpack.c.l.b16 %v1025
        %v1126 = vunpack.c.l.b16 %v1026
        %v1127 = vunpack.c.l.b16 %v1027
        %v1128 = vunpack.c.l.b16 %v1028
        %v1129 = vunpack.c.l.b16 %v1029
        %v1130 = vunpack.c.l.b16 %v1030
        %v1131 = vunpack.c.l.b16 %v1031
        %v1132 = vunpack.c.l.b16 %v1032
        %v1133 = vunpack.c.l.b16 %v1033
        %v1134 = vunpack.c.l.b16 %v1034
        %v1135 = vunpack.c.l.b16 %v1035
        %v1136 = vunpack.c.l.b16 %v1036
        %v1137 = vunpack.c.l.b16 %v1037
        %v1138 = vunpack.c.l.b16 %v1038
        %v1139 = vunpack.c.l.b16 %v1039
        %v1140 = vunpack.c.l.b16 %v1040
        %v1141 = vunpack.c.l.b16 %v1041
        %v1142 = vunpack.c.l.b16 %v1042
        %v1143 = vunpack.c.l.b16 %v1043
        %v1144 = vpack.c.b16 %v1097, %v1096
        %v1145 = vpack.c.b16 %v1099, %v1098
        %v1146 = vpack.c.b16 %v1101, %v1100
        %v1147 = vpack.c.b16 %v1103, %v1102
        %v1148 = vpack.c.b16 %v1105, %v1104
        %v1149 = vpack.c.b16 %v1107, %v1106
        %v1150 = vpack.c.b16 %v1109, %v1108
        %v1151 = vpack.c.b16 %v1111, %v1110
        %v1152 = vpack.c.b16 %v1113, %v1112
        %v1153 = vpack.c.b16 %v1115, %v1114
        %v1154 = vpack.c.b16 %v1117, %v1116
        %v1155 = vpack.c.b16 %v1119, %v1118
        %v1156 = vpack.c.b16 %v1121, %v1120
        %v1157 = vpack.c.b16 %v1123, %v1122
        %v1158 = vpack.c.b16 %v1125, %v1124
        %v1159 = vpack.c.b16 %v1127, %v1126
        %v1160 = vpack.c.b16 %v1129, %v1128
        %v1161 = vpack.c.b16 %v1131, %v1130
        %v1162 = vpack.c.b16 %v1133, %v1132
        %v1163 = vpack.c.b16 %v1135, %v1134
        %v1164 = vpack.c.b16 %v1137, %v1136
        %v1165 = vpack.c.b16 %v1139, %v1138
        %v1166 = vpack.c.b16 %v1141, %v1140
        %v1167 = vpack.c.b16 %v1143, %v1142
        %1192 = vmatprep.subr.bf16.mxu0 0
        %1193 = vmatpush1.bf16.msra.mxu0 %v1144
        %1194 = vmatprep.subr.bf16.mxu0 0
        %1195 = vmatpush1.bf16.msra.mxu0 %v1145
        %1196 = vmatprep.subr.bf16.mxu0 0
        %1197 = vmatpush1.bf16.msra.mxu0 %v1146
        %1198 = vmatprep.subr.bf16.mxu0 0
        %1199 = vmatpush1.bf16.msra.mxu0 %v1147
        %1200 = vmatprep.subr.bf16.mxu0 0
        %1201 = vmatpush1.bf16.msra.mxu0 %v1148
        %1202 = vmatprep.subr.bf16.mxu0 0
        %1203 = vmatpush1.bf16.msra.mxu0 %v1149
        %1204 = vmatprep.subr.bf16.mxu0 0
        %1205 = vmatpush1.bf16.msra.mxu0 %v1150
        %1206 = vmatprep.subr.bf16.mxu0 0
        %1207 = vmatpush1.bf16.msra.mxu0 %v1151
        %1208 = vmatprep.subr.bf16.mxu0 0
        %1209 = vmatpush1.bf16.msra.mxu0 %v1152
        %1210 = vmatprep.subr.bf16.mxu0 0
        %1211 = vmatpush1.bf16.msra.mxu0 %v1153
        %1212 = vmatprep.subr.bf16.mxu0 0
        %1213 = vmatpush1.bf16.msra.mxu0 %v1154
        %1214 = vmatprep.subr.bf16.mxu0 0
        %1215 = vmatpush1.bf16.msra.mxu0 %v1155
        %1216 = vmatprep.subr.bf16.mxu0 0
        %1217 = vmatpush1.bf16.msra.mxu0 %v1156
        %1218 = vmatprep.subr.bf16.mxu0 0
        %1219 = vmatpush1.bf16.msra.mxu0 %v1157
        %1220 = vmatprep.subr.bf16.mxu0 0
        %1221 = vmatpush1.bf16.msra.mxu0 %v1158
        %1222 = vmatprep.subr.bf16.mxu0 0
        %1223 = vmatpush1.bf16.msra.mxu0 %v1159
        %1224 = vmatprep.mubr.bf16.mxu0 %v468
        %1225 = vmatmul.mubr.bf16.gmra.mrb[0].mxu0 %v457
        %v1226 = vpop.f32.mrb[0].mxu0
        %v1227 = vadd.f32 %v1047, %v1226
        %v1228 = vpop.f32.mrb[0].mxu0
        %v1229 = vpop.f32.mrb[0].mxu0
        %v1230 = vadd.f32 %v1047, %v1229
        %v1231 = vpop.f32.mrb[0].mxu0
        %1232 = vdwg.mxu0
        %1233 = vmatprep.subr.bf16.mxu0 0
        %1234 = vmatpush1.bf16.msra.mxu0 %v1160
        %1235 = vmatprep.subr.bf16.mxu0 0
        %1236 = vmatpush1.bf16.msra.mxu0 %v1161
        %1237 = vmatprep.subr.bf16.mxu0 0
        %1238 = vmatpush1.bf16.msra.mxu0 %v1162
        %1239 = vmatprep.subr.bf16.mxu0 0
        %1240 = vmatpush1.bf16.msra.mxu0 %v1163
        %1241 = vmatprep.subr.bf16.mxu0 0
        %1242 = vmatpush1.bf16.msra.mxu0 %v1164
        %1243 = vmatprep.subr.bf16.mxu0 0
        %1244 = vmatpush1.bf16.msra.mxu0 %v1165
        %1245 = vmatprep.subr.bf16.mxu0 0
        %1246 = vmatpush1.bf16.msra.mxu0 %v1166
        %1247 = vmatprep.subr.bf16.mxu0 0
        %1248 = vmatpush1.bf16.msra.mxu0 %v1167
        %1249 = vmatprep.subr.bf16.mxu0 0
        %1250 = vmatpush1.bf16.msra.mxu0 0
        %1251 = vmatprep.subr.bf16.mxu0 0
        %1252 = vmatpush1.bf16.msra.mxu0 0
        %1253 = vmatprep.subr.bf16.mxu0 0
        %1254 = vmatpush1.bf16.msra.mxu0 0
        %1255 = vmatprep.subr.bf16.mxu0 0
        %1256 = vmatpush1.bf16.msra.mxu0 0
        %1257 = vmatprep.subr.bf16.mxu0 0
        %1258 = vmatpush1.bf16.msra.mxu0 0
        %1259 = vmatprep.subr.bf16.mxu0 0
        %1260 = vmatpush1.bf16.msra.mxu0 0
        %1261 = vmatprep.subr.bf16.mxu0 0
        %1262 = vmatpush1.bf16.msra.mxu0 0
        %1263 = vmatprep.subr.bf16.mxu0 0
        %1264 = vmatpush1.bf16.msra.mxu0 0
        %1265 = vmatprep.mubr.bf16.mxu0 0
        %1266 = vmatmul.mubr.bf16.gmra.mrb[0].mxu0 %v473
        %v1267 = vpop.f32.mrb[0].mxu0
        %v1268 = vadd.f32 %v1227, %v1267
        %v1269 = vpop.f32.mrb[0].mxu0
        %v1270 = vpop.f32.mrb[0].mxu0
        %v1271 = vadd.f32 %v1230, %v1270
        %v1272 = vpop.f32.mrb[0].mxu0
        %1273 = vdwg.mxu0
        %vm1274 = vcmp.ge.f32.partialorder %v1268, 0.0
        %vm1275 = vcmp.ge.f32.partialorder %v1271, 0.0
        %v1276 = vmul.f32 %v1268, 0.2
        %v1277 = vmul.f32 %v1271, 0.2
        %v1278 = vsel %vm1274, %v1268, %v1276
        %v1279 = vsel %vm1275, %v1271, %v1277
        %v1280 = vpack.c.bf16 %v1279, %v1278
        %v1281 = vld [vmem:[#allocation4 + $0x80] sm:$0xf]
        %v1282 = vld [vmem:[#allocation4 + $0x84] sm:$0xf]
        %v1283 = vld [vmem:[#allocation4 + $0x88] sm:$0xf]
        %v1284 = vld [vmem:[#allocation4 + $0x8c] sm:$0xf]
        %v1285 = vld [vmem:[#allocation4 + $0x90] sm:$0xf]
        %v1286 = vld [vmem:[#allocation4 + $0x94] sm:$0xf]
        %v1287 = vld [vmem:[#allocation4 + $0x98] sm:$0xf]
        %v1288 = vld [vmem:[#allocation4 + $0x9c] sm:$0xf]
        %v1289 = vld [vmem:[#allocation4 + $0xa0] sm:$0xf]
        %v1290 = vld [vmem:[#allocation4 + $0xa4] sm:$0xf]
        %v1291 = vld [vmem:[#allocation4 + $0xa8] sm:$0xf]
        %v1292 = vld [vmem:[#allocation4 + $0xac] sm:$0xf]
        %v1293 = vld [vmem:[#allocation4 + $0xb0] sm:$0xf]
        %v1294 = vld [vmem:[#allocation4 + $0xb4] sm:$0xf]
        %v1295 = vld [vmem:[#allocation4 + $0xb8] sm:$0xf]
        %v1296 = vld [vmem:[#allocation4 + $0xbc] sm:$0xf]
        %v1313 = vunpack.c.l.b16 %v1281
        %v1314 = vunpack.c.l.b16 %v1282
        %v1315 = vunpack.c.l.b16 %v1283
        %v1316 = vunpack.c.l.b16 %v1284
        %v1317 = vunpack.c.l.b16 %v1285
        %v1318 = vunpack.c.l.b16 %v1286
        %v1319 = vunpack.c.l.b16 %v1287
        %v1320 = vunpack.c.l.b16 %v1288
        %v1321 = vunpack.c.l.b16 %v1289
        %v1322 = vunpack.c.l.b16 %v1290
        %v1323 = vunpack.c.l.b16 %v1291
        %v1324 = vunpack.c.l.b16 %v1292
        %v1325 = vunpack.c.l.b16 %v1293
        %v1326 = vunpack.c.l.b16 %v1294
        %v1327 = vunpack.c.l.b16 %v1295
        %v1328 = vunpack.c.l.b16 %v1296
        %v1329 = vpack.c.b16 %v1314, %v1313
        %v1330 = vpack.c.b16 %v1316, %v1315
        %v1331 = vpack.c.b16 %v1318, %v1317
        %v1332 = vpack.c.b16 %v1320, %v1319
        %v1333 = vpack.c.b16 %v1322, %v1321
        %v1334 = vpack.c.b16 %v1324, %v1323
        %v1335 = vpack.c.b16 %v1326, %v1325
        %v1336 = vpack.c.b16 %v1328, %v1327
        %1345 = vmatprep.subr.bf16.mxu0 0
        %1346 = vmatpush1.bf16.msra.mxu0 %v1329
        %1347 = vmatprep.subr.bf16.mxu0 0
        %1348 = vmatpush1.bf16.msra.mxu0 %v1330
        %1349 = vmatprep.subr.bf16.mxu0 0
        %1350 = vmatpush1.bf16.msra.mxu0 %v1331
        %1351 = vmatprep.subr.bf16.mxu0 0
        %1352 = vmatpush1.bf16.msra.mxu0 %v1332
        %1353 = vmatprep.subr.bf16.mxu0 0
        %1354 = vmatpush1.bf16.msra.mxu0 %v1333
        %1355 = vmatprep.subr.bf16.mxu0 0
        %1356 = vmatpush1.bf16.msra.mxu0 %v1334
        %1357 = vmatprep.subr.bf16.mxu0 0
        %1358 = vmatpush1.bf16.msra.mxu0 %v1335
        %1359 = vmatprep.subr.bf16.mxu0 0
        %1360 = vmatpush1.bf16.msra.mxu0 %v1336
        %1361 = vmatprep.subr.bf16.mxu0 0
        %1362 = vmatpush1.bf16.msra.mxu0 0
        %1363 = vmatprep.subr.bf16.mxu0 0
        %1364 = vmatpush1.bf16.msra.mxu0 0
        %1365 = vmatprep.subr.bf16.mxu0 0
        %1366 = vmatpush1.bf16.msra.mxu0 0
        %1367 = vmatprep.subr.bf16.mxu0 0
        %1368 = vmatpush1.bf16.msra.mxu0 0
        %1369 = vmatprep.subr.bf16.mxu0 0
        %1370 = vmatpush1.bf16.msra.mxu0 0
        %1371 = vmatprep.subr.bf16.mxu0 0
        %1372 = vmatpush1.bf16.msra.mxu0 0
        %1373 = vmatprep.subr.bf16.mxu0 0
        %1374 = vmatpush1.bf16.msra.mxu0 0
        %1375 = vmatprep.subr.bf16.mxu0 0
        %1376 = vmatpush1.bf16.msra.mxu0 0
        %1377 = vmatprep.mubr.bf16.mxu0 0
        %1378 = vmatmul.mubr.bf16.gmra.mrb[0].mxu0 %v1280
        %v1379 = vpop.f32.mrb[0].mxu0
        %v1380 = vadd.f32 0.0, %v1379
        %v1381 = vpop.f32.mrb[0].mxu0
        %v1382 = vpop.f32.mrb[0].mxu0
        %v1383 = vadd.f32 0.0, %v1382
        %v1384 = vpop.f32.mrb[0].mxu0
        %1385 = vdwg.mxu0
        %v1386 = vadd.f32 %v990, %v1380
        %v1387 = vadd.f32 %v993, %v1383
        %v1388 = vld [vmem:[#allocation2 + $0x180] sm:$0xf]
        %v1389 = vld [vmem:[#allocation2 + $0x184] sm:$0xf]
        %v1390 = vld [vmem:[#allocation2 + $0x188] sm:$0xf]
        %v1391 = vld [vmem:[#allocation2 + $0x18c] sm:$0xf]
        %v1392 = vld [vmem:[#allocation2 + $0x190] sm:$0xf]
        %v1393 = vld [vmem:[#allocation2 + $0x194] sm:$0xf]
        %v1394 = vld [vmem:[#allocation2 + $0x198] sm:$0xf]
        %v1395 = vld [vmem:[#allocation2 + $0x19c] sm:$0xf]
        %v1396 = vld [vmem:[#allocation2 + $0x1a0] sm:$0xf]
        %v1397 = vld [vmem:[#allocation2 + $0x1a4] sm:$0xf]
        %v1398 = vld [vmem:[#allocation2 + $0x1a8] sm:$0xf]
        %v1399 = vld [vmem:[#allocation2 + $0x1ac] sm:$0xf]
        %v1400 = vld [vmem:[#allocation2 + $0x1b0] sm:$0xf]
        %v1401 = vld [vmem:[#allocation2 + $0x1b4] sm:$0xf]
        %v1402 = vld [vmem:[#allocation2 + $0x1b8] sm:$0xf]
        %v1403 = vld [vmem:[#allocation2 + $0x1bc] sm:$0xf]
        %v1404 = vld [vmem:[#allocation2 + $0x1c0] sm:$0xf]
        %v1405 = vld [vmem:[#allocation2 + $0x1c4] sm:$0xf]
        %v1406 = vld [vmem:[#allocation2 + $0x1c8] sm:$0xf]
        %v1407 = vld [vmem:[#allocation2 + $0x1cc] sm:$0xf]
        %v1408 = vld [vmem:[#allocation2 + $0x1d0] sm:$0xf]
        %v1409 = vld [vmem:[#allocation2 + $0x1d4] sm:$0xf]
        %v1410 = vld [vmem:[#allocation2 + $0x1d8] sm:$0xf]
        %v1411 = vld [vmem:[#allocation2 + $0x1dc] sm:$0xf]
        %v1412 = vld [vmem:[#allocation2 + $0x1e0] sm:$0xf]
        %v1413 = vld [vmem:[#allocation2 + $0x1e4] sm:$0xf]
        %v1414 = vld [vmem:[#allocation2 + $0x1e8] sm:$0xf]
        %v1415 = vld [vmem:[#allocation2 + $0x1ec] sm:$0xf]
        %v1416 = vld [vmem:[#allocation2 + $0x1f0] sm:$0xf]
        %v1417 = vld [vmem:[#allocation2 + $0x1f4] sm:$0xf]
        %v1418 = vld [vmem:[#allocation2 + $0x1f8] sm:$0xf]
        %v1419 = vld [vmem:[#allocation2 + $0x1fc] sm:$0xf]
        %v1420 = vld [vmem:[#allocation2 + $0x200] sm:$0xf]
        %v1421 = vld [vmem:[#allocation2 + $0x204] sm:$0xf]
        %v1422 = vld [vmem:[#allocation2 + $0x208] sm:$0xf]
        %v1423 = vld [vmem:[#allocation2 + $0x20c] sm:$0xf]
        %v1424 = vld [vmem:[#allocation2 + $0x210] sm:$0xf]
        %v1425 = vld [vmem:[#allocation2 + $0x214] sm:$0xf]
        %v1426 = vld [vmem:[#allocation2 + $0x218] sm:$0xf]
        %v1427 = vld [vmem:[#allocation2 + $0x21c] sm:$0xf]
        %v1428 = vld [vmem:[#allocation2 + $0x220] sm:$0xf]
        %v1429 = vld [vmem:[#allocation2 + $0x224] sm:$0xf]
        %v1430 = vld [vmem:[#allocation2 + $0x228] sm:$0xf]
        %v1431 = vld [vmem:[#allocation2 + $0x22c] sm:$0xf]
        %v1432 = vld [vmem:[#allocation2 + $0x230] sm:$0xf]
        %v1433 = vld [vmem:[#allocation2 + $0x234] sm:$0xf]
        %v1434 = vld [vmem:[#allocation2 + $0x238] sm:$0xf]
        %v1435 = vld [vmem:[#allocation2 + $0x23c] sm:$0xf]
        %v1436 = vld [vmem:[#allocation2 + $0x240] sm:$0xf]
        %v1437 = vld [vmem:[#allocation2 + $0x244] sm:$0xf]
        %v1438 = vld [vmem:[#allocation2 + $0x248] sm:$0xf]
        %v1439 = vld [vmem:[#allocation2 + $0x24c] sm:$0xf]
        %v1440 = vld [vmem:[#allocation2 + $0x250] sm:$0xf]
        %v1441 = vld [vmem:[#allocation2 + $0x254] sm:$0xf]
        %v1442 = vld [vmem:[#allocation2 + $0x258] sm:$0xf]
        %v1443 = vld [vmem:[#allocation2 + $0x25c] sm:$0xf]
        %v1444 = vld [vmem:[#allocation2 + $0x260] sm:$0xf]
        %v1445 = vld [vmem:[#allocation2 + $0x264] sm:$0xf]
        %v1446 = vld [vmem:[#allocation2 + $0x268] sm:$0xf]
        %v1447 = vld [vmem:[#allocation2 + $0x26c] sm:$0xf]
        %v1448 = vld [vmem:[#allocation2 + $0x270] sm:$0xf]
        %v1449 = vld [vmem:[#allocation2 + $0x274] sm:$0xf]
        %v1450 = vld [vmem:[#allocation2 + $0x278] sm:$0xf]
        %v1451 = vld [vmem:[#allocation2 + $0x27c] sm:$0xf]
        %v1452 = vlaneseq
        %v1453 = vshrl.u32 %v1452, 7
        %v1454 = vsub.s32 3, %v1453
        %v1455 = vrot.slane %v489, %v1454
        %v1520 = vunpack.c.l.b16 %v1388
        %v1521 = vunpack.c.l.b16 %v1389
        %v1522 = vunpack.c.l.b16 %v1390
        %v1523 = vunpack.c.l.b16 %v1391
        %v1524 = vunpack.c.l.b16 %v1392
        %v1525 = vunpack.c.l.b16 %v1393
        %v1526 = vunpack.c.l.b16 %v1394
        %v1527 = vunpack.c.l.b16 %v1395
        %v1528 = vunpack.c.l.b16 %v1396
        %v1529 = vunpack.c.l.b16 %v1397
        %v1530 = vunpack.c.l.b16 %v1398
        %v1531 = vunpack.c.l.b16 %v1399
        %v1532 = vunpack.c.l.b16 %v1400
        %v1533 = vunpack.c.l.b16 %v1401
        %v1534 = vunpack.c.l.b16 %v1402
        %v1535 = vunpack.c.l.b16 %v1403
        %v1536 = vunpack.c.l.b16 %v1404
        %v1537 = vunpack.c.l.b16 %v1405
        %v1538 = vunpack.c.l.b16 %v1406
        %v1539 = vunpack.c.l.b16 %v1407
        %v1540 = vunpack.c.l.b16 %v1408
        %v1541 = vunpack.c.l.b16 %v1409
        %v1542 = vunpack.c.l.b16 %v1410
        %v1543 = vunpack.c.l.b16 %v1411
        %v1544 = vunpack.c.l.b16 %v1412
        %v1545 = vunpack.c.l.b16 %v1413
        %v1546 = vunpack.c.l.b16 %v1414
        %v1547 = vunpack.c.l.b16 %v1415
        %v1548 = vunpack.c.l.b16 %v1416
        %v1549 = vunpack.c.l.b16 %v1417
        %v1550 = vunpack.c.l.b16 %v1418
        %v1551 = vunpack.c.l.b16 %v1419
        %v1552 = vunpack.c.l.b16 %v1420
        %v1553 = vunpack.c.l.b16 %v1421
        %v1554 = vunpack.c.l.b16 %v1422
        %v1555 = vunpack.c.l.b16 %v1423
        %v1556 = vunpack.c.l.b16 %v1424
        %v1557 = vunpack.c.l.b16 %v1425
        %v1558 = vunpack.c.l.b16 %v1426
        %v1559 = vunpack.c.l.b16 %v1427
        %v1560 = vunpack.c.l.b16 %v1428
        %v1561 = vunpack.c.l.b16 %v1429
        %v1562 = vunpack.c.l.b16 %v1430
        %v1563 = vunpack.c.l.b16 %v1431
        %v1564 = vunpack.c.l.b16 %v1432
        %v1565 = vunpack.c.l.b16 %v1433
        %v1566 = vunpack.c.l.b16 %v1434
        %v1567 = vunpack.c.l.b16 %v1435
        %v1568 = vunpack.c.l.b16 %v1436
        %v1569 = vunpack.c.l.b16 %v1437
        %v1570 = vunpack.c.l.b16 %v1438
        %v1571 = vunpack.c.l.b16 %v1439
        %v1572 = vunpack.c.l.b16 %v1440
        %v1573 = vunpack.c.l.b16 %v1441
        %v1574 = vunpack.c.l.b16 %v1442
        %v1575 = vunpack.c.l.b16 %v1443
        %v1576 = vunpack.c.l.b16 %v1444
        %v1577 = vunpack.c.l.b16 %v1445
        %v1578 = vunpack.c.l.b16 %v1446
        %v1579 = vunpack.c.l.b16 %v1447
        %v1580 = vunpack.c.l.b16 %v1448
        %v1581 = vunpack.c.l.b16 %v1449
        %v1582 = vunpack.c.l.b16 %v1450
        %v1583 = vunpack.c.l.b16 %v1451
        %v1584 = vpack.c.b16 %v1521, %v1520
        %v1585 = vpack.c.b16 %v1523, %v1522
        %v1586 = vpack.c.b16 %v1525, %v1524
        %v1587 = vpack.c.b16 %v1527, %v1526
        %v1588 = vpack.c.b16 %v1529, %v1528
        %v1589 = vpack.c.b16 %v1531, %v1530
        %v1590 = vpack.c.b16 %v1533, %v1532
        %v1591 = vpack.c.b16 %v1535, %v1534
        %v1592 = vpack.c.b16 %v1537, %v1536
        %v1593 = vpack.c.b16 %v1539, %v1538
        %v1594 = vpack.c.b16 %v1541, %v1540
        %v1595 = vpack.c.b16 %v1543, %v1542
        %v1596 = vpack.c.b16 %v1545, %v1544
        %v1597 = vpack.c.b16 %v1547, %v1546
        %v1598 = vpack.c.b16 %v1549, %v1548
        %v1599 = vpack.c.b16 %v1551, %v1550
        %v1600 = vpack.c.b16 %v1553, %v1552
        %v1601 = vpack.c.b16 %v1555, %v1554
        %v1602 = vpack.c.b16 %v1557, %v1556
        %v1603 = vpack.c.b16 %v1559, %v1558
        %v1604 = vpack.c.b16 %v1561, %v1560
        %v1605 = vpack.c.b16 %v1563, %v1562
        %v1606 = vpack.c.b16 %v1565, %v1564
        %v1607 = vpack.c.b16 %v1567, %v1566
        %v1608 = vpack.c.b16 %v1569, %v1568
        %v1609 = vpack.c.b16 %v1571, %v1570
        %v1610 = vpack.c.b16 %v1573, %v1572
        %v1611 = vpack.c.b16 %v1575, %v1574
        %v1612 = vpack.c.b16 %v1577, %v1576
        %v1613 = vpack.c.b16 %v1579, %v1578
        %v1614 = vpack.c.b16 %v1581, %v1580
        %v1615 = vpack.c.b16 %v1583, %v1582
        %1648 = vmatprep.subr.bf16.mxu0 0
        %1649 = vmatpush1.bf16.msra.mxu0 %v1584
        %1650 = vmatprep.subr.bf16.mxu0 0
        %1651 = vmatpush1.bf16.msra.mxu0 %v1585
        %1652 = vmatprep.subr.bf16.mxu0 0
        %1653 = vmatpush1.bf16.msra.mxu0 %v1586
        %1654 = vmatprep.subr.bf16.mxu0 0
        %1655 = vmatpush1.bf16.msra.mxu0 %v1587
        %1656 = vmatprep.subr.bf16.mxu0 0
        %1657 = vmatpush1.bf16.msra.mxu0 %v1588
        %1658 = vmatprep.subr.bf16.mxu0 0
        %1659 = vmatpush1.bf16.msra.mxu0 %v1589
        %1660 = vmatprep.subr.bf16.mxu0 0
        %1661 = vmatpush1.bf16.msra.mxu0 %v1590
        %1662 = vmatprep.subr.bf16.mxu0 0
        %1663 = vmatpush1.bf16.msra.mxu0 %v1591
        %1664 = vmatprep.subr.bf16.mxu0 0
        %1665 = vmatpush1.bf16.msra.mxu0 %v1592
        %1666 = vmatprep.subr.bf16.mxu0 0
        %1667 = vmatpush1.bf16.msra.mxu0 %v1593
        %1668 = vmatprep.subr.bf16.mxu0 0
        %1669 = vmatpush1.bf16.msra.mxu0 %v1594
        %1670 = vmatprep.subr.bf16.mxu0 0
        %1671 = vmatpush1.bf16.msra.mxu0 %v1595
        %1672 = vmatprep.subr.bf16.mxu0 0
        %1673 = vmatpush1.bf16.msra.mxu0 %v1596
        %1674 = vmatprep.subr.bf16.mxu0 0
        %1675 = vmatpush1.bf16.msra.mxu0 %v1597
        %1676 = vmatprep.subr.bf16.mxu0 0
        %1677 = vmatpush1.bf16.msra.mxu0 %v1598
        %1678 = vmatprep.subr.bf16.mxu0 0
        %1679 = vmatpush1.bf16.msra.mxu0 %v1599
        %1680 = vmatprep.mubr.bf16.mxu0 %v457
        %1681 = vmatmul.mubr.bf16.gmra.mrb[0].mxu0 %v450
        %v1682 = vpop.f32.mrb[0].mxu0
        %v1683 = vadd.f32 %v1455, %v1682
        %v1684 = vpop.f32.mrb[0].mxu0
        %v1685 = vpop.f32.mrb[0].mxu0
        %v1686 = vadd.f32 %v1455, %v1685
        %v1687 = vpop.f32.mrb[0].mxu0
        %1688 = vdwg.mxu0
        %1689 = vmatprep.subr.bf16.mxu0 0
        %1690 = vmatpush1.bf16.msra.mxu0 %v1600
        %1691 = vmatprep.subr.bf16.mxu0 0
        %1692 = vmatpush1.bf16.msra.mxu0 %v1601
        %1693 = vmatprep.subr.bf16.mxu0 0
        %1694 = vmatpush1.bf16.msra.mxu0 %v1602
        %1695 = vmatprep.subr.bf16.mxu0 0
        %1696 = vmatpush1.bf16.msra.mxu0 %v1603
        %1697 = vmatprep.subr.bf16.mxu0 0
        %1698 = vmatpush1.bf16.msra.mxu0 %v1604
        %1699 = vmatprep.subr.bf16.mxu0 0
        %1700 = vmatpush1.bf16.msra.mxu0 %v1605
        %1701 = vmatprep.subr.bf16.mxu0 0
        %1702 = vmatpush1.bf16.msra.mxu0 %v1606
        %1703 = vmatprep.subr.bf16.mxu0 0
        %1704 = vmatpush1.bf16.msra.mxu0 %v1607
        %1705 = vmatprep.subr.bf16.mxu0 0
        %1706 = vmatpush1.bf16.msra.mxu0 %v1608
        %1707 = vmatprep.subr.bf16.mxu0 0
        %1708 = vmatpush1.bf16.msra.mxu0 %v1609
        %1709 = vmatprep.subr.bf16.mxu0 0
        %1710 = vmatpush1.bf16.msra.mxu0 %v1610
        %1711 = vmatprep.subr.bf16.mxu0 0
        %1712 = vmatpush1.bf16.msra.mxu0 %v1611
        %1713 = vmatprep.subr.bf16.mxu0 0
        %1714 = vmatpush1.bf16.msra.mxu0 %v1612
        %1715 = vmatprep.subr.bf16.mxu0 0
        %1716 = vmatpush1.bf16.msra.mxu0 %v1613
        %1717 = vmatprep.subr.bf16.mxu0 0
        %1718 = vmatpush1.bf16.msra.mxu0 %v1614
        %1719 = vmatprep.subr.bf16.mxu0 0
        %1720 = vmatpush1.bf16.msra.mxu0 %v1615
        %1721 = vmatprep.mubr.bf16.mxu0 %v473
        %1722 = vmatmul.mubr.bf16.gmra.mrb[0].mxu0 %v468
        %v1723 = vpop.f32.mrb[0].mxu0
        %v1724 = vadd.f32 %v1683, %v1723
        %v1725 = vpop.f32.mrb[0].mxu0
        %v1726 = vpop.f32.mrb[0].mxu0
        %v1727 = vadd.f32 %v1686, %v1726
        %v1728 = vpop.f32.mrb[0].mxu0
        %1729 = vdwg.mxu0
        %vm1730 = vcmp.ge.f32.partialorder %v1724, 0.0
        %vm1731 = vcmp.ge.f32.partialorder %v1727, 0.0
        %v1732 = vmul.f32 %v1724, 0.2
        %v1733 = vmul.f32 %v1727, 0.2
        %v1734 = vsel %vm1730, %v1724, %v1732
        %v1735 = vsel %vm1731, %v1727, %v1733
        %v1736 = vpack.c.bf16 %v1735, %v1734
        %v1737 = vld [vmem:[#allocation4 + $0xc0] sm:$0xf]
        %v1738 = vld [vmem:[#allocation4 + $0xc4] sm:$0xf]
        %v1739 = vld [vmem:[#allocation4 + $0xc8] sm:$0xf]
        %v1740 = vld [vmem:[#allocation4 + $0xcc] sm:$0xf]
        %v1741 = vld [vmem:[#allocation4 + $0xd0] sm:$0xf]
        %v1742 = vld [vmem:[#allocation4 + $0xd4] sm:$0xf]
        %v1743 = vld [vmem:[#allocation4 + $0xd8] sm:$0xf]
        %v1744 = vld [vmem:[#allocation4 + $0xdc] sm:$0xf]
        %v1745 = vld [vmem:[#allocation4 + $0xe0] sm:$0xf]
        %v1746 = vld [vmem:[#allocation4 + $0xe4] sm:$0xf]
        %v1747 = vld [vmem:[#allocation4 + $0xe8] sm:$0xf]
        %v1748 = vld [vmem:[#allocation4 + $0xec] sm:$0xf]
        %v1749 = vld [vmem:[#allocation4 + $0xf0] sm:$0xf]
        %v1750 = vld [vmem:[#allocation4 + $0xf4] sm:$0xf]
        %v1751 = vld [vmem:[#allocation4 + $0xf8] sm:$0xf]
        %v1752 = vld [vmem:[#allocation4 + $0xfc] sm:$0xf]
        %v1769 = vunpack.c.l.b16 %v1737
        %v1770 = vunpack.c.l.b16 %v1738
        %v1771 = vunpack.c.l.b16 %v1739
        %v1772 = vunpack.c.l.b16 %v1740
        %v1773 = vunpack.c.l.b16 %v1741
        %v1774 = vunpack.c.l.b16 %v1742
        %v1775 = vunpack.c.l.b16 %v1743
        %v1776 = vunpack.c.l.b16 %v1744
        %v1777 = vunpack.c.l.b16 %v1745
        %v1778 = vunpack.c.l.b16 %v1746
        %v1779 = vunpack.c.l.b16 %v1747
        %v1780 = vunpack.c.l.b16 %v1748
        %v1781 = vunpack.c.l.b16 %v1749
        %v1782 = vunpack.c.l.b16 %v1750
        %v1783 = vunpack.c.l.b16 %v1751
        %v1784 = vunpack.c.l.b16 %v1752
        %v1785 = vpack.c.b16 %v1770, %v1769
        %v1786 = vpack.c.b16 %v1772, %v1771
        %v1787 = vpack.c.b16 %v1774, %v1773
        %v1788 = vpack.c.b16 %v1776, %v1775
        %v1789 = vpack.c.b16 %v1778, %v1777
        %v1790 = vpack.c.b16 %v1780, %v1779
        %v1791 = vpack.c.b16 %v1782, %v1781
        %v1792 = vpack.c.b16 %v1784, %v1783
        %1801 = vmatprep.subr.bf16.mxu0 0
        %1802 = vmatpush1.bf16.msra.mxu0 %v1785
        %1803 = vmatprep.subr.bf16.mxu0 0
        %1804 = vmatpush1.bf16.msra.mxu0 %v1786
        %1805 = vmatprep.subr.bf16.mxu0 0
        %1806 = vmatpush1.bf16.msra.mxu0 %v1787
        %1807 = vmatprep.subr.bf16.mxu0 0
        %1808 = vmatpush1.bf16.msra.mxu0 %v1788
        %1809 = vmatprep.subr.bf16.mxu0 0
        %1810 = vmatpush1.bf16.msra.mxu0 %v1789
        %1811 = vmatprep.subr.bf16.mxu0 0
        %1812 = vmatpush1.bf16.msra.mxu0 %v1790
        %1813 = vmatprep.subr.bf16.mxu0 0
        %1814 = vmatpush1.bf16.msra.mxu0 %v1791
        %1815 = vmatprep.subr.bf16.mxu0 0
        %1816 = vmatpush1.bf16.msra.mxu0 %v1792
        %1817 = vmatprep.subr.bf16.mxu0 0
        %1818 = vmatpush1.bf16.msra.mxu0 0
        %1819 = vmatprep.subr.bf16.mxu0 0
        %1820 = vmatpush1.bf16.msra.mxu0 0
        %1821 = vmatprep.subr.bf16.mxu0 0
        %1822 = vmatpush1.bf16.msra.mxu0 0
        %1823 = vmatprep.subr.bf16.mxu0 0
        %1824 = vmatpush1.bf16.msra.mxu0 0
        %1825 = vmatprep.subr.bf16.mxu0 0
        %1826 = vmatpush1.bf16.msra.mxu0 0
        %1827 = vmatprep.subr.bf16.mxu0 0
        %1828 = vmatpush1.bf16.msra.mxu0 0
        %1829 = vmatprep.subr.bf16.mxu0 0
        %1830 = vmatpush1.bf16.msra.mxu0 0
        %1831 = vmatprep.subr.bf16.mxu0 0
        %1832 = vmatpush1.bf16.msra.mxu0 0
        %1833 = vmatprep.mubr.bf16.mxu0 0
        %1834 = vmatmul.mubr.bf16.gmra.mrb[0].mxu0 %v1736
        %v1835 = vpop.f32.mrb[0].mxu0
        %v1836 = vadd.f32 0.0, %v1835
        %v1837 = vpop.f32.mrb[0].mxu0
        %v1838 = vpop.f32.mrb[0].mxu0
        %v1839 = vadd.f32 0.0, %v1838
        %v1840 = vpop.f32.mrb[0].mxu0
        %1841 = vdwg.mxu0
        %v1842 = vadd.f32 %v1386, %v1836
        %v1843 = vadd.f32 %v1387, %v1839
        %v1844 = vld [vmem:[#allocation2 + $0x280] sm:$0xf]
        %v1845 = vld [vmem:[#allocation2 + $0x284] sm:$0xf]
        %v1846 = vld [vmem:[#allocation2 + $0x288] sm:$0xf]
        %v1847 = vld [vmem:[#allocation2 + $0x28c] sm:$0xf]
        %v1848 = vld [vmem:[#allocation2 + $0x290] sm:$0xf]
        %v1849 = vld [vmem:[#allocation2 + $0x294] sm:$0xf]
        %v1850 = vld [vmem:[#allocation2 + $0x298] sm:$0xf]
        %v1851 = vld [vmem:[#allocation2 + $0x29c] sm:$0xf]
        %v1852 = vld [vmem:[#allocation2 + $0x2a0] sm:$0xf]
        %v1853 = vld [vmem:[#allocation2 + $0x2a4] sm:$0xf]
        %v1854 = vld [vmem:[#allocation2 + $0x2a8] sm:$0xf]
        %v1855 = vld [vmem:[#allocation2 + $0x2ac] sm:$0xf]
        %v1856 = vld [vmem:[#allocation2 + $0x2b0] sm:$0xf]
        %v1857 = vld [vmem:[#allocation2 + $0x2b4] sm:$0xf]
        %v1858 = vld [vmem:[#allocation2 + $0x2b8] sm:$0xf]
        %v1859 = vld [vmem:[#allocation2 + $0x2bc] sm:$0xf]
        %v1860 = vld [vmem:[#allocation2 + $0x2c0] sm:$0xf]
        %v1861 = vld [vmem:[#allocation2 + $0x2c4] sm:$0xf]
        %v1862 = vld [vmem:[#allocation2 + $0x2c8] sm:$0xf]
        %v1863 = vld [vmem:[#allocation2 + $0x2cc] sm:$0xf]
        %v1864 = vld [vmem:[#allocation2 + $0x2d0] sm:$0xf]
        %v1865 = vld [vmem:[#allocation2 + $0x2d4] sm:$0xf]
        %v1866 = vld [vmem:[#allocation2 + $0x2d8] sm:$0xf]
        %v1867 = vld [vmem:[#allocation2 + $0x2dc] sm:$0xf]
        %v1868 = vld [vmem:[#allocation2 + $0x2e0] sm:$0xf]
        %v1869 = vld [vmem:[#allocation2 + $0x2e4] sm:$0xf]
        %v1870 = vld [vmem:[#allocation2 + $0x2e8] sm:$0xf]
        %v1871 = vld [vmem:[#allocation2 + $0x2ec] sm:$0xf]
        %v1872 = vld [vmem:[#allocation2 + $0x2f0] sm:$0xf]
        %v1873 = vld [vmem:[#allocation2 + $0x2f4] sm:$0xf]
        %v1874 = vld [vmem:[#allocation2 + $0x2f8] sm:$0xf]
        %v1875 = vld [vmem:[#allocation2 + $0x2fc] sm:$0xf]
        %v1876 = vld [vmem:[#allocation2 + $0x300] sm:$0xf]
        %v1877 = vld [vmem:[#allocation2 + $0x304] sm:$0xf]
        %v1878 = vld [vmem:[#allocation2 + $0x308] sm:$0xf]
        %v1879 = vld [vmem:[#allocation2 + $0x30c] sm:$0xf]
        %v1880 = vld [vmem:[#allocation2 + $0x310] sm:$0xf]
        %v1881 = vld [vmem:[#allocation2 + $0x314] sm:$0xf]
        %v1882 = vld [vmem:[#allocation2 + $0x318] sm:$0xf]
        %v1883 = vld [vmem:[#allocation2 + $0x31c] sm:$0xf]
        %v1884 = vld [vmem:[#allocation2 + $0x320] sm:$0xf]
        %v1885 = vld [vmem:[#allocation2 + $0x324] sm:$0xf]
        %v1886 = vld [vmem:[#allocation2 + $0x328] sm:$0xf]
        %v1887 = vld [vmem:[#allocation2 + $0x32c] sm:$0xf]
        %v1888 = vld [vmem:[#allocation2 + $0x330] sm:$0xf]
        %v1889 = vld [vmem:[#allocation2 + $0x334] sm:$0xf]
        %v1890 = vld [vmem:[#allocation2 + $0x338] sm:$0xf]
        %v1891 = vld [vmem:[#allocation2 + $0x33c] sm:$0xf]
        %v1892 = vld [vmem:[#allocation2 + $0x340] sm:$0xf]
        %v1893 = vld [vmem:[#allocation2 + $0x344] sm:$0xf]
        %v1894 = vld [vmem:[#allocation2 + $0x348] sm:$0xf]
        %v1895 = vld [vmem:[#allocation2 + $0x34c] sm:$0xf]
        %v1896 = vld [vmem:[#allocation2 + $0x350] sm:$0xf]
        %v1897 = vld [vmem:[#allocation2 + $0x354] sm:$0xf]
        %v1898 = vld [vmem:[#allocation2 + $0x358] sm:$0xf]
        %v1899 = vld [vmem:[#allocation2 + $0x35c] sm:$0xf]
        %v1900 = vld [vmem:[#allocation2 + $0x360] sm:$0xf]
        %v1901 = vld [vmem:[#allocation2 + $0x364] sm:$0xf]
        %v1902 = vld [vmem:[#allocation2 + $0x368] sm:$0xf]
        %v1903 = vld [vmem:[#allocation2 + $0x36c] sm:$0xf]
        %v1904 = vld [vmem:[#allocation2 + $0x370] sm:$0xf]
        %v1905 = vld [vmem:[#allocation2 + $0x374] sm:$0xf]
        %v1906 = vld [vmem:[#allocation2 + $0x378] sm:$0xf]
        %v1907 = vld [vmem:[#allocation2 + $0x37c] sm:$0xf]
        %v1908 = vld [vmem:[#allocation2 + $0x380] sm:$0xf]
        %v1909 = vld [vmem:[#allocation2 + $0x384] sm:$0xf]
        %v1910 = vld [vmem:[#allocation2 + $0x388] sm:$0xf]
        %v1911 = vld [vmem:[#allocation2 + $0x38c] sm:$0xf]
        %v1912 = vld [vmem:[#allocation2 + $0x390] sm:$0xf]
        %v1913 = vld [vmem:[#allocation2 + $0x394] sm:$0xf]
        %v1914 = vld [vmem:[#allocation2 + $0x398] sm:$0xf]
        %v1915 = vld [vmem:[#allocation2 + $0x39c] sm:$0xf]
        %v1916 = vld [vmem:[#allocation2 + $0x3a0] sm:$0xf]
        %v1917 = vld [vmem:[#allocation2 + $0x3a4] sm:$0xf]
        %v1918 = vld [vmem:[#allocation2 + $0x3a8] sm:$0xf]
        %v1919 = vld [vmem:[#allocation2 + $0x3ac] sm:$0xf]
        %v1920 = vld [vmem:[#allocation2 + $0x3b0] sm:$0xf]
        %v1921 = vld [vmem:[#allocation2 + $0x3b4] sm:$0xf]
        %v1922 = vld [vmem:[#allocation2 + $0x3b8] sm:$0xf]
        %v1923 = vld [vmem:[#allocation2 + $0x3bc] sm:$0xf]
        %v1924 = vlaneseq
        %v1925 = vshrl.u32 %v1924, 7
        %v1926 = vsub.s32 4, %v1925
        %v1927 = vrot.slane %v489, %v1926
        %v2008 = vunpack.c.l.b16 %v1844
        %v2009 = vunpack.c.l.b16 %v1845
        %v2010 = vunpack.c.l.b16 %v1846
        %v2011 = vunpack.c.l.b16 %v1847
        %v2012 = vunpack.c.l.b16 %v1848
        %v2013 = vunpack.c.l.b16 %v1849
        %v2014 = vunpack.c.l.b16 %v1850
        %v2015 = vunpack.c.l.b16 %v1851
        %v2016 = vunpack.c.l.b16 %v1852
        %v2017 = vunpack.c.l.b16 %v1853
        %v2018 = vunpack.c.l.b16 %v1854
        %v2019 = vunpack.c.l.b16 %v1855
        %v2020 = vunpack.c.l.b16 %v1856
        %v2021 = vunpack.c.l.b16 %v1857
        %v2022 = vunpack.c.l.b16 %v1858
        %v2023 = vunpack.c.l.b16 %v1859
        %v2024 = vunpack.c.l.b16 %v1860
        %v2025 = vunpack.c.l.b16 %v1861
        %v2026 = vunpack.c.l.b16 %v1862
        %v2027 = vunpack.c.l.b16 %v1863
        %v2028 = vunpack.c.l.b16 %v1864
        %v2029 = vunpack.c.l.b16 %v1865
        %v2030 = vunpack.c.l.b16 %v1866
        %v2031 = vunpack.c.l.b16 %v1867
        %v2032 = vunpack.c.l.b16 %v1868
        %v2033 = vunpack.c.l.b16 %v1869
        %v2034 = vunpack.c.l.b16 %v1870
        %v2035 = vunpack.c.l.b16 %v1871
        %v2036 = vunpack.c.l.b16 %v1872
        %v2037 = vunpack.c.l.b16 %v1873
        %v2038 = vunpack.c.l.b16 %v1874
        %v2039 = vunpack.c.l.b16 %v1875
        %v2040 = vunpack.c.l.b16 %v1876
        %v2041 = vunpack.c.l.b16 %v1877
        %v2042 = vunpack.c.l.b16 %v1878
        %v2043 = vunpack.c.l.b16 %v1879
        %v2044 = vunpack.c.l.b16 %v1880
        %v2045 = vunpack.c.l.b16 %v1881
        %v2046 = vunpack.c.l.b16 %v1882
        %v2047 = vunpack.c.l.b16 %v1883
        %v2048 = vunpack.c.l.b16 %v1884
        %v2049 = vunpack.c.l.b16 %v1885
        %v2050 = vunpack.c.l.b16 %v1886
        %v2051 = vunpack.c.l.b16 %v1887
        %v2052 = vunpack.c.l.b16 %v1888
        %v2053 = vunpack.c.l.b16 %v1889
        %v2054 = vunpack.c.l.b16 %v1890
        %v2055 = vunpack.c.l.b16 %v1891
        %v2056 = vunpack.c.l.b16 %v1892
        %v2057 = vunpack.c.l.b16 %v1893
        %v2058 = vunpack.c.l.b16 %v1894
        %v2059 = vunpack.c.l.b16 %v1895
        %v2060 = vunpack.c.l.b16 %v1896
        %v2061 = vunpack.c.l.b16 %v1897
        %v2062 = vunpack.c.l.b16 %v1898
        %v2063 = vunpack.c.l.b16 %v1899
        %v2064 = vunpack.c.l.b16 %v1900
        %v2065 = vunpack.c.l.b16 %v1901
        %v2066 = vunpack.c.l.b16 %v1902
        %v2067 = vunpack.c.l.b16 %v1903
        %v2068 = vunpack.c.l.b16 %v1904
        %v2069 = vunpack.c.l.b16 %v1905
        %v2070 = vunpack.c.l.b16 %v1906
        %v2071 = vunpack.c.l.b16 %v1907
        %v2072 = vunpack.c.l.b16 %v1908
        %v2073 = vunpack.c.l.b16 %v1909
        %v2074 = vunpack.c.l.b16 %v1910
        %v2075 = vunpack.c.l.b16 %v1911
        %v2076 = vunpack.c.l.b16 %v1912
        %v2077 = vunpack.c.l.b16 %v1913
        %v2078 = vunpack.c.l.b16 %v1914
        %v2079 = vunpack.c.l.b16 %v1915
        %v2080 = vunpack.c.l.b16 %v1916
        %v2081 = vunpack.c.l.b16 %v1917
        %v2082 = vunpack.c.l.b16 %v1918
        %v2083 = vunpack.c.l.b16 %v1919
        %v2084 = vunpack.c.l.b16 %v1920
        %v2085 = vunpack.c.l.b16 %v1921
        %v2086 = vunpack.c.l.b16 %v1922
        %v2087 = vunpack.c.l.b16 %v1923
        %v2088 = vpack.c.b16 %v2009, %v2008
        %v2089 = vpack.c.b16 %v2011, %v2010
        %v2090 = vpack.c.b16 %v2013, %v2012
        %v2091 = vpack.c.b16 %v2015, %v2014
        %v2092 = vpack.c.b16 %v2017, %v2016
        %v2093 = vpack.c.b16 %v2019, %v2018
        %v2094 = vpack.c.b16 %v2021, %v2020
        %v2095 = vpack.c.b16 %v2023, %v2022
        %v2096 = vpack.c.b16 %v2025, %v2024
        %v2097 = vpack.c.b16 %v2027, %v2026
        %v2098 = vpack.c.b16 %v2029, %v2028
        %v2099 = vpack.c.b16 %v2031, %v2030
        %v2100 = vpack.c.b16 %v2033, %v2032
        %v2101 = vpack.c.b16 %v2035, %v2034
        %v2102 = vpack.c.b16 %v2037, %v2036
        %v2103 = vpack.c.b16 %v2039, %v2038
        %v2104 = vpack.c.b16 %v2041, %v2040
        %v2105 = vpack.c.b16 %v2043, %v2042
        %v2106 = vpack.c.b16 %v2045, %v2044
        %v2107 = vpack.c.b16 %v2047, %v2046
        %v2108 = vpack.c.b16 %v2049, %v2048
        %v2109 = vpack.c.b16 %v2051, %v2050
        %v2110 = vpack.c.b16 %v2053, %v2052
        %v2111 = vpack.c.b16 %v2055, %v2054
        %v2112 = vpack.c.b16 %v2057, %v2056
        %v2113 = vpack.c.b16 %v2059, %v2058
        %v2114 = vpack.c.b16 %v2061, %v2060
        %v2115 = vpack.c.b16 %v2063, %v2062
        %v2116 = vpack.c.b16 %v2065, %v2064
        %v2117 = vpack.c.b16 %v2067, %v2066
        %v2118 = vpack.c.b16 %v2069, %v2068
        %v2119 = vpack.c.b16 %v2071, %v2070
        %v2120 = vpack.c.b16 %v2073, %v2072
        %v2121 = vpack.c.b16 %v2075, %v2074
        %v2122 = vpack.c.b16 %v2077, %v2076
        %v2123 = vpack.c.b16 %v2079, %v2078
        %v2124 = vpack.c.b16 %v2081, %v2080
        %v2125 = vpack.c.b16 %v2083, %v2082
        %v2126 = vpack.c.b16 %v2085, %v2084
        %v2127 = vpack.c.b16 %v2087, %v2086
        %2168 = vmatprep.subr.bf16.mxu0 0
        %2169 = vmatpush1.bf16.msra.mxu0 %v2088
        %2170 = vmatprep.subr.bf16.mxu0 0
        %2171 = vmatpush1.bf16.msra.mxu0 %v2089
        %2172 = vmatprep.subr.bf16.mxu0 0
        %2173 = vmatpush1.bf16.msra.mxu0 %v2090
        %2174 = vmatprep.subr.bf16.mxu0 0
        %2175 = vmatpush1.bf16.msra.mxu0 %v2091
        %2176 = vmatprep.subr.bf16.mxu0 0
        %2177 = vmatpush1.bf16.msra.mxu0 %v2092
        %2178 = vmatprep.subr.bf16.mxu0 0
        %2179 = vmatpush1.bf16.msra.mxu0 %v2093
        %2180 = vmatprep.subr.bf16.mxu0 0
        %2181 = vmatpush1.bf16.msra.mxu0 %v2094
        %2182 = vmatprep.subr.bf16.mxu0 0
        %2183 = vmatpush1.bf16.msra.mxu0 %v2095
        %2184 = vmatprep.subr.bf16.mxu0 0
        %2185 = vmatpush1.bf16.msra.mxu0 %v2096
        %2186 = vmatprep.subr.bf16.mxu0 0
        %2187 = vmatpush1.bf16.msra.mxu0 %v2097
        %2188 = vmatprep.subr.bf16.mxu0 0
        %2189 = vmatpush1.bf16.msra.mxu0 %v2098
        %2190 = vmatprep.subr.bf16.mxu0 0
        %2191 = vmatpush1.bf16.msra.mxu0 %v2099
        %2192 = vmatprep.subr.bf16.mxu0 0
        %2193 = vmatpush1.bf16.msra.mxu0 %v2100
        %2194 = vmatprep.subr.bf16.mxu0 0
        %2195 = vmatpush1.bf16.msra.mxu0 %v2101
        %2196 = vmatprep.subr.bf16.mxu0 0
        %2197 = vmatpush1.bf16.msra.mxu0 %v2102
        %2198 = vmatprep.subr.bf16.mxu0 0
        %2199 = vmatpush1.bf16.msra.mxu0 %v2103
        %2200 = vmatprep.mubr.bf16.mxu0 %v457
        %2201 = vmatmul.mubr.bf16.gmra.mrb[0].mxu0 %v450
        %v2202 = vpop.f32.mrb[0].mxu0
        %v2203 = vadd.f32 %v1927, %v2202
        %v2204 = vpop.f32.mrb[0].mxu0
        %v2205 = vpop.f32.mrb[0].mxu0
        %v2206 = vadd.f32 %v1927, %v2205
        %v2207 = vpop.f32.mrb[0].mxu0
        %2208 = vdwg.mxu0
        %2209 = vmatprep.subr.bf16.mxu0 0
        %2210 = vmatpush1.bf16.msra.mxu0 %v2104
        %2211 = vmatprep.subr.bf16.mxu0 0
        %2212 = vmatpush1.bf16.msra.mxu0 %v2105
        %2213 = vmatprep.subr.bf16.mxu0 0
        %2214 = vmatpush1.bf16.msra.mxu0 %v2106
        %2215 = vmatprep.subr.bf16.mxu0 0
        %2216 = vmatpush1.bf16.msra.mxu0 %v2107
        %2217 = vmatprep.subr.bf16.mxu0 0
        %2218 = vmatpush1.bf16.msra.mxu0 %v2108
        %2219 = vmatprep.subr.bf16.mxu0 0
        %2220 = vmatpush1.bf16.msra.mxu0 %v2109
        %2221 = vmatprep.subr.bf16.mxu0 0
        %2222 = vmatpush1.bf16.msra.mxu0 %v2110
        %2223 = vmatprep.subr.bf16.mxu0 0
        %2224 = vmatpush1.bf16.msra.mxu0 %v2111
        %2225 = vmatprep.subr.bf16.mxu0 0
        %2226 = vmatpush1.bf16.msra.mxu0 %v2112
        %2227 = vmatprep.subr.bf16.mxu0 0
        %2228 = vmatpush1.bf16.msra.mxu0 %v2113
        %2229 = vmatprep.subr.bf16.mxu0 0
        %2230 = vmatpush1.bf16.msra.mxu0 %v2114
        %2231 = vmatprep.subr.bf16.mxu0 0
        %2232 = vmatpush1.bf16.msra.mxu0 %v2115
        %2233 = vmatprep.subr.bf16.mxu0 0
        %2234 = vmatpush1.bf16.msra.mxu0 %v2116
        %2235 = vmatprep.subr.bf16.mxu0 0
        %2236 = vmatpush1.bf16.msra.mxu0 %v2117
        %2237 = vmatprep.subr.bf16.mxu0 0
        %2238 = vmatpush1.bf16.msra.mxu0 %v2118
        %2239 = vmatprep.subr.bf16.mxu0 0
        %2240 = vmatpush1.bf16.msra.mxu0 %v2119
        %2241 = vmatprep.mubr.bf16.mxu0 %v473
        %2242 = vmatmul.mubr.bf16.gmra.mrb[0].mxu0 %v468
        %v2243 = vpop.f32.mrb[0].mxu0
        %v2244 = vadd.f32 %v2203, %v2243
        %v2245 = vpop.f32.mrb[0].mxu0
        %v2246 = vpop.f32.mrb[0].mxu0
        %v2247 = vadd.f32 %v2206, %v2246
        %v2248 = vpop.f32.mrb[0].mxu0
        %2249 = vdwg.mxu0
        %2250 = vmatprep.subr.bf16.mxu0 0
        %2251 = vmatpush1.bf16.msra.mxu0 %v2120
        %2252 = vmatprep.subr.bf16.mxu0 0
        %2253 = vmatpush1.bf16.msra.mxu0 %v2121
        %2254 = vmatprep.subr.bf16.mxu0 0
        %2255 = vmatpush1.bf16.msra.mxu0 %v2122
        %2256 = vmatprep.subr.bf16.mxu0 0
        %2257 = vmatpush1.bf16.msra.mxu0 %v2123
        %2258 = vmatprep.subr.bf16.mxu0 0
        %2259 = vmatpush1.bf16.msra.mxu0 %v2124
        %2260 = vmatprep.subr.bf16.mxu0 0
        %2261 = vmatpush1.bf16.msra.mxu0 %v2125
        %2262 = vmatprep.subr.bf16.mxu0 0
        %2263 = vmatpush1.bf16.msra.mxu0 %v2126
        %2264 = vmatprep.subr.bf16.mxu0 0
        %2265 = vmatpush1.bf16.msra.mxu0 %v2127
        %2266 = vmatprep.subr.bf16.mxu0 0
        %2267 = vmatpush1.bf16.msra.mxu0 0
        %2268 = vmatprep.subr.bf16.mxu0 0
        %2269 = vmatpush1.bf16.msra.mxu0 0
        %2270 = vmatprep.subr.bf16.mxu0 0
        %2271 = vmatpush1.bf16.msra.mxu0 0
        %2272 = vmatprep.subr.bf16.mxu0 0
        %2273 = vmatpush1.bf16.msra.mxu0 0
        %2274 = vmatprep.subr.bf16.mxu0 0
        %2275 = vmatpush1.bf16.msra.mxu0 0
        %2276 = vmatprep.subr.bf16.mxu0 0
        %2277 = vmatpush1.bf16.msra.mxu0 0
        %2278 = vmatprep.subr.bf16.mxu0 0
        %2279 = vmatpush1.bf16.msra.mxu0 0
        %2280 = vmatprep.subr.bf16.mxu0 0
        %2281 = vmatpush1.bf16.msra.mxu0 0
        %2282 = vmatprep.mubr.bf16.mxu0 0
        %2283 = vmatmul.mubr.bf16.gmra.mrb[0].mxu0 %v482
        %v2284 = vpop.f32.mrb[0].mxu0
        %v2285 = vadd.f32 %v2244, %v2284
        %v2286 = vpop.f32.mrb[0].mxu0
        %v2287 = vpop.f32.mrb[0].mxu0
        %v2288 = vadd.f32 %v2247, %v2287
        %v2289 = vpop.f32.mrb[0].mxu0
        %2290 = vdwg.mxu0
        %vm2291 = vcmp.ge.f32.partialorder %v2285, 0.0
        %vm2292 = vcmp.ge.f32.partialorder %v2288, 0.0
        %v2293 = vmul.f32 %v2285, 0.2
        %v2294 = vmul.f32 %v2288, 0.2
        %v2295 = vsel %vm2291, %v2285, %v2293
        %v2296 = vsel %vm2292, %v2288, %v2294
        %v2297 = vpack.c.bf16 %v2296, %v2295
        %v2298 = vld [vmem:[#allocation4 + $0x100] sm:$0xf]
        %v2299 = vld [vmem:[#allocation4 + $0x104] sm:$0xf]
        %v2300 = vld [vmem:[#allocation4 + $0x108] sm:$0xf]
        %v2301 = vld [vmem:[#allocation4 + $0x10c] sm:$0xf]
        %v2302 = vld [vmem:[#allocation4 + $0x110] sm:$0xf]
        %v2303 = vld [vmem:[#allocation4 + $0x114] sm:$0xf]
        %v2304 = vld [vmem:[#allocation4 + $0x118] sm:$0xf]
        %v2305 = vld [vmem:[#allocation4 + $0x11c] sm:$0xf]
        %v2306 = vld [vmem:[#allocation4 + $0x120] sm:$0xf]
        %v2307 = vld [vmem:[#allocation4 + $0x124] sm:$0xf]
        %v2308 = vld [vmem:[#allocation4 + $0x128] sm:$0xf]
        %v2309 = vld [vmem:[#allocation4 + $0x12c] sm:$0xf]
        %v2310 = vld [vmem:[#allocation4 + $0x130] sm:$0xf]
        %v2311 = vld [vmem:[#allocation4 + $0x134] sm:$0xf]
        %v2312 = vld [vmem:[#allocation4 + $0x138] sm:$0xf]
        %v2313 = vld [vmem:[#allocation4 + $0x13c] sm:$0xf]
        %v2330 = vunpack.c.l.b16 %v2298
        %v2331 = vunpack.c.l.b16 %v2299
        %v2332 = vunpack.c.l.b16 %v2300
        %v2333 = vunpack.c.l.b16 %v2301
        %v2334 = vunpack.c.l.b16 %v2302
        %v2335 = vunpack.c.l.b16 %v2303
        %v2336 = vunpack.c.l.b16 %v2304
        %v2337 = vunpack.c.l.b16 %v2305
        %v2338 = vunpack.c.l.b16 %v2306
        %v2339 = vunpack.c.l.b16 %v2307
        %v2340 = vunpack.c.l.b16 %v2308
        %v2341 = vunpack.c.l.b16 %v2309
        %v2342 = vunpack.c.l.b16 %v2310
        %v2343 = vunpack.c.l.b16 %v2311
        %v2344 = vunpack.c.l.b16 %v2312
        %v2345 = vunpack.c.l.b16 %v2313
        %v2346 = vpack.c.b16 %v2331, %v2330
        %v2347 = vpack.c.b16 %v2333, %v2332
        %v2348 = vpack.c.b16 %v2335, %v2334
        %v2349 = vpack.c.b16 %v2337, %v2336
        %v2350 = vpack.c.b16 %v2339, %v2338
        %v2351 = vpack.c.b16 %v2341, %v2340
        %v2352 = vpack.c.b16 %v2343, %v2342
        %v2353 = vpack.c.b16 %v2345, %v2344
        %2362 = vmatprep.subr.bf16.mxu0 0
        %2363 = vmatpush1.bf16.msra.mxu0 %v2346
        %2364 = vmatprep.subr.bf16.mxu0 0
        %2365 = vmatpush1.bf16.msra.mxu0 %v2347
        %2366 = vmatprep.subr.bf16.mxu0 0
        %2367 = vmatpush1.bf16.msra.mxu0 %v2348
        %2368 = vmatprep.subr.bf16.mxu0 0
        %2369 = vmatpush1.bf16.msra.mxu0 %v2349
        %2370 = vmatprep.subr.bf16.mxu0 0
        %2371 = vmatpush1.bf16.msra.mxu0 %v2350
        %2372 = vmatprep.subr.bf16.mxu0 0
        %2373 = vmatpush1.bf16.msra.mxu0 %v2351
        %2374 = vmatprep.subr.bf16.mxu0 0
        %2375 = vmatpush1.bf16.msra.mxu0 %v2352
        %2376 = vmatprep.subr.bf16.mxu0 0
        %2377 = vmatpush1.bf16.msra.mxu0 %v2353
        %2378 = vmatprep.subr.bf16.mxu0 0
        %2379 = vmatpush1.bf16.msra.mxu0 0
        %2380 = vmatprep.subr.bf16.mxu0 0
        %2381 = vmatpush1.bf16.msra.mxu0 0
        %2382 = vmatprep.subr.bf16.mxu0 0
        %2383 = vmatpush1.bf16.msra.mxu0 0
        %2384 = vmatprep.subr.bf16.mxu0 0
        %2385 = vmatpush1.bf16.msra.mxu0 0
        %2386 = vmatprep.subr.bf16.mxu0 0
        %2387 = vmatpush1.bf16.msra.mxu0 0
        %2388 = vmatprep.subr.bf16.mxu0 0
        %2389 = vmatpush1.bf16.msra.mxu0 0
        %2390 = vmatprep.subr.bf16.mxu0 0
        %2391 = vmatpush1.bf16.msra.mxu0 0
        %2392 = vmatprep.subr.bf16.mxu0 0
        %2393 = vmatpush1.bf16.msra.mxu0 0
        %2394 = vmatprep.mubr.bf16.mxu0 0
        %2395 = vmatmul.mubr.bf16.gmra.mrb[0].mxu0 %v2297
        %v2396 = vpop.f32.mrb[0].mxu0
        %v2397 = vadd.f32 0.0, %v2396
        %v2398 = vpop.f32.mrb[0].mxu0
        %v2399 = vpop.f32.mrb[0].mxu0
        %v2400 = vadd.f32 0.0, %v2399
        %v2401 = vpop.f32.mrb[0].mxu0
        %2402 = vdwg.mxu0
        %v2403 = vadd.f32 %v1842, %v2397
        %v2404 = vadd.f32 %v1843, %v2400
        %v2405 = vld [vmem:[#allocation2 + $0x3c0] sm:$0xf]
        %v2406 = vld [vmem:[#allocation2 + $0x3c4] sm:$0xf]
        %v2407 = vld [vmem:[#allocation2 + $0x3c8] sm:$0xf]
        %v2408 = vld [vmem:[#allocation2 + $0x3cc] sm:$0xf]
        %v2409 = vld [vmem:[#allocation2 + $0x3d0] sm:$0xf]
        %v2410 = vld [vmem:[#allocation2 + $0x3d4] sm:$0xf]
        %v2411 = vld [vmem:[#allocation2 + $0x3d8] sm:$0xf]
        %v2412 = vld [vmem:[#allocation2 + $0x3dc] sm:$0xf]
        %v2413 = vld [vmem:[#allocation2 + $0x3e0] sm:$0xf]
        %v2414 = vld [vmem:[#allocation2 + $0x3e4] sm:$0xf]
        %v2415 = vld [vmem:[#allocation2 + $0x3e8] sm:$0xf]
        %v2416 = vld [vmem:[#allocation2 + $0x3ec] sm:$0xf]
        %v2417 = vld [vmem:[#allocation2 + $0x3f0] sm:$0xf]
        %v2418 = vld [vmem:[#allocation2 + $0x3f4] sm:$0xf]
        %v2419 = vld [vmem:[#allocation2 + $0x3f8] sm:$0xf]
        %v2420 = vld [vmem:[#allocation2 + $0x3fc] sm:$0xf]
        %v2421 = vld [vmem:[#allocation2 + $0x400] sm:$0xf]
        %v2422 = vld [vmem:[#allocation2 + $0x404] sm:$0xf]
        %v2423 = vld [vmem:[#allocation2 + $0x408] sm:$0xf]
        %v2424 = vld [vmem:[#allocation2 + $0x40c] sm:$0xf]
        %v2425 = vld [vmem:[#allocation2 + $0x410] sm:$0xf]
        %v2426 = vld [vmem:[#allocation2 + $0x414] sm:$0xf]
        %v2427 = vld [vmem:[#allocation2 + $0x418] sm:$0xf]
        %v2428 = vld [vmem:[#allocation2 + $0x41c] sm:$0xf]
        %v2429 = vld [vmem:[#allocation2 + $0x420] sm:$0xf]
        %v2430 = vld [vmem:[#allocation2 + $0x424] sm:$0xf]
        %v2431 = vld [vmem:[#allocation2 + $0x428] sm:$0xf]
        %v2432 = vld [vmem:[#allocation2 + $0x42c] sm:$0xf]
        %v2433 = vld [vmem:[#allocation2 + $0x430] sm:$0xf]
        %v2434 = vld [vmem:[#allocation2 + $0x434] sm:$0xf]
        %v2435 = vld [vmem:[#allocation2 + $0x438] sm:$0xf]
        %v2436 = vld [vmem:[#allocation2 + $0x43c] sm:$0xf]
        %v2437 = vld [vmem:[#allocation2 + $0x440] sm:$0xf]
        %v2438 = vld [vmem:[#allocation2 + $0x444] sm:$0xf]
        %v2439 = vld [vmem:[#allocation2 + $0x448] sm:$0xf]
        %v2440 = vld [vmem:[#allocation2 + $0x44c] sm:$0xf]
        %v2441 = vld [vmem:[#allocation2 + $0x450] sm:$0xf]
        %v2442 = vld [vmem:[#allocation2 + $0x454] sm:$0xf]
        %v2443 = vld [vmem:[#allocation2 + $0x458] sm:$0xf]
        %v2444 = vld [vmem:[#allocation2 + $0x45c] sm:$0xf]
        %v2445 = vld [vmem:[#allocation2 + $0x460] sm:$0xf]
        %v2446 = vld [vmem:[#allocation2 + $0x464] sm:$0xf]
        %v2447 = vld [vmem:[#allocation2 + $0x468] sm:$0xf]
        %v2448 = vld [vmem:[#allocation2 + $0x46c] sm:$0xf]
        %v2449 = vld [vmem:[#allocation2 + $0x470] sm:$0xf]
        %v2450 = vld [vmem:[#allocation2 + $0x474] sm:$0xf]
        %v2451 = vld [vmem:[#allocation2 + $0x478] sm:$0xf]
        %v2452 = vld [vmem:[#allocation2 + $0x47c] sm:$0xf]
        %v2453 = vld [vmem:[#allocation2 + $0x480] sm:$0xf]
        %v2454 = vld [vmem:[#allocation2 + $0x484] sm:$0xf]
        %v2455 = vld [vmem:[#allocation2 + $0x488] sm:$0xf]
        %v2456 = vld [vmem:[#allocation2 + $0x48c] sm:$0xf]
        %v2457 = vld [vmem:[#allocation2 + $0x490] sm:$0xf]
        %v2458 = vld [vmem:[#allocation2 + $0x494] sm:$0xf]
        %v2459 = vld [vmem:[#allocation2 + $0x498] sm:$0xf]
        %v2460 = vld [vmem:[#allocation2 + $0x49c] sm:$0xf]
        %v2461 = vld [vmem:[#allocation2 + $0x4a0] sm:$0xf]
        %v2462 = vld [vmem:[#allocation2 + $0x4a4] sm:$0xf]
        %v2463 = vld [vmem:[#allocation2 + $0x4a8] sm:$0xf]
        %v2464 = vld [vmem:[#allocation2 + $0x4ac] sm:$0xf]
        %v2465 = vld [vmem:[#allocation2 + $0x4b0] sm:$0xf]
        %v2466 = vld [vmem:[#allocation2 + $0x4b4] sm:$0xf]
        %v2467 = vld [vmem:[#allocation2 + $0x4b8] sm:$0xf]
        %v2468 = vld [vmem:[#allocation2 + $0x4bc] sm:$0xf]
        %v2469 = vld [vmem:[#allocation2 + $0x4c0] sm:$0xf]
        %v2470 = vld [vmem:[#allocation2 + $0x4c4] sm:$0xf]
        %v2471 = vld [vmem:[#allocation2 + $0x4c8] sm:$0xf]
        %v2472 = vld [vmem:[#allocation2 + $0x4cc] sm:$0xf]
        %v2473 = vld [vmem:[#allocation2 + $0x4d0] sm:$0xf]
        %v2474 = vld [vmem:[#allocation2 + $0x4d4] sm:$0xf]
        %v2475 = vld [vmem:[#allocation2 + $0x4d8] sm:$0xf]
        %v2476 = vld [vmem:[#allocation2 + $0x4dc] sm:$0xf]
        %v2477 = vld [vmem:[#allocation2 + $0x4e0] sm:$0xf]
        %v2478 = vld [vmem:[#allocation2 + $0x4e4] sm:$0xf]
        %v2479 = vld [vmem:[#allocation2 + $0x4e8] sm:$0xf]
        %v2480 = vld [vmem:[#allocation2 + $0x4ec] sm:$0xf]
        %v2481 = vld [vmem:[#allocation2 + $0x4f0] sm:$0xf]
        %v2482 = vld [vmem:[#allocation2 + $0x4f4] sm:$0xf]
        %v2483 = vld [vmem:[#allocation2 + $0x4f8] sm:$0xf]
        %v2484 = vld [vmem:[#allocation2 + $0x4fc] sm:$0xf]
        %v2485 = vld [vmem:[#allocation2 + $0x500] sm:$0xf]
        %v2486 = vld [vmem:[#allocation2 + $0x504] sm:$0xf]
        %v2487 = vld [vmem:[#allocation2 + $0x508] sm:$0xf]
        %v2488 = vld [vmem:[#allocation2 + $0x50c] sm:$0xf]
        %v2489 = vld [vmem:[#allocation2 + $0x510] sm:$0xf]
        %v2490 = vld [vmem:[#allocation2 + $0x514] sm:$0xf]
        %v2491 = vld [vmem:[#allocation2 + $0x518] sm:$0xf]
        %v2492 = vld [vmem:[#allocation2 + $0x51c] sm:$0xf]
        %v2493 = vld [vmem:[#allocation2 + $0x520] sm:$0xf]
        %v2494 = vld [vmem:[#allocation2 + $0x524] sm:$0xf]
        %v2495 = vld [vmem:[#allocation2 + $0x528] sm:$0xf]
        %v2496 = vld [vmem:[#allocation2 + $0x52c] sm:$0xf]
        %v2497 = vld [vmem:[#allocation2 + $0x530] sm:$0xf]
        %v2498 = vld [vmem:[#allocation2 + $0x534] sm:$0xf]
        %v2499 = vld [vmem:[#allocation2 + $0x538] sm:$0xf]
        %v2500 = vld [vmem:[#allocation2 + $0x53c] sm:$0xf]
        %v2501 = vlaneseq
        %v2502 = vshrl.u32 %v2501, 7
        %v2503 = vsub.s32 5, %v2502
        %v2504 = vrot.slane %v489, %v2503
        %v2601 = vunpack.c.l.b16 %v2405
        %v2602 = vunpack.c.l.b16 %v2406
        %v2603 = vunpack.c.l.b16 %v2407
        %v2604 = vunpack.c.l.b16 %v2408
        %v2605 = vunpack.c.l.b16 %v2409
        %v2606 = vunpack.c.l.b16 %v2410
        %v2607 = vunpack.c.l.b16 %v2411
        %v2608 = vunpack.c.l.b16 %v2412
        %v2609 = vunpack.c.l.b16 %v2413
        %v2610 = vunpack.c.l.b16 %v2414
        %v2611 = vunpack.c.l.b16 %v2415
        %v2612 = vunpack.c.l.b16 %v2416
        %v2613 = vunpack.c.l.b16 %v2417
        %v2614 = vunpack.c.l.b16 %v2418
        %v2615 = vunpack.c.l.b16 %v2419
        %v2616 = vunpack.c.l.b16 %v2420
        %v2617 = vunpack.c.l.b16 %v2421
        %v2618 = vunpack.c.l.b16 %v2422
        %v2619 = vunpack.c.l.b16 %v2423
        %v2620 = vunpack.c.l.b16 %v2424
        %v2621 = vunpack.c.l.b16 %v2425
        %v2622 = vunpack.c.l.b16 %v2426
        %v2623 = vunpack.c.l.b16 %v2427
        %v2624 = vunpack.c.l.b16 %v2428
        %v2625 = vunpack.c.l.b16 %v2429
        %v2626 = vunpack.c.l.b16 %v2430
        %v2627 = vunpack.c.l.b16 %v2431
        %v2628 = vunpack.c.l.b16 %v2432
        %v2629 = vunpack.c.l.b16 %v2433
        %v2630 = vunpack.c.l.b16 %v2434
        %v2631 = vunpack.c.l.b16 %v2435
        %v2632 = vunpack.c.l.b16 %v2436
        %v2633 = vunpack.c.l.b16 %v2437
        %v2634 = vunpack.c.l.b16 %v2438
        %v2635 = vunpack.c.l.b16 %v2439
        %v2636 = vunpack.c.l.b16 %v2440
        %v2637 = vunpack.c.l.b16 %v2441
        %v2638 = vunpack.c.l.b16 %v2442
        %v2639 = vunpack.c.l.b16 %v2443
        %v2640 = vunpack.c.l.b16 %v2444
        %v2641 = vunpack.c.l.b16 %v2445
        %v2642 = vunpack.c.l.b16 %v2446
        %v2643 = vunpack.c.l.b16 %v2447
        %v2644 = vunpack.c.l.b16 %v2448
        %v2645 = vunpack.c.l.b16 %v2449
        %v2646 = vunpack.c.l.b16 %v2450
        %v2647 = vunpack.c.l.b16 %v2451
        %v2648 = vunpack.c.l.b16 %v2452
        %v2649 = vunpack.c.l.b16 %v2453
        %v2650 = vunpack.c.l.b16 %v2454
        %v2651 = vunpack.c.l.b16 %v2455
        %v2652 = vunpack.c.l.b16 %v2456
        %v2653 = vunpack.c.l.b16 %v2457
        %v2654 = vunpack.c.l.b16 %v2458
        %v2655 = vunpack.c.l.b16 %v2459
        %v2656 = vunpack.c.l.b16 %v2460
        %v2657 = vunpack.c.l.b16 %v2461
        %v2658 = vunpack.c.l.b16 %v2462
        %v2659 = vunpack.c.l.b16 %v2463
        %v2660 = vunpack.c.l.b16 %v2464
        %v2661 = vunpack.c.l.b16 %v2465
        %v2662 = vunpack.c.l.b16 %v2466
        %v2663 = vunpack.c.l.b16 %v2467
        %v2664 = vunpack.c.l.b16 %v2468
        %v2665 = vunpack.c.l.b16 %v2469
        %v2666 = vunpack.c.l.b16 %v2470
        %v2667 = vunpack.c.l.b16 %v2471
        %v2668 = vunpack.c.l.b16 %v2472
        %v2669 = vunpack.c.l.b16 %v2473
        %v2670 = vunpack.c.l.b16 %v2474
        %v2671 = vunpack.c.l.b16 %v2475
        %v2672 = vunpack.c.l.b16 %v2476
        %v2673 = vunpack.c.l.b16 %v2477
        %v2674 = vunpack.c.l.b16 %v2478
        %v2675 = vunpack.c.l.b16 %v2479
        %v2676 = vunpack.c.l.b16 %v2480
        %v2677 = vunpack.c.l.b16 %v2481
        %v2678 = vunpack.c.l.b16 %v2482
        %v2679 = vunpack.c.l.b16 %v2483
        %v2680 = vunpack.c.l.b16 %v2484
        %v2681 = vunpack.c.l.b16 %v2485
        %v2682 = vunpack.c.l.b16 %v2486
        %v2683 = vunpack.c.l.b16 %v2487
        %v2684 = vunpack.c.l.b16 %v2488
        %v2685 = vunpack.c.l.b16 %v2489
        %v2686 = vunpack.c.l.b16 %v2490
        %v2687 = vunpack.c.l.b16 %v2491
        %v2688 = vunpack.c.l.b16 %v2492
        %v2689 = vunpack.c.l.b16 %v2493
        %v2690 = vunpack.c.l.b16 %v2494
        %v2691 = vunpack.c.l.b16 %v2495
        %v2692 = vunpack.c.l.b16 %v2496
        %v2693 = vunpack.c.l.b16 %v2497
        %v2694 = vunpack.c.l.b16 %v2498
        %v2695 = vunpack.c.l.b16 %v2499
        %v2696 = vunpack.c.l.b16 %v2500
        %v2697 = vpack.c.b16 %v2602, %v2601
        %v2698 = vpack.c.b16 %v2604, %v2603
        %v2699 = vpack.c.b16 %v2606, %v2605
        %v2700 = vpack.c.b16 %v2608, %v2607
        %v2701 = vpack.c.b16 %v2610, %v2609
        %v2702 = vpack.c.b16 %v2612, %v2611
        %v2703 = vpack.c.b16 %v2614, %v2613
        %v2704 = vpack.c.b16 %v2616, %v2615
        %v2705 = vpack.c.b16 %v2618, %v2617
        %v2706 = vpack.c.b16 %v2620, %v2619
        %v2707 = vpack.c.b16 %v2622, %v2621
        %v2708 = vpack.c.b16 %v2624, %v2623
        %v2709 = vpack.c.b16 %v2626, %v2625
        %v2710 = vpack.c.b16 %v2628, %v2627
        %v2711 = vpack.c.b16 %v2630, %v2629
        %v2712 = vpack.c.b16 %v2632, %v2631
        %v2713 = vpack.c.b16 %v2634, %v2633
        %v2714 = vpack.c.b16 %v2636, %v2635
        %v2715 = vpack.c.b16 %v2638, %v2637
        %v2716 = vpack.c.b16 %v2640, %v2639
        %v2717 = vpack.c.b16 %v2642, %v2641
        %v2718 = vpack.c.b16 %v2644, %v2643
        %v2719 = vpack.c.b16 %v2646, %v2645
        %v2720 = vpack.c.b16 %v2648, %v2647
        %v2721 = vpack.c.b16 %v2650, %v2649
        %v2722 = vpack.c.b16 %v2652, %v2651
        %v2723 = vpack.c.b16 %v2654, %v2653
        %v2724 = vpack.c.b16 %v2656, %v2655
        %v2725 = vpack.c.b16 %v2658, %v2657
        %v2726 = vpack.c.b16 %v2660, %v2659
        %v2727 = vpack.c.b16 %v2662, %v2661
        %v2728 = vpack.c.b16 %v2664, %v2663
        %v2729 = vpack.c.b16 %v2666, %v2665
        %v2730 = vpack.c.b16 %v2668, %v2667
        %v2731 = vpack.c.b16 %v2670, %v2669
        %v2732 = vpack.c.b16 %v2672, %v2671
        %v2733 = vpack.c.b16 %v2674, %v2673
        %v2734 = vpack.c.b16 %v2676, %v2675
        %v2735 = vpack.c.b16 %v2678, %v2677
        %v2736 = vpack.c.b16 %v2680, %v2679
        %v2737 = vpack.c.b16 %v2682, %v2681
        %v2738 = vpack.c.b16 %v2684, %v2683
        %v2739 = vpack.c.b16 %v2686, %v2685
        %v2740 = vpack.c.b16 %v2688, %v2687
        %v2741 = vpack.c.b16 %v2690, %v2689
        %v2742 = vpack.c.b16 %v2692, %v2691
        %v2743 = vpack.c.b16 %v2694, %v2693
        %v2744 = vpack.c.b16 %v2696, %v2695
        %2793 = vmatprep.subr.bf16.mxu0 0
        %2794 = vmatpush1.bf16.msra.mxu0 %v2697
        %2795 = vmatprep.subr.bf16.mxu0 0
        %2796 = vmatpush1.bf16.msra.mxu0 %v2698
        %2797 = vmatprep.subr.bf16.mxu0 0
        %2798 = vmatpush1.bf16.msra.mxu0 %v2699
        %2799 = vmatprep.subr.bf16.mxu0 0
        %2800 = vmatpush1.bf16.msra.mxu0 %v2700
        %2801 = vmatprep.subr.bf16.mxu0 0
        %2802 = vmatpush1.bf16.msra.mxu0 %v2701
        %2803 = vmatprep.subr.bf16.mxu0 0
        %2804 = vmatpush1.bf16.msra.mxu0 %v2702
        %2805 = vmatprep.subr.bf16.mxu0 0
        %2806 = vmatpush1.bf16.msra.mxu0 %v2703
        %2807 = vmatprep.subr.bf16.mxu0 0
        %2808 = vmatpush1.bf16.msra.mxu0 %v2704
        %2809 = vmatprep.subr.bf16.mxu0 0
        %2810 = vmatpush1.bf16.msra.mxu0 %v2705
        %2811 = vmatprep.subr.bf16.mxu0 0
        %2812 = vmatpush1.bf16.msra.mxu0 %v2706
        %2813 = vmatprep.subr.bf16.mxu0 0
        %2814 = vmatpush1.bf16.msra.mxu0 %v2707
        %2815 = vmatprep.subr.bf16.mxu0 0
        %2816 = vmatpush1.bf16.msra.mxu0 %v2708
        %2817 = vmatprep.subr.bf16.mxu0 0
        %2818 = vmatpush1.bf16.msra.mxu0 %v2709
        %2819 = vmatprep.subr.bf16.mxu0 0
        %2820 = vmatpush1.bf16.msra.mxu0 %v2710
        %2821 = vmatprep.subr.bf16.mxu0 0
        %2822 = vmatpush1.bf16.msra.mxu0 %v2711
        %2823 = vmatprep.subr.bf16.mxu0 0
        %2824 = vmatpush1.bf16.msra.mxu0 %v2712
        %2825 = vmatprep.mubr.bf16.mxu0 %v450
        %2826 = vmatmul.mubr.bf16.gmra.mrb[0].mxu0 %v427
        %v2827 = vpop.f32.mrb[0].mxu0
        %v2828 = vadd.f32 %v2504, %v2827
        %v2829 = vpop.f32.mrb[0].mxu0
        %v2830 = vpop.f32.mrb[0].mxu0
        %v2831 = vadd.f32 %v2504, %v2830
        %v2832 = vpop.f32.mrb[0].mxu0
        %2833 = vdwg.mxu0
        %2834 = vmatprep.subr.bf16.mxu0 0
        %2835 = vmatpush1.bf16.msra.mxu0 %v2713
        %2836 = vmatprep.subr.bf16.mxu0 0
        %2837 = vmatpush1.bf16.msra.mxu0 %v2714
        %2838 = vmatprep.subr.bf16.mxu0 0
        %2839 = vmatpush1.bf16.msra.mxu0 %v2715
        %2840 = vmatprep.subr.bf16.mxu0 0
        %2841 = vmatpush1.bf16.msra.mxu0 %v2716
        %2842 = vmatprep.subr.bf16.mxu0 0
        %2843 = vmatpush1.bf16.msra.mxu0 %v2717
        %2844 = vmatprep.subr.bf16.mxu0 0
        %2845 = vmatpush1.bf16.msra.mxu0 %v2718
        %2846 = vmatprep.subr.bf16.mxu0 0
        %2847 = vmatpush1.bf16.msra.mxu0 %v2719
        %2848 = vmatprep.subr.bf16.mxu0 0
        %2849 = vmatpush1.bf16.msra.mxu0 %v2720
        %2850 = vmatprep.subr.bf16.mxu0 0
        %2851 = vmatpush1.bf16.msra.mxu0 %v2721
        %2852 = vmatprep.subr.bf16.mxu0 0
        %2853 = vmatpush1.bf16.msra.mxu0 %v2722
        %2854 = vmatprep.subr.bf16.mxu0 0
        %2855 = vmatpush1.bf16.msra.mxu0 %v2723
        %2856 = vmatprep.subr.bf16.mxu0 0
        %2857 = vmatpush1.bf16.msra.mxu0 %v2724
        %2858 = vmatprep.subr.bf16.mxu0 0
        %2859 = vmatpush1.bf16.msra.mxu0 %v2725
        %2860 = vmatprep.subr.bf16.mxu0 0
        %2861 = vmatpush1.bf16.msra.mxu0 %v2726
        %2862 = vmatprep.subr.bf16.mxu0 0
        %2863 = vmatpush1.bf16.msra.mxu0 %v2727
        %2864 = vmatprep.subr.bf16.mxu0 0
        %2865 = vmatpush1.bf16.msra.mxu0 %v2728
        %2866 = vmatprep.mubr.bf16.mxu0 %v468
        %2867 = vmatmul.mubr.bf16.gmra.mrb[0].mxu0 %v457
        %v2868 = vpop.f32.mrb[0].mxu0
        %v2869 = vadd.f32 %v2828, %v2868
        %v2870 = vpop.f32.mrb[0].mxu0
        %v2871 = vpop.f32.mrb[0].mxu0
        %v2872 = vadd.f32 %v2831, %v2871
        %v2873 = vpop.f32.mrb[0].mxu0
        %2874 = vdwg.mxu0
        %2875 = vmatprep.subr.bf16.mxu0 0
        %2876 = vmatpush1.bf16.msra.mxu0 %v2729
        %2877 = vmatprep.subr.bf16.mxu0 0
        %2878 = vmatpush1.bf16.msra.mxu0 %v2730
        %2879 = vmatprep.subr.bf16.mxu0 0
        %2880 = vmatpush1.bf16.msra.mxu0 %v2731
        %2881 = vmatprep.subr.bf16.mxu0 0
        %2882 = vmatpush1.bf16.msra.mxu0 %v2732
        %2883 = vmatprep.subr.bf16.mxu0 0
        %2884 = vmatpush1.bf16.msra.mxu0 %v2733
        %2885 = vmatprep.subr.bf16.mxu0 0
        %2886 = vmatpush1.bf16.msra.mxu0 %v2734
        %2887 = vmatprep.subr.bf16.mxu0 0
        %2888 = vmatpush1.bf16.msra.mxu0 %v2735
        %2889 = vmatprep.subr.bf16.mxu0 0
        %2890 = vmatpush1.bf16.msra.mxu0 %v2736
        %2891 = vmatprep.subr.bf16.mxu0 0
        %2892 = vmatpush1.bf16.msra.mxu0 %v2737
        %2893 = vmatprep.subr.bf16.mxu0 0
        %2894 = vmatpush1.bf16.msra.mxu0 %v2738
        %2895 = vmatprep.subr.bf16.mxu0 0
        %2896 = vmatpush1.bf16.msra.mxu0 %v2739
        %2897 = vmatprep.subr.bf16.mxu0 0
        %2898 = vmatpush1.bf16.msra.mxu0 %v2740
        %2899 = vmatprep.subr.bf16.mxu0 0
        %2900 = vmatpush1.bf16.msra.mxu0 %v2741
        %2901 = vmatprep.subr.bf16.mxu0 0
        %2902 = vmatpush1.bf16.msra.mxu0 %v2742
        %2903 = vmatprep.subr.bf16.mxu0 0
        %2904 = vmatpush1.bf16.msra.mxu0 %v2743
        %2905 = vmatprep.subr.bf16.mxu0 0
        %2906 = vmatpush1.bf16.msra.mxu0 %v2744
        %2907 = vmatprep.mubr.bf16.mxu0 %v482
        %2908 = vmatmul.mubr.bf16.gmra.mrb[0].mxu0 %v473
        %v2909 = vpop.f32.mrb[0].mxu0
        %v2910 = vadd.f32 %v2869, %v2909
        %v2911 = vpop.f32.mrb[0].mxu0
        %v2912 = vpop.f32.mrb[0].mxu0
        %v2913 = vadd.f32 %v2872, %v2912
        %v2914 = vpop.f32.mrb[0].mxu0
        %2915 = vdwg.mxu0
        %vm2916 = vcmp.ge.f32.partialorder %v2910, 0.0
        %vm2917 = vcmp.ge.f32.partialorder %v2913, 0.0
        %v2918 = vmul.f32 %v2910, 0.2
        %v2919 = vmul.f32 %v2913, 0.2
        %v2920 = vsel %vm2916, %v2910, %v2918
        %v2921 = vsel %vm2917, %v2913, %v2919
        %v2922 = vpack.c.bf16 %v2921, %v2920
        %v2923 = vld [vmem:[#allocation4 + $0x140] sm:$0xf]
        %v2924 = vld [vmem:[#allocation4 + $0x144] sm:$0xf]
        %v2925 = vld [vmem:[#allocation4 + $0x148] sm:$0xf]
        %v2926 = vld [vmem:[#allocation4 + $0x14c] sm:$0xf]
        %v2927 = vld [vmem:[#allocation4 + $0x150] sm:$0xf]
        %v2928 = vld [vmem:[#allocation4 + $0x154] sm:$0xf]
        %v2929 = vld [vmem:[#allocation4 + $0x158] sm:$0xf]
        %v2930 = vld [vmem:[#allocation4 + $0x15c] sm:$0xf]
        %v2931 = vld [vmem:[#allocation4 + $0x160] sm:$0xf]
        %v2932 = vld [vmem:[#allocation4 + $0x164] sm:$0xf]
        %v2933 = vld [vmem:[#allocation4 + $0x168] sm:$0xf]
        %v2934 = vld [vmem:[#allocation4 + $0x16c] sm:$0xf]
        %v2935 = vld [vmem:[#allocation4 + $0x170] sm:$0xf]
        %v2936 = vld [vmem:[#allocation4 + $0x174] sm:$0xf]
        %v2937 = vld [vmem:[#allocation4 + $0x178] sm:$0xf]
        %v2938 = vld [vmem:[#allocation4 + $0x17c] sm:$0xf]
        %v2955 = vunpack.c.l.b16 %v2923
        %v2956 = vunpack.c.l.b16 %v2924
        %v2957 = vunpack.c.l.b16 %v2925
        %v2958 = vunpack.c.l.b16 %v2926
        %v2959 = vunpack.c.l.b16 %v2927
        %v2960 = vunpack.c.l.b16 %v2928
        %v2961 = vunpack.c.l.b16 %v2929
        %v2962 = vunpack.c.l.b16 %v2930
        %v2963 = vunpack.c.l.b16 %v2931
        %v2964 = vunpack.c.l.b16 %v2932
        %v2965 = vunpack.c.l.b16 %v2933
        %v2966 = vunpack.c.l.b16 %v2934
        %v2967 = vunpack.c.l.b16 %v2935
        %v2968 = vunpack.c.l.b16 %v2936
        %v2969 = vunpack.c.l.b16 %v2937
        %v2970 = vunpack.c.l.b16 %v2938
        %v2971 = vpack.c.b16 %v2956, %v2955
        %v2972 = vpack.c.b16 %v2958, %v2957
        %v2973 = vpack.c.b16 %v2960, %v2959
        %v2974 = vpack.c.b16 %v2962, %v2961
        %v2975 = vpack.c.b16 %v2964, %v2963
        %v2976 = vpack.c.b16 %v2966, %v2965
        %v2977 = vpack.c.b16 %v2968, %v2967
        %v2978 = vpack.c.b16 %v2970, %v2969
        %2987 = vmatprep.subr.bf16.mxu0 0
        %2988 = vmatpush1.bf16.msra.mxu0 %v2971
        %2989 = vmatprep.subr.bf16.mxu0 0
        %2990 = vmatpush1.bf16.msra.mxu0 %v2972
        %2991 = vmatprep.subr.bf16.mxu0 0
        %2992 = vmatpush1.bf16.msra.mxu0 %v2973
        %2993 = vmatprep.subr.bf16.mxu0 0
        %2994 = vmatpush1.bf16.msra.mxu0 %v2974
        %2995 = vmatprep.subr.bf16.mxu0 0
        %2996 = vmatpush1.bf16.msra.mxu0 %v2975
        %2997 = vmatprep.subr.bf16.mxu0 0
        %2998 = vmatpush1.bf16.msra.mxu0 %v2976
        %2999 = vmatprep.subr.bf16.mxu0 0
        %3000 = vmatpush1.bf16.msra.mxu0 %v2977
        %3001 = vmatprep.subr.bf16.mxu0 0
        %3002 = vmatpush1.bf16.msra.mxu0 %v2978
        %3003 = vmatprep.subr.bf16.mxu0 0
        %3004 = vmatpush1.bf16.msra.mxu0 0
        %3005 = vmatprep.subr.bf16.mxu0 0
        %3006 = vmatpush1.bf16.msra.mxu0 0
        %3007 = vmatprep.subr.bf16.mxu0 0
        %3008 = vmatpush1.bf16.msra.mxu0 0
        %3009 = vmatprep.subr.bf16.mxu0 0
        %3010 = vmatpush1.bf16.msra.mxu0 0
        %3011 = vmatprep.subr.bf16.mxu0 0
        %3012 = vmatpush1.bf16.msra.mxu0 0
        %3013 = vmatprep.subr.bf16.mxu0 0
        %3014 = vmatpush1.bf16.msra.mxu0 0
        %3015 = vmatprep.subr.bf16.mxu0 0
        %3016 = vmatpush1.bf16.msra.mxu0 0
        %3017 = vmatprep.subr.bf16.mxu0 0
        %3018 = vmatpush1.bf16.msra.mxu0 0
        %3019 = vmatprep.mubr.bf16.mxu0 0
        %3020 = vmatmul.mubr.bf16.gmra.mrb[0].mxu0 %v2922
        %v3021 = vpop.f32.mrb[0].mxu0
        %v3022 = vadd.f32 0.0, %v3021
        %v3023 = vpop.f32.mrb[0].mxu0
        %v3024 = vpop.f32.mrb[0].mxu0
        %v3025 = vadd.f32 0.0, %v3024
        %v3026 = vpop.f32.mrb[0].mxu0
        %3027 = vdwg.mxu0
        %v3028 = vadd.f32 %v2403, %v3022
        %v3029 = vadd.f32 %v2404, %v3025
        %v3030 = vld [vmem:[#allocation2 + $0x540] sm:$0xf]
        %v3031 = vld [vmem:[#allocation2 + $0x544] sm:$0xf]
        %v3032 = vld [vmem:[#allocation2 + $0x548] sm:$0xf]
        %v3033 = vld [vmem:[#allocation2 + $0x54c] sm:$0xf]
        %v3034 = vld [vmem:[#allocation2 + $0x550] sm:$0xf]
        %v3035 = vld [vmem:[#allocation2 + $0x554] sm:$0xf]
        %v3036 = vld [vmem:[#allocation2 + $0x558] sm:$0xf]
        %v3037 = vld [vmem:[#allocation2 + $0x55c] sm:$0xf]
        %v3038 = vld [vmem:[#allocation2 + $0x560] sm:$0xf]
        %v3039 = vld [vmem:[#allocation2 + $0x564] sm:$0xf]
        %v3040 = vld [vmem:[#allocation2 + $0x568] sm:$0xf]
        %v3041 = vld [vmem:[#allocation2 + $0x56c] sm:$0xf]
        %v3042 = vld [vmem:[#allocation2 + $0x570] sm:$0xf]
        %v3043 = vld [vmem:[#allocation2 + $0x574] sm:$0xf]
        %v3044 = vld [vmem:[#allocation2 + $0x578] sm:$0xf]
        %v3045 = vld [vmem:[#allocation2 + $0x57c] sm:$0xf]
        %v3046 = vld [vmem:[#allocation2 + $0x580] sm:$0xf]
        %v3047 = vld [vmem:[#allocation2 + $0x584] sm:$0xf]
        %v3048 = vld [vmem:[#allocation2 + $0x588] sm:$0xf]
        %v3049 = vld [vmem:[#allocation2 + $0x58c] sm:$0xf]
        %v3050 = vld [vmem:[#allocation2 + $0x590] sm:$0xf]
        %v3051 = vld [vmem:[#allocation2 + $0x594] sm:$0xf]
        %v3052 = vld [vmem:[#allocation2 + $0x598] sm:$0xf]
        %v3053 = vld [vmem:[#allocation2 + $0x59c] sm:$0xf]
        %v3054 = vld [vmem:[#allocation2 + $0x5a0] sm:$0xf]
        %v3055 = vld [vmem:[#allocation2 + $0x5a4] sm:$0xf]
        %v3056 = vld [vmem:[#allocation2 + $0x5a8] sm:$0xf]
        %v3057 = vld [vmem:[#allocation2 + $0x5ac] sm:$0xf]
        %v3058 = vld [vmem:[#allocation2 + $0x5b0] sm:$0xf]
        %v3059 = vld [vmem:[#allocation2 + $0x5b4] sm:$0xf]
        %v3060 = vld [vmem:[#allocation2 + $0x5b8] sm:$0xf]
        %v3061 = vld [vmem:[#allocation2 + $0x5bc] sm:$0xf]
        %v3062 = vld [vmem:[#allocation2 + $0x5c0] sm:$0xf]
        %v3063 = vld [vmem:[#allocation2 + $0x5c4] sm:$0xf]
        %v3064 = vld [vmem:[#allocation2 + $0x5c8] sm:$0xf]
        %v3065 = vld [vmem:[#allocation2 + $0x5cc] sm:$0xf]
        %v3066 = vld [vmem:[#allocation2 + $0x5d0] sm:$0xf]
        %v3067 = vld [vmem:[#allocation2 + $0x5d4] sm:$0xf]
        %v3068 = vld [vmem:[#allocation2 + $0x5d8] sm:$0xf]
        %v3069 = vld [vmem:[#allocation2 + $0x5dc] sm:$0xf]
        %v3070 = vld [vmem:[#allocation2 + $0x5e0] sm:$0xf]
        %v3071 = vld [vmem:[#allocation2 + $0x5e4] sm:$0xf]
        %v3072 = vld [vmem:[#allocation2 + $0x5e8] sm:$0xf]
        %v3073 = vld [vmem:[#allocation2 + $0x5ec] sm:$0xf]
        %v3074 = vld [vmem:[#allocation2 + $0x5f0] sm:$0xf]
        %v3075 = vld [vmem:[#allocation2 + $0x5f4] sm:$0xf]
        %v3076 = vld [vmem:[#allocation2 + $0x5f8] sm:$0xf]
        %v3077 = vld [vmem:[#allocation2 + $0x5fc] sm:$0xf]
        %v3078 = vld [vmem:[#allocation2 + $0x600] sm:$0xf]
        %v3079 = vld [vmem:[#allocation2 + $0x604] sm:$0xf]
        %v3080 = vld [vmem:[#allocation2 + $0x608] sm:$0xf]
        %v3081 = vld [vmem:[#allocation2 + $0x60c] sm:$0xf]
        %v3082 = vld [vmem:[#allocation2 + $0x610] sm:$0xf]
        %v3083 = vld [vmem:[#allocation2 + $0x614] sm:$0xf]
        %v3084 = vld [vmem:[#allocation2 + $0x618] sm:$0xf]
        %v3085 = vld [vmem:[#allocation2 + $0x61c] sm:$0xf]
        %v3086 = vld [vmem:[#allocation2 + $0x620] sm:$0xf]
        %v3087 = vld [vmem:[#allocation2 + $0x624] sm:$0xf]
        %v3088 = vld [vmem:[#allocation2 + $0x628] sm:$0xf]
        %v3089 = vld [vmem:[#allocation2 + $0x62c] sm:$0xf]
        %v3090 = vld [vmem:[#allocation2 + $0x630] sm:$0xf]
        %v3091 = vld [vmem:[#allocation2 + $0x634] sm:$0xf]
        %v3092 = vld [vmem:[#allocation2 + $0x638] sm:$0xf]
        %v3093 = vld [vmem:[#allocation2 + $0x63c] sm:$0xf]
        %v3094 = vld [vmem:[#allocation2 + $0x640] sm:$0xf]
        %v3095 = vld [vmem:[#allocation2 + $0x644] sm:$0xf]
        %v3096 = vld [vmem:[#allocation2 + $0x648] sm:$0xf]
        %v3097 = vld [vmem:[#allocation2 + $0x64c] sm:$0xf]
        %v3098 = vld [vmem:[#allocation2 + $0x650] sm:$0xf]
        %v3099 = vld [vmem:[#allocation2 + $0x654] sm:$0xf]
        %v3100 = vld [vmem:[#allocation2 + $0x658] sm:$0xf]
        %v3101 = vld [vmem:[#allocation2 + $0x65c] sm:$0xf]
        %v3102 = vld [vmem:[#allocation2 + $0x660] sm:$0xf]
        %v3103 = vld [vmem:[#allocation2 + $0x664] sm:$0xf]
        %v3104 = vld [vmem:[#allocation2 + $0x668] sm:$0xf]
        %v3105 = vld [vmem:[#allocation2 + $0x66c] sm:$0xf]
        %v3106 = vld [vmem:[#allocation2 + $0x670] sm:$0xf]
        %v3107 = vld [vmem:[#allocation2 + $0x674] sm:$0xf]
        %v3108 = vld [vmem:[#allocation2 + $0x678] sm:$0xf]
        %v3109 = vld [vmem:[#allocation2 + $0x67c] sm:$0xf]
        %v3110 = vld [vmem:[#allocation2 + $0x680] sm:$0xf]
        %v3111 = vld [vmem:[#allocation2 + $0x684] sm:$0xf]
        %v3112 = vld [vmem:[#allocation2 + $0x688] sm:$0xf]
        %v3113 = vld [vmem:[#allocation2 + $0x68c] sm:$0xf]
        %v3114 = vld [vmem:[#allocation2 + $0x690] sm:$0xf]
        %v3115 = vld [vmem:[#allocation2 + $0x694] sm:$0xf]
        %v3116 = vld [vmem:[#allocation2 + $0x698] sm:$0xf]
        %v3117 = vld [vmem:[#allocation2 + $0x69c] sm:$0xf]
        %v3118 = vld [vmem:[#allocation2 + $0x6a0] sm:$0xf]
        %v3119 = vld [vmem:[#allocation2 + $0x6a4] sm:$0xf]
        %v3120 = vld [vmem:[#allocation2 + $0x6a8] sm:$0xf]
        %v3121 = vld [vmem:[#allocation2 + $0x6ac] sm:$0xf]
        %v3122 = vld [vmem:[#allocation2 + $0x6b0] sm:$0xf]
        %v3123 = vld [vmem:[#allocation2 + $0x6b4] sm:$0xf]
        %v3124 = vld [vmem:[#allocation2 + $0x6b8] sm:$0xf]
        %v3125 = vld [vmem:[#allocation2 + $0x6bc] sm:$0xf]
        %v3126 = vld [vmem:[#allocation2 + $0x6c0] sm:$0xf]
        %v3127 = vld [vmem:[#allocation2 + $0x6c4] sm:$0xf]
        %v3128 = vld [vmem:[#allocation2 + $0x6c8] sm:$0xf]
        %v3129 = vld [vmem:[#allocation2 + $0x6cc] sm:$0xf]
        %v3130 = vld [vmem:[#allocation2 + $0x6d0] sm:$0xf]
        %v3131 = vld [vmem:[#allocation2 + $0x6d4] sm:$0xf]
        %v3132 = vld [vmem:[#allocation2 + $0x6d8] sm:$0xf]
        %v3133 = vld [vmem:[#allocation2 + $0x6dc] sm:$0xf]
        %v3134 = vld [vmem:[#allocation2 + $0x6e0] sm:$0xf]
        %v3135 = vld [vmem:[#allocation2 + $0x6e4] sm:$0xf]
        %v3136 = vld [vmem:[#allocation2 + $0x6e8] sm:$0xf]
        %v3137 = vld [vmem:[#allocation2 + $0x6ec] sm:$0xf]
        %v3138 = vld [vmem:[#allocation2 + $0x6f0] sm:$0xf]
        %v3139 = vld [vmem:[#allocation2 + $0x6f4] sm:$0xf]
        %v3140 = vld [vmem:[#allocation2 + $0x6f8] sm:$0xf]
        %v3141 = vld [vmem:[#allocation2 + $0x6fc] sm:$0xf]
        %v3142 = vlaneseq
        %v3143 = vshrl.u32 %v3142, 7
        %v3144 = vsub.s32 6, %v3143
        %v3145 = vrot.slane %v489, %v3144
        %v3258 = vunpack.c.l.b16 %v3030
        %v3259 = vunpack.c.l.b16 %v3031
        %v3260 = vunpack.c.l.b16 %v3032
        %v3261 = vunpack.c.l.b16 %v3033
        %v3262 = vunpack.c.l.b16 %v3034
        %v3263 = vunpack.c.l.b16 %v3035
        %v3264 = vunpack.c.l.b16 %v3036
        %v3265 = vunpack.c.l.b16 %v3037
        %v3266 = vunpack.c.l.b16 %v3038
        %v3267 = vunpack.c.l.b16 %v3039
        %v3268 = vunpack.c.l.b16 %v3040
        %v3269 = vunpack.c.l.b16 %v3041
        %v3270 = vunpack.c.l.b16 %v3042
        %v3271 = vunpack.c.l.b16 %v3043
        %v3272 = vunpack.c.l.b16 %v3044
        %v3273 = vunpack.c.l.b16 %v3045
        %v3274 = vunpack.c.l.b16 %v3046
        %v3275 = vunpack.c.l.b16 %v3047
        %v3276 = vunpack.c.l.b16 %v3048
        %v3277 = vunpack.c.l.b16 %v3049
        %v3278 = vunpack.c.l.b16 %v3050
        %v3279 = vunpack.c.l.b16 %v3051
        %v3280 = vunpack.c.l.b16 %v3052
        %v3281 = vunpack.c.l.b16 %v3053
        %v3282 = vunpack.c.l.b16 %v3054
        %v3283 = vunpack.c.l.b16 %v3055
        %v3284 = vunpack.c.l.b16 %v3056
        %v3285 = vunpack.c.l.b16 %v3057
        %v3286 = vunpack.c.l.b16 %v3058
        %v3287 = vunpack.c.l.b16 %v3059
        %v3288 = vunpack.c.l.b16 %v3060
        %v3289 = vunpack.c.l.b16 %v3061
        %v3290 = vunpack.c.l.b16 %v3062
        %v3291 = vunpack.c.l.b16 %v3063
        %v3292 = vunpack.c.l.b16 %v3064
        %v3293 = vunpack.c.l.b16 %v3065
        %v3294 = vunpack.c.l.b16 %v3066
        %v3295 = vunpack.c.l.b16 %v3067
        %v3296 = vunpack.c.l.b16 %v3068
        %v3297 = vunpack.c.l.b16 %v3069
        %v3298 = vunpack.c.l.b16 %v3070
        %v3299 = vunpack.c.l.b16 %v3071
        %v3300 = vunpack.c.l.b16 %v3072
        %v3301 = vunpack.c.l.b16 %v3073
        %v3302 = vunpack.c.l.b16 %v3074
        %v3303 = vunpack.c.l.b16 %v3075
        %v3304 = vunpack.c.l.b16 %v3076
        %v3305 = vunpack.c.l.b16 %v3077
        %v3306 = vunpack.c.l.b16 %v3078
        %v3307 = vunpack.c.l.b16 %v3079
        %v3308 = vunpack.c.l.b16 %v3080
        %v3309 = vunpack.c.l.b16 %v3081
        %v3310 = vunpack.c.l.b16 %v3082
        %v3311 = vunpack.c.l.b16 %v3083
        %v3312 = vunpack.c.l.b16 %v3084
        %v3313 = vunpack.c.l.b16 %v3085
        %v3314 = vunpack.c.l.b16 %v3086
        %v3315 = vunpack.c.l.b16 %v3087
        %v3316 = vunpack.c.l.b16 %v3088
        %v3317 = vunpack.c.l.b16 %v3089
        %v3318 = vunpack.c.l.b16 %v3090
        %v3319 = vunpack.c.l.b16 %v3091
        %v3320 = vunpack.c.l.b16 %v3092
        %v3321 = vunpack.c.l.b16 %v3093
        %v3322 = vunpack.c.l.b16 %v3094
        %v3323 = vunpack.c.l.b16 %v3095
        %v3324 = vunpack.c.l.b16 %v3096
        %v3325 = vunpack.c.l.b16 %v3097
        %v3326 = vunpack.c.l.b16 %v3098
        %v3327 = vunpack.c.l.b16 %v3099
        %v3328 = vunpack.c.l.b16 %v3100
        %v3329 = vunpack.c.l.b16 %v3101
        %v3330 = vunpack.c.l.b16 %v3102
        %v3331 = vunpack.c.l.b16 %v3103
        %v3332 = vunpack.c.l.b16 %v3104
        %v3333 = vunpack.c.l.b16 %v3105
        %v3334 = vunpack.c.l.b16 %v3106
        %v3335 = vunpack.c.l.b16 %v3107
        %v3336 = vunpack.c.l.b16 %v3108
        %v3337 = vunpack.c.l.b16 %v3109
        %v3338 = vunpack.c.l.b16 %v3110
        %v3339 = vunpack.c.l.b16 %v3111
        %v3340 = vunpack.c.l.b16 %v3112
        %v3341 = vunpack.c.l.b16 %v3113
        %v3342 = vunpack.c.l.b16 %v3114
        %v3343 = vunpack.c.l.b16 %v3115
        %v3344 = vunpack.c.l.b16 %v3116
        %v3345 = vunpack.c.l.b16 %v3117
        %v3346 = vunpack.c.l.b16 %v3118
        %v3347 = vunpack.c.l.b16 %v3119
        %v3348 = vunpack.c.l.b16 %v3120
        %v3349 = vunpack.c.l.b16 %v3121
        %v3350 = vunpack.c.l.b16 %v3122
        %v3351 = vunpack.c.l.b16 %v3123
        %v3352 = vunpack.c.l.b16 %v3124
        %v3353 = vunpack.c.l.b16 %v3125
        %v3354 = vunpack.c.l.b16 %v3126
        %v3355 = vunpack.c.l.b16 %v3127
        %v3356 = vunpack.c.l.b16 %v3128
        %v3357 = vunpack.c.l.b16 %v3129
        %v3358 = vunpack.c.l.b16 %v3130
        %v3359 = vunpack.c.l.b16 %v3131
        %v3360 = vunpack.c.l.b16 %v3132
        %v3361 = vunpack.c.l.b16 %v3133
        %v3362 = vunpack.c.l.b16 %v3134
        %v3363 = vunpack.c.l.b16 %v3135
        %v3364 = vunpack.c.l.b16 %v3136
        %v3365 = vunpack.c.l.b16 %v3137
        %v3366 = vunpack.c.l.b16 %v3138
        %v3367 = vunpack.c.l.b16 %v3139
        %v3368 = vunpack.c.l.b16 %v3140
        %v3369 = vunpack.c.l.b16 %v3141
        %v3370 = vpack.c.b16 %v3259, %v3258
        %v3371 = vpack.c.b16 %v3261, %v3260
        %v3372 = vpack.c.b16 %v3263, %v3262
        %v3373 = vpack.c.b16 %v3265, %v3264
        %v3374 = vpack.c.b16 %v3267, %v3266
        %v3375 = vpack.c.b16 %v3269, %v3268
        %v3376 = vpack.c.b16 %v3271, %v3270
        %v3377 = vpack.c.b16 %v3273, %v3272
        %v3378 = vpack.c.b16 %v3275, %v3274
        %v3379 = vpack.c.b16 %v3277, %v3276
        %v3380 = vpack.c.b16 %v3279, %v3278
        %v3381 = vpack.c.b16 %v3281, %v3280
        %v3382 = vpack.c.b16 %v3283, %v3282
        %v3383 = vpack.c.b16 %v3285, %v3284
        %v3384 = vpack.c.b16 %v3287, %v3286
        %v3385 = vpack.c.b16 %v3289, %v3288
        %v3386 = vpack.c.b16 %v3291, %v3290
        %v3387 = vpack.c.b16 %v3293, %v3292
        %v3388 = vpack.c.b16 %v3295, %v3294
        %v3389 = vpack.c.b16 %v3297, %v3296
        %v3390 = vpack.c.b16 %v3299, %v3298
        %v3391 = vpack.c.b16 %v3301, %v3300
        %v3392 = vpack.c.b16 %v3303, %v3302
        %v3393 = vpack.c.b16 %v3305, %v3304
        %v3394 = vpack.c.b16 %v3307, %v3306
        %v3395 = vpack.c.b16 %v3309, %v3308
        %v3396 = vpack.c.b16 %v3311, %v3310
        %v3397 = vpack.c.b16 %v3313, %v3312
        %v3398 = vpack.c.b16 %v3315, %v3314
        %v3399 = vpack.c.b16 %v3317, %v3316
        %v3400 = vpack.c.b16 %v3319, %v3318
        %v3401 = vpack.c.b16 %v3321, %v3320
        %v3402 = vpack.c.b16 %v3323, %v3322
        %v3403 = vpack.c.b16 %v3325, %v3324
        %v3404 = vpack.c.b16 %v3327, %v3326
        %v3405 = vpack.c.b16 %v3329, %v3328
        %v3406 = vpack.c.b16 %v3331, %v3330
        %v3407 = vpack.c.b16 %v3333, %v3332
        %v3408 = vpack.c.b16 %v3335, %v3334
        %v3409 = vpack.c.b16 %v3337, %v3336
        %v3410 = vpack.c.b16 %v3339, %v3338
        %v3411 = vpack.c.b16 %v3341, %v3340
        %v3412 = vpack.c.b16 %v3343, %v3342
        %v3413 = vpack.c.b16 %v3345, %v3344
        %v3414 = vpack.c.b16 %v3347, %v3346
        %v3415 = vpack.c.b16 %v3349, %v3348
        %v3416 = vpack.c.b16 %v3351, %v3350
        %v3417 = vpack.c.b16 %v3353, %v3352
        %v3418 = vpack.c.b16 %v3355, %v3354
        %v3419 = vpack.c.b16 %v3357, %v3356
        %v3420 = vpack.c.b16 %v3359, %v3358
        %v3421 = vpack.c.b16 %v3361, %v3360
        %v3422 = vpack.c.b16 %v3363, %v3362
        %v3423 = vpack.c.b16 %v3365, %v3364
        %v3424 = vpack.c.b16 %v3367, %v3366
        %v3425 = vpack.c.b16 %v3369, %v3368
        %3482 = vmatprep.subr.bf16.mxu0 0
        %3483 = vmatpush1.bf16.msra.mxu0 %v3370
        %3484 = vmatprep.subr.bf16.mxu0 0
        %3485 = vmatpush1.bf16.msra.mxu0 %v3371
        %3486 = vmatprep.subr.bf16.mxu0 0
        %3487 = vmatpush1.bf16.msra.mxu0 %v3372
        %3488 = vmatprep.subr.bf16.mxu0 0
        %3489 = vmatpush1.bf16.msra.mxu0 %v3373
        %3490 = vmatprep.subr.bf16.mxu0 0
        %3491 = vmatpush1.bf16.msra.mxu0 %v3374
        %3492 = vmatprep.subr.bf16.mxu0 0
        %3493 = vmatpush1.bf16.msra.mxu0 %v3375
        %3494 = vmatprep.subr.bf16.mxu0 0
        %3495 = vmatpush1.bf16.msra.mxu0 %v3376
        %3496 = vmatprep.subr.bf16.mxu0 0
        %3497 = vmatpush1.bf16.msra.mxu0 %v3377
        %3498 = vmatprep.subr.bf16.mxu0 0
        %3499 = vmatpush1.bf16.msra.mxu0 %v3378
        %3500 = vmatprep.subr.bf16.mxu0 0
        %3501 = vmatpush1.bf16.msra.mxu0 %v3379
        %3502 = vmatprep.subr.bf16.mxu0 0
        %3503 = vmatpush1.bf16.msra.mxu0 %v3380
        %3504 = vmatprep.subr.bf16.mxu0 0
        %3505 = vmatpush1.bf16.msra.mxu0 %v3381
        %3506 = vmatprep.subr.bf16.mxu0 0
        %3507 = vmatpush1.bf16.msra.mxu0 %v3382
        %3508 = vmatprep.subr.bf16.mxu0 0
        %3509 = vmatpush1.bf16.msra.mxu0 %v3383
        %3510 = vmatprep.subr.bf16.mxu0 0
        %3511 = vmatpush1.bf16.msra.mxu0 %v3384
        %3512 = vmatprep.subr.bf16.mxu0 0
        %3513 = vmatpush1.bf16.msra.mxu0 %v3385
        %3514 = vmatprep.mubr.bf16.mxu0 %v450
        %3515 = vmatmul.mubr.bf16.gmra.mrb[0].mxu0 %v427
        %v3516 = vpop.f32.mrb[0].mxu0
        %v3517 = vadd.f32 %v3145, %v3516
        %v3518 = vpop.f32.mrb[0].mxu0
        %v3519 = vpop.f32.mrb[0].mxu0
        %v3520 = vadd.f32 %v3145, %v3519
        %v3521 = vpop.f32.mrb[0].mxu0
        %3522 = vdwg.mxu0
        %3523 = vmatprep.subr.bf16.mxu0 0
        %3524 = vmatpush1.bf16.msra.mxu0 %v3386
        %3525 = vmatprep.subr.bf16.mxu0 0
        %3526 = vmatpush1.bf16.msra.mxu0 %v3387
        %3527 = vmatprep.subr.bf16.mxu0 0
        %3528 = vmatpush1.bf16.msra.mxu0 %v3388
        %3529 = vmatprep.subr.bf16.mxu0 0
        %3530 = vmatpush1.bf16.msra.mxu0 %v3389
        %3531 = vmatprep.subr.bf16.mxu0 0
        %3532 = vmatpush1.bf16.msra.mxu0 %v3390
        %3533 = vmatprep.subr.bf16.mxu0 0
        %3534 = vmatpush1.bf16.msra.mxu0 %v3391
        %3535 = vmatprep.subr.bf16.mxu0 0
        %3536 = vmatpush1.bf16.msra.mxu0 %v3392
        %3537 = vmatprep.subr.bf16.mxu0 0
        %3538 = vmatpush1.bf16.msra.mxu0 %v3393
        %3539 = vmatprep.subr.bf16.mxu0 0
        %3540 = vmatpush1.bf16.msra.mxu0 %v3394
        %3541 = vmatprep.subr.bf16.mxu0 0
        %3542 = vmatpush1.bf16.msra.mxu0 %v3395
        %3543 = vmatprep.subr.bf16.mxu0 0
        %3544 = vmatpush1.bf16.msra.mxu0 %v3396
        %3545 = vmatprep.subr.bf16.mxu0 0
        %3546 = vmatpush1.bf16.msra.mxu0 %v3397
        %3547 = vmatprep.subr.bf16.mxu0 0
        %3548 = vmatpush1.bf16.msra.mxu0 %v3398
        %3549 = vmatprep.subr.bf16.mxu0 0
        %3550 = vmatpush1.bf16.msra.mxu0 %v3399
        %3551 = vmatprep.subr.bf16.mxu0 0
        %3552 = vmatpush1.bf16.msra.mxu0 %v3400
        %3553 = vmatprep.subr.bf16.mxu0 0
        %3554 = vmatpush1.bf16.msra.mxu0 %v3401
        %3555 = vmatprep.mubr.bf16.mxu0 %v468
        %3556 = vmatmul.mubr.bf16.gmra.mrb[0].mxu0 %v457
        %v3557 = vpop.f32.mrb[0].mxu0
        %v3558 = vadd.f32 %v3517, %v3557
        %v3559 = vpop.f32.mrb[0].mxu0
        %v3560 = vpop.f32.mrb[0].mxu0
        %v3561 = vadd.f32 %v3520, %v3560
        %v3562 = vpop.f32.mrb[0].mxu0
        %3563 = vdwg.mxu0
        %3564 = vmatprep.subr.bf16.mxu0 0
        %3565 = vmatpush1.bf16.msra.mxu0 %v3402
        %3566 = vmatprep.subr.bf16.mxu0 0
        %3567 = vmatpush1.bf16.msra.mxu0 %v3403
        %3568 = vmatprep.subr.bf16.mxu0 0
        %3569 = vmatpush1.bf16.msra.mxu0 %v3404
        %3570 = vmatprep.subr.bf16.mxu0 0
        %3571 = vmatpush1.bf16.msra.mxu0 %v3405
        %3572 = vmatprep.subr.bf16.mxu0 0
        %3573 = vmatpush1.bf16.msra.mxu0 %v3406
        %3574 = vmatprep.subr.bf16.mxu0 0
        %3575 = vmatpush1.bf16.msra.mxu0 %v3407
        %3576 = vmatprep.subr.bf16.mxu0 0
        %3577 = vmatpush1.bf16.msra.mxu0 %v3408
        %3578 = vmatprep.subr.bf16.mxu0 0
        %3579 = vmatpush1.bf16.msra.mxu0 %v3409
        %3580 = vmatprep.subr.bf16.mxu0 0
        %3581 = vmatpush1.bf16.msra.mxu0 %v3410
        %3582 = vmatprep.subr.bf16.mxu0 0
        %3583 = vmatpush1.bf16.msra.mxu0 %v3411
        %3584 = vmatprep.subr.bf16.mxu0 0
        %3585 = vmatpush1.bf16.msra.mxu0 %v3412
        %3586 = vmatprep.subr.bf16.mxu0 0
        %3587 = vmatpush1.bf16.msra.mxu0 %v3413
        %3588 = vmatprep.subr.bf16.mxu0 0
        %3589 = vmatpush1.bf16.msra.mxu0 %v3414
        %3590 = vmatprep.subr.bf16.mxu0 0
        %3591 = vmatpush1.bf16.msra.mxu0 %v3415
        %3592 = vmatprep.subr.bf16.mxu0 0
        %3593 = vmatpush1.bf16.msra.mxu0 %v3416
        %3594 = vmatprep.subr.bf16.mxu0 0
        %3595 = vmatpush1.bf16.msra.mxu0 %v3417
        %3596 = vmatprep.mubr.bf16.mxu0 %v482
        %3597 = vmatmul.mubr.bf16.gmra.mrb[0].mxu0 %v473
        %v3598 = vpop.f32.mrb[0].mxu0
        %v3599 = vadd.f32 %v3558, %v3598
        %v3600 = vpop.f32.mrb[0].mxu0
        %v3601 = vpop.f32.mrb[0].mxu0
        %v3602 = vadd.f32 %v3561, %v3601
        %v3603 = vpop.f32.mrb[0].mxu0
        %3604 = vdwg.mxu0
        %3605 = vmatprep.subr.bf16.mxu0 0
        %3606 = vmatpush1.bf16.msra.mxu0 %v3418
        %3607 = vmatprep.subr.bf16.mxu0 0
        %3608 = vmatpush1.bf16.msra.mxu0 %v3419
        %3609 = vmatprep.subr.bf16.mxu0 0
        %3610 = vmatpush1.bf16.msra.mxu0 %v3420
        %3611 = vmatprep.subr.bf16.mxu0 0
        %3612 = vmatpush1.bf16.msra.mxu0 %v3421
        %3613 = vmatprep.subr.bf16.mxu0 0
        %3614 = vmatpush1.bf16.msra.mxu0 %v3422
        %3615 = vmatprep.subr.bf16.mxu0 0
        %3616 = vmatpush1.bf16.msra.mxu0 %v3423
        %3617 = vmatprep.subr.bf16.mxu0 0
        %3618 = vmatpush1.bf16.msra.mxu0 %v3424
        %3619 = vmatprep.subr.bf16.mxu0 0
        %3620 = vmatpush1.bf16.msra.mxu0 %v3425
        %3621 = vmatprep.subr.bf16.mxu0 0
        %3622 = vmatpush1.bf16.msra.mxu0 0
        %3623 = vmatprep.subr.bf16.mxu0 0
        %3624 = vmatpush1.bf16.msra.mxu0 0
        %3625 = vmatprep.subr.bf16.mxu0 0
        %3626 = vmatpush1.bf16.msra.mxu0 0
        %3627 = vmatprep.subr.bf16.mxu0 0
        %3628 = vmatpush1.bf16.msra.mxu0 0
        %3629 = vmatprep.subr.bf16.mxu0 0
        %3630 = vmatpush1.bf16.msra.mxu0 0
        %3631 = vmatprep.subr.bf16.mxu0 0
        %3632 = vmatpush1.bf16.msra.mxu0 0
        %3633 = vmatprep.subr.bf16.mxu0 0
        %3634 = vmatpush1.bf16.msra.mxu0 0
        %3635 = vmatprep.subr.bf16.mxu0 0
        %3636 = vmatpush1.bf16.msra.mxu0 0
        %3637 = vmatprep.mubr.bf16.mxu0 0
        %3638 = vmatmul.mubr.bf16.gmra.mrb[0].mxu0 %v487
        %v3639 = vpop.f32.mrb[0].mxu0
        %v3640 = vadd.f32 %v3599, %v3639
        %v3641 = vpop.f32.mrb[0].mxu0
        %v3642 = vpop.f32.mrb[0].mxu0
        %v3643 = vadd.f32 %v3602, %v3642
        %v3644 = vpop.f32.mrb[0].mxu0
        %3645 = vdwg.mxu0
        %vm3646 = vcmp.ge.f32.partialorder %v3640, 0.0
        %vm3647 = vcmp.ge.f32.partialorder %v3643, 0.0
        %v3648 = vmul.f32 %v3640, 0.2
        %v3649 = vmul.f32 %v3643, 0.2
        %v3650 = vsel %vm3646, %v3640, %v3648
        %v3651 = vsel %vm3647, %v3643, %v3649
        %v3652 = vpack.c.bf16 %v3651, %v3650
        %v3653 = vld [vmem:[#allocation4 + $0x180] sm:$0xf]
        %v3654 = vld [vmem:[#allocation4 + $0x184] sm:$0xf]
        %v3655 = vld [vmem:[#allocation4 + $0x188] sm:$0xf]
        %v3656 = vld [vmem:[#allocation4 + $0x18c] sm:$0xf]
        %v3657 = vld [vmem:[#allocation4 + $0x190] sm:$0xf]
        %v3658 = vld [vmem:[#allocation4 + $0x194] sm:$0xf]
        %v3659 = vld [vmem:[#allocation4 + $0x198] sm:$0xf]
        %v3660 = vld [vmem:[#allocation4 + $0x19c] sm:$0xf]
        %v3661 = vld [vmem:[#allocation4 + $0x1a0] sm:$0xf]
        %v3662 = vld [vmem:[#allocation4 + $0x1a4] sm:$0xf]
        %v3663 = vld [vmem:[#allocation4 + $0x1a8] sm:$0xf]
        %v3664 = vld [vmem:[#allocation4 + $0x1ac] sm:$0xf]
        %v3665 = vld [vmem:[#allocation4 + $0x1b0] sm:$0xf]
        %v3666 = vld [vmem:[#allocation4 + $0x1b4] sm:$0xf]
        %v3667 = vld [vmem:[#allocation4 + $0x1b8] sm:$0xf]
        %v3668 = vld [vmem:[#allocation4 + $0x1bc] sm:$0xf]
        %v3685 = vunpack.c.l.b16 %v3653
        %v3686 = vunpack.c.l.b16 %v3654
        %v3687 = vunpack.c.l.b16 %v3655
        %v3688 = vunpack.c.l.b16 %v3656
        %v3689 = vunpack.c.l.b16 %v3657
        %v3690 = vunpack.c.l.b16 %v3658
        %v3691 = vunpack.c.l.b16 %v3659
        %v3692 = vunpack.c.l.b16 %v3660
        %v3693 = vunpack.c.l.b16 %v3661
        %v3694 = vunpack.c.l.b16 %v3662
        %v3695 = vunpack.c.l.b16 %v3663
        %v3696 = vunpack.c.l.b16 %v3664
        %v3697 = vunpack.c.l.b16 %v3665
        %v3698 = vunpack.c.l.b16 %v3666
        %v3699 = vunpack.c.l.b16 %v3667
        %v3700 = vunpack.c.l.b16 %v3668
        %v3701 = vpack.c.b16 %v3686, %v3685
        %v3702 = vpack.c.b16 %v3688, %v3687
        %v3703 = vpack.c.b16 %v3690, %v3689
        %v3704 = vpack.c.b16 %v3692, %v3691
        %v3705 = vpack.c.b16 %v3694, %v3693
        %v3706 = vpack.c.b16 %v3696, %v3695
        %v3707 = vpack.c.b16 %v3698, %v3697
        %v3708 = vpack.c.b16 %v3700, %v3699
        %3717 = vmatprep.subr.bf16.mxu0 0
        %3718 = vmatpush1.bf16.msra.mxu0 %v3701
        %3719 = vmatprep.subr.bf16.mxu0 0
        %3720 = vmatpush1.bf16.msra.mxu0 %v3702
        %3721 = vmatprep.subr.bf16.mxu0 0
        %3722 = vmatpush1.bf16.msra.mxu0 %v3703
        %3723 = vmatprep.subr.bf16.mxu0 0
        %3724 = vmatpush1.bf16.msra.mxu0 %v3704
        %3725 = vmatprep.subr.bf16.mxu0 0
        %3726 = vmatpush1.bf16.msra.mxu0 %v3705
        %3727 = vmatprep.subr.bf16.mxu0 0
        %3728 = vmatpush1.bf16.msra.mxu0 %v3706
        %3729 = vmatprep.subr.bf16.mxu0 0
        %3730 = vmatpush1.bf16.msra.mxu0 %v3707
        %3731 = vmatprep.subr.bf16.mxu0 0
        %3732 = vmatpush1.bf16.msra.mxu0 %v3708
        %3733 = vmatprep.subr.bf16.mxu0 0
        %3734 = vmatpush1.bf16.msra.mxu0 0
        %3735 = vmatprep.subr.bf16.mxu0 0
        %3736 = vmatpush1.bf16.msra.mxu0 0
        %3737 = vmatprep.subr.bf16.mxu0 0
        %3738 = vmatpush1.bf16.msra.mxu0 0
        %3739 = vmatprep.subr.bf16.mxu0 0
        %3740 = vmatpush1.bf16.msra.mxu0 0
        %3741 = vmatprep.subr.bf16.mxu0 0
        %3742 = vmatpush1.bf16.msra.mxu0 0
        %3743 = vmatprep.subr.bf16.mxu0 0
        %3744 = vmatpush1.bf16.msra.mxu0 0
        %3745 = vmatprep.subr.bf16.mxu0 0
        %3746 = vmatpush1.bf16.msra.mxu0 0
        %3747 = vmatprep.subr.bf16.mxu0 0
        %3748 = vmatpush1.bf16.msra.mxu0 0
        %3749 = vmatprep.mubr.bf16.mxu0 0
        %3750 = vmatmul.mubr.bf16.gmra.mrb[0].mxu0 %v3652
        %v3751 = vpop.f32.mrb[0].mxu0
        %v3752 = vadd.f32 0.0, %v3751
        %v3753 = vpop.f32.mrb[0].mxu0
        %v3754 = vpop.f32.mrb[0].mxu0
        %v3755 = vadd.f32 0.0, %v3754
        %v3756 = vpop.f32.mrb[0].mxu0
        %3757 = vdwg.mxu0
        %v3758 = vadd.f32 %v3028, %v3752
        %v3759 = vadd.f32 %v3029, %v3755
        %vm3760 = vcmp.ge.f32.partialorder %v393, 0.0
        %vm3761 = vcmp.ge.f32.partialorder %v394, 0.0
        %v3762 = vmul.f32 %v393, 0.2
        %v3763 = vmul.f32 %v394, 0.2
        %v3764 = vsel %vm3760, %v393, %v3762
        %v3765 = vsel %vm3761, %v394, %v3763
        %v3766 = vpack.c.bf16 %v3765, %v3764
        %v3767 = vld [vmem:[#allocation4 + $0x1c0] sm:$0xf]
        %v3768 = vld [vmem:[#allocation4 + $0x1c4] sm:$0xf]
        %v3769 = vld [vmem:[#allocation4 + $0x1c8] sm:$0xf]
        %v3770 = vld [vmem:[#allocation4 + $0x1cc] sm:$0xf]
        %v3771 = vld [vmem:[#allocation4 + $0x1d0] sm:$0xf]
        %v3772 = vld [vmem:[#allocation4 + $0x1d4] sm:$0xf]
        %v3773 = vld [vmem:[#allocation4 + $0x1d8] sm:$0xf]
        %v3774 = vld [vmem:[#allocation4 + $0x1dc] sm:$0xf]
        %v3775 = vld [vmem:[#allocation4 + $0x1e0] sm:$0xf]
        %v3776 = vld [vmem:[#allocation4 + $0x1e4] sm:$0xf]
        %v3777 = vld [vmem:[#allocation4 + $0x1e8] sm:$0xf]
        %v3778 = vld [vmem:[#allocation4 + $0x1ec] sm:$0xf]
        %v3779 = vld [vmem:[#allocation4 + $0x1f0] sm:$0xf]
        %v3780 = vld [vmem:[#allocation4 + $0x1f4] sm:$0xf]
        %v3781 = vld [vmem:[#allocation4 + $0x1f8] sm:$0xf]
        %v3782 = vld [vmem:[#allocation4 + $0x1fc] sm:$0xf]
        %v3799 = vunpack.c.l.b16 %v3767
        %v3800 = vunpack.c.l.b16 %v3768
        %v3801 = vunpack.c.l.b16 %v3769
        %v3802 = vunpack.c.l.b16 %v3770
        %v3803 = vunpack.c.l.b16 %v3771
        %v3804 = vunpack.c.l.b16 %v3772
        %v3805 = vunpack.c.l.b16 %v3773
        %v3806 = vunpack.c.l.b16 %v3774
        %v3807 = vunpack.c.l.b16 %v3775
        %v3808 = vunpack.c.l.b16 %v3776
        %v3809 = vunpack.c.l.b16 %v3777
        %v3810 = vunpack.c.l.b16 %v3778
        %v3811 = vunpack.c.l.b16 %v3779
        %v3812 = vunpack.c.l.b16 %v3780
        %v3813 = vunpack.c.l.b16 %v3781
        %v3814 = vunpack.c.l.b16 %v3782
        %v3815 = vpack.c.b16 %v3800, %v3799
        %v3816 = vpack.c.b16 %v3802, %v3801
        %v3817 = vpack.c.b16 %v3804, %v3803
        %v3818 = vpack.c.b16 %v3806, %v3805
        %v3819 = vpack.c.b16 %v3808, %v3807
        %v3820 = vpack.c.b16 %v3810, %v3809
        %v3821 = vpack.c.b16 %v3812, %v3811
        %v3822 = vpack.c.b16 %v3814, %v3813
        %3831 = vmatprep.subr.bf16.mxu0 0
        %3832 = vmatpush1.bf16.msra.mxu0 %v3815
        %3833 = vmatprep.subr.bf16.mxu0 0
        %3834 = vmatpush1.bf16.msra.mxu0 %v3816
        %3835 = vmatprep.subr.bf16.mxu0 0
        %3836 = vmatpush1.bf16.msra.mxu0 %v3817
        %3837 = vmatprep.subr.bf16.mxu0 0
        %3838 = vmatpush1.bf16.msra.mxu0 %v3818
        %3839 = vmatprep.subr.bf16.mxu0 0
        %3840 = vmatpush1.bf16.msra.mxu0 %v3819
        %3841 = vmatprep.subr.bf16.mxu0 0
        %3842 = vmatpush1.bf16.msra.mxu0 %v3820
        %3843 = vmatprep.subr.bf16.mxu0 0
        %3844 = vmatpush1.bf16.msra.mxu0 %v3821
        %3845 = vmatprep.subr.bf16.mxu0 0
        %3846 = vmatpush1.bf16.msra.mxu0 %v3822
        %3847 = vmatprep.subr.bf16.mxu0 0
        %3848 = vmatpush1.bf16.msra.mxu0 0
        %3849 = vmatprep.subr.bf16.mxu0 0
        %3850 = vmatpush1.bf16.msra.mxu0 0
        %3851 = vmatprep.subr.bf16.mxu0 0
        %3852 = vmatpush1.bf16.msra.mxu0 0
        %3853 = vmatprep.subr.bf16.mxu0 0
        %3854 = vmatpush1.bf16.msra.mxu0 0
        %3855 = vmatprep.subr.bf16.mxu0 0
        %3856 = vmatpush1.bf16.msra.mxu0 0
        %3857 = vmatprep.subr.bf16.mxu0 0
        %3858 = vmatpush1.bf16.msra.mxu0 0
        %3859 = vmatprep.subr.bf16.mxu0 0
        %3860 = vmatpush1.bf16.msra.mxu0 0
        %3861 = vmatprep.subr.bf16.mxu0 0
        %3862 = vmatpush1.bf16.msra.mxu0 0
        %3863 = vmatprep.mubr.bf16.mxu0 0
        %3864 = vmatmul.mubr.bf16.gmra.mrb[0].mxu0 %v3766
        %v3865 = vpop.f32.mrb[0].mxu0
        %v3866 = vadd.f32 0.0, %v3865
        %v3867 = vpop.f32.mrb[0].mxu0
        %v3868 = vpop.f32.mrb[0].mxu0
        %v3869 = vadd.f32 0.0, %v3868
        %v3870 = vpop.f32.mrb[0].mxu0
        %3871 = vdwg.mxu0
        %v3872 = vadd.f32 %v3758, %v3866
        %v3873 = vadd.f32 %v3759, %v3869
        %v3874 = vld [vmem:[%s4] sm:$0x1]
        %v3876 = vlaneseq
        %v3877 = vshrl.u32 %v3876, 7
        %v3878 = vsub.s32 0, %v3877
        %v3879 = vrot.slane %v3874, %v3878
        %v3881 = vadd.f32 %v3872, %v3879
        %v3882 = vadd.f32 %v3873, %v3879
        %vm3883 = vcmp.ge.f32.partialorder %v3881, 0.0
        %vm3884 = vcmp.ge.f32.partialorder %v3882, 0.0
        %v3885 = vmul.f32 %v3881, 0.2
        %v3886 = vmul.f32 %v3882, 0.2
        %v3887 = vsel %vm3883, %v3881, %v3885
        %v3888 = vsel %vm3884, %v3882, %v3886
        %v3889 = vadd.f32 %v3887, %v3888
        %v3890 = vrot.slane %v3889, 4
        %v3891 = vadd.f32 %v3889, %v3890
        %v3892 = vrot.slane %v3891, 2
        %v3893 = vadd.f32 %v3891, %v3892
        %v3894 = vrot.slane %v3893, 1
        %v3895 = vadd.f32 %v3893, %v3894
        %v3896 = vmul.f32 %v3887, %v3887
        %v3897 = vmul.f32 %v3888, %v3888
        %v3898 = vadd.f32 %v3896, %v3897
        %v3899 = vrot.slane %v3898, 4
        %v3900 = vadd.f32 %v3898, %v3899
        %v3901 = vrot.slane %v3900, 2
        %v3902 = vadd.f32 %v3900, %v3901
        %v3903 = vrot.slane %v3902, 1
        %v3904 = vadd.f32 %v3902, %v3903
        %v3905 = vmul.f32 %v3895, 0.0625
        %v3906 = vmul.f32 %v3904, 0.0625
        %v3907 = vmul.f32 %v3905, %v3905
        %v3908 = vsub.f32 %v3906, %v3907
        %v3909 = vmax.f32 %v3908, 0.0
        %v3910 = vsub.f32 %v3887, %v3905
        %v3911 = vsub.f32 %v3888, %v3905
        %v3912 = vadd.f32 %v3909, 1e-05
        %v3913 = vrsqrt.pop %v3912
        %v3914 = vmul.f32 %v3910, %v3913
        %v3915 = vmul.f32 %v3911, %v3913
        %v3916 = vld [vmem:[%s6] sm:$0x3f]
        %v3917 = vld [vmem:[%s8] sm:$0xf]
        %v3918 = vld [vmem:[#allocation6] sm:$0xf]
        %v3919 = vld [vmem:[#allocation6 + $0x4] sm:$0xf]
        %v3920 = vld [vmem:[#allocation6 + $0x8] sm:$0xf]
        %v3921 = vld [vmem:[#allocation6 + $0xc] sm:$0xf]
        %v3922 = vld [vmem:[#allocation6 + $0x10] sm:$0xf]
        %v3923 = vld [vmem:[#allocation6 + $0x14] sm:$0xf]
        %v3924 = vld [vmem:[#allocation6 + $0x18] sm:$0xf]
        %v3925 = vld [vmem:[#allocation6 + $0x1c] sm:$0xf]
        %v3926 = vld [vmem:[#allocation6 + $0x20] sm:$0xf]
        %v3927 = vld [vmem:[#allocation6 + $0x24] sm:$0xf]
        %v3928 = vld [vmem:[#allocation6 + $0x28] sm:$0xf]
        %v3929 = vld [vmem:[#allocation6 + $0x2c] sm:$0xf]
        %v3930 = vld [vmem:[#allocation6 + $0x30] sm:$0xf]
        %v3931 = vld [vmem:[#allocation6 + $0x34] sm:$0xf]
        %v3932 = vld [vmem:[#allocation6 + $0x38] sm:$0xf]
        %v3933 = vld [vmem:[#allocation6 + $0x3c] sm:$0xf]
        %v3934 = vld [vmem:[#allocation6 + $0x40] sm:$0xf]
        %v3935 = vld [vmem:[#allocation6 + $0x44] sm:$0xf]
        %v3936 = vld [vmem:[#allocation6 + $0x48] sm:$0xf]
        %v3937 = vld [vmem:[#allocation6 + $0x4c] sm:$0xf]
        %v3938 = vld [vmem:[#allocation6 + $0x50] sm:$0xf]
        %v3939 = vld [vmem:[#allocation6 + $0x54] sm:$0xf]
        %v3940 = vld [vmem:[#allocation6 + $0x58] sm:$0xf]
        %v3941 = vld [vmem:[#allocation6 + $0x5c] sm:$0xf]
        %v3942 = vld [vmem:[#allocation6 + $0x60] sm:$0xf]
        %v3943 = vld [vmem:[#allocation6 + $0x64] sm:$0xf]
        %v3944 = vld [vmem:[#allocation6 + $0x68] sm:$0xf]
        %v3945 = vld [vmem:[#allocation6 + $0x6c] sm:$0xf]
        %v3946 = vld [vmem:[#allocation6 + $0x70] sm:$0xf]
        %v3947 = vld [vmem:[#allocation6 + $0x74] sm:$0xf]
        %v3948 = vld [vmem:[#allocation6 + $0x78] sm:$0xf]
        %v3949 = vld [vmem:[#allocation6 + $0x7c] sm:$0xf]
        %v3950 = vld [vmem:[#allocation6 + $0x80] sm:$0xf]
        %v3951 = vld [vmem:[#allocation6 + $0x84] sm:$0xf]
        %v3952 = vld [vmem:[#allocation6 + $0x88] sm:$0xf]
        %v3953 = vld [vmem:[#allocation6 + $0x8c] sm:$0xf]
        %v3954 = vld [vmem:[#allocation6 + $0x90] sm:$0xf]
        %v3955 = vld [vmem:[#allocation6 + $0x94] sm:$0xf]
        %v3956 = vld [vmem:[#allocation6 + $0x98] sm:$0xf]
        %v3957 = vld [vmem:[#allocation6 + $0x9c] sm:$0xf]
        %v3958 = vld [vmem:[#allocation6 + $0xa0] sm:$0xf]
        %v3959 = vld [vmem:[#allocation6 + $0xa4] sm:$0xf]
        %v3960 = vld [vmem:[#allocation6 + $0xa8] sm:$0xf]
        %v3961 = vld [vmem:[#allocation6 + $0xac] sm:$0xf]
        %v3962 = vld [vmem:[#allocation6 + $0xb0] sm:$0xf]
        %v3963 = vld [vmem:[#allocation6 + $0xb4] sm:$0xf]
        %v3964 = vld [vmem:[#allocation6 + $0xb8] sm:$0xf]
        %v3965 = vld [vmem:[#allocation6 + $0xbc] sm:$0xf]
        %v3966 = vld [vmem:[#allocation6 + $0xc0] sm:$0xf]
        %v3967 = vld [vmem:[#allocation6 + $0xc4] sm:$0xf]
        %v3968 = vld [vmem:[#allocation6 + $0xc8] sm:$0xf]
        %v3969 = vld [vmem:[#allocation6 + $0xcc] sm:$0xf]
        %v3970 = vld [vmem:[#allocation6 + $0xd0] sm:$0xf]
        %v3971 = vld [vmem:[#allocation6 + $0xd4] sm:$0xf]
        %v3972 = vld [vmem:[#allocation6 + $0xd8] sm:$0xf]
        %v3973 = vld [vmem:[#allocation6 + $0xdc] sm:$0xf]
        %v3974 = vld [vmem:[#allocation6 + $0xe0] sm:$0xf]
        %v3975 = vld [vmem:[#allocation6 + $0xe4] sm:$0xf]
        %v3976 = vld [vmem:[#allocation6 + $0xe8] sm:$0xf]
        %v3977 = vld [vmem:[#allocation6 + $0xec] sm:$0xf]
        %v3978 = vld [vmem:[#allocation6 + $0xf0] sm:$0xf]
        %v3979 = vld [vmem:[#allocation6 + $0xf4] sm:$0xf]
        %v3980 = vld [vmem:[#allocation6 + $0xf8] sm:$0xf]
        %v3981 = vld [vmem:[#allocation6 + $0xfc] sm:$0xf]
        %v3982 = vld [vmem:[#allocation6 + $0x100] sm:$0xf]
        %v3983 = vld [vmem:[#allocation6 + $0x104] sm:$0xf]
        %v3984 = vld [vmem:[#allocation6 + $0x108] sm:$0xf]
        %v3985 = vld [vmem:[#allocation6 + $0x10c] sm:$0xf]
        %v3986 = vld [vmem:[#allocation6 + $0x110] sm:$0xf]
        %v3987 = vld [vmem:[#allocation6 + $0x114] sm:$0xf]
        %v3988 = vld [vmem:[#allocation6 + $0x118] sm:$0xf]
        %v3989 = vld [vmem:[#allocation6 + $0x11c] sm:$0xf]
        %v3990 = vld [vmem:[#allocation6 + $0x120] sm:$0xf]
        %v3991 = vld [vmem:[#allocation6 + $0x124] sm:$0xf]
        %v3992 = vld [vmem:[#allocation6 + $0x128] sm:$0xf]
        %v3993 = vld [vmem:[#allocation6 + $0x12c] sm:$0xf]
        %v3994 = vld [vmem:[#allocation6 + $0x130] sm:$0xf]
        %v3995 = vld [vmem:[#allocation6 + $0x134] sm:$0xf]
        %v3996 = vld [vmem:[#allocation6 + $0x138] sm:$0xf]
        %v3997 = vld [vmem:[#allocation6 + $0x13c] sm:$0xf]
        %v3998 = vpack.c.bf16 %v3915, %v3914
        %v4000 = vrot.slane %v3998, 1
        %v4002 = vrot.slane %v3998, 7
        %v4003 = vrot.slane %v3998, 6
        %v4004 = vrot.slane %v3998, 5
        %v4006 = vsel %vm417, %v4000, %v3998
        %v4009 = vsel %vm419, %v4006, %v4002
        %v4012 = vsel %vm419, %v4002, %v4003
        %v4014 = vsel %vm426, %v4012, %v4004
        %v4015 = vshrl.u32 %v4009, 16
        %v4017 = vshll.u32 %v4009, 16
        %v4019 = vrot.slane %v4017, 1
        %v4020 = vor.u32 %v4015, %v4019
        %v4022 = vshll.u32 %v4014, 16
        %v4024 = vrot.slane %v4022, 1
        %v4025 = vsel %vm438, %v4020, %v4024
        %v4029 = vrot.slane %v4009, 1
        %v4030 = vrot.slane %v4014, 1
        %v4031 = vsel %vm454, %v4029, %v4030
        %v4033 = vrot.slane %v4015, 1
        %v4034 = vrot.slane %v4017, 2
        %v4035 = vor.u32 %v4033, %v4034
        %v4036 = vshrl.u32 %v4014, 16
        %v4038 = vrot.slane %v4036, 1
        %v4039 = vrot.slane %v4022, 2
        %v4040 = vor.u32 %v4038, %v4039
        %v4041 = vsel %vm459, %v4035, %v4040
        %v4043 = vrot.slane %v4009, 2
        %v4044 = vrot.slane %v4014, 2
        %v4045 = vsel %vm470, %v4043, %v4044
        %v4047 = vlaneseq
        %v4048 = vshrl.u32 %v4047, 7
        %v4049 = vsub.s32 0, %v4048
        %v4050 = vrot.slane %v3916, %v4049
        %v4131 = vunpack.c.l.b16 %v3918
        %v4132 = vunpack.c.l.b16 %v3919
        %v4133 = vunpack.c.l.b16 %v3920
        %v4134 = vunpack.c.l.b16 %v3921
        %v4135 = vunpack.c.l.b16 %v3922
        %v4136 = vunpack.c.l.b16 %v3923
        %v4137 = vunpack.c.l.b16 %v3924
        %v4138 = vunpack.c.l.b16 %v3925
        %v4139 = vunpack.c.l.b16 %v3926
        %v4140 = vunpack.c.l.b16 %v3927
        %v4141 = vunpack.c.l.b16 %v3928
        %v4142 = vunpack.c.l.b16 %v3929
        %v4143 = vunpack.c.l.b16 %v3930
        %v4144 = vunpack.c.l.b16 %v3931
        %v4145 = vunpack.c.l.b16 %v3932
        %v4146 = vunpack.c.l.b16 %v3933
        %v4147 = vunpack.c.l.b16 %v3934
        %v4148 = vunpack.c.l.b16 %v3935
        %v4149 = vunpack.c.l.b16 %v3936
        %v4150 = vunpack.c.l.b16 %v3937
        %v4151 = vunpack.c.l.b16 %v3938
        %v4152 = vunpack.c.l.b16 %v3939
        %v4153 = vunpack.c.l.b16 %v3940
        %v4154 = vunpack.c.l.b16 %v3941
        %v4155 = vunpack.c.l.b16 %v3942
        %v4156 = vunpack.c.l.b16 %v3943
        %v4157 = vunpack.c.l.b16 %v3944
        %v4158 = vunpack.c.l.b16 %v3945
        %v4159 = vunpack.c.l.b16 %v3946
        %v4160 = vunpack.c.l.b16 %v3947
        %v4161 = vunpack.c.l.b16 %v3948
        %v4162 = vunpack.c.l.b16 %v3949
        %v4163 = vunpack.c.l.b16 %v3950
        %v4164 = vunpack.c.l.b16 %v3951
        %v4165 = vunpack.c.l.b16 %v3952
        %v4166 = vunpack.c.l.b16 %v3953
        %v4167 = vunpack.c.l.b16 %v3954
        %v4168 = vunpack.c.l.b16 %v3955
        %v4169 = vunpack.c.l.b16 %v3956
        %v4170 = vunpack.c.l.b16 %v3957
        %v4171 = vunpack.c.l.b16 %v3958
        %v4172 = vunpack.c.l.b16 %v3959
        %v4173 = vunpack.c.l.b16 %v3960
        %v4174 = vunpack.c.l.b16 %v3961
        %v4175 = vunpack.c.l.b16 %v3962
        %v4176 = vunpack.c.l.b16 %v3963
        %v4177 = vunpack.c.l.b16 %v3964
        %v4178 = vunpack.c.l.b16 %v3965
        %v4179 = vunpack.c.l.b16 %v3966
        %v4180 = vunpack.c.l.b16 %v3967
        %v4181 = vunpack.c.l.b16 %v3968
        %v4182 = vunpack.c.l.b16 %v3969
        %v4183 = vunpack.c.l.b16 %v3970
        %v4184 = vunpack.c.l.b16 %v3971
        %v4185 = vunpack.c.l.b16 %v3972
        %v4186 = vunpack.c.l.b16 %v3973
        %v4187 = vunpack.c.l.b16 %v3974
        %v4188 = vunpack.c.l.b16 %v3975
        %v4189 = vunpack.c.l.b16 %v3976
        %v4190 = vunpack.c.l.b16 %v3977
        %v4191 = vunpack.c.l.b16 %v3978
        %v4192 = vunpack.c.l.b16 %v3979
        %v4193 = vunpack.c.l.b16 %v3980
        %v4194 = vunpack.c.l.b16 %v3981
        %v4195 = vunpack.c.l.b16 %v3982
        %v4196 = vunpack.c.l.b16 %v3983
        %v4197 = vunpack.c.l.b16 %v3984
        %v4198 = vunpack.c.l.b16 %v3985
        %v4199 = vunpack.c.l.b16 %v3986
        %v4200 = vunpack.c.l.b16 %v3987
        %v4201 = vunpack.c.l.b16 %v3988
        %v4202 = vunpack.c.l.b16 %v3989
        %v4203 = vunpack.c.l.b16 %v3990
        %v4204 = vunpack.c.l.b16 %v3991
        %v4205 = vunpack.c.l.b16 %v3992
        %v4206 = vunpack.c.l.b16 %v3993
        %v4207 = vunpack.c.l.b16 %v3994
        %v4208 = vunpack.c.l.b16 %v3995
        %v4209 = vunpack.c.l.b16 %v3996
        %v4210 = vunpack.c.l.b16 %v3997
        %v4211 = vpack.c.b16 %v4132, %v4131
        %v4212 = vpack.c.b16 %v4134, %v4133
        %v4213 = vpack.c.b16 %v4136, %v4135
        %v4214 = vpack.c.b16 %v4138, %v4137
        %v4215 = vpack.c.b16 %v4140, %v4139
        %v4216 = vpack.c.b16 %v4142, %v4141
        %v4217 = vpack.c.b16 %v4144, %v4143
        %v4218 = vpack.c.b16 %v4146, %v4145
        %v4219 = vpack.c.b16 %v4148, %v4147
        %v4220 = vpack.c.b16 %v4150, %v4149
        %v4221 = vpack.c.b16 %v4152, %v4151
        %v4222 = vpack.c.b16 %v4154, %v4153
        %v4223 = vpack.c.b16 %v4156, %v4155
        %v4224 = vpack.c.b16 %v4158, %v4157
        %v4225 = vpack.c.b16 %v4160, %v4159
        %v4226 = vpack.c.b16 %v4162, %v4161
        %v4227 = vpack.c.b16 %v4164, %v4163
        %v4228 = vpack.c.b16 %v4166, %v4165
        %v4229 = vpack.c.b16 %v4168, %v4167
        %v4230 = vpack.c.b16 %v4170, %v4169
        %v4231 = vpack.c.b16 %v4172, %v4171
        %v4232 = vpack.c.b16 %v4174, %v4173
        %v4233 = vpack.c.b16 %v4176, %v4175
        %v4234 = vpack.c.b16 %v4178, %v4177
        %v4235 = vpack.c.b16 %v4180, %v4179
        %v4236 = vpack.c.b16 %v4182, %v4181
        %v4237 = vpack.c.b16 %v4184, %v4183
        %v4238 = vpack.c.b16 %v4186, %v4185
        %v4239 = vpack.c.b16 %v4188, %v4187
        %v4240 = vpack.c.b16 %v4190, %v4189
        %v4241 = vpack.c.b16 %v4192, %v4191
        %v4242 = vpack.c.b16 %v4194, %v4193
        %v4243 = vpack.c.b16 %v4196, %v4195
        %v4244 = vpack.c.b16 %v4198, %v4197
        %v4245 = vpack.c.b16 %v4200, %v4199
        %v4246 = vpack.c.b16 %v4202, %v4201
        %v4247 = vpack.c.b16 %v4204, %v4203
        %v4248 = vpack.c.b16 %v4206, %v4205
        %v4249 = vpack.c.b16 %v4208, %v4207
        %v4250 = vpack.c.b16 %v4210, %v4209
        %4291 = vmatprep.subr.bf16.mxu0 0
        %4292 = vmatpush1.bf16.msra.mxu0 %v4211
        %4293 = vmatprep.subr.bf16.mxu0 0
        %4294 = vmatpush1.bf16.msra.mxu0 %v4212
        %4295 = vmatprep.subr.bf16.mxu0 0
        %4296 = vmatpush1.bf16.msra.mxu0 %v4213
        %4297 = vmatprep.subr.bf16.mxu0 0
        %4298 = vmatpush1.bf16.msra.mxu0 %v4214
        %4299 = vmatprep.subr.bf16.mxu0 0
        %4300 = vmatpush1.bf16.msra.mxu0 %v4215
        %4301 = vmatprep.subr.bf16.mxu0 0
        %4302 = vmatpush1.bf16.msra.mxu0 %v4216
        %4303 = vmatprep.subr.bf16.mxu0 0
        %4304 = vmatpush1.bf16.msra.mxu0 %v4217
        %4305 = vmatprep.subr.bf16.mxu0 0
        %4306 = vmatpush1.bf16.msra.mxu0 %v4218
        %4307 = vmatprep.subr.bf16.mxu0 0
        %4308 = vmatpush1.bf16.msra.mxu0 %v4219
        %4309 = vmatprep.subr.bf16.mxu0 0
        %4310 = vmatpush1.bf16.msra.mxu0 %v4220
        %4311 = vmatprep.subr.bf16.mxu0 0
        %4312 = vmatpush1.bf16.msra.mxu0 %v4221
        %4313 = vmatprep.subr.bf16.mxu0 0
        %4314 = vmatpush1.bf16.msra.mxu0 %v4222
        %4315 = vmatprep.subr.bf16.mxu0 0
        %4316 = vmatpush1.bf16.msra.mxu0 %v4223
        %4317 = vmatprep.subr.bf16.mxu0 0
        %4318 = vmatpush1.bf16.msra.mxu0 %v4224
        %4319 = vmatprep.subr.bf16.mxu0 0
        %4320 = vmatpush1.bf16.msra.mxu0 %v4225
        %4321 = vmatprep.subr.bf16.mxu0 0
        %4322 = vmatpush1.bf16.msra.mxu0 %v4226
        %4323 = vmatprep.mubr.bf16.mxu0 %v4025
        %4324 = vmatmul.mubr.bf16.gmra.mrb[0].mxu0 %v4009
        %v4325 = vpop.f32.mrb[0].mxu0
        %v4326 = vadd.f32 %v4050, %v4325
        %v4327 = vpop.f32.mrb[0].mxu0
        %v4328 = vpop.f32.mrb[0].mxu0
        %v4329 = vadd.f32 %v4050, %v4328
        %v4330 = vpop.f32.mrb[0].mxu0
        %4331 = vdwg.mxu0
        %4332 = vmatprep.subr.bf16.mxu0 0
        %4333 = vmatpush1.bf16.msra.mxu0 %v4227
        %4334 = vmatprep.subr.bf16.mxu0 0
        %4335 = vmatpush1.bf16.msra.mxu0 %v4228
        %4336 = vmatprep.subr.bf16.mxu0 0
        %4337 = vmatpush1.bf16.msra.mxu0 %v4229
        %4338 = vmatprep.subr.bf16.mxu0 0
        %4339 = vmatpush1.bf16.msra.mxu0 %v4230
        %4340 = vmatprep.subr.bf16.mxu0 0
        %4341 = vmatpush1.bf16.msra.mxu0 %v4231
        %4342 = vmatprep.subr.bf16.mxu0 0
        %4343 = vmatpush1.bf16.msra.mxu0 %v4232
        %4344 = vmatprep.subr.bf16.mxu0 0
        %4345 = vmatpush1.bf16.msra.mxu0 %v4233
        %4346 = vmatprep.subr.bf16.mxu0 0
        %4347 = vmatpush1.bf16.msra.mxu0 %v4234
        %4348 = vmatprep.subr.bf16.mxu0 0
        %4349 = vmatpush1.bf16.msra.mxu0 %v4235
        %4350 = vmatprep.subr.bf16.mxu0 0
        %4351 = vmatpush1.bf16.msra.mxu0 %v4236
        %4352 = vmatprep.subr.bf16.mxu0 0
        %4353 = vmatpush1.bf16.msra.mxu0 %v4237
        %4354 = vmatprep.subr.bf16.mxu0 0
        %4355 = vmatpush1.bf16.msra.mxu0 %v4238
        %4356 = vmatprep.subr.bf16.mxu0 0
        %4357 = vmatpush1.bf16.msra.mxu0 %v4239
        %4358 = vmatprep.subr.bf16.mxu0 0
        %4359 = vmatpush1.bf16.msra.mxu0 %v4240
        %4360 = vmatprep.subr.bf16.mxu0 0
        %4361 = vmatpush1.bf16.msra.mxu0 %v4241
        %4362 = vmatprep.subr.bf16.mxu0 0
        %4363 = vmatpush1.bf16.msra.mxu0 %v4242
        %4364 = vmatprep.mubr.bf16.mxu0 %v4041
        %4365 = vmatmul.mubr.bf16.gmra.mrb[0].mxu0 %v4031
        %v4366 = vpop.f32.mrb[0].mxu0
        %v4367 = vadd.f32 %v4326, %v4366
        %v4368 = vpop.f32.mrb[0].mxu0
        %v4369 = vpop.f32.mrb[0].mxu0
        %v4370 = vadd.f32 %v4329, %v4369
        %v4371 = vpop.f32.mrb[0].mxu0
        %4372 = vdwg.mxu0
        %4373 = vmatprep.subr.bf16.mxu0 0
        %4374 = vmatpush1.bf16.msra.mxu0 %v4243
        %4375 = vmatprep.subr.bf16.mxu0 0
        %4376 = vmatpush1.bf16.msra.mxu0 %v4244
        %4377 = vmatprep.subr.bf16.mxu0 0
        %4378 = vmatpush1.bf16.msra.mxu0 %v4245
        %4379 = vmatprep.subr.bf16.mxu0 0
        %4380 = vmatpush1.bf16.msra.mxu0 %v4246
        %4381 = vmatprep.subr.bf16.mxu0 0
        %4382 = vmatpush1.bf16.msra.mxu0 %v4247
        %4383 = vmatprep.subr.bf16.mxu0 0
        %4384 = vmatpush1.bf16.msra.mxu0 %v4248
        %4385 = vmatprep.subr.bf16.mxu0 0
        %4386 = vmatpush1.bf16.msra.mxu0 %v4249
        %4387 = vmatprep.subr.bf16.mxu0 0
        %4388 = vmatpush1.bf16.msra.mxu0 %v4250
        %4389 = vmatprep.subr.bf16.mxu0 0
        %4390 = vmatpush1.bf16.msra.mxu0 0
        %4391 = vmatprep.subr.bf16.mxu0 0
        %4392 = vmatpush1.bf16.msra.mxu0 0
        %4393 = vmatprep.subr.bf16.mxu0 0
        %4394 = vmatpush1.bf16.msra.mxu0 0
        %4395 = vmatprep.subr.bf16.mxu0 0
        %4396 = vmatpush1.bf16.msra.mxu0 0
        %4397 = vmatprep.subr.bf16.mxu0 0
        %4398 = vmatpush1.bf16.msra.mxu0 0
        %4399 = vmatprep.subr.bf16.mxu0 0
        %4400 = vmatpush1.bf16.msra.mxu0 0
        %4401 = vmatprep.subr.bf16.mxu0 0
        %4402 = vmatpush1.bf16.msra.mxu0 0
        %4403 = vmatprep.subr.bf16.mxu0 0
        %4404 = vmatpush1.bf16.msra.mxu0 0
        %4405 = vmatprep.mubr.bf16.mxu0 0
        %4406 = vmatmul.mubr.bf16.gmra.mrb[0].mxu0 %v4045
        %v4407 = vpop.f32.mrb[0].mxu0
        %v4408 = vadd.f32 %v4367, %v4407
        %v4409 = vpop.f32.mrb[0].mxu0
        %v4410 = vpop.f32.mrb[0].mxu0
        %v4411 = vadd.f32 %v4370, %v4410
        %v4412 = vpop.f32.mrb[0].mxu0
        %4413 = vdwg.mxu0
        %vm4414 = vcmp.ge.f32.partialorder %v4408, 0.0
        %vm4415 = vcmp.ge.f32.partialorder %v4411, 0.0
        %v4416 = vmul.f32 %v4408, 0.2
        %v4417 = vmul.f32 %v4411, 0.2
        %v4418 = vsel %vm4414, %v4408, %v4416
        %v4419 = vsel %vm4415, %v4411, %v4417
        %s4420 = scalar_lea.vmem [#allocation6], 320
        %v4421 = vld [vmem:[%s4420] sm:$0xf]
        %v4422 = vld [vmem:[%s4420 + $0x4] sm:$0xf]
        %v4423 = vld [vmem:[%s4420 + $0x8] sm:$0xf]
        %v4424 = vld [vmem:[%s4420 + $0xc] sm:$0xf]
        %v4425 = vld [vmem:[%s4420 + $0x10] sm:$0xf]
        %v4426 = vld [vmem:[%s4420 + $0x14] sm:$0xf]
        %v4427 = vld [vmem:[%s4420 + $0x18] sm:$0xf]
        %v4428 = vld [vmem:[%s4420 + $0x1c] sm:$0xf]
        %v4429 = vld [vmem:[%s4420 + $0x20] sm:$0xf]
        %v4430 = vld [vmem:[%s4420 + $0x24] sm:$0xf]
        %v4431 = vld [vmem:[%s4420 + $0x28] sm:$0xf]
        %v4432 = vld [vmem:[%s4420 + $0x2c] sm:$0xf]
        %v4433 = vld [vmem:[%s4420 + $0x30] sm:$0xf]
        %v4434 = vld [vmem:[%s4420 + $0x34] sm:$0xf]
        %v4435 = vld [vmem:[%s4420 + $0x38] sm:$0xf]
        %v4436 = vld [vmem:[%s4420 + $0x3c] sm:$0xf]
        %v4437 = vld [vmem:[%s4420 + $0x40] sm:$0xf]
        %v4438 = vld [vmem:[%s4420 + $0x44] sm:$0xf]
        %v4439 = vld [vmem:[%s4420 + $0x48] sm:$0xf]
        %v4440 = vld [vmem:[%s4420 + $0x4c] sm:$0xf]
        %v4441 = vld [vmem:[%s4420 + $0x50] sm:$0xf]
        %v4442 = vld [vmem:[%s4420 + $0x54] sm:$0xf]
        %v4443 = vld [vmem:[%s4420 + $0x58] sm:$0xf]
        %v4444 = vld [vmem:[%s4420 + $0x5c] sm:$0xf]
        %v4445 = vld [vmem:[%s4420 + $0x60] sm:$0xf]
        %v4446 = vld [vmem:[%s4420 + $0x64] sm:$0xf]
        %v4447 = vld [vmem:[%s4420 + $0x68] sm:$0xf]
        %v4448 = vld [vmem:[%s4420 + $0x6c] sm:$0xf]
        %v4449 = vld [vmem:[%s4420 + $0x70] sm:$0xf]
        %v4450 = vld [vmem:[%s4420 + $0x74] sm:$0xf]
        %v4451 = vld [vmem:[%s4420 + $0x78] sm:$0xf]
        %v4452 = vld [vmem:[%s4420 + $0x7c] sm:$0xf]
        %v4453 = vld [vmem:[%s4420 + $0x80] sm:$0xf]
        %v4454 = vld [vmem:[%s4420 + $0x84] sm:$0xf]
        %v4455 = vld [vmem:[%s4420 + $0x88] sm:$0xf]
        %v4456 = vld [vmem:[%s4420 + $0x8c] sm:$0xf]
        %v4457 = vld [vmem:[%s4420 + $0x90] sm:$0xf]
        %v4458 = vld [vmem:[%s4420 + $0x94] sm:$0xf]
        %v4459 = vld [vmem:[%s4420 + $0x98] sm:$0xf]
        %v4460 = vld [vmem:[%s4420 + $0x9c] sm:$0xf]
        %v4461 = vld [vmem:[%s4420 + $0xa0] sm:$0xf]
        %v4462 = vld [vmem:[%s4420 + $0xa4] sm:$0xf]
        %v4463 = vld [vmem:[%s4420 + $0xa8] sm:$0xf]
        %v4464 = vld [vmem:[%s4420 + $0xac] sm:$0xf]
        %v4465 = vld [vmem:[%s4420 + $0xb0] sm:$0xf]
        %v4466 = vld [vmem:[%s4420 + $0xb4] sm:$0xf]
        %v4467 = vld [vmem:[%s4420 + $0xb8] sm:$0xf]
        %v4468 = vld [vmem:[%s4420 + $0xbc] sm:$0xf]
        %v4469 = vld [vmem:[%s4420 + $0xc0] sm:$0xf]
        %v4470 = vld [vmem:[%s4420 + $0xc4] sm:$0xf]
        %v4471 = vld [vmem:[%s4420 + $0xc8] sm:$0xf]
        %v4472 = vld [vmem:[%s4420 + $0xcc] sm:$0xf]
        %v4473 = vld [vmem:[%s4420 + $0xd0] sm:$0xf]
        %v4474 = vld [vmem:[%s4420 + $0xd4] sm:$0xf]
        %v4475 = vld [vmem:[%s4420 + $0xd8] sm:$0xf]
        %v4476 = vld [vmem:[%s4420 + $0xdc] sm:$0xf]
        %v4477 = vld [vmem:[%s4420 + $0xe0] sm:$0xf]
        %v4478 = vld [vmem:[%s4420 + $0xe4] sm:$0xf]
        %v4479 = vld [vmem:[%s4420 + $0xe8] sm:$0xf]
        %v4480 = vld [vmem:[%s4420 + $0xec] sm:$0xf]
        %v4481 = vld [vmem:[%s4420 + $0xf0] sm:$0xf]
        %v4482 = vld [vmem:[%s4420 + $0xf4] sm:$0xf]
        %v4483 = vld [vmem:[%s4420 + $0xf8] sm:$0xf]
        %v4484 = vld [vmem:[%s4420 + $0xfc] sm:$0xf]
        %v4485 = vld [vmem:[%s4420 + $0x100] sm:$0xf]
        %v4486 = vld [vmem:[%s4420 + $0x104] sm:$0xf]
        %v4487 = vld [vmem:[%s4420 + $0x108] sm:$0xf]
        %v4488 = vld [vmem:[%s4420 + $0x10c] sm:$0xf]
        %v4489 = vld [vmem:[%s4420 + $0x110] sm:$0xf]
        %v4490 = vld [vmem:[%s4420 + $0x114] sm:$0xf]
        %v4491 = vld [vmem:[%s4420 + $0x118] sm:$0xf]
        %v4492 = vld [vmem:[%s4420 + $0x11c] sm:$0xf]
        %v4493 = vld [vmem:[%s4420 + $0x120] sm:$0xf]
        %v4494 = vld [vmem:[%s4420 + $0x124] sm:$0xf]
        %v4495 = vld [vmem:[%s4420 + $0x128] sm:$0xf]
        %v4496 = vld [vmem:[%s4420 + $0x12c] sm:$0xf]
        %v4497 = vld [vmem:[%s4420 + $0x130] sm:$0xf]
        %v4498 = vld [vmem:[%s4420 + $0x134] sm:$0xf]
        %v4499 = vld [vmem:[%s4420 + $0x138] sm:$0xf]
        %v4500 = vld [vmem:[%s4420 + $0x13c] sm:$0xf]
        %v4501 = vpack.c.bf16 %v4419, %v4418
        %v4503 = vrot.slane %v4501, 1
        %v4505 = vrot.slane %v4501, 7
        %v4506 = vrot.slane %v4501, 6
        %v4507 = vrot.slane %v4501, 5
        %v4509 = vsel %vm417, %v4503, %v4501
        %v4512 = vsel %vm419, %v4509, %v4505
        %v4515 = vsel %vm419, %v4505, %v4506
        %v4517 = vsel %vm426, %v4515, %v4507
        %v4518 = vshrl.u32 %v4512, 16
        %v4520 = vshll.u32 %v4512, 16
        %v4522 = vrot.slane %v4520, 1
        %v4523 = vor.u32 %v4518, %v4522
        %v4525 = vshll.u32 %v4517, 16
        %v4527 = vrot.slane %v4525, 1
        %v4528 = vsel %vm438, %v4523, %v4527
        %v4532 = vrot.slane %v4512, 1
        %v4533 = vrot.slane %v4517, 1
        %v4534 = vsel %vm454, %v4532, %v4533
        %v4536 = vrot.slane %v4518, 1
        %v4537 = vrot.slane %v4520, 2
        %v4538 = vor.u32 %v4536, %v4537
        %v4539 = vshrl.u32 %v4517, 16
        %v4541 = vrot.slane %v4539, 1
        %v4542 = vrot.slane %v4525, 2
        %v4543 = vor.u32 %v4541, %v4542
        %v4544 = vsel %vm459, %v4538, %v4543
        %v4546 = vrot.slane %v4512, 2
        %v4547 = vrot.slane %v4517, 2
        %v4548 = vsel %vm470, %v4546, %v4547
        %v4550 = vlaneseq
        %v4551 = vshrl.u32 %v4550, 7
        %v4552 = vsub.s32 1, %v4551
        %v4553 = vrot.slane %v3916, %v4552
        %v4634 = vunpack.c.l.b16 %v4421
        %v4635 = vunpack.c.l.b16 %v4422
        %v4636 = vunpack.c.l.b16 %v4423
        %v4637 = vunpack.c.l.b16 %v4424
        %v4638 = vunpack.c.l.b16 %v4425
        %v4639 = vunpack.c.l.b16 %v4426
        %v4640 = vunpack.c.l.b16 %v4427
        %v4641 = vunpack.c.l.b16 %v4428
        %v4642 = vunpack.c.l.b16 %v4429
        %v4643 = vunpack.c.l.b16 %v4430
        %v4644 = vunpack.c.l.b16 %v4431
        %v4645 = vunpack.c.l.b16 %v4432
        %v4646 = vunpack.c.l.b16 %v4433
        %v4647 = vunpack.c.l.b16 %v4434
        %v4648 = vunpack.c.l.b16 %v4435
        %v4649 = vunpack.c.l.b16 %v4436
        %v4650 = vunpack.c.l.b16 %v4437
        %v4651 = vunpack.c.l.b16 %v4438
        %v4652 = vunpack.c.l.b16 %v4439
        %v4653 = vunpack.c.l.b16 %v4440
        %v4654 = vunpack.c.l.b16 %v4441
        %v4655 = vunpack.c.l.b16 %v4442
        %v4656 = vunpack.c.l.b16 %v4443
        %v4657 = vunpack.c.l.b16 %v4444
        %v4658 = vunpack.c.l.b16 %v4445
        %v4659 = vunpack.c.l.b16 %v4446
        %v4660 = vunpack.c.l.b16 %v4447
        %v4661 = vunpack.c.l.b16 %v4448
        %v4662 = vunpack.c.l.b16 %v4449
        %v4663 = vunpack.c.l.b16 %v4450
        %v4664 = vunpack.c.l.b16 %v4451
        %v4665 = vunpack.c.l.b16 %v4452
        %v4666 = vunpack.c.l.b16 %v4453
        %v4667 = vunpack.c.l.b16 %v4454
        %v4668 = vunpack.c.l.b16 %v4455
        %v4669 = vunpack.c.l.b16 %v4456
        %v4670 = vunpack.c.l.b16 %v4457
        %v4671 = vunpack.c.l.b16 %v4458
        %v4672 = vunpack.c.l.b16 %v4459
        %v4673 = vunpack.c.l.b16 %v4460
        %v4674 = vunpack.c.l.b16 %v4461
        %v4675 = vunpack.c.l.b16 %v4462
        %v4676 = vunpack.c.l.b16 %v4463
        %v4677 = vunpack.c.l.b16 %v4464
        %v4678 = vunpack.c.l.b16 %v4465
        %v4679 = vunpack.c.l.b16 %v4466
        %v4680 = vunpack.c.l.b16 %v4467
        %v4681 = vunpack.c.l.b16 %v4468
        %v4682 = vunpack.c.l.b16 %v4469
        %v4683 = vunpack.c.l.b16 %v4470
        %v4684 = vunpack.c.l.b16 %v4471
        %v4685 = vunpack.c.l.b16 %v4472
        %v4686 = vunpack.c.l.b16 %v4473
        %v4687 = vunpack.c.l.b16 %v4474
        %v4688 = vunpack.c.l.b16 %v4475
        %v4689 = vunpack.c.l.b16 %v4476
        %v4690 = vunpack.c.l.b16 %v4477
        %v4691 = vunpack.c.l.b16 %v4478
        %v4692 = vunpack.c.l.b16 %v4479
        %v4693 = vunpack.c.l.b16 %v4480
        %v4694 = vunpack.c.l.b16 %v4481
        %v4695 = vunpack.c.l.b16 %v4482
        %v4696 = vunpack.c.l.b16 %v4483
        %v4697 = vunpack.c.l.b16 %v4484
        %v4698 = vunpack.c.l.b16 %v4485
        %v4699 = vunpack.c.l.b16 %v4486
        %v4700 = vunpack.c.l.b16 %v4487
        %v4701 = vunpack.c.l.b16 %v4488
        %v4702 = vunpack.c.l.b16 %v4489
        %v4703 = vunpack.c.l.b16 %v4490
        %v4704 = vunpack.c.l.b16 %v4491
        %v4705 = vunpack.c.l.b16 %v4492
        %v4706 = vunpack.c.l.b16 %v4493
        %v4707 = vunpack.c.l.b16 %v4494
        %v4708 = vunpack.c.l.b16 %v4495
        %v4709 = vunpack.c.l.b16 %v4496
        %v4710 = vunpack.c.l.b16 %v4497
        %v4711 = vunpack.c.l.b16 %v4498
        %v4712 = vunpack.c.l.b16 %v4499
        %v4713 = vunpack.c.l.b16 %v4500
        %v4714 = vpack.c.b16 %v4635, %v4634
        %v4715 = vpack.c.b16 %v4637, %v4636
        %v4716 = vpack.c.b16 %v4639, %v4638
        %v4717 = vpack.c.b16 %v4641, %v4640
        %v4718 = vpack.c.b16 %v4643, %v4642
        %v4719 = vpack.c.b16 %v4645, %v4644
        %v4720 = vpack.c.b16 %v4647, %v4646
        %v4721 = vpack.c.b16 %v4649, %v4648
        %v4722 = vpack.c.b16 %v4651, %v4650
        %v4723 = vpack.c.b16 %v4653, %v4652
        %v4724 = vpack.c.b16 %v4655, %v4654
        %v4725 = vpack.c.b16 %v4657, %v4656
        %v4726 = vpack.c.b16 %v4659, %v4658
        %v4727 = vpack.c.b16 %v4661, %v4660
        %v4728 = vpack.c.b16 %v4663, %v4662
        %v4729 = vpack.c.b16 %v4665, %v4664
        %v4730 = vpack.c.b16 %v4667, %v4666
        %v4731 = vpack.c.b16 %v4669, %v4668
        %v4732 = vpack.c.b16 %v4671, %v4670
        %v4733 = vpack.c.b16 %v4673, %v4672
        %v4734 = vpack.c.b16 %v4675, %v4674
        %v4735 = vpack.c.b16 %v4677, %v4676
        %v4736 = vpack.c.b16 %v4679, %v4678
        %v4737 = vpack.c.b16 %v4681, %v4680
        %v4738 = vpack.c.b16 %v4683, %v4682
        %v4739 = vpack.c.b16 %v4685, %v4684
        %v4740 = vpack.c.b16 %v4687, %v4686
        %v4741 = vpack.c.b16 %v4689, %v4688
        %v4742 = vpack.c.b16 %v4691, %v4690
        %v4743 = vpack.c.b16 %v4693, %v4692
        %v4744 = vpack.c.b16 %v4695, %v4694
        %v4745 = vpack.c.b16 %v4697, %v4696
        %v4746 = vpack.c.b16 %v4699, %v4698
        %v4747 = vpack.c.b16 %v4701, %v4700
        %v4748 = vpack.c.b16 %v4703, %v4702
        %v4749 = vpack.c.b16 %v4705, %v4704
        %v4750 = vpack.c.b16 %v4707, %v4706
        %v4751 = vpack.c.b16 %v4709, %v4708
        %v4752 = vpack.c.b16 %v4711, %v4710
        %v4753 = vpack.c.b16 %v4713, %v4712
        %4794 = vmatprep.subr.bf16.mxu0 0
        %4795 = vmatpush1.bf16.msra.mxu0 %v4714
        %4796 = vmatprep.subr.bf16.mxu0 0
        %4797 = vmatpush1.bf16.msra.mxu0 %v4715
        %4798 = vmatprep.subr.bf16.mxu0 0
        %4799 = vmatpush1.bf16.msra.mxu0 %v4716
        %4800 = vmatprep.subr.bf16.mxu0 0
        %4801 = vmatpush1.bf16.msra.mxu0 %v4717
        %4802 = vmatprep.subr.bf16.mxu0 0
        %4803 = vmatpush1.bf16.msra.mxu0 %v4718
        %4804 = vmatprep.subr.bf16.mxu0 0
        %4805 = vmatpush1.bf16.msra.mxu0 %v4719
        %4806 = vmatprep.subr.bf16.mxu0 0
        %4807 = vmatpush1.bf16.msra.mxu0 %v4720
        %4808 = vmatprep.subr.bf16.mxu0 0
        %4809 = vmatpush1.bf16.msra.mxu0 %v4721
        %4810 = vmatprep.subr.bf16.mxu0 0
        %4811 = vmatpush1.bf16.msra.mxu0 %v4722
        %4812 = vmatprep.subr.bf16.mxu0 0
        %4813 = vmatpush1.bf16.msra.mxu0 %v4723
        %4814 = vmatprep.subr.bf16.mxu0 0
        %4815 = vmatpush1.bf16.msra.mxu0 %v4724
        %4816 = vmatprep.subr.bf16.mxu0 0
        %4817 = vmatpush1.bf16.msra.mxu0 %v4725
        %4818 = vmatprep.subr.bf16.mxu0 0
        %4819 = vmatpush1.bf16.msra.mxu0 %v4726
        %4820 = vmatprep.subr.bf16.mxu0 0
        %4821 = vmatpush1.bf16.msra.mxu0 %v4727
        %4822 = vmatprep.subr.bf16.mxu0 0
        %4823 = vmatpush1.bf16.msra.mxu0 %v4728
        %4824 = vmatprep.subr.bf16.mxu0 0
        %4825 = vmatpush1.bf16.msra.mxu0 %v4729
        %4826 = vmatprep.mubr.bf16.mxu0 %v4528
        %4827 = vmatmul.mubr.bf16.gmra.mrb[0].mxu0 %v4512
        %v4828 = vpop.f32.mrb[0].mxu0
        %v4829 = vadd.f32 %v4553, %v4828
        %v4830 = vpop.f32.mrb[0].mxu0
        %v4831 = vpop.f32.mrb[0].mxu0
        %v4832 = vadd.f32 %v4553, %v4831
        %v4833 = vpop.f32.mrb[0].mxu0
        %4834 = vdwg.mxu0
        %4835 = vmatprep.subr.bf16.mxu0 0
        %4836 = vmatpush1.bf16.msra.mxu0 %v4730
        %4837 = vmatprep.subr.bf16.mxu0 0
        %4838 = vmatpush1.bf16.msra.mxu0 %v4731
        %4839 = vmatprep.subr.bf16.mxu0 0
        %4840 = vmatpush1.bf16.msra.mxu0 %v4732
        %4841 = vmatprep.subr.bf16.mxu0 0
        %4842 = vmatpush1.bf16.msra.mxu0 %v4733
        %4843 = vmatprep.subr.bf16.mxu0 0
        %4844 = vmatpush1.bf16.msra.mxu0 %v4734
        %4845 = vmatprep.subr.bf16.mxu0 0
        %4846 = vmatpush1.bf16.msra.mxu0 %v4735
        %4847 = vmatprep.subr.bf16.mxu0 0
        %4848 = vmatpush1.bf16.msra.mxu0 %v4736
        %4849 = vmatprep.subr.bf16.mxu0 0
        %4850 = vmatpush1.bf16.msra.mxu0 %v4737
        %4851 = vmatprep.subr.bf16.mxu0 0
        %4852 = vmatpush1.bf16.msra.mxu0 %v4738
        %4853 = vmatprep.subr.bf16.mxu0 0
        %4854 = vmatpush1.bf16.msra.mxu0 %v4739
        %4855 = vmatprep.subr.bf16.mxu0 0
        %4856 = vmatpush1.bf16.msra.mxu0 %v4740
        %4857 = vmatprep.subr.bf16.mxu0 0
        %4858 = vmatpush1.bf16.msra.mxu0 %v4741
        %4859 = vmatprep.subr.bf16.mxu0 0
        %4860 = vmatpush1.bf16.msra.mxu0 %v4742
        %4861 = vmatprep.subr.bf16.mxu0 0
        %4862 = vmatpush1.bf16.msra.mxu0 %v4743
        %4863 = vmatprep.subr.bf16.mxu0 0
        %4864 = vmatpush1.bf16.msra.mxu0 %v4744
        %4865 = vmatprep.subr.bf16.mxu0 0
        %4866 = vmatpush1.bf16.msra.mxu0 %v4745
        %4867 = vmatprep.mubr.bf16.mxu0 %v4544
        %4868 = vmatmul.mubr.bf16.gmra.mrb[0].mxu0 %v4534
        %v4869 = vpop.f32.mrb[0].mxu0
        %v4870 = vadd.f32 %v4829, %v4869
        %v4871 = vpop.f32.mrb[0].mxu0
        %v4872 = vpop.f32.mrb[0].mxu0
        %v4873 = vadd.f32 %v4832, %v4872
        %v4874 = vpop.f32.mrb[0].mxu0
        %4875 = vdwg.mxu0
        %4876 = vmatprep.subr.bf16.mxu0 0
        %4877 = vmatpush1.bf16.msra.mxu0 %v4746
        %4878 = vmatprep.subr.bf16.mxu0 0
        %4879 = vmatpush1.bf16.msra.mxu0 %v4747
        %4880 = vmatprep.subr.bf16.mxu0 0
        %4881 = vmatpush1.bf16.msra.mxu0 %v4748
        %4882 = vmatprep.subr.bf16.mxu0 0
        %4883 = vmatpush1.bf16.msra.mxu0 %v4749
        %4884 = vmatprep.subr.bf16.mxu0 0
        %4885 = vmatpush1.bf16.msra.mxu0 %v4750
        %4886 = vmatprep.subr.bf16.mxu0 0
        %4887 = vmatpush1.bf16.msra.mxu0 %v4751
        %4888 = vmatprep.subr.bf16.mxu0 0
        %4889 = vmatpush1.bf16.msra.mxu0 %v4752
        %4890 = vmatprep.subr.bf16.mxu0 0
        %4891 = vmatpush1.bf16.msra.mxu0 %v4753
        %4892 = vmatprep.subr.bf16.mxu0 0
        %4893 = vmatpush1.bf16.msra.mxu0 0
        %4894 = vmatprep.subr.bf16.mxu0 0
        %4895 = vmatpush1.bf16.msra.mxu0 0
        %4896 = vmatprep.subr.bf16.mxu0 0
        %4897 = vmatpush1.bf16.msra.mxu0 0
        %4898 = vmatprep.subr.bf16.mxu0 0
        %4899 = vmatpush1.bf16.msra.mxu0 0
        %4900 = vmatprep.subr.bf16.mxu0 0
        %4901 = vmatpush1.bf16.msra.mxu0 0
        %4902 = vmatprep.subr.bf16.mxu0 0
        %4903 = vmatpush1.bf16.msra.mxu0 0
        %4904 = vmatprep.subr.bf16.mxu0 0
        %4905 = vmatpush1.bf16.msra.mxu0 0
        %4906 = vmatprep.subr.bf16.mxu0 0
        %4907 = vmatpush1.bf16.msra.mxu0 0
        %4908 = vmatprep.mubr.bf16.mxu0 0
        %4909 = vmatmul.mubr.bf16.gmra.mrb[0].mxu0 %v4548
        %v4910 = vpop.f32.mrb[0].mxu0
        %v4911 = vadd.f32 %v4870, %v4910
        %v4912 = vpop.f32.mrb[0].mxu0
        %v4913 = vpop.f32.mrb[0].mxu0
        %v4914 = vadd.f32 %v4873, %v4913
        %v4915 = vpop.f32.mrb[0].mxu0
        %4916 = vdwg.mxu0
        %vm4917 = vcmp.ge.f32.partialorder %v4911, 0.0
        %vm4918 = vcmp.ge.f32.partialorder %v4914, 0.0
        %v4919 = vmul.f32 %v4911, 0.2
        %v4920 = vmul.f32 %v4914, 0.2
        %v4921 = vsel %vm4917, %v4911, %v4919
        %v4922 = vsel %vm4918, %v4914, %v4920
        %v4923 = vadd.f32 %v4921, %v4922
        %v4924 = vrot.slane %v4923, 4
        %v4925 = vadd.f32 %v4923, %v4924
        %v4926 = vrot.slane %v4925, 2
        %v4927 = vadd.f32 %v4925, %v4926
        %v4928 = vrot.slane %v4927, 1
        %v4929 = vadd.f32 %v4927, %v4928
        %v4930 = vmul.f32 %v4921, %v4921
        %v4931 = vmul.f32 %v4922, %v4922
        %v4932 = vadd.f32 %v4930, %v4931
        %v4933 = vrot.slane %v4932, 4
        %v4934 = vadd.f32 %v4932, %v4933
        %v4935 = vrot.slane %v4934, 2
        %v4936 = vadd.f32 %v4934, %v4935
        %v4937 = vrot.slane %v4936, 1
        %v4938 = vadd.f32 %v4936, %v4937
        %v4939 = vmul.f32 %v4929, 0.0625
        %v4940 = vmul.f32 %v4938, 0.0625
        %v4941 = vmul.f32 %v4939, %v4939
        %v4942 = vsub.f32 %v4940, %v4941
        %v4943 = vmax.f32 %v4942, 0.0
        %v4944 = vsub.f32 %v4921, %v4939
        %v4945 = vsub.f32 %v4922, %v4939
        %v4946 = vadd.f32 %v4943, 1e-05
        %v4947 = vrsqrt.pop %v4946
        %v4948 = vmul.f32 %v4944, %v4947
        %v4949 = vmul.f32 %v4945, %v4947
        %v4950 = vadd.f32 %v3914, %v4948
        %v4951 = vadd.f32 %v3915, %v4949
        %s4952 = scalar_lea.vmem [#allocation6], 640
        %v4953 = vld [vmem:[%s4952] sm:$0xf]
        %v4954 = vld [vmem:[%s4952 + $0x4] sm:$0xf]
        %v4955 = vld [vmem:[%s4952 + $0x8] sm:$0xf]
        %v4956 = vld [vmem:[%s4952 + $0xc] sm:$0xf]
        %v4957 = vld [vmem:[%s4952 + $0x10] sm:$0xf]
        %v4958 = vld [vmem:[%s4952 + $0x14] sm:$0xf]
        %v4959 = vld [vmem:[%s4952 + $0x18] sm:$0xf]
        %v4960 = vld [vmem:[%s4952 + $0x1c] sm:$0xf]
        %v4961 = vld [vmem:[%s4952 + $0x20] sm:$0xf]
        %v4962 = vld [vmem:[%s4952 + $0x24] sm:$0xf]
        %v4963 = vld [vmem:[%s4952 + $0x28] sm:$0xf]
        %v4964 = vld [vmem:[%s4952 + $0x2c] sm:$0xf]
        %v4965 = vld [vmem:[%s4952 + $0x30] sm:$0xf]
        %v4966 = vld [vmem:[%s4952 + $0x34] sm:$0xf]
        %v4967 = vld [vmem:[%s4952 + $0x38] sm:$0xf]
        %v4968 = vld [vmem:[%s4952 + $0x3c] sm:$0xf]
        %v4969 = vld [vmem:[%s4952 + $0x40] sm:$0xf]
        %v4970 = vld [vmem:[%s4952 + $0x44] sm:$0xf]
        %v4971 = vld [vmem:[%s4952 + $0x48] sm:$0xf]
        %v4972 = vld [vmem:[%s4952 + $0x4c] sm:$0xf]
        %v4973 = vld [vmem:[%s4952 + $0x50] sm:$0xf]
        %v4974 = vld [vmem:[%s4952 + $0x54] sm:$0xf]
        %v4975 = vld [vmem:[%s4952 + $0x58] sm:$0xf]
        %v4976 = vld [vmem:[%s4952 + $0x5c] sm:$0xf]
        %v4977 = vld [vmem:[%s4952 + $0x60] sm:$0xf]
        %v4978 = vld [vmem:[%s4952 + $0x64] sm:$0xf]
        %v4979 = vld [vmem:[%s4952 + $0x68] sm:$0xf]
        %v4980 = vld [vmem:[%s4952 + $0x6c] sm:$0xf]
        %v4981 = vld [vmem:[%s4952 + $0x70] sm:$0xf]
        %v4982 = vld [vmem:[%s4952 + $0x74] sm:$0xf]
        %v4983 = vld [vmem:[%s4952 + $0x78] sm:$0xf]
        %v4984 = vld [vmem:[%s4952 + $0x7c] sm:$0xf]
        %v4985 = vld [vmem:[%s4952 + $0x80] sm:$0xf]
        %v4986 = vld [vmem:[%s4952 + $0x84] sm:$0xf]
        %v4987 = vld [vmem:[%s4952 + $0x88] sm:$0xf]
        %v4988 = vld [vmem:[%s4952 + $0x8c] sm:$0xf]
        %v4989 = vld [vmem:[%s4952 + $0x90] sm:$0xf]
        %v4990 = vld [vmem:[%s4952 + $0x94] sm:$0xf]
        %v4991 = vld [vmem:[%s4952 + $0x98] sm:$0xf]
        %v4992 = vld [vmem:[%s4952 + $0x9c] sm:$0xf]
        %v4993 = vld [vmem:[%s4952 + $0xa0] sm:$0xf]
        %v4994 = vld [vmem:[%s4952 + $0xa4] sm:$0xf]
        %v4995 = vld [vmem:[%s4952 + $0xa8] sm:$0xf]
        %v4996 = vld [vmem:[%s4952 + $0xac] sm:$0xf]
        %v4997 = vld [vmem:[%s4952 + $0xb0] sm:$0xf]
        %v4998 = vld [vmem:[%s4952 + $0xb4] sm:$0xf]
        %v4999 = vld [vmem:[%s4952 + $0xb8] sm:$0xf]
        %v5000 = vld [vmem:[%s4952 + $0xbc] sm:$0xf]
        %v5001 = vld [vmem:[%s4952 + $0xc0] sm:$0xf]
        %v5002 = vld [vmem:[%s4952 + $0xc4] sm:$0xf]
        %v5003 = vld [vmem:[%s4952 + $0xc8] sm:$0xf]
        %v5004 = vld [vmem:[%s4952 + $0xcc] sm:$0xf]
        %v5005 = vld [vmem:[%s4952 + $0xd0] sm:$0xf]
        %v5006 = vld [vmem:[%s4952 + $0xd4] sm:$0xf]
        %v5007 = vld [vmem:[%s4952 + $0xd8] sm:$0xf]
        %v5008 = vld [vmem:[%s4952 + $0xdc] sm:$0xf]
        %v5009 = vld [vmem:[%s4952 + $0xe0] sm:$0xf]
        %v5010 = vld [vmem:[%s4952 + $0xe4] sm:$0xf]
        %v5011 = vld [vmem:[%s4952 + $0xe8] sm:$0xf]
        %v5012 = vld [vmem:[%s4952 + $0xec] sm:$0xf]
        %v5013 = vld [vmem:[%s4952 + $0xf0] sm:$0xf]
        %v5014 = vld [vmem:[%s4952 + $0xf4] sm:$0xf]
        %v5015 = vld [vmem:[%s4952 + $0xf8] sm:$0xf]
        %v5016 = vld [vmem:[%s4952 + $0xfc] sm:$0xf]
        %v5017 = vld [vmem:[%s4952 + $0x100] sm:$0xf]
        %v5018 = vld [vmem:[%s4952 + $0x104] sm:$0xf]
        %v5019 = vld [vmem:[%s4952 + $0x108] sm:$0xf]
        %v5020 = vld [vmem:[%s4952 + $0x10c] sm:$0xf]
        %v5021 = vld [vmem:[%s4952 + $0x110] sm:$0xf]
        %v5022 = vld [vmem:[%s4952 + $0x114] sm:$0xf]
        %v5023 = vld [vmem:[%s4952 + $0x118] sm:$0xf]
        %v5024 = vld [vmem:[%s4952 + $0x11c] sm:$0xf]
        %v5025 = vld [vmem:[%s4952 + $0x120] sm:$0xf]
        %v5026 = vld [vmem:[%s4952 + $0x124] sm:$0xf]
        %v5027 = vld [vmem:[%s4952 + $0x128] sm:$0xf]
        %v5028 = vld [vmem:[%s4952 + $0x12c] sm:$0xf]
        %v5029 = vld [vmem:[%s4952 + $0x130] sm:$0xf]
        %v5030 = vld [vmem:[%s4952 + $0x134] sm:$0xf]
        %v5031 = vld [vmem:[%s4952 + $0x138] sm:$0xf]
        %v5032 = vld [vmem:[%s4952 + $0x13c] sm:$0xf]
        %v5033 = vpack.c.bf16 %v4951, %v4950
        %v5035 = vrot.slane %v5033, 1
        %v5037 = vrot.slane %v5033, 7
        %v5038 = vrot.slane %v5033, 6
        %v5039 = vrot.slane %v5033, 5
        %v5041 = vsel %vm417, %v5035, %v5033
        %v5044 = vsel %vm419, %v5041, %v5037
        %v5047 = vsel %vm419, %v5037, %v5038
        %v5049 = vsel %vm426, %v5047, %v5039
        %v5050 = vshrl.u32 %v5044, 16
        %v5052 = vshll.u32 %v5044, 16
        %v5054 = vrot.slane %v5052, 1
        %v5055 = vor.u32 %v5050, %v5054
        %v5057 = vshll.u32 %v5049, 16
        %v5059 = vrot.slane %v5057, 1
        %v5060 = vsel %vm438, %v5055, %v5059
        %v5064 = vrot.slane %v5044, 1
        %v5065 = vrot.slane %v5049, 1
        %v5066 = vsel %vm454, %v5064, %v5065
        %v5068 = vrot.slane %v5050, 1
        %v5069 = vrot.slane %v5052, 2
        %v5070 = vor.u32 %v5068, %v5069
        %v5071 = vshrl.u32 %v5049, 16
        %v5073 = vrot.slane %v5071, 1
        %v5074 = vrot.slane %v5057, 2
        %v5075 = vor.u32 %v5073, %v5074
        %v5076 = vsel %vm459, %v5070, %v5075
        %v5078 = vrot.slane %v5044, 2
        %v5079 = vrot.slane %v5049, 2
        %v5080 = vsel %vm470, %v5078, %v5079
        %v5082 = vlaneseq
        %v5083 = vshrl.u32 %v5082, 7
        %v5084 = vsub.s32 2, %v5083
        %v5085 = vrot.slane %v3916, %v5084
        %v5166 = vunpack.c.l.b16 %v4953
        %v5167 = vunpack.c.l.b16 %v4954
        %v5168 = vunpack.c.l.b16 %v4955
        %v5169 = vunpack.c.l.b16 %v4956
        %v5170 = vunpack.c.l.b16 %v4957
        %v5171 = vunpack.c.l.b16 %v4958
        %v5172 = vunpack.c.l.b16 %v4959
        %v5173 = vunpack.c.l.b16 %v4960
        %v5174 = vunpack.c.l.b16 %v4961
        %v5175 = vunpack.c.l.b16 %v4962
        %v5176 = vunpack.c.l.b16 %v4963
        %v5177 = vunpack.c.l.b16 %v4964
        %v5178 = vunpack.c.l.b16 %v4965
        %v5179 = vunpack.c.l.b16 %v4966
        %v5180 = vunpack.c.l.b16 %v4967
        %v5181 = vunpack.c.l.b16 %v4968
        %v5182 = vunpack.c.l.b16 %v4969
        %v5183 = vunpack.c.l.b16 %v4970
        %v5184 = vunpack.c.l.b16 %v4971
        %v5185 = vunpack.c.l.b16 %v4972
        %v5186 = vunpack.c.l.b16 %v4973
        %v5187 = vunpack.c.l.b16 %v4974
        %v5188 = vunpack.c.l.b16 %v4975
        %v5189 = vunpack.c.l.b16 %v4976
        %v5190 = vunpack.c.l.b16 %v4977
        %v5191 = vunpack.c.l.b16 %v4978
        %v5192 = vunpack.c.l.b16 %v4979
        %v5193 = vunpack.c.l.b16 %v4980
        %v5194 = vunpack.c.l.b16 %v4981
        %v5195 = vunpack.c.l.b16 %v4982
        %v5196 = vunpack.c.l.b16 %v4983
        %v5197 = vunpack.c.l.b16 %v4984
        %v5198 = vunpack.c.l.b16 %v4985
        %v5199 = vunpack.c.l.b16 %v4986
        %v5200 = vunpack.c.l.b16 %v4987
        %v5201 = vunpack.c.l.b16 %v4988
        %v5202 = vunpack.c.l.b16 %v4989
        %v5203 = vunpack.c.l.b16 %v4990
        %v5204 = vunpack.c.l.b16 %v4991
        %v5205 = vunpack.c.l.b16 %v4992
        %v5206 = vunpack.c.l.b16 %v4993
        %v5207 = vunpack.c.l.b16 %v4994
        %v5208 = vunpack.c.l.b16 %v4995
        %v5209 = vunpack.c.l.b16 %v4996
        %v5210 = vunpack.c.l.b16 %v4997
        %v5211 = vunpack.c.l.b16 %v4998
        %v5212 = vunpack.c.l.b16 %v4999
        %v5213 = vunpack.c.l.b16 %v5000
        %v5214 = vunpack.c.l.b16 %v5001
        %v5215 = vunpack.c.l.b16 %v5002
        %v5216 = vunpack.c.l.b16 %v5003
        %v5217 = vunpack.c.l.b16 %v5004
        %v5218 = vunpack.c.l.b16 %v5005
        %v5219 = vunpack.c.l.b16 %v5006
        %v5220 = vunpack.c.l.b16 %v5007
        %v5221 = vunpack.c.l.b16 %v5008
        %v5222 = vunpack.c.l.b16 %v5009
        %v5223 = vunpack.c.l.b16 %v5010
        %v5224 = vunpack.c.l.b16 %v5011
        %v5225 = vunpack.c.l.b16 %v5012
        %v5226 = vunpack.c.l.b16 %v5013
        %v5227 = vunpack.c.l.b16 %v5014
        %v5228 = vunpack.c.l.b16 %v5015
        %v5229 = vunpack.c.l.b16 %v5016
        %v5230 = vunpack.c.l.b16 %v5017
        %v5231 = vunpack.c.l.b16 %v5018
        %v5232 = vunpack.c.l.b16 %v5019
        %v5233 = vunpack.c.l.b16 %v5020
        %v5234 = vunpack.c.l.b16 %v5021
        %v5235 = vunpack.c.l.b16 %v5022
        %v5236 = vunpack.c.l.b16 %v5023
        %v5237 = vunpack.c.l.b16 %v5024
        %v5238 = vunpack.c.l.b16 %v5025
        %v5239 = vunpack.c.l.b16 %v5026
        %v5240 = vunpack.c.l.b16 %v5027
        %v5241 = vunpack.c.l.b16 %v5028
        %v5242 = vunpack.c.l.b16 %v5029
        %v5243 = vunpack.c.l.b16 %v5030
        %v5244 = vunpack.c.l.b16 %v5031
        %v5245 = vunpack.c.l.b16 %v5032
        %v5246 = vpack.c.b16 %v5167, %v5166
        %v5247 = vpack.c.b16 %v5169, %v5168
        %v5248 = vpack.c.b16 %v5171, %v5170
        %v5249 = vpack.c.b16 %v5173, %v5172
        %v5250 = vpack.c.b16 %v5175, %v5174
        %v5251 = vpack.c.b16 %v5177, %v5176
        %v5252 = vpack.c.b16 %v5179, %v5178
        %v5253 = vpack.c.b16 %v5181, %v5180
        %v5254 = vpack.c.b16 %v5183, %v5182
        %v5255 = vpack.c.b16 %v5185, %v5184
        %v5256 = vpack.c.b16 %v5187, %v5186
        %v5257 = vpack.c.b16 %v5189, %v5188
        %v5258 = vpack.c.b16 %v5191, %v5190
        %v5259 = vpack.c.b16 %v5193, %v5192
        %v5260 = vpack.c.b16 %v5195, %v5194
        %v5261 = vpack.c.b16 %v5197, %v5196
        %v5262 = vpack.c.b16 %v5199, %v5198
        %v5263 = vpack.c.b16 %v5201, %v5200
        %v5264 = vpack.c.b16 %v5203, %v5202
        %v5265 = vpack.c.b16 %v5205, %v5204
        %v5266 = vpack.c.b16 %v5207, %v5206
        %v5267 = vpack.c.b16 %v5209, %v5208
        %v5268 = vpack.c.b16 %v5211, %v5210
        %v5269 = vpack.c.b16 %v5213, %v5212
        %v5270 = vpack.c.b16 %v5215, %v5214
        %v5271 = vpack.c.b16 %v5217, %v5216
        %v5272 = vpack.c.b16 %v5219, %v5218
        %v5273 = vpack.c.b16 %v5221, %v5220
        %v5274 = vpack.c.b16 %v5223, %v5222
        %v5275 = vpack.c.b16 %v5225, %v5224
        %v5276 = vpack.c.b16 %v5227, %v5226
        %v5277 = vpack.c.b16 %v5229, %v5228
        %v5278 = vpack.c.b16 %v5231, %v5230
        %v5279 = vpack.c.b16 %v5233, %v5232
        %v5280 = vpack.c.b16 %v5235, %v5234
        %v5281 = vpack.c.b16 %v5237, %v5236
        %v5282 = vpack.c.b16 %v5239, %v5238
        %v5283 = vpack.c.b16 %v5241, %v5240
        %v5284 = vpack.c.b16 %v5243, %v5242
        %v5285 = vpack.c.b16 %v5245, %v5244
        %5326 = vmatprep.subr.bf16.mxu0 0
        %5327 = vmatpush1.bf16.msra.mxu0 %v5246
        %5328 = vmatprep.subr.bf16.mxu0 0
        %5329 = vmatpush1.bf16.msra.mxu0 %v5247
        %5330 = vmatprep.subr.bf16.mxu0 0
        %5331 = vmatpush1.bf16.msra.mxu0 %v5248
        %5332 = vmatprep.subr.bf16.mxu0 0
        %5333 = vmatpush1.bf16.msra.mxu0 %v5249
        %5334 = vmatprep.subr.bf16.mxu0 0
        %5335 = vmatpush1.bf16.msra.mxu0 %v5250
        %5336 = vmatprep.subr.bf16.mxu0 0
        %5337 = vmatpush1.bf16.msra.mxu0 %v5251
        %5338 = vmatprep.subr.bf16.mxu0 0
        %5339 = vmatpush1.bf16.msra.mxu0 %v5252
        %5340 = vmatprep.subr.bf16.mxu0 0
        %5341 = vmatpush1.bf16.msra.mxu0 %v5253
        %5342 = vmatprep.subr.bf16.mxu0 0
        %5343 = vmatpush1.bf16.msra.mxu0 %v5254
        %5344 = vmatprep.subr.bf16.mxu0 0
        %5345 = vmatpush1.bf16.msra.mxu0 %v5255
        %5346 = vmatprep.subr.bf16.mxu0 0
        %5347 = vmatpush1.bf16.msra.mxu0 %v5256
        %5348 = vmatprep.subr.bf16.mxu0 0
        %5349 = vmatpush1.bf16.msra.mxu0 %v5257
        %5350 = vmatprep.subr.bf16.mxu0 0
        %5351 = vmatpush1.bf16.msra.mxu0 %v5258
        %5352 = vmatprep.subr.bf16.mxu0 0
        %5353 = vmatpush1.bf16.msra.mxu0 %v5259
        %5354 = vmatprep.subr.bf16.mxu0 0
        %5355 = vmatpush1.bf16.msra.mxu0 %v5260
        %5356 = vmatprep.subr.bf16.mxu0 0
        %5357 = vmatpush1.bf16.msra.mxu0 %v5261
        %5358 = vmatprep.mubr.bf16.mxu0 %v5060
        %5359 = vmatmul.mubr.bf16.gmra.mrb[0].mxu0 %v5044
        %v5360 = vpop.f32.mrb[0].mxu0
        %v5361 = vadd.f32 %v5085, %v5360
        %v5362 = vpop.f32.mrb[0].mxu0
        %v5363 = vpop.f32.mrb[0].mxu0
        %v5364 = vadd.f32 %v5085, %v5363
        %v5365 = vpop.f32.mrb[0].mxu0
        %5366 = vdwg.mxu0
        %5367 = vmatprep.subr.bf16.mxu0 0
        %5368 = vmatpush1.bf16.msra.mxu0 %v5262
        %5369 = vmatprep.subr.bf16.mxu0 0
        %5370 = vmatpush1.bf16.msra.mxu0 %v5263
        %5371 = vmatprep.subr.bf16.mxu0 0
        %5372 = vmatpush1.bf16.msra.mxu0 %v5264
        %5373 = vmatprep.subr.bf16.mxu0 0
        %5374 = vmatpush1.bf16.msra.mxu0 %v5265
        %5375 = vmatprep.subr.bf16.mxu0 0
        %5376 = vmatpush1.bf16.msra.mxu0 %v5266
        %5377 = vmatprep.subr.bf16.mxu0 0
        %5378 = vmatpush1.bf16.msra.mxu0 %v5267
        %5379 = vmatprep.subr.bf16.mxu0 0
        %5380 = vmatpush1.bf16.msra.mxu0 %v5268
        %5381 = vmatprep.subr.bf16.mxu0 0
        %5382 = vmatpush1.bf16.msra.mxu0 %v5269
        %5383 = vmatprep.subr.bf16.mxu0 0
        %5384 = vmatpush1.bf16.msra.mxu0 %v5270
        %5385 = vmatprep.subr.bf16.mxu0 0
        %5386 = vmatpush1.bf16.msra.mxu0 %v5271
        %5387 = vmatprep.subr.bf16.mxu0 0
        %5388 = vmatpush1.bf16.msra.mxu0 %v5272
        %5389 = vmatprep.subr.bf16.mxu0 0
        %5390 = vmatpush1.bf16.msra.mxu0 %v5273
        %5391 = vmatprep.subr.bf16.mxu0 0
        %5392 = vmatpush1.bf16.msra.mxu0 %v5274
        %5393 = vmatprep.subr.bf16.mxu0 0
        %5394 = vmatpush1.bf16.msra.mxu0 %v5275
        %5395 = vmatprep.subr.bf16.mxu0 0
        %5396 = vmatpush1.bf16.msra.mxu0 %v5276
        %5397 = vmatprep.subr.bf16.mxu0 0
        %5398 = vmatpush1.bf16.msra.mxu0 %v5277
        %5399 = vmatprep.mubr.bf16.mxu0 %v5076
        %5400 = vmatmul.mubr.bf16.gmra.mrb[0].mxu0 %v5066
        %v5401 = vpop.f32.mrb[0].mxu0
        %v5402 = vadd.f32 %v5361, %v5401
        %v5403 = vpop.f32.mrb[0].mxu0
        %v5404 = vpop.f32.mrb[0].mxu0
        %v5405 = vadd.f32 %v5364, %v5404
        %v5406 = vpop.f32.mrb[0].mxu0
        %5407 = vdwg.mxu0
        %5408 = vmatprep.subr.bf16.mxu0 0
        %5409 = vmatpush1.bf16.msra.mxu0 %v5278
        %5410 = vmatprep.subr.bf16.mxu0 0
        %5411 = vmatpush1.bf16.msra.mxu0 %v5279
        %5412 = vmatprep.subr.bf16.mxu0 0
        %5413 = vmatpush1.bf16.msra.mxu0 %v5280
        %5414 = vmatprep.subr.bf16.mxu0 0
        %5415 = vmatpush1.bf16.msra.mxu0 %v5281
        %5416 = vmatprep.subr.bf16.mxu0 0
        %5417 = vmatpush1.bf16.msra.mxu0 %v5282
        %5418 = vmatprep.subr.bf16.mxu0 0
        %5419 = vmatpush1.bf16.msra.mxu0 %v5283
        %5420 = vmatprep.subr.bf16.mxu0 0
        %5421 = vmatpush1.bf16.msra.mxu0 %v5284
        %5422 = vmatprep.subr.bf16.mxu0 0
        %5423 = vmatpush1.bf16.msra.mxu0 %v5285
        %5424 = vmatprep.subr.bf16.mxu0 0
        %5425 = vmatpush1.bf16.msra.mxu0 0
        %5426 = vmatprep.subr.bf16.mxu0 0
        %5427 = vmatpush1.bf16.msra.mxu0 0
        %5428 = vmatprep.subr.bf16.mxu0 0
        %5429 = vmatpush1.bf16.msra.mxu0 0
        %5430 = vmatprep.subr.bf16.mxu0 0
        %5431 = vmatpush1.bf16.msra.mxu0 0
        %5432 = vmatprep.subr.bf16.mxu0 0
        %5433 = vmatpush1.bf16.msra.mxu0 0
        %5434 = vmatprep.subr.bf16.mxu0 0
        %5435 = vmatpush1.bf16.msra.mxu0 0
        %5436 = vmatprep.subr.bf16.mxu0 0
        %5437 = vmatpush1.bf16.msra.mxu0 0
        %5438 = vmatprep.subr.bf16.mxu0 0
        %5439 = vmatpush1.bf16.msra.mxu0 0
        %5440 = vmatprep.mubr.bf16.mxu0 0
        %5441 = vmatmul.mubr.bf16.gmra.mrb[0].mxu0 %v5080
        %v5442 = vpop.f32.mrb[0].mxu0
        %v5443 = vadd.f32 %v5402, %v5442
        %v5444 = vpop.f32.mrb[0].mxu0
        %v5445 = vpop.f32.mrb[0].mxu0
        %v5446 = vadd.f32 %v5405, %v5445
        %v5447 = vpop.f32.mrb[0].mxu0
        %5448 = vdwg.mxu0
        %vm5449 = vcmp.ge.f32.partialorder %v5443, 0.0
        %vm5450 = vcmp.ge.f32.partialorder %v5446, 0.0
        %v5451 = vmul.f32 %v5443, 0.2
        %v5452 = vmul.f32 %v5446, 0.2
        %v5453 = vsel %vm5449, %v5443, %v5451
        %v5454 = vsel %vm5450, %v5446, %v5452
        %s5455 = scalar_lea.vmem [#allocation6], 960
        %v5456 = vld [vmem:[%s5455] sm:$0xf]
        %v5457 = vld [vmem:[%s5455 + $0x4] sm:$0xf]
        %v5458 = vld [vmem:[%s5455 + $0x8] sm:$0xf]
        %v5459 = vld [vmem:[%s5455 + $0xc] sm:$0xf]
        %v5460 = vld [vmem:[%s5455 + $0x10] sm:$0xf]
        %v5461 = vld [vmem:[%s5455 + $0x14] sm:$0xf]
        %v5462 = vld [vmem:[%s5455 + $0x18] sm:$0xf]
        %v5463 = vld [vmem:[%s5455 + $0x1c] sm:$0xf]
        %v5464 = vld [vmem:[%s5455 + $0x20] sm:$0xf]
        %v5465 = vld [vmem:[%s5455 + $0x24] sm:$0xf]
        %v5466 = vld [vmem:[%s5455 + $0x28] sm:$0xf]
        %v5467 = vld [vmem:[%s5455 + $0x2c] sm:$0xf]
        %v5468 = vld [vmem:[%s5455 + $0x30] sm:$0xf]
        %v5469 = vld [vmem:[%s5455 + $0x34] sm:$0xf]
        %v5470 = vld [vmem:[%s5455 + $0x38] sm:$0xf]
        %v5471 = vld [vmem:[%s5455 + $0x3c] sm:$0xf]
        %v5472 = vld [vmem:[%s5455 + $0x40] sm:$0xf]
        %v5473 = vld [vmem:[%s5455 + $0x44] sm:$0xf]
        %v5474 = vld [vmem:[%s5455 + $0x48] sm:$0xf]
        %v5475 = vld [vmem:[%s5455 + $0x4c] sm:$0xf]
        %v5476 = vld [vmem:[%s5455 + $0x50] sm:$0xf]
        %v5477 = vld [vmem:[%s5455 + $0x54] sm:$0xf]
        %v5478 = vld [vmem:[%s5455 + $0x58] sm:$0xf]
        %v5479 = vld [vmem:[%s5455 + $0x5c] sm:$0xf]
        %v5480 = vld [vmem:[%s5455 + $0x60] sm:$0xf]
        %v5481 = vld [vmem:[%s5455 + $0x64] sm:$0xf]
        %v5482 = vld [vmem:[%s5455 + $0x68] sm:$0xf]
        %v5483 = vld [vmem:[%s5455 + $0x6c] sm:$0xf]
        %v5484 = vld [vmem:[%s5455 + $0x70] sm:$0xf]
        %v5485 = vld [vmem:[%s5455 + $0x74] sm:$0xf]
        %v5486 = vld [vmem:[%s5455 + $0x78] sm:$0xf]
        %v5487 = vld [vmem:[%s5455 + $0x7c] sm:$0xf]
        %v5488 = vld [vmem:[%s5455 + $0x80] sm:$0xf]
        %v5489 = vld [vmem:[%s5455 + $0x84] sm:$0xf]
        %v5490 = vld [vmem:[%s5455 + $0x88] sm:$0xf]
        %v5491 = vld [vmem:[%s5455 + $0x8c] sm:$0xf]
        %v5492 = vld [vmem:[%s5455 + $0x90] sm:$0xf]
        %v5493 = vld [vmem:[%s5455 + $0x94] sm:$0xf]
        %v5494 = vld [vmem:[%s5455 + $0x98] sm:$0xf]
        %v5495 = vld [vmem:[%s5455 + $0x9c] sm:$0xf]
        %v5496 = vld [vmem:[%s5455 + $0xa0] sm:$0xf]
        %v5497 = vld [vmem:[%s5455 + $0xa4] sm:$0xf]
        %v5498 = vld [vmem:[%s5455 + $0xa8] sm:$0xf]
        %v5499 = vld [vmem:[%s5455 + $0xac] sm:$0xf]
        %v5500 = vld [vmem:[%s5455 + $0xb0] sm:$0xf]
        %v5501 = vld [vmem:[%s5455 + $0xb4] sm:$0xf]
        %v5502 = vld [vmem:[%s5455 + $0xb8] sm:$0xf]
        %v5503 = vld [vmem:[%s5455 + $0xbc] sm:$0xf]
        %v5504 = vld [vmem:[%s5455 + $0xc0] sm:$0xf]
        %v5505 = vld [vmem:[%s5455 + $0xc4] sm:$0xf]
        %v5506 = vld [vmem:[%s5455 + $0xc8] sm:$0xf]
        %v5507 = vld [vmem:[%s5455 + $0xcc] sm:$0xf]
        %v5508 = vld [vmem:[%s5455 + $0xd0] sm:$0xf]
        %v5509 = vld [vmem:[%s5455 + $0xd4] sm:$0xf]
        %v5510 = vld [vmem:[%s5455 + $0xd8] sm:$0xf]
        %v5511 = vld [vmem:[%s5455 + $0xdc] sm:$0xf]
        %v5512 = vld [vmem:[%s5455 + $0xe0] sm:$0xf]
        %v5513 = vld [vmem:[%s5455 + $0xe4] sm:$0xf]
        %v5514 = vld [vmem:[%s5455 + $0xe8] sm:$0xf]
        %v5515 = vld [vmem:[%s5455 + $0xec] sm:$0xf]
        %v5516 = vld [vmem:[%s5455 + $0xf0] sm:$0xf]
        %v5517 = vld [vmem:[%s5455 + $0xf4] sm:$0xf]
        %v5518 = vld [vmem:[%s5455 + $0xf8] sm:$0xf]
        %v5519 = vld [vmem:[%s5455 + $0xfc] sm:$0xf]
        %v5520 = vld [vmem:[%s5455 + $0x100] sm:$0xf]
        %v5521 = vld [vmem:[%s5455 + $0x104] sm:$0xf]
        %v5522 = vld [vmem:[%s5455 + $0x108] sm:$0xf]
        %v5523 = vld [vmem:[%s5455 + $0x10c] sm:$0xf]
        %v5524 = vld [vmem:[%s5455 + $0x110] sm:$0xf]
        %v5525 = vld [vmem:[%s5455 + $0x114] sm:$0xf]
        %v5526 = vld [vmem:[%s5455 + $0x118] sm:$0xf]
        %v5527 = vld [vmem:[%s5455 + $0x11c] sm:$0xf]
        %v5528 = vld [vmem:[%s5455 + $0x120] sm:$0xf]
        %v5529 = vld [vmem:[%s5455 + $0x124] sm:$0xf]
        %v5530 = vld [vmem:[%s5455 + $0x128] sm:$0xf]
        %v5531 = vld [vmem:[%s5455 + $0x12c] sm:$0xf]
        %v5532 = vld [vmem:[%s5455 + $0x130] sm:$0xf]
        %v5533 = vld [vmem:[%s5455 + $0x134] sm:$0xf]
        %v5534 = vld [vmem:[%s5455 + $0x138] sm:$0xf]
        %v5535 = vld [vmem:[%s5455 + $0x13c] sm:$0xf]
        %v5536 = vpack.c.bf16 %v5454, %v5453
        %v5538 = vrot.slane %v5536, 1
        %v5540 = vrot.slane %v5536, 7
        %v5541 = vrot.slane %v5536, 6
        %v5542 = vrot.slane %v5536, 5
        %v5544 = vsel %vm417, %v5538, %v5536
        %v5547 = vsel %vm419, %v5544, %v5540
        %v5550 = vsel %vm419, %v5540, %v5541
        %v5552 = vsel %vm426, %v5550, %v5542
        %v5553 = vshrl.u32 %v5547, 16
        %v5555 = vshll.u32 %v5547, 16
        %v5557 = vrot.slane %v5555, 1
        %v5558 = vor.u32 %v5553, %v5557
        %v5560 = vshll.u32 %v5552, 16
        %v5562 = vrot.slane %v5560, 1
        %v5563 = vsel %vm438, %v5558, %v5562
        %v5567 = vrot.slane %v5547, 1
        %v5568 = vrot.slane %v5552, 1
        %v5569 = vsel %vm454, %v5567, %v5568
        %v5571 = vrot.slane %v5553, 1
        %v5572 = vrot.slane %v5555, 2
        %v5573 = vor.u32 %v5571, %v5572
        %v5574 = vshrl.u32 %v5552, 16
        %v5576 = vrot.slane %v5574, 1
        %v5577 = vrot.slane %v5560, 2
        %v5578 = vor.u32 %v5576, %v5577
        %v5579 = vsel %vm459, %v5573, %v5578
        %v5581 = vrot.slane %v5547, 2
        %v5582 = vrot.slane %v5552, 2
        %v5583 = vsel %vm470, %v5581, %v5582
        %v5585 = vlaneseq
        %v5586 = vshrl.u32 %v5585, 7
        %v5587 = vsub.s32 3, %v5586
        %v5588 = vrot.slane %v3916, %v5587
        %v5669 = vunpack.c.l.b16 %v5456
        %v5670 = vunpack.c.l.b16 %v5457
        %v5671 = vunpack.c.l.b16 %v5458
        %v5672 = vunpack.c.l.b16 %v5459
        %v5673 = vunpack.c.l.b16 %v5460
        %v5674 = vunpack.c.l.b16 %v5461
        %v5675 = vunpack.c.l.b16 %v5462
        %v5676 = vunpack.c.l.b16 %v5463
        %v5677 = vunpack.c.l.b16 %v5464
        %v5678 = vunpack.c.l.b16 %v5465
        %v5679 = vunpack.c.l.b16 %v5466
        %v5680 = vunpack.c.l.b16 %v5467
        %v5681 = vunpack.c.l.b16 %v5468
        %v5682 = vunpack.c.l.b16 %v5469
        %v5683 = vunpack.c.l.b16 %v5470
        %v5684 = vunpack.c.l.b16 %v5471
        %v5685 = vunpack.c.l.b16 %v5472
        %v5686 = vunpack.c.l.b16 %v5473
        %v5687 = vunpack.c.l.b16 %v5474
        %v5688 = vunpack.c.l.b16 %v5475
        %v5689 = vunpack.c.l.b16 %v5476
        %v5690 = vunpack.c.l.b16 %v5477
        %v5691 = vunpack.c.l.b16 %v5478
        %v5692 = vunpack.c.l.b16 %v5479
        %v5693 = vunpack.c.l.b16 %v5480
        %v5694 = vunpack.c.l.b16 %v5481
        %v5695 = vunpack.c.l.b16 %v5482
        %v5696 = vunpack.c.l.b16 %v5483
        %v5697 = vunpack.c.l.b16 %v5484
        %v5698 = vunpack.c.l.b16 %v5485
        %v5699 = vunpack.c.l.b16 %v5486
        %v5700 = vunpack.c.l.b16 %v5487
        %v5701 = vunpack.c.l.b16 %v5488
        %v5702 = vunpack.c.l.b16 %v5489
        %v5703 = vunpack.c.l.b16 %v5490
        %v5704 = vunpack.c.l.b16 %v5491
        %v5705 = vunpack.c.l.b16 %v5492
        %v5706 = vunpack.c.l.b16 %v5493
        %v5707 = vunpack.c.l.b16 %v5494
        %v5708 = vunpack.c.l.b16 %v5495
        %v5709 = vunpack.c.l.b16 %v5496
        %v5710 = vunpack.c.l.b16 %v5497
        %v5711 = vunpack.c.l.b16 %v5498
        %v5712 = vunpack.c.l.b16 %v5499
        %v5713 = vunpack.c.l.b16 %v5500
        %v5714 = vunpack.c.l.b16 %v5501
        %v5715 = vunpack.c.l.b16 %v5502
        %v5716 = vunpack.c.l.b16 %v5503
        %v5717 = vunpack.c.l.b16 %v5504
        %v5718 = vunpack.c.l.b16 %v5505
        %v5719 = vunpack.c.l.b16 %v5506
        %v5720 = vunpack.c.l.b16 %v5507
        %v5721 = vunpack.c.l.b16 %v5508
        %v5722 = vunpack.c.l.b16 %v5509
        %v5723 = vunpack.c.l.b16 %v5510
        %v5724 = vunpack.c.l.b16 %v5511
        %v5725 = vunpack.c.l.b16 %v5512
        %v5726 = vunpack.c.l.b16 %v5513
        %v5727 = vunpack.c.l.b16 %v5514
        %v5728 = vunpack.c.l.b16 %v5515
        %v5729 = vunpack.c.l.b16 %v5516
        %v5730 = vunpack.c.l.b16 %v5517
        %v5731 = vunpack.c.l.b16 %v5518
        %v5732 = vunpack.c.l.b16 %v5519
        %v5733 = vunpack.c.l.b16 %v5520
        %v5734 = vunpack.c.l.b16 %v5521
        %v5735 = vunpack.c.l.b16 %v5522
        %v5736 = vunpack.c.l.b16 %v5523
        %v5737 = vunpack.c.l.b16 %v5524
        %v5738 = vunpack.c.l.b16 %v5525
        %v5739 = vunpack.c.l.b16 %v5526
        %v5740 = vunpack.c.l.b16 %v5527
        %v5741 = vunpack.c.l.b16 %v5528
        %v5742 = vunpack.c.l.b16 %v5529
        %v5743 = vunpack.c.l.b16 %v5530
        %v5744 = vunpack.c.l.b16 %v5531
        %v5745 = vunpack.c.l.b16 %v5532
        %v5746 = vunpack.c.l.b16 %v5533
        %v5747 = vunpack.c.l.b16 %v5534
        %v5748 = vunpack.c.l.b16 %v5535
        %v5749 = vpack.c.b16 %v5670, %v5669
        %v5750 = vpack.c.b16 %v5672, %v5671
        %v5751 = vpack.c.b16 %v5674, %v5673
        %v5752 = vpack.c.b16 %v5676, %v5675
        %v5753 = vpack.c.b16 %v5678, %v5677
        %v5754 = vpack.c.b16 %v5680, %v5679
        %v5755 = vpack.c.b16 %v5682, %v5681
        %v5756 = vpack.c.b16 %v5684, %v5683
        %v5757 = vpack.c.b16 %v5686, %v5685
        %v5758 = vpack.c.b16 %v5688, %v5687
        %v5759 = vpack.c.b16 %v5690, %v5689
        %v5760 = vpack.c.b16 %v5692, %v5691
        %v5761 = vpack.c.b16 %v5694, %v5693
        %v5762 = vpack.c.b16 %v5696, %v5695
        %v5763 = vpack.c.b16 %v5698, %v5697
        %v5764 = vpack.c.b16 %v5700, %v5699
        %v5765 = vpack.c.b16 %v5702, %v5701
        %v5766 = vpack.c.b16 %v5704, %v5703
        %v5767 = vpack.c.b16 %v5706, %v5705
        %v5768 = vpack.c.b16 %v5708, %v5707
        %v5769 = vpack.c.b16 %v5710, %v5709
        %v5770 = vpack.c.b16 %v5712, %v5711
        %v5771 = vpack.c.b16 %v5714, %v5713
        %v5772 = vpack.c.b16 %v5716, %v5715
        %v5773 = vpack.c.b16 %v5718, %v5717
        %v5774 = vpack.c.b16 %v5720, %v5719
        %v5775 = vpack.c.b16 %v5722, %v5721
        %v5776 = vpack.c.b16 %v5724, %v5723
        %v5777 = vpack.c.b16 %v5726, %v5725
        %v5778 = vpack.c.b16 %v5728, %v5727
        %v5779 = vpack.c.b16 %v5730, %v5729
        %v5780 = vpack.c.b16 %v5732, %v5731
        %v5781 = vpack.c.b16 %v5734, %v5733
        %v5782 = vpack.c.b16 %v5736, %v5735
        %v5783 = vpack.c.b16 %v5738, %v5737
        %v5784 = vpack.c.b16 %v5740, %v5739
        %v5785 = vpack.c.b16 %v5742, %v5741
        %v5786 = vpack.c.b16 %v5744, %v5743
        %v5787 = vpack.c.b16 %v5746, %v5745
        %v5788 = vpack.c.b16 %v5748, %v5747
        %5829 = vmatprep.subr.bf16.mxu0 0
        %5830 = vmatpush1.bf16.msra.mxu0 %v5749
        %5831 = vmatprep.subr.bf16.mxu0 0
        %5832 = vmatpush1.bf16.msra.mxu0 %v5750
        %5833 = vmatprep.subr.bf16.mxu0 0
        %5834 = vmatpush1.bf16.msra.mxu0 %v5751
        %5835 = vmatprep.subr.bf16.mxu0 0
        %5836 = vmatpush1.bf16.msra.mxu0 %v5752
        %5837 = vmatprep.subr.bf16.mxu0 0
        %5838 = vmatpush1.bf16.msra.mxu0 %v5753
        %5839 = vmatprep.subr.bf16.mxu0 0
        %5840 = vmatpush1.bf16.msra.mxu0 %v5754
        %5841 = vmatprep.subr.bf16.mxu0 0
        %5842 = vmatpush1.bf16.msra.mxu0 %v5755
        %5843 = vmatprep.subr.bf16.mxu0 0
        %5844 = vmatpush1.bf16.msra.mxu0 %v5756
        %5845 = vmatprep.subr.bf16.mxu0 0
        %5846 = vmatpush1.bf16.msra.mxu0 %v5757
        %5847 = vmatprep.subr.bf16.mxu0 0
        %5848 = vmatpush1.bf16.msra.mxu0 %v5758
        %5849 = vmatprep.subr.bf16.mxu0 0
        %5850 = vmatpush1.bf16.msra.mxu0 %v5759
        %5851 = vmatprep.subr.bf16.mxu0 0
        %5852 = vmatpush1.bf16.msra.mxu0 %v5760
        %5853 = vmatprep.subr.bf16.mxu0 0
        %5854 = vmatpush1.bf16.msra.mxu0 %v5761
        %5855 = vmatprep.subr.bf16.mxu0 0
        %5856 = vmatpush1.bf16.msra.mxu0 %v5762
        %5857 = vmatprep.subr.bf16.mxu0 0
        %5858 = vmatpush1.bf16.msra.mxu0 %v5763
        %5859 = vmatprep.subr.bf16.mxu0 0
        %5860 = vmatpush1.bf16.msra.mxu0 %v5764
        %5861 = vmatprep.mubr.bf16.mxu0 %v5563
        %5862 = vmatmul.mubr.bf16.gmra.mrb[0].mxu0 %v5547
        %v5863 = vpop.f32.mrb[0].mxu0
        %v5864 = vadd.f32 %v5588, %v5863
        %v5865 = vpop.f32.mrb[0].mxu0
        %v5866 = vpop.f32.mrb[0].mxu0
        %v5867 = vadd.f32 %v5588, %v5866
        %v5868 = vpop.f32.mrb[0].mxu0
        %5869 = vdwg.mxu0
        %5870 = vmatprep.subr.bf16.mxu0 0
        %5871 = vmatpush1.bf16.msra.mxu0 %v5765
        %5872 = vmatprep.subr.bf16.mxu0 0
        %5873 = vmatpush1.bf16.msra.mxu0 %v5766
        %5874 = vmatprep.subr.bf16.mxu0 0
        %5875 = vmatpush1.bf16.msra.mxu0 %v5767
        %5876 = vmatprep.subr.bf16.mxu0 0
        %5877 = vmatpush1.bf16.msra.mxu0 %v5768
        %5878 = vmatprep.subr.bf16.mxu0 0
        %5879 = vmatpush1.bf16.msra.mxu0 %v5769
        %5880 = vmatprep.subr.bf16.mxu0 0
        %5881 = vmatpush1.bf16.msra.mxu0 %v5770
        %5882 = vmatprep.subr.bf16.mxu0 0
        %5883 = vmatpush1.bf16.msra.mxu0 %v5771
        %5884 = vmatprep.subr.bf16.mxu0 0
        %5885 = vmatpush1.bf16.msra.mxu0 %v5772
        %5886 = vmatprep.subr.bf16.mxu0 0
        %5887 = vmatpush1.bf16.msra.mxu0 %v5773
        %5888 = vmatprep.subr.bf16.mxu0 0
        %5889 = vmatpush1.bf16.msra.mxu0 %v5774
        %5890 = vmatprep.subr.bf16.mxu0 0
        %5891 = vmatpush1.bf16.msra.mxu0 %v5775
        %5892 = vmatprep.subr.bf16.mxu0 0
        %5893 = vmatpush1.bf16.msra.mxu0 %v5776
        %5894 = vmatprep.subr.bf16.mxu0 0
        %5895 = vmatpush1.bf16.msra.mxu0 %v5777
        %5896 = vmatprep.subr.bf16.mxu0 0
        %5897 = vmatpush1.bf16.msra.mxu0 %v5778
        %5898 = vmatprep.subr.bf16.mxu0 0
        %5899 = vmatpush1.bf16.msra.mxu0 %v5779
        %5900 = vmatprep.subr.bf16.mxu0 0
        %5901 = vmatpush1.bf16.msra.mxu0 %v5780
        %5902 = vmatprep.mubr.bf16.mxu0 %v5579
        %5903 = vmatmul.mubr.bf16.gmra.mrb[0].mxu0 %v5569
        %v5904 = vpop.f32.mrb[0].mxu0
        %v5905 = vadd.f32 %v5864, %v5904
        %v5906 = vpop.f32.mrb[0].mxu0
        %v5907 = vpop.f32.mrb[0].mxu0
        %v5908 = vadd.f32 %v5867, %v5907
        %v5909 = vpop.f32.mrb[0].mxu0
        %5910 = vdwg.mxu0
        %5911 = vmatprep.subr.bf16.mxu0 0
        %5912 = vmatpush1.bf16.msra.mxu0 %v5781
        %5913 = vmatprep.subr.bf16.mxu0 0
        %5914 = vmatpush1.bf16.msra.mxu0 %v5782
        %5915 = vmatprep.subr.bf16.mxu0 0
        %5916 = vmatpush1.bf16.msra.mxu0 %v5783
        %5917 = vmatprep.subr.bf16.mxu0 0
        %5918 = vmatpush1.bf16.msra.mxu0 %v5784
        %5919 = vmatprep.subr.bf16.mxu0 0
        %5920 = vmatpush1.bf16.msra.mxu0 %v5785
        %5921 = vmatprep.subr.bf16.mxu0 0
        %5922 = vmatpush1.bf16.msra.mxu0 %v5786
        %5923 = vmatprep.subr.bf16.mxu0 0
        %5924 = vmatpush1.bf16.msra.mxu0 %v5787
        %5925 = vmatprep.subr.bf16.mxu0 0
        %5926 = vmatpush1.bf16.msra.mxu0 %v5788
        %5927 = vmatprep.subr.bf16.mxu0 0
        %5928 = vmatpush1.bf16.msra.mxu0 0
        %5929 = vmatprep.subr.bf16.mxu0 0
        %5930 = vmatpush1.bf16.msra.mxu0 0
        %5931 = vmatprep.subr.bf16.mxu0 0
        %5932 = vmatpush1.bf16.msra.mxu0 0
        %5933 = vmatprep.subr.bf16.mxu0 0
        %5934 = vmatpush1.bf16.msra.mxu0 0
        %5935 = vmatprep.subr.bf16.mxu0 0
        %5936 = vmatpush1.bf16.msra.mxu0 0
        %5937 = vmatprep.subr.bf16.mxu0 0
        %5938 = vmatpush1.bf16.msra.mxu0 0
        %5939 = vmatprep.subr.bf16.mxu0 0
        %5940 = vmatpush1.bf16.msra.mxu0 0
        %5941 = vmatprep.subr.bf16.mxu0 0
        %5942 = vmatpush1.bf16.msra.mxu0 0
        %5943 = vmatprep.mubr.bf16.mxu0 0
        %5944 = vmatmul.mubr.bf16.gmra.mrb[0].mxu0 %v5583
        %v5945 = vpop.f32.mrb[0].mxu0
        %v5946 = vadd.f32 %v5905, %v5945
        %v5947 = vpop.f32.mrb[0].mxu0
        %v5948 = vpop.f32.mrb[0].mxu0
        %v5949 = vadd.f32 %v5908, %v5948
        %v5950 = vpop.f32.mrb[0].mxu0
        %5951 = vdwg.mxu0
        %vm5952 = vcmp.ge.f32.partialorder %v5946, 0.0
        %vm5953 = vcmp.ge.f32.partialorder %v5949, 0.0
        %v5954 = vmul.f32 %v5946, 0.2
        %v5955 = vmul.f32 %v5949, 0.2
        %v5956 = vsel %vm5952, %v5946, %v5954
        %v5957 = vsel %vm5953, %v5949, %v5955
        %v5958 = vadd.f32 %v5956, %v5957
        %v5959 = vrot.slane %v5958, 4
        %v5960 = vadd.f32 %v5958, %v5959
        %v5961 = vrot.slane %v5960, 2
        %v5962 = vadd.f32 %v5960, %v5961
        %v5963 = vrot.slane %v5962, 1
        %v5964 = vadd.f32 %v5962, %v5963
        %v5965 = vmul.f32 %v5956, %v5956
        %v5966 = vmul.f32 %v5957, %v5957
        %v5967 = vadd.f32 %v5965, %v5966
        %v5968 = vrot.slane %v5967, 4
        %v5969 = vadd.f32 %v5967, %v5968
        %v5970 = vrot.slane %v5969, 2
        %v5971 = vadd.f32 %v5969, %v5970
        %v5972 = vrot.slane %v5971, 1
        %v5973 = vadd.f32 %v5971, %v5972
        %v5974 = vmul.f32 %v5964, 0.0625
        %v5975 = vmul.f32 %v5973, 0.0625
        %v5976 = vmul.f32 %v5974, %v5974
        %v5977 = vsub.f32 %v5975, %v5976
        %v5978 = vmax.f32 %v5977, 0.0
        %v5979 = vsub.f32 %v5956, %v5974
        %v5980 = vsub.f32 %v5957, %v5974
        %v5981 = vadd.f32 %v5978, 1e-05
        %v5982 = vrsqrt.pop %v5981
        %v5983 = vmul.f32 %v5979, %v5982
        %v5984 = vmul.f32 %v5980, %v5982
        %v5985 = vadd.f32 %v4950, %v5983
        %v5986 = vadd.f32 %v4951, %v5984
        %s5987 = scalar_lea.vmem [#allocation6], 1280
        %v5988 = vld [vmem:[%s5987] sm:$0xf]
        %v5989 = vld [vmem:[%s5987 + $0x4] sm:$0xf]
        %v5990 = vld [vmem:[%s5987 + $0x8] sm:$0xf]
        %v5991 = vld [vmem:[%s5987 + $0xc] sm:$0xf]
        %v5992 = vld [vmem:[%s5987 + $0x10] sm:$0xf]
        %v5993 = vld [vmem:[%s5987 + $0x14] sm:$0xf]
        %v5994 = vld [vmem:[%s5987 + $0x18] sm:$0xf]
        %v5995 = vld [vmem:[%s5987 + $0x1c] sm:$0xf]
        %v5996 = vld [vmem:[%s5987 + $0x20] sm:$0xf]
        %v5997 = vld [vmem:[%s5987 + $0x24] sm:$0xf]
        %v5998 = vld [vmem:[%s5987 + $0x28] sm:$0xf]
        %v5999 = vld [vmem:[%s5987 + $0x2c] sm:$0xf]
        %v6000 = vld [vmem:[%s5987 + $0x30] sm:$0xf]
        %v6001 = vld [vmem:[%s5987 + $0x34] sm:$0xf]
        %v6002 = vld [vmem:[%s5987 + $0x38] sm:$0xf]
        %v6003 = vld [vmem:[%s5987 + $0x3c] sm:$0xf]
        %v6004 = vld [vmem:[%s5987 + $0x40] sm:$0xf]
        %v6005 = vld [vmem:[%s5987 + $0x44] sm:$0xf]
        %v6006 = vld [vmem:[%s5987 + $0x48] sm:$0xf]
        %v6007 = vld [vmem:[%s5987 + $0x4c] sm:$0xf]
        %v6008 = vld [vmem:[%s5987 + $0x50] sm:$0xf]
        %v6009 = vld [vmem:[%s5987 + $0x54] sm:$0xf]
        %v6010 = vld [vmem:[%s5987 + $0x58] sm:$0xf]
        %v6011 = vld [vmem:[%s5987 + $0x5c] sm:$0xf]
        %v6012 = vld [vmem:[%s5987 + $0x60] sm:$0xf]
        %v6013 = vld [vmem:[%s5987 + $0x64] sm:$0xf]
        %v6014 = vld [vmem:[%s5987 + $0x68] sm:$0xf]
        %v6015 = vld [vmem:[%s5987 + $0x6c] sm:$0xf]
        %v6016 = vld [vmem:[%s5987 + $0x70] sm:$0xf]
        %v6017 = vld [vmem:[%s5987 + $0x74] sm:$0xf]
        %v6018 = vld [vmem:[%s5987 + $0x78] sm:$0xf]
        %v6019 = vld [vmem:[%s5987 + $0x7c] sm:$0xf]
        %v6020 = vld [vmem:[%s5987 + $0x80] sm:$0xf]
        %v6021 = vld [vmem:[%s5987 + $0x84] sm:$0xf]
        %v6022 = vld [vmem:[%s5987 + $0x88] sm:$0xf]
        %v6023 = vld [vmem:[%s5987 + $0x8c] sm:$0xf]
        %v6024 = vld [vmem:[%s5987 + $0x90] sm:$0xf]
        %v6025 = vld [vmem:[%s5987 + $0x94] sm:$0xf]
        %v6026 = vld [vmem:[%s5987 + $0x98] sm:$0xf]
        %v6027 = vld [vmem:[%s5987 + $0x9c] sm:$0xf]
        %v6028 = vld [vmem:[%s5987 + $0xa0] sm:$0xf]
        %v6029 = vld [vmem:[%s5987 + $0xa4] sm:$0xf]
        %v6030 = vld [vmem:[%s5987 + $0xa8] sm:$0xf]
        %v6031 = vld [vmem:[%s5987 + $0xac] sm:$0xf]
        %v6032 = vld [vmem:[%s5987 + $0xb0] sm:$0xf]
        %v6033 = vld [vmem:[%s5987 + $0xb4] sm:$0xf]
        %v6034 = vld [vmem:[%s5987 + $0xb8] sm:$0xf]
        %v6035 = vld [vmem:[%s5987 + $0xbc] sm:$0xf]
        %v6036 = vld [vmem:[%s5987 + $0xc0] sm:$0xf]
        %v6037 = vld [vmem:[%s5987 + $0xc4] sm:$0xf]
        %v6038 = vld [vmem:[%s5987 + $0xc8] sm:$0xf]
        %v6039 = vld [vmem:[%s5987 + $0xcc] sm:$0xf]
        %v6040 = vld [vmem:[%s5987 + $0xd0] sm:$0xf]
        %v6041 = vld [vmem:[%s5987 + $0xd4] sm:$0xf]
        %v6042 = vld [vmem:[%s5987 + $0xd8] sm:$0xf]
        %v6043 = vld [vmem:[%s5987 + $0xdc] sm:$0xf]
        %v6044 = vld [vmem:[%s5987 + $0xe0] sm:$0xf]
        %v6045 = vld [vmem:[%s5987 + $0xe4] sm:$0xf]
        %v6046 = vld [vmem:[%s5987 + $0xe8] sm:$0xf]
        %v6047 = vld [vmem:[%s5987 + $0xec] sm:$0xf]
        %v6048 = vld [vmem:[%s5987 + $0xf0] sm:$0xf]
        %v6049 = vld [vmem:[%s5987 + $0xf4] sm:$0xf]
        %v6050 = vld [vmem:[%s5987 + $0xf8] sm:$0xf]
        %v6051 = vld [vmem:[%s5987 + $0xfc] sm:$0xf]
        %v6052 = vld [vmem:[%s5987 + $0x100] sm:$0xf]
        %v6053 = vld [vmem:[%s5987 + $0x104] sm:$0xf]
        %v6054 = vld [vmem:[%s5987 + $0x108] sm:$0xf]
        %v6055 = vld [vmem:[%s5987 + $0x10c] sm:$0xf]
        %v6056 = vld [vmem:[%s5987 + $0x110] sm:$0xf]
        %v6057 = vld [vmem:[%s5987 + $0x114] sm:$0xf]
        %v6058 = vld [vmem:[%s5987 + $0x118] sm:$0xf]
        %v6059 = vld [vmem:[%s5987 + $0x11c] sm:$0xf]
        %v6060 = vld [vmem:[%s5987 + $0x120] sm:$0xf]
        %v6061 = vld [vmem:[%s5987 + $0x124] sm:$0xf]
        %v6062 = vld [vmem:[%s5987 + $0x128] sm:$0xf]
        %v6063 = vld [vmem:[%s5987 + $0x12c] sm:$0xf]
        %v6064 = vld [vmem:[%s5987 + $0x130] sm:$0xf]
        %v6065 = vld [vmem:[%s5987 + $0x134] sm:$0xf]
        %v6066 = vld [vmem:[%s5987 + $0x138] sm:$0xf]
        %v6067 = vld [vmem:[%s5987 + $0x13c] sm:$0xf]
        %v6068 = vpack.c.bf16 %v5986, %v5985
        %v6070 = vrot.slane %v6068, 1
        %v6072 = vrot.slane %v6068, 7
        %v6073 = vrot.slane %v6068, 6
        %v6074 = vrot.slane %v6068, 5
        %v6076 = vsel %vm417, %v6070, %v6068
        %v6079 = vsel %vm419, %v6076, %v6072
        %v6082 = vsel %vm419, %v6072, %v6073
        %v6084 = vsel %vm426, %v6082, %v6074
        %v6085 = vshrl.u32 %v6079, 16
        %v6087 = vshll.u32 %v6079, 16
        %v6089 = vrot.slane %v6087, 1
        %v6090 = vor.u32 %v6085, %v6089
        %v6092 = vshll.u32 %v6084, 16
        %v6094 = vrot.slane %v6092, 1
        %v6095 = vsel %vm438, %v6090, %v6094
        %v6099 = vrot.slane %v6079, 1
        %v6100 = vrot.slane %v6084, 1
        %v6101 = vsel %vm454, %v6099, %v6100
        %v6103 = vrot.slane %v6085, 1
        %v6104 = vrot.slane %v6087, 2
        %v6105 = vor.u32 %v6103, %v6104
        %v6106 = vshrl.u32 %v6084, 16
        %v6108 = vrot.slane %v6106, 1
        %v6109 = vrot.slane %v6092, 2
        %v6110 = vor.u32 %v6108, %v6109
        %v6111 = vsel %vm459, %v6105, %v6110
        %v6113 = vrot.slane %v6079, 2
        %v6114 = vrot.slane %v6084, 2
        %v6115 = vsel %vm470, %v6113, %v6114
        %v6117 = vlaneseq
        %v6118 = vshrl.u32 %v6117, 7
        %v6119 = vsub.s32 4, %v6118
        %v6120 = vrot.slane %v3916, %v6119
        %v6201 = vunpack.c.l.b16 %v5988
        %v6202 = vunpack.c.l.b16 %v5989
        %v6203 = vunpack.c.l.b16 %v5990
        %v6204 = vunpack.c.l.b16 %v5991
        %v6205 = vunpack.c.l.b16 %v5992
        %v6206 = vunpack.c.l.b16 %v5993
        %v6207 = vunpack.c.l.b16 %v5994
        %v6208 = vunpack.c.l.b16 %v5995
        %v6209 = vunpack.c.l.b16 %v5996
        %v6210 = vunpack.c.l.b16 %v5997
        %v6211 = vunpack.c.l.b16 %v5998
        %v6212 = vunpack.c.l.b16 %v5999
        %v6213 = vunpack.c.l.b16 %v6000
        %v6214 = vunpack.c.l.b16 %v6001
        %v6215 = vunpack.c.l.b16 %v6002
        %v6216 = vunpack.c.l.b16 %v6003
        %v6217 = vunpack.c.l.b16 %v6004
        %v6218 = vunpack.c.l.b16 %v6005
        %v6219 = vunpack.c.l.b16 %v6006
        %v6220 = vunpack.c.l.b16 %v6007
        %v6221 = vunpack.c.l.b16 %v6008
        %v6222 = vunpack.c.l.b16 %v6009
        %v6223 = vunpack.c.l.b16 %v6010
        %v6224 = vunpack.c.l.b16 %v6011
        %v6225 = vunpack.c.l.b16 %v6012
        %v6226 = vunpack.c.l.b16 %v6013
        %v6227 = vunpack.c.l.b16 %v6014
        %v6228 = vunpack.c.l.b16 %v6015
        %v6229 = vunpack.c.l.b16 %v6016
        %v6230 = vunpack.c.l.b16 %v6017
        %v6231 = vunpack.c.l.b16 %v6018
        %v6232 = vunpack.c.l.b16 %v6019
        %v6233 = vunpack.c.l.b16 %v6020
        %v6234 = vunpack.c.l.b16 %v6021
        %v6235 = vunpack.c.l.b16 %v6022
        %v6236 = vunpack.c.l.b16 %v6023
        %v6237 = vunpack.c.l.b16 %v6024
        %v6238 = vunpack.c.l.b16 %v6025
        %v6239 = vunpack.c.l.b16 %v6026
        %v6240 = vunpack.c.l.b16 %v6027
        %v6241 = vunpack.c.l.b16 %v6028
        %v6242 = vunpack.c.l.b16 %v6029
        %v6243 = vunpack.c.l.b16 %v6030
        %v6244 = vunpack.c.l.b16 %v6031
        %v6245 = vunpack.c.l.b16 %v6032
        %v6246 = vunpack.c.l.b16 %v6033
        %v6247 = vunpack.c.l.b16 %v6034
        %v6248 = vunpack.c.l.b16 %v6035
        %v6249 = vunpack.c.l.b16 %v6036
        %v6250 = vunpack.c.l.b16 %v6037
        %v6251 = vunpack.c.l.b16 %v6038
        %v6252 = vunpack.c.l.b16 %v6039
        %v6253 = vunpack.c.l.b16 %v6040
        %v6254 = vunpack.c.l.b16 %v6041
        %v6255 = vunpack.c.l.b16 %v6042
        %v6256 = vunpack.c.l.b16 %v6043
        %v6257 = vunpack.c.l.b16 %v6044
        %v6258 = vunpack.c.l.b16 %v6045
        %v6259 = vunpack.c.l.b16 %v6046
        %v6260 = vunpack.c.l.b16 %v6047
        %v6261 = vunpack.c.l.b16 %v6048
        %v6262 = vunpack.c.l.b16 %v6049
        %v6263 = vunpack.c.l.b16 %v6050
        %v6264 = vunpack.c.l.b16 %v6051
        %v6265 = vunpack.c.l.b16 %v6052
        %v6266 = vunpack.c.l.b16 %v6053
        %v6267 = vunpack.c.l.b16 %v6054
        %v6268 = vunpack.c.l.b16 %v6055
        %v6269 = vunpack.c.l.b16 %v6056
        %v6270 = vunpack.c.l.b16 %v6057
        %v6271 = vunpack.c.l.b16 %v6058
        %v6272 = vunpack.c.l.b16 %v6059
        %v6273 = vunpack.c.l.b16 %v6060
        %v6274 = vunpack.c.l.b16 %v6061
        %v6275 = vunpack.c.l.b16 %v6062
        %v6276 = vunpack.c.l.b16 %v6063
        %v6277 = vunpack.c.l.b16 %v6064
        %v6278 = vunpack.c.l.b16 %v6065
        %v6279 = vunpack.c.l.b16 %v6066
        %v6280 = vunpack.c.l.b16 %v6067
        %v6281 = vpack.c.b16 %v6202, %v6201
        %v6282 = vpack.c.b16 %v6204, %v6203
        %v6283 = vpack.c.b16 %v6206, %v6205
        %v6284 = vpack.c.b16 %v6208, %v6207
        %v6285 = vpack.c.b16 %v6210, %v6209
        %v6286 = vpack.c.b16 %v6212, %v6211
        %v6287 = vpack.c.b16 %v6214, %v6213
        %v6288 = vpack.c.b16 %v6216, %v6215
        %v6289 = vpack.c.b16 %v6218, %v6217
        %v6290 = vpack.c.b16 %v6220, %v6219
        %v6291 = vpack.c.b16 %v6222, %v6221
        %v6292 = vpack.c.b16 %v6224, %v6223
        %v6293 = vpack.c.b16 %v6226, %v6225
        %v6294 = vpack.c.b16 %v6228, %v6227
        %v6295 = vpack.c.b16 %v6230, %v6229
        %v6296 = vpack.c.b16 %v6232, %v6231
        %v6297 = vpack.c.b16 %v6234, %v6233
        %v6298 = vpack.c.b16 %v6236, %v6235
        %v6299 = vpack.c.b16 %v6238, %v6237
        %v6300 = vpack.c.b16 %v6240, %v6239
        %v6301 = vpack.c.b16 %v6242, %v6241
        %v6302 = vpack.c.b16 %v6244, %v6243
        %v6303 = vpack.c.b16 %v6246, %v6245
        %v6304 = vpack.c.b16 %v6248, %v6247
        %v6305 = vpack.c.b16 %v6250, %v6249
        %v6306 = vpack.c.b16 %v6252, %v6251
        %v6307 = vpack.c.b16 %v6254, %v6253
        %v6308 = vpack.c.b16 %v6256, %v6255
        %v6309 = vpack.c.b16 %v6258, %v6257
        %v6310 = vpack.c.b16 %v6260, %v6259
        %v6311 = vpack.c.b16 %v6262, %v6261
        %v6312 = vpack.c.b16 %v6264, %v6263
        %v6313 = vpack.c.b16 %v6266, %v6265
        %v6314 = vpack.c.b16 %v6268, %v6267
        %v6315 = vpack.c.b16 %v6270, %v6269
        %v6316 = vpack.c.b16 %v6272, %v6271
        %v6317 = vpack.c.b16 %v6274, %v6273
        %v6318 = vpack.c.b16 %v6276, %v6275
        %v6319 = vpack.c.b16 %v6278, %v6277
        %v6320 = vpack.c.b16 %v6280, %v6279
        %6361 = vmatprep.subr.bf16.mxu0 0
        %6362 = vmatpush1.bf16.msra.mxu0 %v6281
        %6363 = vmatprep.subr.bf16.mxu0 0
        %6364 = vmatpush1.bf16.msra.mxu0 %v6282
        %6365 = vmatprep.subr.bf16.mxu0 0
        %6366 = vmatpush1.bf16.msra.mxu0 %v6283
        %6367 = vmatprep.subr.bf16.mxu0 0
        %6368 = vmatpush1.bf16.msra.mxu0 %v6284
        %6369 = vmatprep.subr.bf16.mxu0 0
        %6370 = vmatpush1.bf16.msra.mxu0 %v6285
        %6371 = vmatprep.subr.bf16.mxu0 0
        %6372 = vmatpush1.bf16.msra.mxu0 %v6286
        %6373 = vmatprep.subr.bf16.mxu0 0
        %6374 = vmatpush1.bf16.msra.mxu0 %v6287
        %6375 = vmatprep.subr.bf16.mxu0 0
        %6376 = vmatpush1.bf16.msra.mxu0 %v6288
        %6377 = vmatprep.subr.bf16.mxu0 0
        %6378 = vmatpush1.bf16.msra.mxu0 %v6289
        %6379 = vmatprep.subr.bf16.mxu0 0
        %6380 = vmatpush1.bf16.msra.mxu0 %v6290
        %6381 = vmatprep.subr.bf16.mxu0 0
        %6382 = vmatpush1.bf16.msra.mxu0 %v6291
        %6383 = vmatprep.subr.bf16.mxu0 0
        %6384 = vmatpush1.bf16.msra.mxu0 %v6292
        %6385 = vmatprep.subr.bf16.mxu0 0
        %6386 = vmatpush1.bf16.msra.mxu0 %v6293
        %6387 = vmatprep.subr.bf16.mxu0 0
        %6388 = vmatpush1.bf16.msra.mxu0 %v6294
        %6389 = vmatprep.subr.bf16.mxu0 0
        %6390 = vmatpush1.bf16.msra.mxu0 %v6295
        %6391 = vmatprep.subr.bf16.mxu0 0
        %6392 = vmatpush1.bf16.msra.mxu0 %v6296
        %6393 = vmatprep.mubr.bf16.mxu0 %v6095
        %6394 = vmatmul.mubr.bf16.gmra.mrb[0].mxu0 %v6079
        %v6395 = vpop.f32.mrb[0].mxu0
        %v6396 = vadd.f32 %v6120, %v6395
        %v6397 = vpop.f32.mrb[0].mxu0
        %v6398 = vpop.f32.mrb[0].mxu0
        %v6399 = vadd.f32 %v6120, %v6398
        %v6400 = vpop.f32.mrb[0].mxu0
        %6401 = vdwg.mxu0
        %6402 = vmatprep.subr.bf16.mxu0 0
        %6403 = vmatpush1.bf16.msra.mxu0 %v6297
        %6404 = vmatprep.subr.bf16.mxu0 0
        %6405 = vmatpush1.bf16.msra.mxu0 %v6298
        %6406 = vmatprep.subr.bf16.mxu0 0
        %6407 = vmatpush1.bf16.msra.mxu0 %v6299
        %6408 = vmatprep.subr.bf16.mxu0 0
        %6409 = vmatpush1.bf16.msra.mxu0 %v6300
        %6410 = vmatprep.subr.bf16.mxu0 0
        %6411 = vmatpush1.bf16.msra.mxu0 %v6301
        %6412 = vmatprep.subr.bf16.mxu0 0
        %6413 = vmatpush1.bf16.msra.mxu0 %v6302
        %6414 = vmatprep.subr.bf16.mxu0 0
        %6415 = vmatpush1.bf16.msra.mxu0 %v6303
        %6416 = vmatprep.subr.bf16.mxu0 0
        %6417 = vmatpush1.bf16.msra.mxu0 %v6304
        %6418 = vmatprep.subr.bf16.mxu0 0
        %6419 = vmatpush1.bf16.msra.mxu0 %v6305
        %6420 = vmatprep.subr.bf16.mxu0 0
        %6421 = vmatpush1.bf16.msra.mxu0 %v6306
        %6422 = vmatprep.subr.bf16.mxu0 0
        %6423 = vmatpush1.bf16.msra.mxu0 %v6307
        %6424 = vmatprep.subr.bf16.mxu0 0
        %6425 = vmatpush1.bf16.msra.mxu0 %v6308
        %6426 = vmatprep.subr.bf16.mxu0 0
        %6427 = vmatpush1.bf16.msra.mxu0 %v6309
        %6428 = vmatprep.subr.bf16.mxu0 0
        %6429 = vmatpush1.bf16.msra.mxu0 %v6310
        %6430 = vmatprep.subr.bf16.mxu0 0
        %6431 = vmatpush1.bf16.msra.mxu0 %v6311
        %6432 = vmatprep.subr.bf16.mxu0 0
        %6433 = vmatpush1.bf16.msra.mxu0 %v6312
        %6434 = vmatprep.mubr.bf16.mxu0 %v6111
        %6435 = vmatmul.mubr.bf16.gmra.mrb[0].mxu0 %v6101
        %v6436 = vpop.f32.mrb[0].mxu0
        %v6437 = vadd.f32 %v6396, %v6436
        %v6438 = vpop.f32.mrb[0].mxu0
        %v6439 = vpop.f32.mrb[0].mxu0
        %v6440 = vadd.f32 %v6399, %v6439
        %v6441 = vpop.f32.mrb[0].mxu0
        %6442 = vdwg.mxu0
        %6443 = vmatprep.subr.bf16.mxu0 0
        %6444 = vmatpush1.bf16.msra.mxu0 %v6313
        %6445 = vmatprep.subr.bf16.mxu0 0
        %6446 = vmatpush1.bf16.msra.mxu0 %v6314
        %6447 = vmatprep.subr.bf16.mxu0 0
        %6448 = vmatpush1.bf16.msra.mxu0 %v6315
        %6449 = vmatprep.subr.bf16.mxu0 0
        %6450 = vmatpush1.bf16.msra.mxu0 %v6316
        %6451 = vmatprep.subr.bf16.mxu0 0
        %6452 = vmatpush1.bf16.msra.mxu0 %v6317
        %6453 = vmatprep.subr.bf16.mxu0 0
        %6454 = vmatpush1.bf16.msra.mxu0 %v6318
        %6455 = vmatprep.subr.bf16.mxu0 0
        %6456 = vmatpush1.bf16.msra.mxu0 %v6319
        %6457 = vmatprep.subr.bf16.mxu0 0
        %6458 = vmatpush1.bf16.msra.mxu0 %v6320
        %6459 = vmatprep.subr.bf16.mxu0 0
        %6460 = vmatpush1.bf16.msra.mxu0 0
        %6461 = vmatprep.subr.bf16.mxu0 0
        %6462 = vmatpush1.bf16.msra.mxu0 0
        %6463 = vmatprep.subr.bf16.mxu0 0
        %6464 = vmatpush1.bf16.msra.mxu0 0
        %6465 = vmatprep.subr.bf16.mxu0 0
        %6466 = vmatpush1.bf16.msra.mxu0 0
        %6467 = vmatprep.subr.bf16.mxu0 0
        %6468 = vmatpush1.bf16.msra.mxu0 0
        %6469 = vmatprep.subr.bf16.mxu0 0
        %6470 = vmatpush1.bf16.msra.mxu0 0
        %6471 = vmatprep.subr.bf16.mxu0 0
        %6472 = vmatpush1.bf16.msra.mxu0 0
        %6473 = vmatprep.subr.bf16.mxu0 0
        %6474 = vmatpush1.bf16.msra.mxu0 0
        %6475 = vmatprep.mubr.bf16.mxu0 0
        %6476 = vmatmul.mubr.bf16.gmra.mrb[0].mxu0 %v6115
        %v6477 = vpop.f32.mrb[0].mxu0
        %v6478 = vadd.f32 %v6437, %v6477
        %v6479 = vpop.f32.mrb[0].mxu0
        %v6480 = vpop.f32.mrb[0].mxu0
        %v6481 = vadd.f32 %v6440, %v6480
        %v6482 = vpop.f32.mrb[0].mxu0
        %6483 = vdwg.mxu0
        %vm6484 = vcmp.ge.f32.partialorder %v6478, 0.0
        %vm6485 = vcmp.ge.f32.partialorder %v6481, 0.0
        %v6486 = vmul.f32 %v6478, 0.2
        %v6487 = vmul.f32 %v6481, 0.2
        %v6488 = vsel %vm6484, %v6478, %v6486
        %v6489 = vsel %vm6485, %v6481, %v6487
        %s6490 = scalar_lea.vmem [#allocation6], 1600
        %v6491 = vld [vmem:[%s6490] sm:$0xf]
        %v6492 = vld [vmem:[%s6490 + $0x4] sm:$0xf]
        %v6493 = vld [vmem:[%s6490 + $0x8] sm:$0xf]
        %v6494 = vld [vmem:[%s6490 + $0xc] sm:$0xf]
        %v6495 = vld [vmem:[%s6490 + $0x10] sm:$0xf]
        %v6496 = vld [vmem:[%s6490 + $0x14] sm:$0xf]
        %v6497 = vld [vmem:[%s6490 + $0x18] sm:$0xf]
        %v6498 = vld [vmem:[%s6490 + $0x1c] sm:$0xf]
        %v6499 = vld [vmem:[%s6490 + $0x20] sm:$0xf]
        %v6500 = vld [vmem:[%s6490 + $0x24] sm:$0xf]
        %v6501 = vld [vmem:[%s6490 + $0x28] sm:$0xf]
        %v6502 = vld [vmem:[%s6490 + $0x2c] sm:$0xf]
        %v6503 = vld [vmem:[%s6490 + $0x30] sm:$0xf]
        %v6504 = vld [vmem:[%s6490 + $0x34] sm:$0xf]
        %v6505 = vld [vmem:[%s6490 + $0x38] sm:$0xf]
        %v6506 = vld [vmem:[%s6490 + $0x3c] sm:$0xf]
        %v6507 = vld [vmem:[%s6490 + $0x40] sm:$0xf]
        %v6508 = vld [vmem:[%s6490 + $0x44] sm:$0xf]
        %v6509 = vld [vmem:[%s6490 + $0x48] sm:$0xf]
        %v6510 = vld [vmem:[%s6490 + $0x4c] sm:$0xf]
        %v6511 = vld [vmem:[%s6490 + $0x50] sm:$0xf]
        %v6512 = vld [vmem:[%s6490 + $0x54] sm:$0xf]
        %v6513 = vld [vmem:[%s6490 + $0x58] sm:$0xf]
        %v6514 = vld [vmem:[%s6490 + $0x5c] sm:$0xf]
        %v6515 = vld [vmem:[%s6490 + $0x60] sm:$0xf]
        %v6516 = vld [vmem:[%s6490 + $0x64] sm:$0xf]
        %v6517 = vld [vmem:[%s6490 + $0x68] sm:$0xf]
        %v6518 = vld [vmem:[%s6490 + $0x6c] sm:$0xf]
        %v6519 = vld [vmem:[%s6490 + $0x70] sm:$0xf]
        %v6520 = vld [vmem:[%s6490 + $0x74] sm:$0xf]
        %v6521 = vld [vmem:[%s6490 + $0x78] sm:$0xf]
        %v6522 = vld [vmem:[%s6490 + $0x7c] sm:$0xf]
        %v6523 = vld [vmem:[%s6490 + $0x80] sm:$0xf]
        %v6524 = vld [vmem:[%s6490 + $0x84] sm:$0xf]
        %v6525 = vld [vmem:[%s6490 + $0x88] sm:$0xf]
        %v6526 = vld [vmem:[%s6490 + $0x8c] sm:$0xf]
        %v6527 = vld [vmem:[%s6490 + $0x90] sm:$0xf]
        %v6528 = vld [vmem:[%s6490 + $0x94] sm:$0xf]
        %v6529 = vld [vmem:[%s6490 + $0x98] sm:$0xf]
        %v6530 = vld [vmem:[%s6490 + $0x9c] sm:$0xf]
        %v6531 = vld [vmem:[%s6490 + $0xa0] sm:$0xf]
        %v6532 = vld [vmem:[%s6490 + $0xa4] sm:$0xf]
        %v6533 = vld [vmem:[%s6490 + $0xa8] sm:$0xf]
        %v6534 = vld [vmem:[%s6490 + $0xac] sm:$0xf]
        %v6535 = vld [vmem:[%s6490 + $0xb0] sm:$0xf]
        %v6536 = vld [vmem:[%s6490 + $0xb4] sm:$0xf]
        %v6537 = vld [vmem:[%s6490 + $0xb8] sm:$0xf]
        %v6538 = vld [vmem:[%s6490 + $0xbc] sm:$0xf]
        %v6539 = vld [vmem:[%s6490 + $0xc0] sm:$0xf]
        %v6540 = vld [vmem:[%s6490 + $0xc4] sm:$0xf]
        %v6541 = vld [vmem:[%s6490 + $0xc8] sm:$0xf]
        %v6542 = vld [vmem:[%s6490 + $0xcc] sm:$0xf]
        %v6543 = vld [vmem:[%s6490 + $0xd0] sm:$0xf]
        %v6544 = vld [vmem:[%s6490 + $0xd4] sm:$0xf]
        %v6545 = vld [vmem:[%s6490 + $0xd8] sm:$0xf]
        %v6546 = vld [vmem:[%s6490 + $0xdc] sm:$0xf]
        %v6547 = vld [vmem:[%s6490 + $0xe0] sm:$0xf]
        %v6548 = vld [vmem:[%s6490 + $0xe4] sm:$0xf]
        %v6549 = vld [vmem:[%s6490 + $0xe8] sm:$0xf]
        %v6550 = vld [vmem:[%s6490 + $0xec] sm:$0xf]
        %v6551 = vld [vmem:[%s6490 + $0xf0] sm:$0xf]
        %v6552 = vld [vmem:[%s6490 + $0xf4] sm:$0xf]
        %v6553 = vld [vmem:[%s6490 + $0xf8] sm:$0xf]
        %v6554 = vld [vmem:[%s6490 + $0xfc] sm:$0xf]
        %v6555 = vld [vmem:[%s6490 + $0x100] sm:$0xf]
        %v6556 = vld [vmem:[%s6490 + $0x104] sm:$0xf]
        %v6557 = vld [vmem:[%s6490 + $0x108] sm:$0xf]
        %v6558 = vld [vmem:[%s6490 + $0x10c] sm:$0xf]
        %v6559 = vld [vmem:[%s6490 + $0x110] sm:$0xf]
        %v6560 = vld [vmem:[%s6490 + $0x114] sm:$0xf]
        %v6561 = vld [vmem:[%s6490 + $0x118] sm:$0xf]
        %v6562 = vld [vmem:[%s6490 + $0x11c] sm:$0xf]
        %v6563 = vld [vmem:[%s6490 + $0x120] sm:$0xf]
        %v6564 = vld [vmem:[%s6490 + $0x124] sm:$0xf]
        %v6565 = vld [vmem:[%s6490 + $0x128] sm:$0xf]
        %v6566 = vld [vmem:[%s6490 + $0x12c] sm:$0xf]
        %v6567 = vld [vmem:[%s6490 + $0x130] sm:$0xf]
        %v6568 = vld [vmem:[%s6490 + $0x134] sm:$0xf]
        %v6569 = vld [vmem:[%s6490 + $0x138] sm:$0xf]
        %v6570 = vld [vmem:[%s6490 + $0x13c] sm:$0xf]
        %v6571 = vpack.c.bf16 %v6489, %v6488
        %v6573 = vrot.slane %v6571, 1
        %v6575 = vrot.slane %v6571, 7
        %v6576 = vrot.slane %v6571, 6
        %v6577 = vrot.slane %v6571, 5
        %v6579 = vsel %vm417, %v6573, %v6571
        %v6582 = vsel %vm419, %v6579, %v6575
        %v6585 = vsel %vm419, %v6575, %v6576
        %v6587 = vsel %vm426, %v6585, %v6577
        %v6588 = vshrl.u32 %v6582, 16
        %v6590 = vshll.u32 %v6582, 16
        %v6592 = vrot.slane %v6590, 1
        %v6593 = vor.u32 %v6588, %v6592
        %v6595 = vshll.u32 %v6587, 16
        %v6597 = vrot.slane %v6595, 1
        %v6598 = vsel %vm438, %v6593, %v6597
        %v6602 = vrot.slane %v6582, 1
        %v6603 = vrot.slane %v6587, 1
        %v6604 = vsel %vm454, %v6602, %v6603
        %v6606 = vrot.slane %v6588, 1
        %v6607 = vrot.slane %v6590, 2
        %v6608 = vor.u32 %v6606, %v6607
        %v6609 = vshrl.u32 %v6587, 16
        %v6611 = vrot.slane %v6609, 1
        %v6612 = vrot.slane %v6595, 2
        %v6613 = vor.u32 %v6611, %v6612
        %v6614 = vsel %vm459, %v6608, %v6613
        %v6616 = vrot.slane %v6582, 2
        %v6617 = vrot.slane %v6587, 2
        %v6618 = vsel %vm470, %v6616, %v6617
        %v6620 = vlaneseq
        %v6621 = vshrl.u32 %v6620, 7
        %v6622 = vsub.s32 5, %v6621
        %v6623 = vrot.slane %v3916, %v6622
        %v6704 = vunpack.c.l.b16 %v6491
        %v6705 = vunpack.c.l.b16 %v6492
        %v6706 = vunpack.c.l.b16 %v6493
        %v6707 = vunpack.c.l.b16 %v6494
        %v6708 = vunpack.c.l.b16 %v6495
        %v6709 = vunpack.c.l.b16 %v6496
        %v6710 = vunpack.c.l.b16 %v6497
        %v6711 = vunpack.c.l.b16 %v6498
        %v6712 = vunpack.c.l.b16 %v6499
        %v6713 = vunpack.c.l.b16 %v6500
        %v6714 = vunpack.c.l.b16 %v6501
        %v6715 = vunpack.c.l.b16 %v6502
        %v6716 = vunpack.c.l.b16 %v6503
        %v6717 = vunpack.c.l.b16 %v6504
        %v6718 = vunpack.c.l.b16 %v6505
        %v6719 = vunpack.c.l.b16 %v6506
        %v6720 = vunpack.c.l.b16 %v6507
        %v6721 = vunpack.c.l.b16 %v6508
        %v6722 = vunpack.c.l.b16 %v6509
        %v6723 = vunpack.c.l.b16 %v6510
        %v6724 = vunpack.c.l.b16 %v6511
        %v6725 = vunpack.c.l.b16 %v6512
        %v6726 = vunpack.c.l.b16 %v6513
        %v6727 = vunpack.c.l.b16 %v6514
        %v6728 = vunpack.c.l.b16 %v6515
        %v6729 = vunpack.c.l.b16 %v6516
        %v6730 = vunpack.c.l.b16 %v6517
        %v6731 = vunpack.c.l.b16 %v6518
        %v6732 = vunpack.c.l.b16 %v6519
        %v6733 = vunpack.c.l.b16 %v6520
        %v6734 = vunpack.c.l.b16 %v6521
        %v6735 = vunpack.c.l.b16 %v6522
        %v6736 = vunpack.c.l.b16 %v6523
        %v6737 = vunpack.c.l.b16 %v6524
        %v6738 = vunpack.c.l.b16 %v6525
        %v6739 = vunpack.c.l.b16 %v6526
        %v6740 = vunpack.c.l.b16 %v6527
        %v6741 = vunpack.c.l.b16 %v6528
        %v6742 = vunpack.c.l.b16 %v6529
        %v6743 = vunpack.c.l.b16 %v6530
        %v6744 = vunpack.c.l.b16 %v6531
        %v6745 = vunpack.c.l.b16 %v6532
        %v6746 = vunpack.c.l.b16 %v6533
        %v6747 = vunpack.c.l.b16 %v6534
        %v6748 = vunpack.c.l.b16 %v6535
        %v6749 = vunpack.c.l.b16 %v6536
        %v6750 = vunpack.c.l.b16 %v6537
        %v6751 = vunpack.c.l.b16 %v6538
        %v6752 = vunpack.c.l.b16 %v6539
        %v6753 = vunpack.c.l.b16 %v6540
        %v6754 = vunpack.c.l.b16 %v6541
        %v6755 = vunpack.c.l.b16 %v6542
        %v6756 = vunpack.c.l.b16 %v6543
        %v6757 = vunpack.c.l.b16 %v6544
        %v6758 = vunpack.c.l.b16 %v6545
        %v6759 = vunpack.c.l.b16 %v6546
        %v6760 = vunpack.c.l.b16 %v6547
        %v6761 = vunpack.c.l.b16 %v6548
        %v6762 = vunpack.c.l.b16 %v6549
        %v6763 = vunpack.c.l.b16 %v6550
        %v6764 = vunpack.c.l.b16 %v6551
        %v6765 = vunpack.c.l.b16 %v6552
        %v6766 = vunpack.c.l.b16 %v6553
        %v6767 = vunpack.c.l.b16 %v6554
        %v6768 = vunpack.c.l.b16 %v6555
        %v6769 = vunpack.c.l.b16 %v6556
        %v6770 = vunpack.c.l.b16 %v6557
        %v6771 = vunpack.c.l.b16 %v6558
        %v6772 = vunpack.c.l.b16 %v6559
        %v6773 = vunpack.c.l.b16 %v6560
        %v6774 = vunpack.c.l.b16 %v6561
        %v6775 = vunpack.c.l.b16 %v6562
        %v6776 = vunpack.c.l.b16 %v6563
        %v6777 = vunpack.c.l.b16 %v6564
        %v6778 = vunpack.c.l.b16 %v6565
        %v6779 = vunpack.c.l.b16 %v6566
        %v6780 = vunpack.c.l.b16 %v6567
        %v6781 = vunpack.c.l.b16 %v6568
        %v6782 = vunpack.c.l.b16 %v6569
        %v6783 = vunpack.c.l.b16 %v6570
        %v6784 = vpack.c.b16 %v6705, %v6704
        %v6785 = vpack.c.b16 %v6707, %v6706
        %v6786 = vpack.c.b16 %v6709, %v6708
        %v6787 = vpack.c.b16 %v6711, %v6710
        %v6788 = vpack.c.b16 %v6713, %v6712
        %v6789 = vpack.c.b16 %v6715, %v6714
        %v6790 = vpack.c.b16 %v6717, %v6716
        %v6791 = vpack.c.b16 %v6719, %v6718
        %v6792 = vpack.c.b16 %v6721, %v6720
        %v6793 = vpack.c.b16 %v6723, %v6722
        %v6794 = vpack.c.b16 %v6725, %v6724
        %v6795 = vpack.c.b16 %v6727, %v6726
        %v6796 = vpack.c.b16 %v6729, %v6728
        %v6797 = vpack.c.b16 %v6731, %v6730
        %v6798 = vpack.c.b16 %v6733, %v6732
        %v6799 = vpack.c.b16 %v6735, %v6734
        %v6800 = vpack.c.b16 %v6737, %v6736
        %v6801 = vpack.c.b16 %v6739, %v6738
        %v6802 = vpack.c.b16 %v6741, %v6740
        %v6803 = vpack.c.b16 %v6743, %v6742
        %v6804 = vpack.c.b16 %v6745, %v6744
        %v6805 = vpack.c.b16 %v6747, %v6746
        %v6806 = vpack.c.b16 %v6749, %v6748
        %v6807 = vpack.c.b16 %v6751, %v6750
        %v6808 = vpack.c.b16 %v6753, %v6752
        %v6809 = vpack.c.b16 %v6755, %v6754
        %v6810 = vpack.c.b16 %v6757, %v6756
        %v6811 = vpack.c.b16 %v6759, %v6758
        %v6812 = vpack.c.b16 %v6761, %v6760
        %v6813 = vpack.c.b16 %v6763, %v6762
        %v6814 = vpack.c.b16 %v6765, %v6764
        %v6815 = vpack.c.b16 %v6767, %v6766
        %v6816 = vpack.c.b16 %v6769, %v6768
        %v6817 = vpack.c.b16 %v6771, %v6770
        %v6818 = vpack.c.b16 %v6773, %v6772
        %v6819 = vpack.c.b16 %v6775, %v6774
        %v6820 = vpack.c.b16 %v6777, %v6776
        %v6821 = vpack.c.b16 %v6779, %v6778
        %v6822 = vpack.c.b16 %v6781, %v6780
        %v6823 = vpack.c.b16 %v6783, %v6782
        %6864 = vmatprep.subr.bf16.mxu0 0
        %6865 = vmatpush1.bf16.msra.mxu0 %v6784
        %6866 = vmatprep.subr.bf16.mxu0 0
        %6867 = vmatpush1.bf16.msra.mxu0 %v6785
        %6868 = vmatprep.subr.bf16.mxu0 0
        %6869 = vmatpush1.bf16.msra.mxu0 %v6786
        %6870 = vmatprep.subr.bf16.mxu0 0
        %6871 = vmatpush1.bf16.msra.mxu0 %v6787
        %6872 = vmatprep.subr.bf16.mxu0 0
        %6873 = vmatpush1.bf16.msra.mxu0 %v6788
        %6874 = vmatprep.subr.bf16.mxu0 0
        %6875 = vmatpush1.bf16.msra.mxu0 %v6789
        %6876 = vmatprep.subr.bf16.mxu0 0
        %6877 = vmatpush1.bf16.msra.mxu0 %v6790
        %6878 = vmatprep.subr.bf16.mxu0 0
        %6879 = vmatpush1.bf16.msra.mxu0 %v6791
        %6880 = vmatprep.subr.bf16.mxu0 0
        %6881 = vmatpush1.bf16.msra.mxu0 %v6792
        %6882 = vmatprep.subr.bf16.mxu0 0
        %6883 = vmatpush1.bf16.msra.mxu0 %v6793
        %6884 = vmatprep.subr.bf16.mxu0 0
        %6885 = vmatpush1.bf16.msra.mxu0 %v6794
        %6886 = vmatprep.subr.bf16.mxu0 0
        %6887 = vmatpush1.bf16.msra.mxu0 %v6795
        %6888 = vmatprep.subr.bf16.mxu0 0
        %6889 = vmatpush1.bf16.msra.mxu0 %v6796
        %6890 = vmatprep.subr.bf16.mxu0 0
        %6891 = vmatpush1.bf16.msra.mxu0 %v6797
        %6892 = vmatprep.subr.bf16.mxu0 0
        %6893 = vmatpush1.bf16.msra.mxu0 %v6798
        %6894 = vmatprep.subr.bf16.mxu0 0
        %6895 = vmatpush1.bf16.msra.mxu0 %v6799
        %6896 = vmatprep.mubr.bf16.mxu0 %v6598
        %6897 = vmatmul.mubr.bf16.gmra.mrb[0].mxu0 %v6582
        %v6898 = vpop.f32.mrb[0].mxu0
        %v6899 = vadd.f32 %v6623, %v6898
        %v6900 = vpop.f32.mrb[0].mxu0
        %v6901 = vpop.f32.mrb[0].mxu0
        %v6902 = vadd.f32 %v6623, %v6901
        %v6903 = vpop.f32.mrb[0].mxu0
        %6904 = vdwg.mxu0
        %6905 = vmatprep.subr.bf16.mxu0 0
        %6906 = vmatpush1.bf16.msra.mxu0 %v6800
        %6907 = vmatprep.subr.bf16.mxu0 0
        %6908 = vmatpush1.bf16.msra.mxu0 %v6801
        %6909 = vmatprep.subr.bf16.mxu0 0
        %6910 = vmatpush1.bf16.msra.mxu0 %v6802
        %6911 = vmatprep.subr.bf16.mxu0 0
        %6912 = vmatpush1.bf16.msra.mxu0 %v6803
        %6913 = vmatprep.subr.bf16.mxu0 0
        %6914 = vmatpush1.bf16.msra.mxu0 %v6804
        %6915 = vmatprep.subr.bf16.mxu0 0
        %6916 = vmatpush1.bf16.msra.mxu0 %v6805
        %6917 = vmatprep.subr.bf16.mxu0 0
        %6918 = vmatpush1.bf16.msra.mxu0 %v6806
        %6919 = vmatprep.subr.bf16.mxu0 0
        %6920 = vmatpush1.bf16.msra.mxu0 %v6807
        %6921 = vmatprep.subr.bf16.mxu0 0
        %6922 = vmatpush1.bf16.msra.mxu0 %v6808
        %6923 = vmatprep.subr.bf16.mxu0 0
        %6924 = vmatpush1.bf16.msra.mxu0 %v6809
        %6925 = vmatprep.subr.bf16.mxu0 0
        %6926 = vmatpush1.bf16.msra.mxu0 %v6810
        %6927 = vmatprep.subr.bf16.mxu0 0
        %6928 = vmatpush1.bf16.msra.mxu0 %v6811
        %6929 = vmatprep.subr.bf16.mxu0 0
        %6930 = vmatpush1.bf16.msra.mxu0 %v6812
        %6931 = vmatprep.subr.bf16.mxu0 0
        %6932 = vmatpush1.bf16.msra.mxu0 %v6813
        %6933 = vmatprep.subr.bf16.mxu0 0
        %6934 = vmatpush1.bf16.msra.mxu0 %v6814
        %6935 = vmatprep.subr.bf16.mxu0 0
        %6936 = vmatpush1.bf16.msra.mxu0 %v6815
        %6937 = vmatprep.mubr.bf16.mxu0 %v6614
        %6938 = vmatmul.mubr.bf16.gmra.mrb[0].mxu0 %v6604
        %v6939 = vpop.f32.mrb[0].mxu0
        %v6940 = vadd.f32 %v6899, %v6939
        %v6941 = vpop.f32.mrb[0].mxu0
        %v6942 = vpop.f32.mrb[0].mxu0
        %v6943 = vadd.f32 %v6902, %v6942
        %v6944 = vpop.f32.mrb[0].mxu0
        %6945 = vdwg.mxu0
        %6946 = vmatprep.subr.bf16.mxu0 0
        %6947 = vmatpush1.bf16.msra.mxu0 %v6816
        %6948 = vmatprep.subr.bf16.mxu0 0
        %6949 = vmatpush1.bf16.msra.mxu0 %v6817
        %6950 = vmatprep.subr.bf16.mxu0 0
        %6951 = vmatpush1.bf16.msra.mxu0 %v6818
        %6952 = vmatprep.subr.bf16.mxu0 0
        %6953 = vmatpush1.bf16.msra.mxu0 %v6819
        %6954 = vmatprep.subr.bf16.mxu0 0
        %6955 = vmatpush1.bf16.msra.mxu0 %v6820
        %6956 = vmatprep.subr.bf16.mxu0 0
        %6957 = vmatpush1.bf16.msra.mxu0 %v6821
        %6958 = vmatprep.subr.bf16.mxu0 0
        %6959 = vmatpush1.bf16.msra.mxu0 %v6822
        %6960 = vmatprep.subr.bf16.mxu0 0
        %6961 = vmatpush1.bf16.msra.mxu0 %v6823
        %6962 = vmatprep.subr.bf16.mxu0 0
        %6963 = vmatpush1.bf16.msra.mxu0 0
        %6964 = vmatprep.subr.bf16.mxu0 0
        %6965 = vmatpush1.bf16.msra.mxu0 0
        %6966 = vmatprep.subr.bf16.mxu0 0
        %6967 = vmatpush1.bf16.msra.mxu0 0
        %6968 = vmatprep.subr.bf16.mxu0 0
        %6969 = vmatpush1.bf16.msra.mxu0 0
        %6970 = vmatprep.subr.bf16.mxu0 0
        %6971 = vmatpush1.bf16.msra.mxu0 0
        %6972 = vmatprep.subr.bf16.mxu0 0
        %6973 = vmatpush1.bf16.msra.mxu0 0
        %6974 = vmatprep.subr.bf16.mxu0 0
        %6975 = vmatpush1.bf16.msra.mxu0 0
        %6976 = vmatprep.subr.bf16.mxu0 0
        %6977 = vmatpush1.bf16.msra.mxu0 0
        %6978 = vmatprep.mubr.bf16.mxu0 0
        %6979 = vmatmul.mubr.bf16.gmra.mrb[0].mxu0 %v6618
        %v6980 = vpop.f32.mrb[0].mxu0
        %v6981 = vadd.f32 %v6940, %v6980
        %v6982 = vpop.f32.mrb[0].mxu0
        %v6983 = vpop.f32.mrb[0].mxu0
        %v6984 = vadd.f32 %v6943, %v6983
        %v6985 = vpop.f32.mrb[0].mxu0
        %6986 = vdwg.mxu0
        %vm6987 = vcmp.ge.f32.partialorder %v6981, 0.0
        %vm6988 = vcmp.ge.f32.partialorder %v6984, 0.0
        %v6989 = vmul.f32 %v6981, 0.2
        %v6990 = vmul.f32 %v6984, 0.2
        %v6991 = vsel %vm6987, %v6981, %v6989
        %v6992 = vsel %vm6988, %v6984, %v6990
        %v6993 = vadd.f32 %v6991, %v6992
        %v6994 = vrot.slane %v6993, 4
        %v6995 = vadd.f32 %v6993, %v6994
        %v6996 = vrot.slane %v6995, 2
        %v6997 = vadd.f32 %v6995, %v6996
        %v6998 = vrot.slane %v6997, 1
        %v6999 = vadd.f32 %v6997, %v6998
        %v7000 = vmul.f32 %v6991, %v6991
        %v7001 = vmul.f32 %v6992, %v6992
        %v7002 = vadd.f32 %v7000, %v7001
        %v7003 = vrot.slane %v7002, 4
        %v7004 = vadd.f32 %v7002, %v7003
        %v7005 = vrot.slane %v7004, 2
        %v7006 = vadd.f32 %v7004, %v7005
        %v7007 = vrot.slane %v7006, 1
        %v7008 = vadd.f32 %v7006, %v7007
        %v7009 = vmul.f32 %v6999, 0.0625
        %v7010 = vmul.f32 %v7008, 0.0625
        %v7011 = vmul.f32 %v7009, %v7009
        %v7012 = vsub.f32 %v7010, %v7011
        %v7013 = vmax.f32 %v7012, 0.0
        %v7014 = vsub.f32 %v6991, %v7009
        %v7015 = vsub.f32 %v6992, %v7009
        %v7016 = vadd.f32 %v7013, 1e-05
        %v7017 = vrsqrt.pop %v7016
        %v7018 = vmul.f32 %v7014, %v7017
        %v7019 = vmul.f32 %v7015, %v7017
        %v7020 = vadd.f32 %v5985, %v7018
        %v7021 = vadd.f32 %v5986, %v7019
        %v7022 = vld [vmem:[#allocation7] sm:$0xf]
        %v7023 = vld [vmem:[#allocation7 + $0x4] sm:$0xf]
        %v7024 = vld [vmem:[#allocation7 + $0x8] sm:$0xf]
        %v7025 = vld [vmem:[#allocation7 + $0xc] sm:$0xf]
        %v7026 = vld [vmem:[#allocation7 + $0x10] sm:$0xf]
        %v7027 = vld [vmem:[#allocation7 + $0x14] sm:$0xf]
        %v7028 = vld [vmem:[#allocation7 + $0x18] sm:$0xf]
        %v7029 = vld [vmem:[#allocation7 + $0x1c] sm:$0xf]
        %v7030 = vld [vmem:[#allocation7 + $0x20] sm:$0xf]
        %v7031 = vld [vmem:[#allocation7 + $0x24] sm:$0xf]
        %v7032 = vld [vmem:[#allocation7 + $0x28] sm:$0xf]
        %v7033 = vld [vmem:[#allocation7 + $0x2c] sm:$0xf]
        %v7034 = vld [vmem:[#allocation7 + $0x30] sm:$0xf]
        %v7035 = vld [vmem:[#allocation7 + $0x34] sm:$0xf]
        %v7036 = vld [vmem:[#allocation7 + $0x38] sm:$0xf]
        %v7037 = vld [vmem:[#allocation7 + $0x3c] sm:$0xf]
        %v7038 = vpack.c.bf16 %v7021, %v7020
        %v7039 = vlaneseq
        %v7040 = vshrl.u32 %v7039, 7
        %v7041 = vsub.s32 0, %v7040
        %v7042 = vrot.slane %v3917, %v7041
        %v7059 = vunpack.c.l.b16 %v7022
        %v7060 = vunpack.c.l.b16 %v7023
        %v7061 = vunpack.c.l.b16 %v7024
        %v7062 = vunpack.c.l.b16 %v7025
        %v7063 = vunpack.c.l.b16 %v7026
        %v7064 = vunpack.c.l.b16 %v7027
        %v7065 = vunpack.c.l.b16 %v7028
        %v7066 = vunpack.c.l.b16 %v7029
        %v7067 = vunpack.c.l.b16 %v7030
        %v7068 = vunpack.c.l.b16 %v7031
        %v7069 = vunpack.c.l.b16 %v7032
        %v7070 = vunpack.c.l.b16 %v7033
        %v7071 = vunpack.c.l.b16 %v7034
        %v7072 = vunpack.c.l.b16 %v7035
        %v7073 = vunpack.c.l.b16 %v7036
        %v7074 = vunpack.c.l.b16 %v7037
        %v7075 = vpack.c.b16 %v7060, %v7059
        %v7076 = vpack.c.b16 %v7062, %v7061
        %v7077 = vpack.c.b16 %v7064, %v7063
        %v7078 = vpack.c.b16 %v7066, %v7065
        %v7079 = vpack.c.b16 %v7068, %v7067
        %v7080 = vpack.c.b16 %v7070, %v7069
        %v7081 = vpack.c.b16 %v7072, %v7071
        %v7082 = vpack.c.b16 %v7074, %v7073
        %7091 = vmatprep.subr.bf16.mxu0 0
        %7092 = vmatpush1.bf16.msra.mxu0 %v7075
        %7093 = vmatprep.subr.bf16.mxu0 0
        %7094 = vmatpush1.bf16.msra.mxu0 %v7076
        %7095 = vmatprep.subr.bf16.mxu0 0
        %7096 = vmatpush1.bf16.msra.mxu0 %v7077
        %7097 = vmatprep.subr.bf16.mxu0 0
        %7098 = vmatpush1.bf16.msra.mxu0 %v7078
        %7099 = vmatprep.subr.bf16.mxu0 0
        %7100 = vmatpush1.bf16.msra.mxu0 %v7079
        %7101 = vmatprep.subr.bf16.mxu0 0
        %7102 = vmatpush1.bf16.msra.mxu0 %v7080
        %7103 = vmatprep.subr.bf16.mxu0 0
        %7104 = vmatpush1.bf16.msra.mxu0 %v7081
        %7105 = vmatprep.subr.bf16.mxu0 0
        %7106 = vmatpush1.bf16.msra.mxu0 %v7082
        %7107 = vmatprep.subr.bf16.mxu0 0
        %7108 = vmatpush1.bf16.msra.mxu0 0
        %7109 = vmatprep.subr.bf16.mxu0 0
        %7110 = vmatpush1.bf16.msra.mxu0 0
        %7111 = vmatprep.subr.bf16.mxu0 0
        %7112 = vmatpush1.bf16.msra.mxu0 0
        %7113 = vmatprep.subr.bf16.mxu0 0
        %7114 = vmatpush1.bf16.msra.mxu0 0
        %7115 = vmatprep.subr.bf16.mxu0 0
        %7116 = vmatpush1.bf16.msra.mxu0 0
        %7117 = vmatprep.subr.bf16.mxu0 0
        %7118 = vmatpush1.bf16.msra.mxu0 0
        %7119 = vmatprep.subr.bf16.mxu0 0
        %7120 = vmatpush1.bf16.msra.mxu0 0
        %7121 = vmatprep.subr.bf16.mxu0 0
        %7122 = vmatpush1.bf16.msra.mxu0 0
        %7123 = vmatprep.mubr.bf16.mxu0 0
        %7124 = vmatmul.mubr.bf16.gmra.mrb[0].mxu0 %v7038
        %v7125 = vpop.f32.mrb[0].mxu0
        %v7126 = vadd.f32 %v7042, %v7125
        %v7127 = vpop.f32.mrb[0].mxu0
        %v7128 = vpop.f32.mrb[0].mxu0
        %v7129 = vadd.f32 %v7042, %v7128
        %v7130 = vpop.f32.mrb[0].mxu0
        %7131 = vdwg.mxu0
        %vm7132 = vcmp.ge.f32.partialorder %v7126, 0.0
        %vm7133 = vcmp.ge.f32.partialorder %v7129, 0.0
        %v7134 = vmul.f32 %v7126, 0.2
        %v7135 = vmul.f32 %v7129, 0.2
        %v7136 = vsel %vm7132, %v7126, %v7134
        %v7137 = vsel %vm7133, %v7129, %v7135
        %s7138 = scalar_lea.vmem [#allocation7], 64
        %v7139 = vld [vmem:[%s7138] sm:$0xf]
        %v7140 = vld [vmem:[%s7138 + $0x4] sm:$0xf]
        %v7141 = vld [vmem:[%s7138 + $0x8] sm:$0xf]
        %v7142 = vld [vmem:[%s7138 + $0xc] sm:$0xf]
        %v7143 = vld [vmem:[%s7138 + $0x10] sm:$0xf]
        %v7144 = vld [vmem:[%s7138 + $0x14] sm:$0xf]
        %v7145 = vld [vmem:[%s7138 + $0x18] sm:$0xf]
        %v7146 = vld [vmem:[%s7138 + $0x1c] sm:$0xf]
        %v7147 = vld [vmem:[%s7138 + $0x20] sm:$0xf]
        %v7148 = vld [vmem:[%s7138 + $0x24] sm:$0xf]
        %v7149 = vld [vmem:[%s7138 + $0x28] sm:$0xf]
        %v7150 = vld [vmem:[%s7138 + $0x2c] sm:$0xf]
        %v7151 = vld [vmem:[%s7138 + $0x30] sm:$0xf]
        %v7152 = vld [vmem:[%s7138 + $0x34] sm:$0xf]
        %v7153 = vld [vmem:[%s7138 + $0x38] sm:$0xf]
        %v7154 = vld [vmem:[%s7138 + $0x3c] sm:$0xf]
        %v7155 = vpack.c.bf16 %v7137, %v7136
        %v7156 = vlaneseq
        %v7157 = vshrl.u32 %v7156, 7
        %v7158 = vsub.s32 1, %v7157
        %v7159 = vrot.slane %v3917, %v7158
        %v7176 = vunpack.c.l.b16 %v7139
        %v7177 = vunpack.c.l.b16 %v7140
        %v7178 = vunpack.c.l.b16 %v7141
        %v7179 = vunpack.c.l.b16 %v7142
        %v7180 = vunpack.c.l.b16 %v7143
        %v7181 = vunpack.c.l.b16 %v7144
        %v7182 = vunpack.c.l.b16 %v7145
        %v7183 = vunpack.c.l.b16 %v7146
        %v7184 = vunpack.c.l.b16 %v7147
        %v7185 = vunpack.c.l.b16 %v7148
        %v7186 = vunpack.c.l.b16 %v7149
        %v7187 = vunpack.c.l.b16 %v7150
        %v7188 = vunpack.c.l.b16 %v7151
        %v7189 = vunpack.c.l.b16 %v7152
        %v7190 = vunpack.c.l.b16 %v7153
        %v7191 = vunpack.c.l.b16 %v7154
        %v7192 = vpack.c.b16 %v7177, %v7176
        %v7193 = vpack.c.b16 %v7179, %v7178
        %v7194 = vpack.c.b16 %v7181, %v7180
        %v7195 = vpack.c.b16 %v7183, %v7182
        %v7196 = vpack.c.b16 %v7185, %v7184
        %v7197 = vpack.c.b16 %v7187, %v7186
        %v7198 = vpack.c.b16 %v7189, %v7188
        %v7199 = vpack.c.b16 %v7191, %v7190
        %7208 = vmatprep.subr.bf16.mxu0 0
        %7209 = vmatpush1.bf16.msra.mxu0 %v7192
        %7210 = vmatprep.subr.bf16.mxu0 0
        %7211 = vmatpush1.bf16.msra.mxu0 %v7193
        %7212 = vmatprep.subr.bf16.mxu0 0
        %7213 = vmatpush1.bf16.msra.mxu0 %v7194
        %7214 = vmatprep.subr.bf16.mxu0 0
        %7215 = vmatpush1.bf16.msra.mxu0 %v7195
        %7216 = vmatprep.subr.bf16.mxu0 0
        %7217 = vmatpush1.bf16.msra.mxu0 %v7196
        %7218 = vmatprep.subr.bf16.mxu0 0
        %7219 = vmatpush1.bf16.msra.mxu0 %v7197
        %7220 = vmatprep.subr.bf16.mxu0 0
        %7221 = vmatpush1.bf16.msra.mxu0 %v7198
        %7222 = vmatprep.subr.bf16.mxu0 0
        %7223 = vmatpush1.bf16.msra.mxu0 %v7199
        %7224 = vmatprep.subr.bf16.mxu0 0
        %7225 = vmatpush1.bf16.msra.mxu0 0
        %7226 = vmatprep.subr.bf16.mxu0 0
        %7227 = vmatpush1.bf16.msra.mxu0 0
        %7228 = vmatprep.subr.bf16.mxu0 0
        %7229 = vmatpush1.bf16.msra.mxu0 0
        %7230 = vmatprep.subr.bf16.mxu0 0
        %7231 = vmatpush1.bf16.msra.mxu0 0
        %7232 = vmatprep.subr.bf16.mxu0 0
        %7233 = vmatpush1.bf16.msra.mxu0 0
        %7234 = vmatprep.subr.bf16.mxu0 0
        %7235 = vmatpush1.bf16.msra.mxu0 0
        %7236 = vmatprep.subr.bf16.mxu0 0
        %7237 = vmatpush1.bf16.msra.mxu0 0
        %7238 = vmatprep.subr.bf16.mxu0 0
        %7239 = vmatpush1.bf16.msra.mxu0 0
        %7240 = vmatprep.mubr.bf16.mxu0 0
        %7241 = vmatmul.mubr.bf16.gmra.mrb[0].mxu0 %v7155
        %v7242 = vpop.f32.mrb[0].mxu0
        %v7243 = vadd.f32 %v7159, %v7242
        %v7244 = vpop.f32.mrb[0].mxu0
        %v7245 = vpop.f32.mrb[0].mxu0
        %v7246 = vadd.f32 %v7159, %v7245
        %v7247 = vpop.f32.mrb[0].mxu0
        %7248 = vdwg.mxu0
        %vm7249 = vcmp.ge.f32.partialorder %v7243, 0.0
        %vm7250 = vcmp.ge.f32.partialorder %v7246, 0.0
        %v7251 = vmul.f32 %v7243, 0.2
        %v7252 = vmul.f32 %v7246, 0.2
        %v7253 = vsel %vm7249, %v7243, %v7251
        %v7254 = vsel %vm7250, %v7246, %v7252
        %v7255 = vadd.f32 %v7253, %v7254
        %v7256 = vrot.slane %v7255, 4
        %v7257 = vadd.f32 %v7255, %v7256
        %v7258 = vrot.slane %v7257, 2
        %v7259 = vadd.f32 %v7257, %v7258
        %v7260 = vrot.slane %v7259, 1
        %v7261 = vadd.f32 %v7259, %v7260
        %v7262 = vmul.f32 %v7253, %v7253
        %v7263 = vmul.f32 %v7254, %v7254
        %v7264 = vadd.f32 %v7262, %v7263
        %v7265 = vrot.slane %v7264, 4
        %v7266 = vadd.f32 %v7264, %v7265
        %v7267 = vrot.slane %v7266, 2
        %v7268 = vadd.f32 %v7266, %v7267
        %v7269 = vrot.slane %v7268, 1
        %v7270 = vadd.f32 %v7268, %v7269
        %v7271 = vmul.f32 %v7261, 0.0625
        %v7272 = vmul.f32 %v7270, 0.0625
        %v7273 = vmul.f32 %v7271, %v7271
        %v7274 = vsub.f32 %v7272, %v7273
        %v7275 = vmax.f32 %v7274, 0.0
        %v7276 = vsub.f32 %v7253, %v7271
        %v7277 = vsub.f32 %v7254, %v7271
        %v7278 = vadd.f32 %v7275, 1e-05
        %v7279 = vrsqrt.pop %v7278
        %v7280 = vmul.f32 %v7276, %v7279
        %v7281 = vmul.f32 %v7277, %v7279
        %v7282 = vadd.f32 %v7020, %v7280
        %v7283 = vadd.f32 %v7021, %v7281
        %s7284 = scalar_lea.vmem [#allocation7], 128
        %v7285 = vld [vmem:[%s7284] sm:$0xf]
        %v7286 = vld [vmem:[%s7284 + $0x4] sm:$0xf]
        %v7287 = vld [vmem:[%s7284 + $0x8] sm:$0xf]
        %v7288 = vld [vmem:[%s7284 + $0xc] sm:$0xf]
        %v7289 = vld [vmem:[%s7284 + $0x10] sm:$0xf]
        %v7290 = vld [vmem:[%s7284 + $0x14] sm:$0xf]
        %v7291 = vld [vmem:[%s7284 + $0x18] sm:$0xf]
        %v7292 = vld [vmem:[%s7284 + $0x1c] sm:$0xf]
        %v7293 = vld [vmem:[%s7284 + $0x20] sm:$0xf]
        %v7294 = vld [vmem:[%s7284 + $0x24] sm:$0xf]
        %v7295 = vld [vmem:[%s7284 + $0x28] sm:$0xf]
        %v7296 = vld [vmem:[%s7284 + $0x2c] sm:$0xf]
        %v7297 = vld [vmem:[%s7284 + $0x30] sm:$0xf]
        %v7298 = vld [vmem:[%s7284 + $0x34] sm:$0xf]
        %v7299 = vld [vmem:[%s7284 + $0x38] sm:$0xf]
        %v7300 = vld [vmem:[%s7284 + $0x3c] sm:$0xf]
        %v7301 = vpack.c.bf16 %v7283, %v7282
        %v7302 = vlaneseq
        %v7303 = vshrl.u32 %v7302, 7
        %v7304 = vsub.s32 2, %v7303
        %v7305 = vrot.slane %v3917, %v7304
        %v7322 = vunpack.c.l.b16 %v7285
        %v7323 = vunpack.c.l.b16 %v7286
        %v7324 = vunpack.c.l.b16 %v7287
        %v7325 = vunpack.c.l.b16 %v7288
        %v7326 = vunpack.c.l.b16 %v7289
        %v7327 = vunpack.c.l.b16 %v7290
        %v7328 = vunpack.c.l.b16 %v7291
        %v7329 = vunpack.c.l.b16 %v7292
        %v7330 = vunpack.c.l.b16 %v7293
        %v7331 = vunpack.c.l.b16 %v7294
        %v7332 = vunpack.c.l.b16 %v7295
        %v7333 = vunpack.c.l.b16 %v7296
        %v7334 = vunpack.c.l.b16 %v7297
        %v7335 = vunpack.c.l.b16 %v7298
        %v7336 = vunpack.c.l.b16 %v7299
        %v7337 = vunpack.c.l.b16 %v7300
        %v7338 = vpack.c.b16 %v7323, %v7322
        %v7339 = vpack.c.b16 %v7325, %v7324
        %v7340 = vpack.c.b16 %v7327, %v7326
        %v7341 = vpack.c.b16 %v7329, %v7328
        %v7342 = vpack.c.b16 %v7331, %v7330
        %v7343 = vpack.c.b16 %v7333, %v7332
        %v7344 = vpack.c.b16 %v7335, %v7334
        %v7345 = vpack.c.b16 %v7337, %v7336
        %7354 = vmatprep.subr.bf16.mxu0 0
        %7355 = vmatpush1.bf16.msra.mxu0 %v7338
        %7356 = vmatprep.subr.bf16.mxu0 0
        %7357 = vmatpush1.bf16.msra.mxu0 %v7339
        %7358 = vmatprep.subr.bf16.mxu0 0
        %7359 = vmatpush1.bf16.msra.mxu0 %v7340
        %7360 = vmatprep.subr.bf16.mxu0 0
        %7361 = vmatpush1.bf16.msra.mxu0 %v7341
        %7362 = vmatprep.subr.bf16.mxu0 0
        %7363 = vmatpush1.bf16.msra.mxu0 %v7342
        %7364 = vmatprep.subr.bf16.mxu0 0
        %7365 = vmatpush1.bf16.msra.mxu0 %v7343
        %7366 = vmatprep.subr.bf16.mxu0 0
        %7367 = vmatpush1.bf16.msra.mxu0 %v7344
        %7368 = vmatprep.subr.bf16.mxu0 0
        %7369 = vmatpush1.bf16.msra.mxu0 %v7345
        %7370 = vmatprep.subr.bf16.mxu0 0
        %7371 = vmatpush1.bf16.msra.mxu0 0
        %7372 = vmatprep.subr.bf16.mxu0 0
        %7373 = vmatpush1.bf16.msra.mxu0 0
        %7374 = vmatprep.subr.bf16.mxu0 0
        %7375 = vmatpush1.bf16.msra.mxu0 0
        %7376 = vmatprep.subr.bf16.mxu0 0
        %7377 = vmatpush1.bf16.msra.mxu0 0
        %7378 = vmatprep.subr.bf16.mxu0 0
        %7379 = vmatpush1.bf16.msra.mxu0 0
        %7380 = vmatprep.subr.bf16.mxu0 0
        %7381 = vmatpush1.bf16.msra.mxu0 0
        %7382 = vmatprep.subr.bf16.mxu0 0
        %7383 = vmatpush1.bf16.msra.mxu0 0
        %7384 = vmatprep.subr.bf16.mxu0 0
        %7385 = vmatpush1.bf16.msra.mxu0 0
        %7386 = vmatprep.mubr.bf16.mxu0 0
        %7387 = vmatmul.mubr.bf16.gmra.mrb[0].mxu0 %v7301
        %v7388 = vpop.f32.mrb[0].mxu0
        %v7389 = vadd.f32 %v7305, %v7388
        %v7390 = vpop.f32.mrb[0].mxu0
        %v7391 = vpop.f32.mrb[0].mxu0
        %v7392 = vadd.f32 %v7305, %v7391
        %v7393 = vpop.f32.mrb[0].mxu0
        %7394 = vdwg.mxu0
        %vm7395 = vcmp.ge.f32.partialorder %v7389, 0.0
        %vm7396 = vcmp.ge.f32.partialorder %v7392, 0.0
        %v7397 = vmul.f32 %v7389, 0.2
        %v7398 = vmul.f32 %v7392, 0.2
        %v7399 = vsel %vm7395, %v7389, %v7397
        %v7400 = vsel %vm7396, %v7392, %v7398
        %s7401 = scalar_lea.vmem [#allocation7], 192
        %v7402 = vld [vmem:[%s7401] sm:$0xf]
        %v7403 = vld [vmem:[%s7401 + $0x4] sm:$0xf]
        %v7404 = vld [vmem:[%s7401 + $0x8] sm:$0xf]
        %v7405 = vld [vmem:[%s7401 + $0xc] sm:$0xf]
        %v7406 = vld [vmem:[%s7401 + $0x10] sm:$0xf]
        %v7407 = vld [vmem:[%s7401 + $0x14] sm:$0xf]
        %v7408 = vld [vmem:[%s7401 + $0x18] sm:$0xf]
        %v7409 = vld [vmem:[%s7401 + $0x1c] sm:$0xf]
        %v7410 = vld [vmem:[%s7401 + $0x20] sm:$0xf]
        %v7411 = vld [vmem:[%s7401 + $0x24] sm:$0xf]
        %v7412 = vld [vmem:[%s7401 + $0x28] sm:$0xf]
        %v7413 = vld [vmem:[%s7401 + $0x2c] sm:$0xf]
        %v7414 = vld [vmem:[%s7401 + $0x30] sm:$0xf]
        %v7415 = vld [vmem:[%s7401 + $0x34] sm:$0xf]
        %v7416 = vld [vmem:[%s7401 + $0x38] sm:$0xf]
        %v7417 = vld [vmem:[%s7401 + $0x3c] sm:$0xf]
        %v7418 = vpack.c.bf16 %v7400, %v7399
        %v7419 = vlaneseq
        %v7420 = vshrl.u32 %v7419, 7
        %v7421 = vsub.s32 3, %v7420
        %v7422 = vrot.slane %v3917, %v7421
        %v7439 = vunpack.c.l.b16 %v7402
        %v7440 = vunpack.c.l.b16 %v7403
        %v7441 = vunpack.c.l.b16 %v7404
        %v7442 = vunpack.c.l.b16 %v7405
        %v7443 = vunpack.c.l.b16 %v7406
        %v7444 = vunpack.c.l.b16 %v7407
        %v7445 = vunpack.c.l.b16 %v7408
        %v7446 = vunpack.c.l.b16 %v7409
        %v7447 = vunpack.c.l.b16 %v7410
        %v7448 = vunpack.c.l.b16 %v7411
        %v7449 = vunpack.c.l.b16 %v7412
        %v7450 = vunpack.c.l.b16 %v7413
        %v7451 = vunpack.c.l.b16 %v7414
        %v7452 = vunpack.c.l.b16 %v7415
        %v7453 = vunpack.c.l.b16 %v7416
        %v7454 = vunpack.c.l.b16 %v7417
        %v7455 = vpack.c.b16 %v7440, %v7439
        %v7456 = vpack.c.b16 %v7442, %v7441
        %v7457 = vpack.c.b16 %v7444, %v7443
        %v7458 = vpack.c.b16 %v7446, %v7445
        %v7459 = vpack.c.b16 %v7448, %v7447
        %v7460 = vpack.c.b16 %v7450, %v7449
        %v7461 = vpack.c.b16 %v7452, %v7451
        %v7462 = vpack.c.b16 %v7454, %v7453
        %7471 = vmatprep.subr.bf16.mxu0 0
        %7472 = vmatpush1.bf16.msra.mxu0 %v7455
        %7473 = vmatprep.subr.bf16.mxu0 0
        %7474 = vmatpush1.bf16.msra.mxu0 %v7456
        %7475 = vmatprep.subr.bf16.mxu0 0
        %7476 = vmatpush1.bf16.msra.mxu0 %v7457
        %7477 = vmatprep.subr.bf16.mxu0 0
        %7478 = vmatpush1.bf16.msra.mxu0 %v7458
        %7479 = vmatprep.subr.bf16.mxu0 0
        %7480 = vmatpush1.bf16.msra.mxu0 %v7459
        %7481 = vmatprep.subr.bf16.mxu0 0
        %7482 = vmatpush1.bf16.msra.mxu0 %v7460
        %7483 = vmatprep.subr.bf16.mxu0 0
        %7484 = vmatpush1.bf16.msra.mxu0 %v7461
        %7485 = vmatprep.subr.bf16.mxu0 0
        %7486 = vmatpush1.bf16.msra.mxu0 %v7462
        %7487 = vmatprep.subr.bf16.mxu0 0
        %7488 = vmatpush1.bf16.msra.mxu0 0
        %7489 = vmatprep.subr.bf16.mxu0 0
        %7490 = vmatpush1.bf16.msra.mxu0 0
        %7491 = vmatprep.subr.bf16.mxu0 0
        %7492 = vmatpush1.bf16.msra.mxu0 0
        %7493 = vmatprep.subr.bf16.mxu0 0
        %7494 = vmatpush1.bf16.msra.mxu0 0
        %7495 = vmatprep.subr.bf16.mxu0 0
        %7496 = vmatpush1.bf16.msra.mxu0 0
        %7497 = vmatprep.subr.bf16.mxu0 0
        %7498 = vmatpush1.bf16.msra.mxu0 0
        %7499 = vmatprep.subr.bf16.mxu0 0
        %7500 = vmatpush1.bf16.msra.mxu0 0
        %7501 = vmatprep.subr.bf16.mxu0 0
        %7502 = vmatpush1.bf16.msra.mxu0 0
        %7503 = vmatprep.mubr.bf16.mxu0 0
        %7504 = vmatmul.mubr.bf16.gmra.mrb[0].mxu0 %v7418
        %v7505 = vpop.f32.mrb[0].mxu0
        %v7506 = vadd.f32 %v7422, %v7505
        %v7507 = vpop.f32.mrb[0].mxu0
        %v7508 = vpop.f32.mrb[0].mxu0
        %v7509 = vadd.f32 %v7422, %v7508
        %v7510 = vpop.f32.mrb[0].mxu0
        %7511 = vdwg.mxu0
        %vm7512 = vcmp.ge.f32.partialorder %v7506, 0.0
        %vm7513 = vcmp.ge.f32.partialorder %v7509, 0.0
        %v7514 = vmul.f32 %v7506, 0.2
        %v7515 = vmul.f32 %v7509, 0.2
        %v7516 = vsel %vm7512, %v7506, %v7514
        %v7517 = vsel %vm7513, %v7509, %v7515
        %v7518 = vadd.f32 %v7516, %v7517
        %v7519 = vrot.slane %v7518, 4
        %v7520 = vadd.f32 %v7518, %v7519
        %v7521 = vrot.slane %v7520, 2
        %v7522 = vadd.f32 %v7520, %v7521
        %v7523 = vrot.slane %v7522, 1
        %v7524 = vadd.f32 %v7522, %v7523
        %v7525 = vmul.f32 %v7516, %v7516
        %v7526 = vmul.f32 %v7517, %v7517
        %v7527 = vadd.f32 %v7525, %v7526
        %v7528 = vrot.slane %v7527, 4
        %v7529 = vadd.f32 %v7527, %v7528
        %v7530 = vrot.slane %v7529, 2
        %v7531 = vadd.f32 %v7529, %v7530
        %v7532 = vrot.slane %v7531, 1
        %v7533 = vadd.f32 %v7531, %v7532
        %v7534 = vmul.f32 %v7524, 0.0625
        %v7535 = vmul.f32 %v7533, 0.0625
        %v7536 = vmul.f32 %v7534, %v7534
        %v7537 = vsub.f32 %v7535, %v7536
        %v7538 = vmax.f32 %v7537, 0.0
        %v7539 = vsub.f32 %v7516, %v7534
        %v7540 = vsub.f32 %v7517, %v7534
        %v7541 = vadd.f32 %v7538, 1e-05
        %v7542 = vrsqrt.pop %v7541
        %v7543 = vmul.f32 %v7539, %v7542
        %v7544 = vmul.f32 %v7540, %v7542
        %v7545 = vadd.f32 %v7282, %v7543
        %v7546 = vadd.f32 %v7283, %v7544
        %v7547 = vpack.c.bf16 %v7546, %v7545
        %v7549 = vunpack.c.l.b16 %v7547
        %v7550 = vunpack.c.h.b16 %v7547
        %v7551 = vpack.c.b16 %v7549, %v7549
        %v7552 = vpack.c.b16 %v7550, %v7550
        %7555 = vst [vmem:[%s391] sm:$0xf] %v7551
        %7556 = vst [vmem:[%s391 + $0x4] sm:$0xf] %v7552
        %p7557 = scmp.lt.s32.totalorder %s23, 1
        %s7558 = scalar_select %p7557, %s23, 1
        %s7559 = smul.addr %s7558, 2
        %s7560 = smul.addr %s7559, 4
        %s7561 = scalar_lea.vmem %s9, %s7560
        // Predicated region
        $region73: #{encoder_forward.2} parent=55 // pred_check
          %p7562 = pneg %p235
        $region74: #{encoder_forward.2} parent=55 // pred_check_branch
          %7564 = sbr.rel (%p7562) target = $region76
        $region75: #{encoder_forward.2} parent=55 // pred_region
          _
        $region76: #{encoder_forward.2} parent=55 // pred_fallthru
          _
      $region56: #{encoder_forward.2} parent=5 // pred_fallthru
        _
      %p7565 = scmp.le.s32.totalorder 2, %s18
      // Predicated region
      $region77: #{encoder_forward.2} parent=5 // pred_check
        %p7566 = pneg %p7565
      $region78: #{encoder_forward.2} parent=5 // pred_check_branch
        %7568 = sbr.rel (%p7566) target = $region80
      $region79: #{encoder_forward.2} parent=5 // pred_region
        %s7569 = ssub.s32 %s18, 2
        // Predicated region
        $region81: #{encoder_forward.2} parent=79 // pred_check
          %p7570 = pneg %p241
        $region82: #{encoder_forward.2} parent=79 // pred_check_branch
          %7572 = sbr.rel (%p7570) target = $region84
        $region83: #{encoder_forward.2} parent=79 // pred_region
          %p7573 = scmp.lt.s32.totalorder %s24, 1
          %s7574 = scalar_select %p7573, %s24, 1
          %s7575 = smul.addr %s7574, 2
          %s7576 = smul.addr %s7575, 4
          %s7577 = scalar_lea.vmem %s9, %s7576
        $region84: #{encoder_forward.2} parent=79 // pred_fallthru
          _
      $region80: #{encoder_forward.2} parent=5 // pred_fallthru
        _
    $region6: #{encoder_forward.2} parent=1 // loop_footer
      %s22 = sadd.s32 1, %s18
    $region7: #{encoder_forward.2} parent=1 // loop_footer_branch
      %17 = sbr.rel target = $region3
    $region8: #{encoder_forward.2} parent=1 // loop_exit
      _
    %7578 = vsyncpa [#allocation3], 1
    %s7579 = scalar_lea.sflag [#allocation3], 1
    %7580 = vsyncpa %s7579, 1
    %7581 = vsyncpa [#allocation5], 1
    %7582 = vsyncpa [#allocation8], 1

</llo_original>
